<compile_context>
chip_gen: v7x
topology: tpu7x:2x2x1
jax: 0.10.0
libtpu: 0.0.40
codegen_flags: <defaults>
</compile_context>

<pallas_src>
import functools

import jax
import jax.numpy as jnp
import numpy as np
from jax.experimental import pallas as pl
from jax.experimental.pallas import tpu as pltpu

_HI = jax.lax.Precision.HIGHEST   # used only by the pure-JAX reference

# Per-image slab height: 70 input rows padded to a multiple of 8 so stacking images
# along sublanes keeps every row slice / merge tile aligned.
_ROWS = 72


def _shift_rows(a, k):
    """result[r, :] = a[r + k, :].  Rows wrapped from the top of the slab only land
    in per-image padding rows that never feed a valid output."""
    if k == 0:
        return a
    return jnp.concatenate([a[k:, :], a[:k, :]], axis=0)


# -----------------------------------------------------------------------------
# Fused kernel: conv1 -> pool -> conv2 -> pool -> flatten -> fc1 -> fc2 -> fc3,
# B images per grid step.
# -----------------------------------------------------------------------------
def _net_kernel(x_ref, w1_ref, b1_ref, e1_ref, o1_ref,
                w2_ref, b2_ref, e2_ref, o2_ref, s0_ref, s1_ref,
                fc1w_ref, fc1b_ref, fc2w_ref, fc2b_ref, fc3w_ref, fc3b_ref,
                out_ref, *, batch_block):
    bf16, f32 = jnp.bfloat16, jnp.float32

    def mm(a, b):   # bf16-in / f32-accumulate MXU matmul (no HIGHEST precision)
        return jnp.dot(a.astype(bf16), b.astype(bf16), preferred_element_type=f32)

    x = x_ref[...]                                             # (B*72, 70) f32

    # conv1 (1->6, 3x3 valid) + bias + relu as 3 row-shifted Toeplitz matmuls.
    c1 = (mm(x, w1_ref[0]) + mm(_shift_rows(x, 1), w1_ref[1])
          + mm(_shift_rows(x, 2), w1_ref[2]))
    c1 = jnp.maximum(c1 + b1_ref[...], 0.0)                    # (B*72, 6*68)

    # 2x2 max-pool #1: columns via even/odd one-hot selection matmuls + max,
    # rows via a sublane shift + max (output kept row-strided by 2).
    c1b = c1.astype(bf16)
    p1 = jnp.maximum(mm(c1b, e1_ref[...]), mm(c1b, o1_ref[...]))   # (B*72, 6*34)
    h1 = jnp.maximum(p1, _shift_rows(p1, 1))                       # valid @ even rows

    # conv2 (6->16, 3x3 valid) + bias + relu on the row-strided pool1 map
    # (row taps become shifts of 0 / 2 / 4).
    c2 = (mm(h1, w2_ref[0]) + mm(_shift_rows(h1, 2), w2_ref[1])
          + mm(_shift_rows(h1, 4), w2_ref[2]))
    c2 = jnp.maximum(c2 + b2_ref[...], 0.0)                    # (B*72, 16*32), rows stride 2

    # 2x2 max-pool #2: columns via even/odd selection matmuls; the row pairing AND
    # the per-image valid-row gather are fused into the S0/S1 selection matmuls,
    # producing a compact pool-row-major (16*B, 256) activation.
    c2b = c2.astype(bf16)
    f2 = jnp.maximum(mm(c2b, e2_ref[...]), mm(c2b, o2_ref[...]))   # (B*72, 16*16)
    f2b = f2.astype(bf16)
    g = jnp.maximum(mm(s0_ref[...], f2b), mm(s1_ref[...], f2b))    # (16*B, 256)

    # AdaptiveAvgPool2d(16) is an identity here (spatial is already 16x16).
    # TODO(synk): dropout(p=0.2) uses eval/inference semantics (identity).

    # Flatten: 16 pool-row blocks of B rows -> lane bands at 256-lane (tile aligned)
    # offsets; the torch CHW permutation is folded into the host-side fc1 repack.
    bb = batch_block
    feat = jnp.concatenate([g[r * bb:(r + 1) * bb, :] for r in range(16)], axis=1)  # (B, 4096)

    h = jnp.maximum(mm(feat, fc1w_ref[...]) + fc1b_ref[...], 0.0)  # (B, 128)
    h = jnp.maximum(mm(h, fc2w_ref[...]) + fc2b_ref[...], 0.0)     # (B, 128)
    out_ref[0] = mm(h, fc3w_ref[...]) + fc3b_ref[...]              # (B, 128); cols >= 2 zero


# -----------------------------------------------------------------------------
# Host-side parameter repacking (Toeplitz / selection matrices, fc padding).
# -----------------------------------------------------------------------------
def _pack_params(params, bb):
    """Repack parameters into the matrices the kernel consumes.  Host-side and cheap;
    in a real deployment this is done once and cached.
    NOTE: FC weights here follow the (in, out) convention; real nn.Linear weights
    are (out, in) and must be transposed when loading a checkpoint."""
    w1 = np.asarray(params["conv1_w"], np.float32)     # (6, 1, 3, 3)
    b1 = np.asarray(params["conv1_b"], np.float32)
    w2 = np.asarray(params["conv2_w"], np.float32)     # (16, 6, 3, 3)
    b2 = np.asarray(params["conv2_b"], np.float32)

    # conv1 as 3 Toeplitz matrices: 70 input cols -> 6 channels x 68 output cols.
    w1t = np.zeros((3, 70, 6 * 68), np.float32)
    b1w = np.zeros((1, 6 * 68), np.float32)
    for oc in range(6):
        b1w[0, oc * 68:(oc + 1) * 68] = b1[oc]
        for ki in range(3):
            for kj in range(3):
                for j in range(68):
                    w1t[ki, j + kj, oc * 68 + j] = w1[oc, 0, ki, kj]

    # pool1 even/odd column selectors: (6x68) -> (6x34).
    e1 = np.zeros((6 * 68, 6 * 34), np.float32)
    o1 = np.zeros_like(e1)
    for oc in range(6):
        for t in range(34):
            e1[oc * 68 + 2 * t, oc * 34 + t] = 1.0
            o1[oc * 68 + 2 * t + 1, oc * 34 + t] = 1.0

    # conv2 as 3 Toeplitz matrices: (6 ch x 34 cols) -> (16 ch x 32 cols).
    w2t = np.zeros((3, 6 * 34, 16 * 32), np.float32)
    b2w = np.zeros((1, 16 * 32), np.float32)
    for oc in range(16):
        b2w[0, oc * 32:(oc + 1) * 32] = b2[oc]
        for ic in range(6):
            for ki in range(3):
                for kj in range(3):
                    for j in range(32):
                        w2t[ki, ic * 34 + j + kj, oc * 32 + j] = w2[oc, ic, ki, kj]

    # pool2 even/odd column selectors: (16x32) -> (16x16).
    e2 = np.zeros((16 * 32, 16 * 16), np.float32)
    o2 = np.zeros_like(e2)
    for oc in range(16):
        for t in range(16):
            e2[oc * 32 + 2 * t, oc * 16 + t] = 1.0
            o2[oc * 32 + 2 * t + 1, oc * 16 + t] = 1.0

    # pool2 row pairing + per-image valid-row gather, pool-row-major:
    # output row r*B + b <- raw slab rows b*72 + 4r (S0) and b*72 + 4r + 2 (S1).
    s0 = np.zeros((16 * bb, _ROWS * bb), np.float32)
    s1 = np.zeros_like(s0)
    for r in range(16):
        for b in range(bb):
            s0[r * bb + b, b * _ROWS + 4 * r] = 1.0
            s1[r * bb + b, b * _ROWS + 4 * r + 2] = 1.0

    # fc1: permute rows from torch CHW order (c*256 + r*16 + t) to the kernel's
    # flatten order (r*256 + c*16 + t); zero-pad all FC outputs to 128 lanes.
    perm = np.empty((4096,), np.int64)
    for r in range(16):
        for c in range(16):
            for t in range(16):
                perm[r * 256 + c * 16 + t] = c * 256 + r * 16 + t
    fc1w = np.zeros((4096, 128), np.float32)
    fc1w[:, :120] = np.asarray(params["fc1_w"], np.float32)[perm, :]
    fc1b = np.zeros((1, 128), np.float32)
    fc1b[0, :120] = np.asarray(params["fc1_b"], np.float32)
    fc2w = np.zeros((128, 128), np.float32)
    fc2w[:120, :84] = np.asarray(params["fc2_w"], np.float32)
    fc2b = np.zeros((1, 128), np.float32)
    fc2b[0, :84] = np.asarray(params["fc2_b"], np.float32)
    fc3w = np.zeros((128, 128), np.float32)
    fc3w[:84, :2] = np.asarray(params["fc3_w"], np.float32)
    fc3b = np.zeros((1, 128), np.float32)
    fc3b[0, :2] = np.asarray(params["fc3_b"], np.float32)

    as_bf16 = lambda a: jnp.asarray(a, jnp.bfloat16)
    as_f32 = lambda a: jnp.asarray(a, jnp.float32)
    return dict(
        w1t=as_bf16(w1t), b1w=as_f32(b1w), e1=as_bf16(e1), o1=as_bf16(o1),
        w2t=as_bf16(w2t), b2w=as_f32(b2w), e2=as_bf16(e2), o2=as_bf16(o2),
        s0=as_bf16(s0), s1=as_bf16(s1),
        fc1w=as_bf16(fc1w), fc1b=as_f32(fc1b),
        fc2w=as_bf16(fc2w), fc2b=as_f32(fc2b),
        fc3w=as_bf16(fc3w), fc3b=as_f32(fc3b))


def _pick_block(n, max_block=8):
    """Images per grid step (tunable): large enough to feed the MXU, small enough to
    keep >= 2 'parallel' grid steps so both v7x TensorCores get work."""
    if n <= 1:
        return 1
    return max(1, min(max_block, n // 2))


# -----------------------------------------------------------------------------
# Wrapper: host repacking + the fused pallas_call.
# -----------------------------------------------------------------------------
def net_forward(x, params, *, block=None):
    n, cin, hin, win = x.shape
    assert (cin, hin, win) == (1, 70, 70), "fc1(4096) implies 1x70x70 inputs"
    bb = _pick_block(n) if block is None else block
    num_blocks = pl.cdiv(n, bb)
    n_pad = num_blocks * bb

    # Row-stacked 2-D slab: 72 rows per image (2 zero padding rows) so every image
    # boundary is sublane-tile aligned.
    xs = jnp.pad(x[:, 0], ((0, n_pad - n), (0, _ROWS - hin), (0, 0)))
    xs = xs.reshape(n_pad * _ROWS, win)

    p = _pack_params(params, bb)

    def full(shape):   # constant index map -> weight stays resident in VMEM
        nd = len(shape)
        return pl.BlockSpec(shape, lambda i: (0,) * nd)

    kernel = functools.partial(_net_kernel, batch_block=bb)
    out = pl.pallas_call(
        kernel,
        out_shape=jax.ShapeDtypeStruct((num_blocks, bb, 128), jnp.float32),
        grid=(num_blocks,),
        in_specs=[
            pl.BlockSpec((bb * _ROWS, win), lambda i: (i, 0)),
            full(p["w1t"].shape), full(p["b1w"].shape),
            full(p["e1"].shape), full(p["o1"].shape),
            full(p["w2t"].shape), full(p["b2w"].shape),
            full(p["e2"].shape), full(p["o2"].shape),
            full(p["s0"].shape), full(p["s1"].shape),
            full(p["fc1w"].shape), full(p["fc1b"].shape),
            full(p["fc2w"].shape), full(p["fc2b"].shape),
            full(p["fc3w"].shape), full(p["fc3b"].shape),
        ],
        out_specs=pl.BlockSpec((1, bb, 128), lambda i: (i, 0, 0)),
        compiler_params=pltpu.CompilerParams(
            dimension_semantics=("parallel",),
            vmem_limit_bytes=32 * 1024 * 1024),
    )(xs, p["w1t"], p["b1w"], p["e1"], p["o1"], p["w2t"], p["b2w"],
      p["e2"], p["o2"], p["s0"], p["s1"],
      p["fc1w"], p["fc1b"], p["fc2w"], p["fc2b"], p["fc3w"], p["fc3b"])

    return out.reshape(n_pad, 128)[:n, :2]


# -----------------------------------------------------------------------------
# Pure-JAX reference for correctness checking.
# -----------------------------------------------------------------------------
def reference_forward(x, params):
    def conv2d(v, w, b):
        y = jax.lax.conv_general_dilated(
            v, w, window_strides=(1, 1), padding="VALID",
            dimension_numbers=("NCHW", "OIHW", "NCHW"), precision=_HI)
        return y + b[None, :, None, None]

    def maxpool2(v):
        return jax.lax.reduce_window(v, -jnp.inf, jax.lax.max,
                                     (1, 1, 2, 2), (1, 1, 2, 2), "VALID")

    h = maxpool2(jax.nn.relu(conv2d(x, params["conv1_w"], params["conv1_b"])))
    h = maxpool2(jax.nn.relu(conv2d(h, params["conv2_w"], params["conv2_b"])))
    h = h.reshape(h.shape[0], -1)
    h = jax.nn.relu(jnp.dot(h, params["fc1_w"], precision=_HI) + params["fc1_b"])
    h = jax.nn.relu(jnp.dot(h, params["fc2_w"], precision=_HI) + params["fc2_b"])
    return jnp.dot(h, params["fc3_w"], precision=_HI) + params["fc3_b"]


if __name__ == "__main__":
    key = jax.random.PRNGKey(0)
    ks = jax.random.split(key, 16)

    def init(k, shape, fan_in):
        return jax.random.normal(k, shape, jnp.float32) / jnp.sqrt(jnp.float32(fan_in))

    # Deterministic synthetic parameters (shapes from Net.__init__).  Linear weights
    # are stored transposed, i.e. (in, out), for the kernel's x @ W layout.
    params = {
        "conv1_w": init(ks[1], (6, 1, 3, 3), 1 * 3 * 3),
        "conv1_b": init(ks[2], (6,), 1 * 3 * 3),
        "conv2_w": init(ks[3], (16, 6, 3, 3), 6 * 3 * 3),
        "conv2_b": init(ks[4], (16,), 6 * 3 * 3),
        "fc1_w": init(ks[5], (4096, 120), 4096),
        "fc1_b": init(ks[6], (120,), 4096),
        "fc2_w": init(ks[7], (120, 84), 120),
        "fc2_b": init(ks[8], (84,), 120),
        "fc3_w": init(ks[9], (84, 2), 84),
        "fc3_b": init(ks[10], (2,), 84),
    }

    N = 4                                            # -> 2 grid steps of 2 images
    x = jax.random.normal(ks[0], (N, 1, 70, 70), jnp.float32)   # NCHW

    out = jax.block_until_ready(net_forward(x, params))
    assert out.shape == (N, 2) and out.dtype == jnp.float32

    ref = jax.block_until_ready(reference_forward(x, params))
    # bf16 matmul inputs / f32 accumulation -> bf16-level tolerance.
    np.testing.assert_allclose(np.asarray(out), np.asarray(ref), rtol=2e-2, atol=2e-2)

    print("KERNEL_OK")
</pallas_src>

<mosaic_0001>
module attributes {stable_mosaic.version = 11 : i64} {
  func.func @_net_kernel(%arg0: i32, %arg1: memref<144x70xf32, #tpu.memory_space<vmem>>, %arg2: memref<3x70x408xbf16, #tpu.memory_space<vmem>>, %arg3: memref<1x408xf32, #tpu.memory_space<vmem>>, %arg4: memref<408x204xbf16, #tpu.memory_space<vmem>>, %arg5: memref<408x204xbf16, #tpu.memory_space<vmem>>, %arg6: memref<3x204x512xbf16, #tpu.memory_space<vmem>>, %arg7: memref<1x512xf32, #tpu.memory_space<vmem>>, %arg8: memref<512x256xbf16, #tpu.memory_space<vmem>>, %arg9: memref<512x256xbf16, #tpu.memory_space<vmem>>, %arg10: memref<32x144xbf16, #tpu.memory_space<vmem>>, %arg11: memref<32x144xbf16, #tpu.memory_space<vmem>>, %arg12: memref<4096x128xbf16, #tpu.memory_space<vmem>>, %arg13: memref<1x128xf32, #tpu.memory_space<vmem>>, %arg14: memref<128x128xbf16, #tpu.memory_space<vmem>>, %arg15: memref<1x128xf32, #tpu.memory_space<vmem>>, %arg16: memref<128x128xbf16, #tpu.memory_space<vmem>>, %arg17: memref<1x128xf32, #tpu.memory_space<vmem>>, %arg18: memref<1x2x128xf32, #tpu.memory_space<vmem>>) attributes {dimension_semantics = [#tpu.dimension_semantics<parallel>], iteration_bounds = array<i64: 2>, scalar_prefetch = 0 : i64, scratch_operands = 0 : i64, tpu.core_type = #tpu.core_type<tc>, window_params = [{transform_indices = @transform_0, window_bounds = array<i64: 144, 70>}, {pipeline_mode = #tpu.pipeline_mode<synchronous>, transform_indices = @transform_1, window_bounds = array<i64: 3, 70, 408>}, {pipeline_mode = #tpu.pipeline_mode<synchronous>, transform_indices = @transform_2, window_bounds = array<i64: 1, 408>}, {pipeline_mode = #tpu.pipeline_mode<synchronous>, transform_indices = @transform_3, window_bounds = array<i64: 408, 204>}, {pipeline_mode = #tpu.pipeline_mode<synchronous>, transform_indices = @transform_4, window_bounds = array<i64: 408, 204>}, {pipeline_mode = #tpu.pipeline_mode<synchronous>, transform_indices = @transform_5, window_bounds = array<i64: 3, 204, 512>}, {pipeline_mode = #tpu.pipeline_mode<synchronous>, transform_indices = @transform_6, window_bounds = array<i64: 1, 512>}, {pipeline_mode = #tpu.pipeline_mode<synchronous>, transform_indices = @transform_7, window_bounds = array<i64: 512, 256>}, {pipeline_mode = #tpu.pipeline_mode<synchronous>, transform_indices = @transform_8, window_bounds = array<i64: 512, 256>}, {pipeline_mode = #tpu.pipeline_mode<synchronous>, transform_indices = @transform_9, window_bounds = array<i64: 32, 144>}, {pipeline_mode = #tpu.pipeline_mode<synchronous>, transform_indices = @transform_10, window_bounds = array<i64: 32, 144>}, {pipeline_mode = #tpu.pipeline_mode<synchronous>, transform_indices = @transform_11, window_bounds = array<i64: 4096, 128>}, {pipeline_mode = #tpu.pipeline_mode<synchronous>, transform_indices = @transform_12, window_bounds = array<i64: 1, 128>}, {pipeline_mode = #tpu.pipeline_mode<synchronous>, transform_indices = @transform_13, window_bounds = array<i64: 128, 128>}, {pipeline_mode = #tpu.pipeline_mode<synchronous>, transform_indices = @transform_14, window_bounds = array<i64: 1, 128>}, {pipeline_mode = #tpu.pipeline_mode<synchronous>, transform_indices = @transform_15, window_bounds = array<i64: 128, 128>}, {pipeline_mode = #tpu.pipeline_mode<synchronous>, transform_indices = @transform_16, window_bounds = array<i64: 1, 128>}, {transform_indices = @transform_17, window_bounds = array<i64: 1, 2, 128>}]} {
    %c0 = arith.constant 0 : index
    %c0_0 = arith.constant 0 : index
    %0 = vector.load %arg1[%c0, %c0_0] : memref<144x70xf32, #tpu.memory_space<vmem>>, vector<144x70xf32>
    %c0_1 = arith.constant 0 : index
    %c0_2 = arith.constant 0 : index
    %c0_3 = arith.constant 0 : index
    %1 = vector.load %arg2[%c0_1, %c0_2, %c0_3] : memref<3x70x408xbf16, #tpu.memory_space<vmem>>, vector<1x70x408xbf16>
    %2 = vector.shape_cast %1 : vector<1x70x408xbf16> to vector<70x408xbf16>
    %3 = arith.truncf %0 : vector<144x70xf32> to vector<144x70xbf16>
    %cst = arith.constant dense<0.000000e+00> : vector<144x408xf32>
    %4 = tpu.matmul %3, %2, %cst {dimension_numbers = #tpu.dot_dimension_numbers<[1], [0], [0], [1], [0, 0, 1, 1], [], []>} : vector<144x70xbf16>, vector<70x408xbf16>, vector<144x408xf32> -> vector<144x408xf32>
    %5 = vector.extract_strided_slice %0 {offsets = [1, 0], sizes = [143, 70], strides = [1, 1]} : vector<144x70xf32> to vector<143x70xf32>
    %6 = vector.extract_strided_slice %0 {offsets = [0, 0], sizes = [1, 70], strides = [1, 1]} : vector<144x70xf32> to vector<1x70xf32>
    %7 = tpu.concatenate %5, %6 in 0 : vector<143x70xf32>, vector<1x70xf32> -> vector<144x70xf32>
    %c1 = arith.constant 1 : index
    %c0_4 = arith.constant 0 : index
    %c0_5 = arith.constant 0 : index
    %8 = vector.load %arg2[%c1, %c0_4, %c0_5] : memref<3x70x408xbf16, #tpu.memory_space<vmem>>, vector<1x70x408xbf16>
    %9 = vector.shape_cast %8 : vector<1x70x408xbf16> to vector<70x408xbf16>
    %10 = arith.truncf %7 : vector<144x70xf32> to vector<144x70xbf16>
    %cst_6 = arith.constant dense<0.000000e+00> : vector<144x408xf32>
    %11 = tpu.matmul %10, %9, %cst_6 {dimension_numbers = #tpu.dot_dimension_numbers<[1], [0], [0], [1], [0, 0, 1, 1], [], []>} : vector<144x70xbf16>, vector<70x408xbf16>, vector<144x408xf32> -> vector<144x408xf32>
    %12 = arith.addf %4, %11 : vector<144x408xf32>
    %13 = vector.extract_strided_slice %0 {offsets = [2, 0], sizes = [142, 70], strides = [1, 1]} : vector<144x70xf32> to vector<142x70xf32>
    %14 = vector.extract_strided_slice %0 {offsets = [0, 0], sizes = [2, 70], strides = [1, 1]} : vector<144x70xf32> to vector<2x70xf32>
    %15 = tpu.concatenate %13, %14 in 0 : vector<142x70xf32>, vector<2x70xf32> -> vector<144x70xf32>
    %c2 = arith.constant 2 : index
    %c0_7 = arith.constant 0 : index
    %c0_8 = arith.constant 0 : index
    %16 = vector.load %arg2[%c2, %c0_7, %c0_8] : memref<3x70x408xbf16, #tpu.memory_space<vmem>>, vector<1x70x408xbf16>
    %17 = vector.shape_cast %16 : vector<1x70x408xbf16> to vector<70x408xbf16>
    %18 = arith.truncf %15 : vector<144x70xf32> to vector<144x70xbf16>
    %cst_9 = arith.constant dense<0.000000e+00> : vector<144x408xf32>
    %19 = tpu.matmul %18, %17, %cst_9 {dimension_numbers = #tpu.dot_dimension_numbers<[1], [0], [0], [1], [0, 0, 1, 1], [], []>} : vector<144x70xbf16>, vector<70x408xbf16>, vector<144x408xf32> -> vector<144x408xf32>
    %20 = arith.addf %12, %19 : vector<144x408xf32>
    %c0_10 = arith.constant 0 : index
    %c0_11 = arith.constant 0 : index
    %21 = vector.load %arg3[%c0_10, %c0_11] : memref<1x408xf32, #tpu.memory_space<vmem>>, vector<1x408xf32>
    %22 = vector.broadcast %21 : vector<1x408xf32> to vector<144x408xf32>
    %23 = arith.addf %20, %22 : vector<144x408xf32>
    %cst_12 = arith.constant 0.000000e+00 : f32
    %24 = vector.broadcast %cst_12 : f32 to vector<144x408xf32>
    %25 = arith.maximumf %23, %24 : vector<144x408xf32>
    %26 = arith.truncf %25 : vector<144x408xf32> to vector<144x408xbf16>
    %c0_13 = arith.constant 0 : index
    %c0_14 = arith.constant 0 : index
    %27 = vector.load %arg4[%c0_13, %c0_14] : memref<408x204xbf16, #tpu.memory_space<vmem>>, vector<408x204xbf16>
    %cst_15 = arith.constant dense<0.000000e+00> : vector<144x204xf32>
    %28 = tpu.matmul %26, %27, %cst_15 {dimension_numbers = #tpu.dot_dimension_numbers<[1], [0], [0], [1], [0, 0, 1, 1], [], []>} : vector<144x408xbf16>, vector<408x204xbf16>, vector<144x204xf32> -> vector<144x204xf32>
    %c0_16 = arith.constant 0 : index
    %c0_17 = arith.constant 0 : index
    %29 = vector.load %arg5[%c0_16, %c0_17] : memref<408x204xbf16, #tpu.memory_space<vmem>>, vector<408x204xbf16>
    %cst_18 = arith.constant dense<0.000000e+00> : vector<144x204xf32>
    %30 = tpu.matmul %26, %29, %cst_18 {dimension_numbers = #tpu.dot_dimension_numbers<[1], [0], [0], [1], [0, 0, 1, 1], [], []>} : vector<144x408xbf16>, vector<408x204xbf16>, vector<144x204xf32> -> vector<144x204xf32>
    %31 = arith.maximumf %28, %30 : vector<144x204xf32>
    %32 = vector.extract_strided_slice %31 {offsets = [1, 0], sizes = [143, 204], strides = [1, 1]} : vector<144x204xf32> to vector<143x204xf32>
    %33 = vector.extract_strided_slice %31 {offsets = [0, 0], sizes = [1, 204], strides = [1, 1]} : vector<144x204xf32> to vector<1x204xf32>
    %34 = tpu.concatenate %32, %33 in 0 : vector<143x204xf32>, vector<1x204xf32> -> vector<144x204xf32>
    %35 = arith.maximumf %31, %34 : vector<144x204xf32>
    %c0_19 = arith.constant 0 : index
    %c0_20 = arith.constant 0 : index
    %c0_21 = arith.constant 0 : index
    %36 = vector.load %arg6[%c0_19, %c0_20, %c0_21] : memref<3x204x512xbf16, #tpu.memory_space<vmem>>, vector<1x204x512xbf16>
    %37 = vector.shape_cast %36 : vector<1x204x512xbf16> to vector<204x512xbf16>
    %38 = arith.truncf %35 : vector<144x204xf32> to vector<144x204xbf16>
    %cst_22 = arith.constant dense<0.000000e+00> : vector<144x512xf32>
    %39 = tpu.matmul %38, %37, %cst_22 {dimension_numbers = #tpu.dot_dimension_numbers<[1], [0], [0], [1], [0, 0, 1, 1], [], []>} : vector<144x204xbf16>, vector<204x512xbf16>, vector<144x512xf32> -> vector<144x512xf32>
    %40 = vector.extract_strided_slice %35 {offsets = [2, 0], sizes = [142, 204], strides = [1, 1]} : vector<144x204xf32> to vector<142x204xf32>
    %41 = vector.extract_strided_slice %35 {offsets = [0, 0], sizes = [2, 204], strides = [1, 1]} : vector<144x204xf32> to vector<2x204xf32>
    %42 = tpu.concatenate %40, %41 in 0 : vector<142x204xf32>, vector<2x204xf32> -> vector<144x204xf32>
    %c1_23 = arith.constant 1 : index
    %c0_24 = arith.constant 0 : index
    %c0_25 = arith.constant 0 : index
    %43 = vector.load %arg6[%c1_23, %c0_24, %c0_25] : memref<3x204x512xbf16, #tpu.memory_space<vmem>>, vector<1x204x512xbf16>
    %44 = vector.shape_cast %43 : vector<1x204x512xbf16> to vector<204x512xbf16>
    %45 = arith.truncf %42 : vector<144x204xf32> to vector<144x204xbf16>
    %cst_26 = arith.constant dense<0.000000e+00> : vector<144x512xf32>
    %46 = tpu.matmul %45, %44, %cst_26 {dimension_numbers = #tpu.dot_dimension_numbers<[1], [0], [0], [1], [0, 0, 1, 1], [], []>} : vector<144x204xbf16>, vector<204x512xbf16>, vector<144x512xf32> -> vector<144x512xf32>
    %47 = arith.addf %39, %46 : vector<144x512xf32>
    %48 = vector.extract_strided_slice %35 {offsets = [4, 0], sizes = [140, 204], strides = [1, 1]} : vector<144x204xf32> to vector<140x204xf32>
    %49 = vector.extract_strided_slice %35 {offsets = [0, 0], sizes = [4, 204], strides = [1, 1]} : vector<144x204xf32> to vector<4x204xf32>
    %50 = tpu.concatenate %48, %49 in 0 : vector<140x204xf32>, vector<4x204xf32> -> vector<144x204xf32>
    %c2_27 = arith.constant 2 : index
    %c0_28 = arith.constant 0 : index
    %c0_29 = arith.constant 0 : index
    %51 = vector.load %arg6[%c2_27, %c0_28, %c0_29] : memref<3x204x512xbf16, #tpu.memory_space<vmem>>, vector<1x204x512xbf16>
    %52 = vector.shape_cast %51 : vector<1x204x512xbf16> to vector<204x512xbf16>
    %53 = arith.truncf %50 : vector<144x204xf32> to vector<144x204xbf16>
    %cst_30 = arith.constant dense<0.000000e+00> : vector<144x512xf32>
    %54 = tpu.matmul %53, %52, %cst_30 {dimension_numbers = #tpu.dot_dimension_numbers<[1], [0], [0], [1], [0, 0, 1, 1], [], []>} : vector<144x204xbf16>, vector<204x512xbf16>, vector<144x512xf32> -> vector<144x512xf32>
    %55 = arith.addf %47, %54 : vector<144x512xf32>
    %c0_31 = arith.constant 0 : index
    %c0_32 = arith.constant 0 : index
    %56 = vector.load %arg7[%c0_31, %c0_32] : memref<1x512xf32, #tpu.memory_space<vmem>>, vector<1x512xf32>
    %57 = vector.broadcast %56 : vector<1x512xf32> to vector<144x512xf32>
    %58 = arith.addf %55, %57 : vector<144x512xf32>
    %cst_33 = arith.constant 0.000000e+00 : f32
    %59 = vector.broadcast %cst_33 : f32 to vector<144x512xf32>
    %60 = arith.maximumf %58, %59 : vector<144x512xf32>
    %61 = arith.truncf %60 : vector<144x512xf32> to vector<144x512xbf16>
    %c0_34 = arith.constant 0 : index
    %c0_35 = arith.constant 0 : index
    %62 = vector.load %arg8[%c0_34, %c0_35] : memref<512x256xbf16, #tpu.memory_space<vmem>>, vector<512x256xbf16>
    %cst_36 = arith.constant dense<0.000000e+00> : vector<144x256xf32>
    %63 = tpu.matmul %61, %62, %cst_36 {dimension_numbers = #tpu.dot_dimension_numbers<[1], [0], [0], [1], [0, 0, 1, 1], [], []>} : vector<144x512xbf16>, vector<512x256xbf16>, vector<144x256xf32> -> vector<144x256xf32>
    %c0_37 = arith.constant 0 : index
    %c0_38 = arith.constant 0 : index
    %64 = vector.load %arg9[%c0_37, %c0_38] : memref<512x256xbf16, #tpu.memory_space<vmem>>, vector<512x256xbf16>
    %cst_39 = arith.constant dense<0.000000e+00> : vector<144x256xf32>
    %65 = tpu.matmul %61, %64, %cst_39 {dimension_numbers = #tpu.dot_dimension_numbers<[1], [0], [0], [1], [0, 0, 1, 1], [], []>} : vector<144x512xbf16>, vector<512x256xbf16>, vector<144x256xf32> -> vector<144x256xf32>
    %66 = arith.maximumf %63, %65 : vector<144x256xf32>
    %67 = arith.truncf %66 : vector<144x256xf32> to vector<144x256xbf16>
    %c0_40 = arith.constant 0 : index
    %c0_41 = arith.constant 0 : index
    %68 = vector.load %arg10[%c0_40, %c0_41] : memref<32x144xbf16, #tpu.memory_space<vmem>>, vector<32x144xbf16>
    %cst_42 = arith.constant dense<0.000000e+00> : vector<32x256xf32>
    %69 = tpu.matmul %68, %67, %cst_42 {dimension_numbers = #tpu.dot_dimension_numbers<[1], [0], [0], [1], [0, 0, 1, 1], [], []>} : vector<32x144xbf16>, vector<144x256xbf16>, vector<32x256xf32> -> vector<32x256xf32>
    %c0_43 = arith.constant 0 : index
    %c0_44 = arith.constant 0 : index
    %70 = vector.load %arg11[%c0_43, %c0_44] : memref<32x144xbf16, #tpu.memory_space<vmem>>, vector<32x144xbf16>
    %cst_45 = arith.constant dense<0.000000e+00> : vector<32x256xf32>
    %71 = tpu.matmul %70, %67, %cst_45 {dimension_numbers = #tpu.dot_dimension_numbers<[1], [0], [0], [1], [0, 0, 1, 1], [], []>} : vector<32x144xbf16>, vector<144x256xbf16>, vector<32x256xf32> -> vector<32x256xf32>
    %72 = arith.maximumf %69, %71 : vector<32x256xf32>
    %73 = vector.extract_strided_slice %72 {offsets = [0, 0], sizes = [2, 256], strides = [1, 1]} : vector<32x256xf32> to vector<2x256xf32>
    %74 = vector.extract_strided_slice %72 {offsets = [2, 0], sizes = [2, 256], strides = [1, 1]} : vector<32x256xf32> to vector<2x256xf32>
    %75 = vector.extract_strided_slice %72 {offsets = [4, 0], sizes = [2, 256], strides = [1, 1]} : vector<32x256xf32> to vector<2x256xf32>
    %76 = vector.extract_strided_slice %72 {offsets = [6, 0], sizes = [2, 256], strides = [1, 1]} : vector<32x256xf32> to vector<2x256xf32>
    %77 = vector.extract_strided_slice %72 {offsets = [8, 0], sizes = [2, 256], strides = [1, 1]} : vector<32x256xf32> to vector<2x256xf32>
    %78 = vector.extract_strided_slice %72 {offsets = [10, 0], sizes = [2, 256], strides = [1, 1]} : vector<32x256xf32> to vector<2x256xf32>
    %79 = vector.extract_strided_slice %72 {offsets = [12, 0], sizes = [2, 256], strides = [1, 1]} : vector<32x256xf32> to vector<2x256xf32>
    %80 = vector.extract_strided_slice %72 {offsets = [14, 0], sizes = [2, 256], strides = [1, 1]} : vector<32x256xf32> to vector<2x256xf32>
    %81 = vector.extract_strided_slice %72 {offsets = [16, 0], sizes = [2, 256], strides = [1, 1]} : vector<32x256xf32> to vector<2x256xf32>
    %82 = vector.extract_strided_slice %72 {offsets = [18, 0], sizes = [2, 256], strides = [1, 1]} : vector<32x256xf32> to vector<2x256xf32>
    %83 = vector.extract_strided_slice %72 {offsets = [20, 0], sizes = [2, 256], strides = [1, 1]} : vector<32x256xf32> to vector<2x256xf32>
    %84 = vector.extract_strided_slice %72 {offsets = [22, 0], sizes = [2, 256], strides = [1, 1]} : vector<32x256xf32> to vector<2x256xf32>
    %85 = vector.extract_strided_slice %72 {offsets = [24, 0], sizes = [2, 256], strides = [1, 1]} : vector<32x256xf32> to vector<2x256xf32>
    %86 = vector.extract_strided_slice %72 {offsets = [26, 0], sizes = [2, 256], strides = [1, 1]} : vector<32x256xf32> to vector<2x256xf32>
    %87 = vector.extract_strided_slice %72 {offsets = [28, 0], sizes = [2, 256], strides = [1, 1]} : vector<32x256xf32> to vector<2x256xf32>
    %88 = vector.extract_strided_slice %72 {offsets = [30, 0], sizes = [2, 256], strides = [1, 1]} : vector<32x256xf32> to vector<2x256xf32>
    %89 = tpu.concatenate %73, %74, %75, %76, %77, %78, %79, %80, %81, %82, %83, %84, %85, %86, %87, %88 in 1 : vector<2x256xf32>, vector<2x256xf32>, vector<2x256xf32>, vector<2x256xf32>, vector<2x256xf32>, vector<2x256xf32>, vector<2x256xf32>, vector<2x256xf32>, vector<2x256xf32>, vector<2x256xf32>, vector<2x256xf32>, vector<2x256xf32>, vector<2x256xf32>, vector<2x256xf32>, vector<2x256xf32>, vector<2x256xf32> -> vector<2x4096xf32>
    %c0_46 = arith.constant 0 : index
    %c0_47 = arith.constant 0 : index
    %90 = vector.load %arg12[%c0_46, %c0_47] : memref<4096x128xbf16, #tpu.memory_space<vmem>>, vector<4096x128xbf16>
    %91 = arith.truncf %89 : vector<2x4096xf32> to vector<2x4096xbf16>
    %cst_48 = arith.constant dense<0.000000e+00> : vector<2x128xf32>
    %92 = tpu.matmul %91, %90, %cst_48 {dimension_numbers = #tpu.dot_dimension_numbers<[1], [0], [0], [1], [0, 0, 1, 1], [], []>} : vector<2x4096xbf16>, vector<4096x128xbf16>, vector<2x128xf32> -> vector<2x128xf32>
    %c0_49 = arith.constant 0 : index
    %c0_50 = arith.constant 0 : index
    %93 = vector.load %arg13[%c0_49, %c0_50] : memref<1x128xf32, #tpu.memory_space<vmem>>, vector<1x128xf32>
    %94 = vector.broadcast %93 : vector<1x128xf32> to vector<2x128xf32>
    %95 = arith.addf %92, %94 : vector<2x128xf32>
    %cst_51 = arith.constant 0.000000e+00 : f32
    %96 = vector.broadcast %cst_51 : f32 to vector<2x128xf32>
    %97 = arith.maximumf %95, %96 : vector<2x128xf32>
    %c0_52 = arith.constant 0 : index
    %c0_53 = arith.constant 0 : index
    %98 = vector.load %arg14[%c0_52, %c0_53] : memref<128x128xbf16, #tpu.memory_space<vmem>>, vector<128x128xbf16>
    %99 = arith.truncf %97 : vector<2x128xf32> to vector<2x128xbf16>
    %cst_54 = arith.constant dense<0.000000e+00> : vector<2x128xf32>
    %100 = tpu.matmul %99, %98, %cst_54 {dimension_numbers = #tpu.dot_dimension_numbers<[1], [0], [0], [1], [0, 0, 1, 1], [], []>} : vector<2x128xbf16>, vector<128x128xbf16>, vector<2x128xf32> -> vector<2x128xf32>
    %c0_55 = arith.constant 0 : index
    %c0_56 = arith.constant 0 : index
    %101 = vector.load %arg15[%c0_55, %c0_56] : memref<1x128xf32, #tpu.memory_space<vmem>>, vector<1x128xf32>
    %102 = vector.broadcast %101 : vector<1x128xf32> to vector<2x128xf32>
    %103 = arith.addf %100, %102 : vector<2x128xf32>
    %cst_57 = arith.constant 0.000000e+00 : f32
    %104 = vector.broadcast %cst_57 : f32 to vector<2x128xf32>
    %105 = arith.maximumf %103, %104 : vector<2x128xf32>
    %c0_58 = arith.constant 0 : index
    %c0_59 = arith.constant 0 : index
    %106 = vector.load %arg16[%c0_58, %c0_59] : memref<128x128xbf16, #tpu.memory_space<vmem>>, vector<128x128xbf16>
    %107 = arith.truncf %105 : vector<2x128xf32> to vector<2x128xbf16>
    %cst_60 = arith.constant dense<0.000000e+00> : vector<2x128xf32>
    %108 = tpu.matmul %107, %106, %cst_60 {dimension_numbers = #tpu.dot_dimension_numbers<[1], [0], [0], [1], [0, 0, 1, 1], [], []>} : vector<2x128xbf16>, vector<128x128xbf16>, vector<2x128xf32> -> vector<2x128xf32>
    %c0_61 = arith.constant 0 : index
    %c0_62 = arith.constant 0 : index
    %109 = vector.load %arg17[%c0_61, %c0_62] : memref<1x128xf32, #tpu.memory_space<vmem>>, vector<1x128xf32>
    %110 = vector.broadcast %109 : vector<1x128xf32> to vector<2x128xf32>
    %111 = arith.addf %108, %110 : vector<2x128xf32>
    %c0_63 = arith.constant 0 : index
    %c0_64 = arith.constant 0 : index
    %c0_65 = arith.constant 0 : index
    %112 = vector.load %arg18[%c0_63, %c0_64, %c0_65] : memref<1x2x128xf32, #tpu.memory_space<vmem>>, vector<1x2x128xf32>
    %113 = vector.shape_cast %112 : vector<1x2x128xf32> to vector<2x128xf32>
    %114 = vector.shape_cast %111 : vector<2x128xf32> to vector<1x2x128xf32>
    tpu.vector_store %arg18[%c0_63, %c0_64, %c0_65], %114 {strides = array<i32>} : memref<1x2x128xf32, #tpu.memory_space<vmem>>, vector<1x2x128xf32>,
    return
  }
  func.func @transform_0(%arg0: i32) -> (i32, i32) {
    %c0_i32 = arith.constant 0 : i32
    %c0_i32_0 = arith.constant 0 : i32
    return %arg0, %c0_i32 : i32, i32
  }
  func.func @transform_1(%arg0: i32) -> (i32, i32, i32) {
    %c0_i32 = arith.constant 0 : i32
    %c0_i32_0 = arith.constant 0 : i32
    %c0_i32_1 = arith.constant 0 : i32
    %c0_i32_2 = arith.constant 0 : i32
    return %c0_i32, %c0_i32_0, %c0_i32_1 : i32, i32, i32
  }
  func.func @transform_2(%arg0: i32) -> (i32, i32) {
    %c0_i32 = arith.constant 0 : i32
    %c0_i32_0 = arith.constant 0 : i32
    %c0_i32_1 = arith.constant 0 : i32
    return %c0_i32, %c0_i32_0 : i32, i32
  }
  func.func @transform_3(%arg0: i32) -> (i32, i32) {
    %c0_i32 = arith.constant 0 : i32
    %c0_i32_0 = arith.constant 0 : i32
    %c0_i32_1 = arith.constant 0 : i32
    return %c0_i32, %c0_i32_0 : i32, i32
  }
  func.func @transform_4(%arg0: i32) -> (i32, i32) {
    %c0_i32 = arith.constant 0 : i32
    %c0_i32_0 = arith.constant 0 : i32
    %c0_i32_1 = arith.constant 0 : i32
    return %c0_i32, %c0_i32_0 : i32, i32
  }
  func.func @transform_5(%arg0: i32) -> (i32, i32, i32) {
    %c0_i32 = arith.constant 0 : i32
    %c0_i32_0 = arith.constant 0 : i32
    %c0_i32_1 = arith.constant 0 : i32
    %c0_i32_2 = arith.constant 0 : i32
    return %c0_i32, %c0_i32_0, %c0_i32_1 : i32, i32, i32
  }
  func.func @transform_6(%arg0: i32) -> (i32, i32) {
    %c0_i32 = arith.constant 0 : i32
    %c0_i32_0 = arith.constant 0 : i32
    %c0_i32_1 = arith.constant 0 : i32
    return %c0_i32, %c0_i32_0 : i32, i32
  }
  func.func @transform_7(%arg0: i32) -> (i32, i32) {
    %c0_i32 = arith.constant 0 : i32
    %c0_i32_0 = arith.constant 0 : i32
    %c0_i32_1 = arith.constant 0 : i32
    return %c0_i32, %c0_i32_0 : i32, i32
  }
  func.func @transform_8(%arg0: i32) -> (i32, i32) {
    %c0_i32 = arith.constant 0 : i32
    %c0_i32_0 = arith.constant 0 : i32
    %c0_i32_1 = arith.constant 0 : i32
    return %c0_i32, %c0_i32_0 : i32, i32
  }
  func.func @transform_9(%arg0: i32) -> (i32, i32) {
    %c0_i32 = arith.constant 0 : i32
    %c0_i32_0 = arith.constant 0 : i32
    %c0_i32_1 = arith.constant 0 : i32
    return %c0_i32, %c0_i32_0 : i32, i32
  }
  func.func @transform_10(%arg0: i32) -> (i32, i32) {
    %c0_i32 = arith.constant 0 : i32
    %c0_i32_0 = arith.constant 0 : i32
    %c0_i32_1 = arith.constant 0 : i32
    return %c0_i32, %c0_i32_0 : i32, i32
  }
  func.func @transform_11(%arg0: i32) -> (i32, i32) {
    %c0_i32 = arith.constant 0 : i32
    %c0_i32_0 = arith.constant 0 : i32
    %c0_i32_1 = arith.constant 0 : i32
    return %c0_i32, %c0_i32_0 : i32, i32
  }
  func.func @transform_12(%arg0: i32) -> (i32, i32) {
    %c0_i32 = arith.constant 0 : i32
    %c0_i32_0 = arith.constant 0 : i32
    %c0_i32_1 = arith.constant 0 : i32
    return %c0_i32, %c0_i32_0 : i32, i32
  }
  func.func @transform_13(%arg0: i32) -> (i32, i32) {
    %c0_i32 = arith.constant 0 : i32
    %c0_i32_0 = arith.constant 0 : i32
    %c0_i32_1 = arith.constant 0 : i32
    return %c0_i32, %c0_i32_0 : i32, i32
  }
  func.func @transform_14(%arg0: i32) -> (i32, i32) {
    %c0_i32 = arith.constant 0 : i32
    %c0_i32_0 = arith.constant 0 : i32
    %c0_i32_1 = arith.constant 0 : i32
    return %c0_i32, %c0_i32_0 : i32, i32
  }
  func.func @transform_15(%arg0: i32) -> (i32, i32) {
    %c0_i32 = arith.constant 0 : i32
    %c0_i32_0 = arith.constant 0 : i32
    %c0_i32_1 = arith.constant 0 : i32
    return %c0_i32, %c0_i32_0 : i32, i32
  }
  func.func @transform_16(%arg0: i32) -> (i32, i32) {
    %c0_i32 = arith.constant 0 : i32
    %c0_i32_0 = arith.constant 0 : i32
    %c0_i32_1 = arith.constant 0 : i32
    return %c0_i32, %c0_i32_0 : i32, i32
  }
  func.func @transform_17(%arg0: i32) -> (i32, i32, i32) {
    %c0_i32 = arith.constant 0 : i32
    %c0_i32_0 = arith.constant 0 : i32
    %c0_i32_1 = arith.constant 0 : i32
    return %arg0, %c0_i32, %c0_i32_0 : i32, i32, i32
  }
}

</mosaic_0001>

<llo_original>
// kernel: tpu_custom_call.1
$region0: #{tpu_custom_call.1}
  #allocation0 [shape = 'u32[]', space=smem, size = 0x4, offset = 0x4, fixed_abs, tag = 'smem constant byte address 0x4 - core index']
  #allocation1 [shape = 'u32[144,128]{1,0:T(1,128)}', space=vmem, size = 0x12000, scoped, tag = 'internal scratch']
  %s0 = inlined_call_operand.vmem [shape: f32[288,70], index: 0, kind: input, shape index: {}]
  %s1 = inlined_call_operand.hbm [shape: bf16[3,70,408], index: 1, kind: input, shape index: {}]
  %s2 = inlined_call_operand.vmem [shape: f32[1,408], index: 2, kind: input, shape index: {}]
  %s3 = inlined_call_operand.hbm [shape: bf16[408,204], index: 3, kind: input, shape index: {}]
  %s4 = inlined_call_operand.hbm [shape: bf16[408,204], index: 4, kind: input, shape index: {}]
  %s5 = inlined_call_operand.hbm [shape: bf16[3,204,512], index: 5, kind: input, shape index: {}]
  %s6 = inlined_call_operand.vmem [shape: f32[1,512], index: 6, kind: input, shape index: {}]
  %s7 = inlined_call_operand.vmem [shape: bf16[512,256], index: 7, kind: input, shape index: {}]
  %s8 = inlined_call_operand.hbm [shape: bf16[512,256], index: 8, kind: input, shape index: {}]
  %s9 = inlined_call_operand.hbm [shape: bf16[32,144], index: 9, kind: input, shape index: {}]
  %s10 = inlined_call_operand.hbm [shape: bf16[32,144], index: 10, kind: input, shape index: {}]
  %s11 = inlined_call_operand.hbm [shape: bf16[4096,128], index: 11, kind: input, shape index: {}]
  %s12 = inlined_call_operand.vmem [shape: f32[1,128], index: 12, kind: input, shape index: {}]
  %s13 = inlined_call_operand.hbm [shape: bf16[128,128], index: 13, kind: input, shape index: {}]
  %s14 = inlined_call_operand.vmem [shape: f32[1,128], index: 14, kind: input, shape index: {}]
  %s15 = inlined_call_operand.hbm [shape: bf16[128,128], index: 15, kind: input, shape index: {}]
  %s16 = inlined_call_operand.vmem [shape: f32[1,128], index: 16, kind: input, shape index: {}]
  %s17 = inlined_call_operand.hbm [shape: f32[2,2,128], index: 17, kind: output, shape index: {}]
  %s18 = sld [smem:[#allocation0]]
  $region141: #{tpu_custom_call.1} parent=0
    _
  %s20 = ssub.s32 1, %s18
  %s21 = scalar_select 0, %s20, %s18
  $region1: #{tpu_custom_call.1} parent=0
    #allocation2 [shape = 'u8[221184]{0}', space=vmem, size = 0x36000, scoped, tag = 'input window, operand 1, single buffered']
    #allocation3 [shape = 's32[2]{0}', space=sflag, size = 0x8, scoped, tag = 'scoped memory for tpu_custom_call.1']
    #allocation4 [shape = 's32[2]{0}', space=sflag, size = 0x8, scoped, tag = 'scoped memory for tpu_custom_call.1']
    #allocation5 [shape = 'u8[208896]{0}', space=vmem, size = 0x33000, scoped, tag = 'input window, operand 3, single buffered']
    #allocation6 [shape = 's32[1]{0}', space=sflag, size = 0x4, scoped, tag = 'scoped memory for tpu_custom_call.1']
    #allocation7 [shape = 'u8[208896]{0}', space=vmem, size = 0x33000, scoped, tag = 'input window, operand 4, single buffered']
    #allocation8 [shape = 'u8[638976]{0}', space=vmem, size = 0x9c000, scoped, tag = 'input window, operand 5, single buffered']
    #allocation9 [shape = 's32[1]{0}', space=sflag, size = 0x4, scoped, tag = 'scoped memory for tpu_custom_call.1']
    #allocation10 [shape = 'u8[262144]{0}', space=vmem, size = 0x40000, scoped, tag = 'input window, operand 8, single buffered']
    #allocation11 [shape = 'u8[16384]{0}', space=vmem, size = 0x4000, scoped, tag = 'input window, operand 9, single buffered']
    #allocation12 [shape = 's32[1]{0}', space=sflag, size = 0x4, scoped, tag = 'scoped memory for tpu_custom_call.1']
    #allocation13 [shape = 'u8[16384]{0}', space=vmem, size = 0x4000, scoped, tag = 'input window, operand 10, single buffered']
    #allocation14 [shape = 'u8[1048576]{0}', space=vmem, size = 0x100000, scoped, tag = 'input window, operand 11, single buffered']
    #allocation15 [shape = 's32[1]{0}', space=sflag, size = 0x4, scoped, tag = 'scoped memory for tpu_custom_call.1']
    #allocation16 [shape = 'u8[32768]{0}', space=vmem, size = 0x8000, scoped, tag = 'input window, operand 13, single buffered']
    #allocation17 [shape = 'u8[32768]{0}', space=vmem, size = 0x8000, scoped, tag = 'input window, operand 15, single buffered']
    #allocation18 [shape = 's32[1]{0}', space=sflag, size = 0x4, scoped, tag = 'scoped memory for tpu_custom_call.1']
    #allocation19 [shape = 'u8[2048]{0}', space=vmem, size = 0x800, scoped, tag = 'output window, operand 0']
    %22 = vsyncpa [#allocation3], 0
    %23 = vsyncpa [#allocation6], 0
    %24 = vsyncpa [#allocation9], 0
    %25 = vsyncpa [#allocation12], 0
    %26 = vsyncpa [#allocation15], 0
    %27 = vsyncpa [#allocation18], 0
    %28 = vsyncpa [#allocation4], 0
    %s29 = scalar_lea.sflag [#allocation4], 1
    %30 = vsyncpa %s29, 0
    loop: start=0, step=1, limit=4
    $region2: #{tpu_custom_call.1} parent=1 // loop_pre_header
      _
    $region3: #{tpu_custom_call.1} parent=1 // loop_header
      %s32 = sphi 0, %s36
      %p33 = scmp.ge.s32.totalorder %s32, 4
      %s42 = sphi 0, %s44
      %s45 = sphi 0, %s42
      %s46 = sphi 0, %s45
      %s62 = sphi 0, %s46
      %s66 = sphi 0, %s66
      %s68 = sphi 0, %s66
      %s69 = sphi 0, %s68
      %s83 = sphi 0, %s69
      %s87 = sphi 0, %s87
      %s89 = sphi 0, %s87
      %s90 = sphi 0, %s89
      %s104 = sphi 0, %s90
      %s108 = sphi 0, %s108
      %s110 = sphi 0, %s108
      %s111 = sphi 0, %s110
      %s125 = sphi 0, %s111
      %s129 = sphi 0, %s129
      %s131 = sphi 0, %s129
      %s132 = sphi 0, %s131
      %s146 = sphi 0, %s132
      %s150 = sphi 0, %s150
      %s152 = sphi 0, %s150
      %s153 = sphi 0, %s152
      %s167 = sphi 0, %s153
      %s171 = sphi 0, %s171
      %s173 = sphi 0, %s171
      %s174 = sphi 0, %s173
      %s188 = sphi 0, %s174
      %s192 = sphi 0, %s192
      %s194 = sphi 0, %s192
      %s195 = sphi 0, %s194
      %s209 = sphi 0, %s195
      %s213 = sphi 0, %s213
      %s215 = sphi 0, %s213
      %s216 = sphi 0, %s215
      %s230 = sphi 0, %s216
      %s234 = sphi 0, %s234
      %s236 = sphi 0, %s234
      %s237 = sphi 0, %s236
      %s251 = sphi 0, %s237
      %s255 = sphi 0, %s255
      %s257 = sphi 0, %s255
      %s258 = sphi 0, %s257
      %s272 = sphi 0, %s258
      %s276 = sphi 0, %s276
      %s278 = sphi 0, %s276
      %s279 = sphi 0, %s278
      %s293 = sphi 0, %s279
      %s297 = sphi 0, %s297
      %s299 = sphi 0, %s297
      %s300 = sphi 0, %s299
      %s314 = sphi 0, %s300
      %s318 = sphi 0, %s318
      %s320 = sphi 0, %s318
      %s321 = sphi 0, %s320
      %s335 = sphi 0, %s321
      %s339 = sphi 0, %s339
      %s341 = sphi 0, %s339
      %s342 = sphi 0, %s341
      %s356 = sphi 0, %s342
      %s360 = sphi 0, %s360
      %s362 = sphi 0, %s360
      %s363 = sphi 0, %s362
      %s377 = sphi 0, %s363
      %s381 = sphi 0, %s381
      %s383 = sphi 0, %s381
      %s384 = sphi 0, %s383
      %s398 = sphi 0, %s384
      %s404 = sphi 0, %s406
      %s407 = sphi 0, %s404
      %s408 = sphi 0, %s407
      %s424 = sphi 0, %s408
    $region4: #{tpu_custom_call.1} parent=1 // loop_header_branch
      %35 = sbr.rel (%p33) target = $region8
    $region5: #{tpu_custom_call.1} parent=1 // loop_body
      %s37 = ssub.s32 %s32, 1
      %s38 = ssub.s32 %s32, 2
      %s39 = sadd.s32 %s32, 1
      %s40 = ssub.s32 %s32, %s39
      %p41 = scmp.eq.s32.totalorder %s40, 0
      %s43 = sadd.s32 %s42, 1
      %s44 = scalar_select %p41, %s42, %s43
      %p47 = pneg %p41
      %p48 = scmp.eq.s32.totalorder %s32, 1
      %p49 = por %p47, %p48
      %p50 = scmp.ne.s32.totalorder %s42, %s45
      %p51 = scmp.eq.s32.totalorder %s32, 0
      %p52 = por %p50, %p51
      %p53 = scmp.ne.s32.totalorder %s42, %s45
      %p54 = scmp.eq.s32.totalorder %s37, 1
      %p55 = por %p53, %p54
      %p56 = scmp.ne.s32.totalorder %s45, %s46
      %p57 = scmp.eq.s32.totalorder %s37, 0
      %p58 = por %p56, %p57
      %p59 = scmp.ne.s32.totalorder %s45, %s46
      %p60 = scmp.eq.s32.totalorder %s38, 1
      %p61 = por %p59, %p60
      %p63 = scmp.ne.s32.totalorder %s46, %s62
      %p64 = scmp.eq.s32.totalorder %s38, 0
      %p65 = por %p63, %p64
      %s67 = sadd.s32 %s66, 1
      %p70 = scmp.eq.s32.totalorder %s32, 1
      %p71 = scmp.ne.s32.totalorder %s66, %s68
      %p72 = scmp.eq.s32.totalorder %s32, 0
      %p73 = por %p71, %p72
      %p74 = scmp.ne.s32.totalorder %s66, %s68
      %p75 = scmp.eq.s32.totalorder %s37, 1
      %p76 = por %p74, %p75
      %p77 = scmp.ne.s32.totalorder %s68, %s69
      %p78 = scmp.eq.s32.totalorder %s37, 0
      %p79 = por %p77, %p78
      %p80 = scmp.ne.s32.totalorder %s68, %s69
      %p81 = scmp.eq.s32.totalorder %s38, 1
      %p82 = por %p80, %p81
      %p84 = scmp.ne.s32.totalorder %s69, %s83
      %p85 = scmp.eq.s32.totalorder %s38, 0
      %p86 = por %p84, %p85
      %s88 = sadd.s32 %s87, 1
      %p91 = scmp.eq.s32.totalorder %s32, 1
      %p92 = scmp.ne.s32.totalorder %s87, %s89
      %p93 = scmp.eq.s32.totalorder %s32, 0
      %p94 = por %p92, %p93
      %p95 = scmp.ne.s32.totalorder %s87, %s89
      %p96 = scmp.eq.s32.totalorder %s37, 1
      %p97 = por %p95, %p96
      %p98 = scmp.ne.s32.totalorder %s89, %s90
      %p99 = scmp.eq.s32.totalorder %s37, 0
      %p100 = por %p98, %p99
      %p101 = scmp.ne.s32.totalorder %s89, %s90
      %p102 = scmp.eq.s32.totalorder %s38, 1
      %p103 = por %p101, %p102
      %p105 = scmp.ne.s32.totalorder %s90, %s104
      %p106 = scmp.eq.s32.totalorder %s38, 0
      %p107 = por %p105, %p106
      %s109 = sadd.s32 %s108, 1
      %p112 = scmp.eq.s32.totalorder %s32, 1
      %p113 = scmp.ne.s32.totalorder %s108, %s110
      %p114 = scmp.eq.s32.totalorder %s32, 0
      %p115 = por %p113, %p114
      %p116 = scmp.ne.s32.totalorder %s108, %s110
      %p117 = scmp.eq.s32.totalorder %s37, 1
      %p118 = por %p116, %p117
      %p119 = scmp.ne.s32.totalorder %s110, %s111
      %p120 = scmp.eq.s32.totalorder %s37, 0
      %p121 = por %p119, %p120
      %p122 = scmp.ne.s32.totalorder %s110, %s111
      %p123 = scmp.eq.s32.totalorder %s38, 1
      %p124 = por %p122, %p123
      %p126 = scmp.ne.s32.totalorder %s111, %s125
      %p127 = scmp.eq.s32.totalorder %s38, 0
      %p128 = por %p126, %p127
      %s130 = sadd.s32 %s129, 1
      %p133 = scmp.eq.s32.totalorder %s32, 1
      %p134 = scmp.ne.s32.totalorder %s129, %s131
      %p135 = scmp.eq.s32.totalorder %s32, 0
      %p136 = por %p134, %p135
      %p137 = scmp.ne.s32.totalorder %s129, %s131
      %p138 = scmp.eq.s32.totalorder %s37, 1
      %p139 = por %p137, %p138
      %p140 = scmp.ne.s32.totalorder %s131, %s132
      %p141 = scmp.eq.s32.totalorder %s37, 0
      %p142 = por %p140, %p141
      %p143 = scmp.ne.s32.totalorder %s131, %s132
      %p144 = scmp.eq.s32.totalorder %s38, 1
      %p145 = por %p143, %p144
      %p147 = scmp.ne.s32.totalorder %s132, %s146
      %p148 = scmp.eq.s32.totalorder %s38, 0
      %p149 = por %p147, %p148
      %s151 = sadd.s32 %s150, 1
      %p154 = scmp.eq.s32.totalorder %s32, 1
      %p155 = scmp.ne.s32.totalorder %s150, %s152
      %p156 = scmp.eq.s32.totalorder %s32, 0
      %p157 = por %p155, %p156
      %p158 = scmp.ne.s32.totalorder %s150, %s152
      %p159 = scmp.eq.s32.totalorder %s37, 1
      %p160 = por %p158, %p159
      %p161 = scmp.ne.s32.totalorder %s152, %s153
      %p162 = scmp.eq.s32.totalorder %s37, 0
      %p163 = por %p161, %p162
      %p164 = scmp.ne.s32.totalorder %s152, %s153
      %p165 = scmp.eq.s32.totalorder %s38, 1
      %p166 = por %p164, %p165
      %p168 = scmp.ne.s32.totalorder %s153, %s167
      %p169 = scmp.eq.s32.totalorder %s38, 0
      %p170 = por %p168, %p169
      %s172 = sadd.s32 %s171, 1
      %p175 = scmp.eq.s32.totalorder %s32, 1
      %p176 = scmp.ne.s32.totalorder %s171, %s173
      %p177 = scmp.eq.s32.totalorder %s32, 0
      %p178 = por %p176, %p177
      %p179 = scmp.ne.s32.totalorder %s171, %s173
      %p180 = scmp.eq.s32.totalorder %s37, 1
      %p181 = por %p179, %p180
      %p182 = scmp.ne.s32.totalorder %s173, %s174
      %p183 = scmp.eq.s32.totalorder %s37, 0
      %p184 = por %p182, %p183
      %p185 = scmp.ne.s32.totalorder %s173, %s174
      %p186 = scmp.eq.s32.totalorder %s38, 1
      %p187 = por %p185, %p186
      %p189 = scmp.ne.s32.totalorder %s174, %s188
      %p190 = scmp.eq.s32.totalorder %s38, 0
      %p191 = por %p189, %p190
      %s193 = sadd.s32 %s192, 1
      %p196 = scmp.eq.s32.totalorder %s32, 1
      %p197 = scmp.ne.s32.totalorder %s192, %s194
      %p198 = scmp.eq.s32.totalorder %s32, 0
      %p199 = por %p197, %p198
      %p200 = scmp.ne.s32.totalorder %s192, %s194
      %p201 = scmp.eq.s32.totalorder %s37, 1
      %p202 = por %p200, %p201
      %p203 = scmp.ne.s32.totalorder %s194, %s195
      %p204 = scmp.eq.s32.totalorder %s37, 0
      %p205 = por %p203, %p204
      %p206 = scmp.ne.s32.totalorder %s194, %s195
      %p207 = scmp.eq.s32.totalorder %s38, 1
      %p208 = por %p206, %p207
      %p210 = scmp.ne.s32.totalorder %s195, %s209
      %p211 = scmp.eq.s32.totalorder %s38, 0
      %p212 = por %p210, %p211
      %s214 = sadd.s32 %s213, 1
      %p217 = scmp.eq.s32.totalorder %s32, 1
      %p218 = scmp.ne.s32.totalorder %s213, %s215
      %p219 = scmp.eq.s32.totalorder %s32, 0
      %p220 = por %p218, %p219
      %p221 = scmp.ne.s32.totalorder %s213, %s215
      %p222 = scmp.eq.s32.totalorder %s37, 1
      %p223 = por %p221, %p222
      %p224 = scmp.ne.s32.totalorder %s215, %s216
      %p225 = scmp.eq.s32.totalorder %s37, 0
      %p226 = por %p224, %p225
      %p227 = scmp.ne.s32.totalorder %s215, %s216
      %p228 = scmp.eq.s32.totalorder %s38, 1
      %p229 = por %p227, %p228
      %p231 = scmp.ne.s32.totalorder %s216, %s230
      %p232 = scmp.eq.s32.totalorder %s38, 0
      %p233 = por %p231, %p232
      %s235 = sadd.s32 %s234, 1
      %p238 = scmp.eq.s32.totalorder %s32, 1
      %p239 = scmp.ne.s32.totalorder %s234, %s236
      %p240 = scmp.eq.s32.totalorder %s32, 0
      %p241 = por %p239, %p240
      %p242 = scmp.ne.s32.totalorder %s234, %s236
      %p243 = scmp.eq.s32.totalorder %s37, 1
      %p244 = por %p242, %p243
      %p245 = scmp.ne.s32.totalorder %s236, %s237
      %p246 = scmp.eq.s32.totalorder %s37, 0
      %p247 = por %p245, %p246
      %p248 = scmp.ne.s32.totalorder %s236, %s237
      %p249 = scmp.eq.s32.totalorder %s38, 1
      %p250 = por %p248, %p249
      %p252 = scmp.ne.s32.totalorder %s237, %s251
      %p253 = scmp.eq.s32.totalorder %s38, 0
      %p254 = por %p252, %p253
      %s256 = sadd.s32 %s255, 1
      %p259 = scmp.eq.s32.totalorder %s32, 1
      %p260 = scmp.ne.s32.totalorder %s255, %s257
      %p261 = scmp.eq.s32.totalorder %s32, 0
      %p262 = por %p260, %p261
      %p263 = scmp.ne.s32.totalorder %s255, %s257
      %p264 = scmp.eq.s32.totalorder %s37, 1
      %p265 = por %p263, %p264
      %p266 = scmp.ne.s32.totalorder %s257, %s258
      %p267 = scmp.eq.s32.totalorder %s37, 0
      %p268 = por %p266, %p267
      %p269 = scmp.ne.s32.totalorder %s257, %s258
      %p270 = scmp.eq.s32.totalorder %s38, 1
      %p271 = por %p269, %p270
      %p273 = scmp.ne.s32.totalorder %s258, %s272
      %p274 = scmp.eq.s32.totalorder %s38, 0
      %p275 = por %p273, %p274
      %s277 = sadd.s32 %s276, 1
      %p280 = scmp.eq.s32.totalorder %s32, 1
      %p281 = scmp.ne.s32.totalorder %s276, %s278
      %p282 = scmp.eq.s32.totalorder %s32, 0
      %p283 = por %p281, %p282
      %p284 = scmp.ne.s32.totalorder %s276, %s278
      %p285 = scmp.eq.s32.totalorder %s37, 1
      %p286 = por %p284, %p285
      %p287 = scmp.ne.s32.totalorder %s278, %s279
      %p288 = scmp.eq.s32.totalorder %s37, 0
      %p289 = por %p287, %p288
      %p290 = scmp.ne.s32.totalorder %s278, %s279
      %p291 = scmp.eq.s32.totalorder %s38, 1
      %p292 = por %p290, %p291
      %p294 = scmp.ne.s32.totalorder %s279, %s293
      %p295 = scmp.eq.s32.totalorder %s38, 0
      %p296 = por %p294, %p295
      %s298 = sadd.s32 %s297, 1
      %p301 = scmp.eq.s32.totalorder %s32, 1
      %p302 = scmp.ne.s32.totalorder %s297, %s299
      %p303 = scmp.eq.s32.totalorder %s32, 0
      %p304 = por %p302, %p303
      %p305 = scmp.ne.s32.totalorder %s297, %s299
      %p306 = scmp.eq.s32.totalorder %s37, 1
      %p307 = por %p305, %p306
      %p308 = scmp.ne.s32.totalorder %s299, %s300
      %p309 = scmp.eq.s32.totalorder %s37, 0
      %p310 = por %p308, %p309
      %p311 = scmp.ne.s32.totalorder %s299, %s300
      %p312 = scmp.eq.s32.totalorder %s38, 1
      %p313 = por %p311, %p312
      %p315 = scmp.ne.s32.totalorder %s300, %s314
      %p316 = scmp.eq.s32.totalorder %s38, 0
      %p317 = por %p315, %p316
      %s319 = sadd.s32 %s318, 1
      %p322 = scmp.eq.s32.totalorder %s32, 1
      %p323 = scmp.ne.s32.totalorder %s318, %s320
      %p324 = scmp.eq.s32.totalorder %s32, 0
      %p325 = por %p323, %p324
      %p326 = scmp.ne.s32.totalorder %s318, %s320
      %p327 = scmp.eq.s32.totalorder %s37, 1
      %p328 = por %p326, %p327
      %p329 = scmp.ne.s32.totalorder %s320, %s321
      %p330 = scmp.eq.s32.totalorder %s37, 0
      %p331 = por %p329, %p330
      %p332 = scmp.ne.s32.totalorder %s320, %s321
      %p333 = scmp.eq.s32.totalorder %s38, 1
      %p334 = por %p332, %p333
      %p336 = scmp.ne.s32.totalorder %s321, %s335
      %p337 = scmp.eq.s32.totalorder %s38, 0
      %p338 = por %p336, %p337
      %s340 = sadd.s32 %s339, 1
      %p343 = scmp.eq.s32.totalorder %s32, 1
      %p344 = scmp.ne.s32.totalorder %s339, %s341
      %p345 = scmp.eq.s32.totalorder %s32, 0
      %p346 = por %p344, %p345
      %p347 = scmp.ne.s32.totalorder %s339, %s341
      %p348 = scmp.eq.s32.totalorder %s37, 1
      %p349 = por %p347, %p348
      %p350 = scmp.ne.s32.totalorder %s341, %s342
      %p351 = scmp.eq.s32.totalorder %s37, 0
      %p352 = por %p350, %p351
      %p353 = scmp.ne.s32.totalorder %s341, %s342
      %p354 = scmp.eq.s32.totalorder %s38, 1
      %p355 = por %p353, %p354
      %p357 = scmp.ne.s32.totalorder %s342, %s356
      %p358 = scmp.eq.s32.totalorder %s38, 0
      %p359 = por %p357, %p358
      %s361 = sadd.s32 %s360, 1
      %p364 = scmp.eq.s32.totalorder %s32, 1
      %p365 = scmp.ne.s32.totalorder %s360, %s362
      %p366 = scmp.eq.s32.totalorder %s32, 0
      %p367 = por %p365, %p366
      %p368 = scmp.ne.s32.totalorder %s360, %s362
      %p369 = scmp.eq.s32.totalorder %s37, 1
      %p370 = por %p368, %p369
      %p371 = scmp.ne.s32.totalorder %s362, %s363
      %p372 = scmp.eq.s32.totalorder %s37, 0
      %p373 = por %p371, %p372
      %p374 = scmp.ne.s32.totalorder %s362, %s363
      %p375 = scmp.eq.s32.totalorder %s38, 1
      %p376 = por %p374, %p375
      %p378 = scmp.ne.s32.totalorder %s363, %s377
      %p379 = scmp.eq.s32.totalorder %s38, 0
      %p380 = por %p378, %p379
      %s382 = sadd.s32 %s381, 1
      %p385 = scmp.eq.s32.totalorder %s32, 1
      %p386 = scmp.ne.s32.totalorder %s381, %s383
      %p387 = scmp.eq.s32.totalorder %s32, 0
      %p388 = por %p386, %p387
      %p389 = scmp.ne.s32.totalorder %s381, %s383
      %p390 = scmp.eq.s32.totalorder %s37, 1
      %p391 = por %p389, %p390
      %p392 = scmp.ne.s32.totalorder %s383, %s384
      %p393 = scmp.eq.s32.totalorder %s37, 0
      %p394 = por %p392, %p393
      %p395 = scmp.ne.s32.totalorder %s383, %s384
      %p396 = scmp.eq.s32.totalorder %s38, 1
      %p397 = por %p395, %p396
      %p399 = scmp.ne.s32.totalorder %s384, %s398
      %p400 = scmp.eq.s32.totalorder %s38, 0
      %p401 = por %p399, %p400
      %s402 = ssub.s32 %s32, %s39
      %p403 = scmp.eq.s32.totalorder %s402, 0
      %s405 = sadd.s32 %s404, 1
      %s406 = scalar_select %p403, %s404, %s405
      %p409 = pneg %p403
      %p410 = scmp.eq.s32.totalorder %s32, 1
      %p411 = por %p409, %p410
      %p412 = scmp.ne.s32.totalorder %s404, %s407
      %p413 = scmp.eq.s32.totalorder %s32, 0
      %p414 = por %p412, %p413
      %p415 = scmp.ne.s32.totalorder %s404, %s407
      %p416 = scmp.eq.s32.totalorder %s37, 1
      %p417 = por %p415, %p416
      %p418 = scmp.ne.s32.totalorder %s407, %s408
      %p419 = scmp.eq.s32.totalorder %s37, 0
      %p420 = por %p418, %p419
      %p421 = scmp.ne.s32.totalorder %s407, %s408
      %p422 = scmp.eq.s32.totalorder %s38, 1
      %p423 = por %p421, %p422
      %p425 = scmp.ne.s32.totalorder %s408, %s424
      %p426 = scmp.eq.s32.totalorder %s38, 0
      %p427 = por %p425, %p426
      %p428 = scmp.le.s32.totalorder 1, %s32
      %p429 = scmp.lt.s32.totalorder %s32, 3
      %p430 = pnand %p428, %p429
      %p431 = pneg %p430
      // Predicated region
      $region9: #{tpu_custom_call.1} parent=5 // pred_check
        _
      $region10: #{tpu_custom_call.1} parent=5 // pred_check_branch
        %433 = sbr.rel (%p430) target = $region12
      $region11: #{tpu_custom_call.1} parent=5 // pred_region
        %s434 = ssub.s32 %s32, 1
        // Predicated region
        $region13: #{tpu_custom_call.1} parent=11 // pred_check
          %p435 = pneg %p79
        $region14: #{tpu_custom_call.1} parent=11 // pred_check_branch
          %437 = sbr.rel (%p435) target = $region16
        $region15: #{tpu_custom_call.1} parent=11 // pred_region
          %s439 = ssub.s32 6912, 6912
          %440 = vsyncadd [#allocation3], %s439
          %s441 = sshll.u32 [#allocation2], 4
          %s442 = int_to_ptr.vmem [resolvable:$true] %s441
          %447 = dma.hbm_to_vmem [thread:$0]  %s1, 6912, %s442, [#allocation3], 256, 256, 16
        $region16: #{tpu_custom_call.1} parent=11 // pred_fallthru
          _
        // Predicated region
        $region17: #{tpu_custom_call.1} parent=11 // pred_check
          %p448 = pneg %p100
        $region18: #{tpu_custom_call.1} parent=11 // pred_check_branch
          %450 = sbr.rel (%p448) target = $region20
        $region19: #{tpu_custom_call.1} parent=11 // pred_region
          _
        $region20: #{tpu_custom_call.1} parent=11 // pred_fallthru
          _
        // Predicated region
        $region21: #{tpu_custom_call.1} parent=11 // pred_check
          %p451 = pneg %p121
        $region22: #{tpu_custom_call.1} parent=11 // pred_check_branch
          %453 = sbr.rel (%p451) target = $region24
        $region23: #{tpu_custom_call.1} parent=11 // pred_region
          %s455 = ssub.s32 6528, 6528
          %456 = vsyncadd [#allocation6], %s455
          %s457 = sshll.u32 [#allocation5], 4
          %s458 = int_to_ptr.vmem [resolvable:$true] %s457
          %463 = dma.hbm_to_vmem [thread:$0]  %s3, 6528, %s458, [#allocation6], 128, 128, 8
        $region24: #{tpu_custom_call.1} parent=11 // pred_fallthru
          _
        // Predicated region
        $region25: #{tpu_custom_call.1} parent=11 // pred_check
          %p464 = pneg %p142
        $region26: #{tpu_custom_call.1} parent=11 // pred_check_branch
          %466 = sbr.rel (%p464) target = $region28
        $region27: #{tpu_custom_call.1} parent=11 // pred_region
          %s468 = ssub.s32 6528, 6528
          %469 = vsyncadd [#allocation6], %s468
          %s470 = sshll.u32 [#allocation7], 4
          %s471 = int_to_ptr.vmem [resolvable:$true] %s470
          %476 = dma.hbm_to_vmem [thread:$0]  %s4, 6528, %s471, [#allocation6], 128, 128, 8
        $region28: #{tpu_custom_call.1} parent=11 // pred_fallthru
          _
        // Predicated region
        $region29: #{tpu_custom_call.1} parent=11 // pred_check
          %p477 = pneg %p163
        $region30: #{tpu_custom_call.1} parent=11 // pred_check_branch
          %479 = sbr.rel (%p477) target = $region32
        $region31: #{tpu_custom_call.1} parent=11 // pred_region
          %s481 = ssub.s32 19968, 19968
          %482 = vsyncadd [#allocation9], %s481
          %s483 = sshll.u32 [#allocation8], 4
          %s484 = int_to_ptr.vmem [resolvable:$true] %s483
          %489 = dma.hbm_to_vmem [thread:$0]  %s5, 19968, %s484, [#allocation9], 256, 256, 16
        $region32: #{tpu_custom_call.1} parent=11 // pred_fallthru
          _
        // Predicated region
        $region33: #{tpu_custom_call.1} parent=11 // pred_check
          %p490 = pneg %p184
        $region34: #{tpu_custom_call.1} parent=11 // pred_check_branch
          %492 = sbr.rel (%p490) target = $region36
        $region35: #{tpu_custom_call.1} parent=11 // pred_region
          _
        $region36: #{tpu_custom_call.1} parent=11 // pred_fallthru
          _
        // Predicated region
        $region37: #{tpu_custom_call.1} parent=11 // pred_check
          %p493 = pneg %p205
        $region38: #{tpu_custom_call.1} parent=11 // pred_check_branch
          %495 = sbr.rel (%p493) target = $region40
        $region39: #{tpu_custom_call.1} parent=11 // pred_region
          _
        $region40: #{tpu_custom_call.1} parent=11 // pred_fallthru
          _
        // Predicated region
        $region41: #{tpu_custom_call.1} parent=11 // pred_check
          %p496 = pneg %p226
        $region42: #{tpu_custom_call.1} parent=11 // pred_check_branch
          %498 = sbr.rel (%p496) target = $region44
        $region43: #{tpu_custom_call.1} parent=11 // pred_region
          %s500 = ssub.s32 8192, 8192
          %501 = vsyncadd [#allocation9], %s500
          %s502 = sshll.u32 [#allocation10], 4
          %s503 = int_to_ptr.vmem [resolvable:$true] %s502
          %508 = dma.hbm_to_vmem [thread:$0]  %s8, 8192, %s503, [#allocation9], 128, 128, 8
        $region44: #{tpu_custom_call.1} parent=11 // pred_fallthru
          _
        // Predicated region
        $region45: #{tpu_custom_call.1} parent=11 // pred_check
          %p509 = pneg %p247
        $region46: #{tpu_custom_call.1} parent=11 // pred_check_branch
          %511 = sbr.rel (%p509) target = $region48
        $region47: #{tpu_custom_call.1} parent=11 // pred_region
          %s513 = ssub.s32 512, 512
          %514 = vsyncadd [#allocation12], %s513
          %s515 = sshll.u32 [#allocation11], 4
          %s516 = int_to_ptr.vmem [resolvable:$true] %s515
          %521 = dma.hbm_to_vmem [thread:$0]  %s9, 512, %s516, [#allocation12], 128, 128, 8
        $region48: #{tpu_custom_call.1} parent=11 // pred_fallthru
          _
        // Predicated region
        $region49: #{tpu_custom_call.1} parent=11 // pred_check
          %p522 = pneg %p268
        $region50: #{tpu_custom_call.1} parent=11 // pred_check_branch
          %524 = sbr.rel (%p522) target = $region52
        $region51: #{tpu_custom_call.1} parent=11 // pred_region
          %s526 = ssub.s32 512, 512
          %527 = vsyncadd [#allocation12], %s526
          %s528 = sshll.u32 [#allocation13], 4
          %s529 = int_to_ptr.vmem [resolvable:$true] %s528
          %534 = dma.hbm_to_vmem [thread:$0]  %s10, 512, %s529, [#allocation12], 128, 128, 8
        $region52: #{tpu_custom_call.1} parent=11 // pred_fallthru
          _
        // Predicated region
        $region53: #{tpu_custom_call.1} parent=11 // pred_check
          %p535 = pneg %p289
        $region54: #{tpu_custom_call.1} parent=11 // pred_check_branch
          %537 = sbr.rel (%p535) target = $region56
        $region55: #{tpu_custom_call.1} parent=11 // pred_region
          %s539 = ssub.s32 32768, 32768
          %540 = vsyncadd [#allocation15], %s539
          %s541 = sshll.u32 [#allocation14], 4
          %s542 = int_to_ptr.vmem [resolvable:$true] %s541
          %547 = dma.hbm_to_vmem [thread:$0]  %s11, 32768, %s542, [#allocation15], 64, 64, 4
        $region56: #{tpu_custom_call.1} parent=11 // pred_fallthru
          _
        // Predicated region
        $region57: #{tpu_custom_call.1} parent=11 // pred_check
          %p548 = pneg %p310
        $region58: #{tpu_custom_call.1} parent=11 // pred_check_branch
          %550 = sbr.rel (%p548) target = $region60
        $region59: #{tpu_custom_call.1} parent=11 // pred_region
          _
        $region60: #{tpu_custom_call.1} parent=11 // pred_fallthru
          _
        // Predicated region
        $region61: #{tpu_custom_call.1} parent=11 // pred_check
          %p551 = pneg %p331
        $region62: #{tpu_custom_call.1} parent=11 // pred_check_branch
          %553 = sbr.rel (%p551) target = $region64
        $region63: #{tpu_custom_call.1} parent=11 // pred_region
          %s555 = ssub.s32 1024, 1024
          %556 = vsyncadd [#allocation15], %s555
          %s557 = sshll.u32 [#allocation16], 4
          %s558 = int_to_ptr.vmem [resolvable:$true] %s557
          %563 = dma.hbm_to_vmem [thread:$0]  %s13, 1024, %s558, [#allocation15], 64, 64, 4
        $region64: #{tpu_custom_call.1} parent=11 // pred_fallthru
          _
        // Predicated region
        $region65: #{tpu_custom_call.1} parent=11 // pred_check
          %p564 = pneg %p352
        $region66: #{tpu_custom_call.1} parent=11 // pred_check_branch
          %566 = sbr.rel (%p564) target = $region68
        $region67: #{tpu_custom_call.1} parent=11 // pred_region
          _
        $region68: #{tpu_custom_call.1} parent=11 // pred_fallthru
          _
        // Predicated region
        $region69: #{tpu_custom_call.1} parent=11 // pred_check
          %p567 = pneg %p373
        $region70: #{tpu_custom_call.1} parent=11 // pred_check_branch
          %569 = sbr.rel (%p567) target = $region72
        $region71: #{tpu_custom_call.1} parent=11 // pred_region
          %s571 = ssub.s32 1024, 1024
          %572 = vsyncadd [#allocation18], %s571
          %s573 = sshll.u32 [#allocation17], 4
          %s574 = int_to_ptr.vmem [resolvable:$true] %s573
          %579 = dma.hbm_to_vmem [thread:$0]  %s15, 1024, %s574, [#allocation18], 64, 64, 4
        $region72: #{tpu_custom_call.1} parent=11 // pred_fallthru
          _
        // Predicated region
        $region73: #{tpu_custom_call.1} parent=11 // pred_check
          %p580 = pneg %p394
        $region74: #{tpu_custom_call.1} parent=11 // pred_check_branch
          %582 = sbr.rel (%p580) target = $region76
        $region75: #{tpu_custom_call.1} parent=11 // pred_region
          _
        $region76: #{tpu_custom_call.1} parent=11 // pred_fallthru
          _
      $region12: #{tpu_custom_call.1} parent=5 // pred_fallthru
        _
      %p583 = scmp.lt.s32.totalorder %s32, 2
      // Predicated region
      $region77: #{tpu_custom_call.1} parent=5 // pred_check
        %p584 = pneg %p583
      $region78: #{tpu_custom_call.1} parent=5 // pred_check_branch
        %586 = sbr.rel (%p584) target = $region80
      $region79: #{tpu_custom_call.1} parent=5 // pred_region
        // Predicated region
        $region81: #{tpu_custom_call.1} parent=79 // pred_check
          %p587 = pneg %p52
        $region82: #{tpu_custom_call.1} parent=79 // pred_check_branch
          %589 = sbr.rel (%p587) target = $region84
        $region83: #{tpu_custom_call.1} parent=79 // pred_region
          %s590 = smul.u32 18, %s32
          %p591 = scmp.lt.s32.totalorder %s590, 35
          %s592 = scalar_select %p591, %s590, 35
          %s593 = smul.addr %s592, 8
          %s594 = scalar_lea.vmem %s0, %s593
          %s595 = smul.u32 18, %s32
        $region84: #{tpu_custom_call.1} parent=79 // pred_fallthru
          _
      $region80: #{tpu_custom_call.1} parent=5 // pred_fallthru
        _
      %p596 = scmp.le.s32.totalorder 1, %s32
      %p597 = scmp.lt.s32.totalorder %s32, 3
      %p598 = pnand %p596, %p597
      %p599 = pneg %p598
      // Predicated region
      $region85: #{tpu_custom_call.1} parent=5 // pred_check
        _
      $region86: #{tpu_custom_call.1} parent=5 // pred_check_branch
        %601 = sbr.rel (%p598) target = $region88
      $region87: #{tpu_custom_call.1} parent=5 // pred_region
        %s602 = ssub.s32 %s32, 1
        // Predicated region
        $region89: #{tpu_custom_call.1} parent=87 // pred_check
          %p603 = pneg %p79
        $region90: #{tpu_custom_call.1} parent=87 // pred_check_branch
          %605 = sbr.rel (%p603) target = $region92
        $region91: #{tpu_custom_call.1} parent=87 // pred_region
          %606 = dma.done [#allocation3], 6912
        $region92: #{tpu_custom_call.1} parent=87 // pred_fallthru
          _
        // Predicated region
        $region93: #{tpu_custom_call.1} parent=87 // pred_check
          %p607 = pneg %p121
        $region94: #{tpu_custom_call.1} parent=87 // pred_check_branch
          %609 = sbr.rel (%p607) target = $region96
        $region95: #{tpu_custom_call.1} parent=87 // pred_region
          %610 = dma.done [#allocation6], 6528
        $region96: #{tpu_custom_call.1} parent=87 // pred_fallthru
          _
        // Predicated region
        $region97: #{tpu_custom_call.1} parent=87 // pred_check
          %p611 = pneg %p142
        $region98: #{tpu_custom_call.1} parent=87 // pred_check_branch
          %613 = sbr.rel (%p611) target = $region100
        $region99: #{tpu_custom_call.1} parent=87 // pred_region
          %614 = dma.done [#allocation6], 6528
        $region100: #{tpu_custom_call.1} parent=87 // pred_fallthru
          _
        // Predicated region
        $region101: #{tpu_custom_call.1} parent=87 // pred_check
          %p615 = pneg %p163
        $region102: #{tpu_custom_call.1} parent=87 // pred_check_branch
          %617 = sbr.rel (%p615) target = $region104
        $region103: #{tpu_custom_call.1} parent=87 // pred_region
          %618 = dma.done [#allocation9], 19968
        $region104: #{tpu_custom_call.1} parent=87 // pred_fallthru
          _
        // Predicated region
        $region105: #{tpu_custom_call.1} parent=87 // pred_check
          %p619 = pneg %p226
        $region106: #{tpu_custom_call.1} parent=87 // pred_check_branch
          %621 = sbr.rel (%p619) target = $region108
        $region107: #{tpu_custom_call.1} parent=87 // pred_region
          %622 = dma.done [#allocation9], 8192
        $region108: #{tpu_custom_call.1} parent=87 // pred_fallthru
          _
        // Predicated region
        $region109: #{tpu_custom_call.1} parent=87 // pred_check
          %p623 = pneg %p247
        $region110: #{tpu_custom_call.1} parent=87 // pred_check_branch
          %625 = sbr.rel (%p623) target = $region112
        $region111: #{tpu_custom_call.1} parent=87 // pred_region
          %626 = dma.done [#allocation12], 512
        $region112: #{tpu_custom_call.1} parent=87 // pred_fallthru
          _
        // Predicated region
        $region113: #{tpu_custom_call.1} parent=87 // pred_check
          %p627 = pneg %p268
        $region114: #{tpu_custom_call.1} parent=87 // pred_check_branch
          %629 = sbr.rel (%p627) target = $region116
        $region115: #{tpu_custom_call.1} parent=87 // pred_region
          %630 = dma.done [#allocation12], 512
        $region116: #{tpu_custom_call.1} parent=87 // pred_fallthru
          _
        // Predicated region
        $region117: #{tpu_custom_call.1} parent=87 // pred_check
          %p631 = pneg %p289
        $region118: #{tpu_custom_call.1} parent=87 // pred_check_branch
          %633 = sbr.rel (%p631) target = $region120
        $region119: #{tpu_custom_call.1} parent=87 // pred_region
          %634 = dma.done [#allocation15], 32768
        $region120: #{tpu_custom_call.1} parent=87 // pred_fallthru
          _
        // Predicated region
        $region121: #{tpu_custom_call.1} parent=87 // pred_check
          %p635 = pneg %p331
        $region122: #{tpu_custom_call.1} parent=87 // pred_check_branch
          %637 = sbr.rel (%p635) target = $region124
        $region123: #{tpu_custom_call.1} parent=87 // pred_region
          %638 = dma.done [#allocation15], 1024
        $region124: #{tpu_custom_call.1} parent=87 // pred_fallthru
          _
        // Predicated region
        $region125: #{tpu_custom_call.1} parent=87 // pred_check
          %p639 = pneg %p373
        $region126: #{tpu_custom_call.1} parent=87 // pred_check_branch
          %641 = sbr.rel (%p639) target = $region128
        $region127: #{tpu_custom_call.1} parent=87 // pred_region
          %642 = dma.done [#allocation18], 1024
        $region128: #{tpu_custom_call.1} parent=87 // pred_fallthru
          _
        %s643 = smul.u32 18, %s37
        %p644 = scmp.lt.s32.totalorder %s643, 35
        %s645 = scalar_select %p644, %s643, 35
        %s646 = smul.addr %s645, 8
        %s647 = scalar_lea.vmem %s0, %s646
        %p648 = pneg %p58
        %p649 = pneg %p55
        %p650 = pneg %p79
        %p651 = pneg %p76
        %p652 = pneg %p100
        %p653 = pneg %p97
        %p654 = pneg %p121
        %p655 = pneg %p118
        %p656 = pneg %p142
        %p657 = pneg %p139
        %p658 = pneg %p163
        %p659 = pneg %p160
        %p660 = pneg %p184
        %p661 = pneg %p181
        %p662 = pneg %p205
        %p663 = pneg %p202
        %p664 = pneg %p226
        %p665 = pneg %p223
        %p666 = pneg %p247
        %p667 = pneg %p244
        %p668 = pneg %p268
        %p669 = pneg %p265
        %p670 = pneg %p289
        %p671 = pneg %p286
        %p672 = pneg %p310
        %p673 = pneg %p307
        %p674 = pneg %p331
        %p675 = pneg %p328
        %p676 = pneg %p352
        %p677 = pneg %p349
        %p678 = pneg %p373
        %p679 = pneg %p370
        %p680 = pneg %p394
        %p681 = pneg %p391
        %p682 = pneg %p420
        %p683 = pneg %p417
        %s684 = sand.u32 %s407, 1
        %s685 = scalar_lea.sflag [#allocation4], %s684
        %s686 = sand.u32 %s407, 1
        %s687 = smul.addr %s686, 2
        %s688 = scalar_lea.vmem [#allocation19], %s687
        %s689 = smul.u32 18, %s37
        %p690 = scmp.lt.s32.totalorder %s689, 35
        %s691 = scalar_select %p690, %s689, 35
        %s692 = smul.addr %s691, 8
        %s693 = scalar_lea.vmem %s0, %s692
        %s694 = smul.u32 18, %s37
        %v696 = vld [vmem:[%s693] sm:$0xff]
        %v697 = vld [vmem:[%s693 + $0x8] sm:$0xff]
        %v698 = vld [vmem:[%s693 + $0x10] sm:$0xff]
        %v699 = vld [vmem:[%s693 + $0x18] sm:$0xff]
        %v700 = vld [vmem:[%s693 + $0x20] sm:$0xff]
        %v701 = vld [vmem:[%s693 + $0x28] sm:$0xff]
        %v702 = vld [vmem:[%s693 + $0x30] sm:$0xff]
        %v703 = vld [vmem:[%s693 + $0x38] sm:$0xff]
        %v704 = vld [vmem:[%s693 + $0x40] sm:$0xff]
        %v705 = vld [vmem:[%s693 + $0x48] sm:$0xff]
        %v706 = vld [vmem:[%s693 + $0x50] sm:$0xff]
        %v707 = vld [vmem:[%s693 + $0x58] sm:$0xff]
        %v708 = vld [vmem:[%s693 + $0x60] sm:$0xff]
        %v709 = vld [vmem:[%s693 + $0x68] sm:$0xff]
        %v710 = vld [vmem:[%s693 + $0x70] sm:$0xff]
        %v711 = vld [vmem:[%s693 + $0x78] sm:$0xff]
        %v712 = vld [vmem:[%s693 + $0x80] sm:$0xff]
        %v713 = vld [vmem:[%s693 + $0x88] sm:$0xff]
        %v714 = vld [vmem:[#allocation2] sm:$0xff]
        %v715 = vld [vmem:[#allocation2 + $0x8] sm:$0xff]
        %v716 = vld [vmem:[#allocation2 + $0x10] sm:$0xff]
        %v717 = vld [vmem:[#allocation2 + $0x18] sm:$0xff]
        %v718 = vld [vmem:[#allocation2 + $0x20] sm:$0xff]
        %v719 = vld [vmem:[#allocation2 + $0x28] sm:$0xff]
        %v720 = vld [vmem:[#allocation2 + $0x30] sm:$0xff]
        %v721 = vld [vmem:[#allocation2 + $0x38] sm:$0xff]
        %v722 = vld [vmem:[#allocation2 + $0x40] sm:$0xff]
        %v723 = vld [vmem:[#allocation2 + $0x48] sm:$0xff]
        %v724 = vld [vmem:[#allocation2 + $0x50] sm:$0xff]
        %v725 = vld [vmem:[#allocation2 + $0x58] sm:$0xff]
        %v726 = vld [vmem:[#allocation2 + $0x60] sm:$0xff]
        %v727 = vld [vmem:[#allocation2 + $0x68] sm:$0xff]
        %v728 = vld [vmem:[#allocation2 + $0x70] sm:$0xff]
        %v729 = vld [vmem:[#allocation2 + $0x78] sm:$0xff]
        %v730 = vld [vmem:[#allocation2 + $0x80] sm:$0x77]
        %v731 = vld [vmem:[#allocation2 + $0x88] sm:$0x77]
        %v732 = vpack.c.bf16 %v697, %v696
        %v733 = vpack.c.bf16 %v699, %v698
        %v734 = vpack.c.bf16 %v701, %v700
        %v735 = vpack.c.bf16 %v703, %v702
        %v736 = vpack.c.bf16 %v705, %v704
        %v737 = vpack.c.bf16 %v707, %v706
        %v738 = vpack.c.bf16 %v709, %v708
        %v739 = vpack.c.bf16 %v711, %v710
        %v740 = vpack.c.bf16 %v713, %v712
        %vm759 = vcmask 1046528
        %v760 = vrot.slane %v696, 1
        %v761 = vrot.slane %v697, 1
        %v762 = vsel %vm759, %v760, %v761
        %v763 = vrot.slane %v698, 1
        %v764 = vsel %vm759, %v761, %v763
        %v765 = vrot.slane %v699, 1
        %v766 = vsel %vm759, %v763, %v765
        %v767 = vrot.slane %v700, 1
        %v768 = vsel %vm759, %v765, %v767
        %v769 = vrot.slane %v701, 1
        %v770 = vsel %vm759, %v767, %v769
        %v771 = vrot.slane %v702, 1
        %v772 = vsel %vm759, %v769, %v771
        %v773 = vrot.slane %v703, 1
        %v774 = vsel %vm759, %v771, %v773
        %v775 = vrot.slane %v704, 1
        %v776 = vsel %vm759, %v773, %v775
        %v777 = vrot.slane %v705, 1
        %v778 = vsel %vm759, %v775, %v777
        %v779 = vrot.slane %v706, 1
        %v780 = vsel %vm759, %v777, %v779
        %v781 = vrot.slane %v707, 1
        %v782 = vsel %vm759, %v779, %v781
        %v783 = vrot.slane %v708, 1
        %v784 = vsel %vm759, %v781, %v783
        %v785 = vrot.slane %v709, 1
        %v786 = vsel %vm759, %v783, %v785
        %v787 = vrot.slane %v710, 1
        %v788 = vsel %vm759, %v785, %v787
        %v789 = vrot.slane %v711, 1
        %v790 = vsel %vm759, %v787, %v789
        %v791 = vrot.slane %v712, 1
        %v792 = vsel %vm759, %v789, %v791
        %v793 = vrot.slane %v713, 1
        %v794 = vsel %vm759, %v791, %v793
        %v814 = vsel %vm759, %v793, %v760
        %s815 = scalar_lea.vmem [#allocation2], 144
        %v816 = vld [vmem:[%s815] sm:$0xff]
        %v817 = vld [vmem:[%s815 + $0x8] sm:$0xff]
        %v818 = vld [vmem:[%s815 + $0x10] sm:$0xff]
        %v819 = vld [vmem:[%s815 + $0x18] sm:$0xff]
        %v820 = vld [vmem:[%s815 + $0x20] sm:$0xff]
        %v821 = vld [vmem:[%s815 + $0x28] sm:$0xff]
        %v822 = vld [vmem:[%s815 + $0x30] sm:$0xff]
        %v823 = vld [vmem:[%s815 + $0x38] sm:$0xff]
        %v824 = vld [vmem:[%s815 + $0x40] sm:$0xff]
        %v825 = vld [vmem:[%s815 + $0x48] sm:$0xff]
        %v826 = vld [vmem:[%s815 + $0x50] sm:$0xff]
        %v827 = vld [vmem:[%s815 + $0x58] sm:$0xff]
        %v828 = vld [vmem:[%s815 + $0x60] sm:$0xff]
        %v829 = vld [vmem:[%s815 + $0x68] sm:$0xff]
        %v830 = vld [vmem:[%s815 + $0x70] sm:$0xff]
        %v831 = vld [vmem:[%s815 + $0x78] sm:$0xff]
        %v832 = vld [vmem:[%s815 + $0x80] sm:$0x77]
        %v833 = vld [vmem:[%s815 + $0x88] sm:$0x77]
        %v834 = vpack.c.bf16 %v764, %v762
        %v835 = vpack.c.bf16 %v768, %v766
        %v836 = vpack.c.bf16 %v772, %v770
        %v837 = vpack.c.bf16 %v776, %v774
        %v838 = vpack.c.bf16 %v780, %v778
        %v839 = vpack.c.bf16 %v784, %v782
        %v840 = vpack.c.bf16 %v788, %v786
        %v841 = vpack.c.bf16 %v792, %v790
        %v842 = vpack.c.bf16 %v814, %v794
        %v861 = vunpack.c.l.b16 %v816
        %v862 = vunpack.c.h.b16 %v816
        %v863 = vunpack.c.l.b16 %v817
        %v864 = vunpack.c.h.b16 %v817
        %v865 = vunpack.c.l.b16 %v818
        %v866 = vunpack.c.h.b16 %v818
        %v867 = vunpack.c.l.b16 %v819
        %v868 = vunpack.c.h.b16 %v819
        %v869 = vunpack.c.l.b16 %v820
        %v870 = vunpack.c.h.b16 %v820
        %v871 = vunpack.c.l.b16 %v821
        %v872 = vunpack.c.h.b16 %v821
        %v873 = vunpack.c.l.b16 %v822
        %v874 = vunpack.c.h.b16 %v822
        %v875 = vunpack.c.l.b16 %v823
        %v876 = vunpack.c.h.b16 %v823
        %v877 = vunpack.c.l.b16 %v824
        %v878 = vunpack.c.h.b16 %v824
        %v879 = vunpack.c.l.b16 %v825
        %v880 = vunpack.c.h.b16 %v825
        %v881 = vunpack.c.l.b16 %v826
        %v882 = vunpack.c.h.b16 %v826
        %v883 = vunpack.c.l.b16 %v827
        %v884 = vunpack.c.h.b16 %v827
        %v885 = vunpack.c.l.b16 %v828
        %v886 = vunpack.c.h.b16 %v828
        %v887 = vunpack.c.l.b16 %v829
        %v888 = vunpack.c.h.b16 %v829
        %v889 = vunpack.c.l.b16 %v830
        %v890 = vunpack.c.h.b16 %v830
        %v891 = vunpack.c.l.b16 %v831
        %v892 = vunpack.c.h.b16 %v831
        %v893 = vunpack.c.l.b16 %v832
        %v894 = vunpack.c.h.b16 %v832
        %v895 = vunpack.c.l.b16 %v833
        %v896 = vunpack.c.h.b16 %v833
        %v897 = vpack.c.b16 %v865, %v861
        %v898 = vpack.c.b16 %v866, %v862
        %v899 = vpack.c.b16 %v867, %v863
        %v900 = vpack.c.b16 %v868, %v864
        %v901 = vpack.c.b16 %v873, %v869
        %v902 = vpack.c.b16 %v874, %v870
        %v903 = vpack.c.b16 %v875, %v871
        %v904 = vpack.c.b16 %v876, %v872
        %v905 = vpack.c.b16 %v881, %v877
        %v906 = vpack.c.b16 %v882, %v878
        %v907 = vpack.c.b16 %v883, %v879
        %v908 = vpack.c.b16 %v884, %v880
        %v909 = vpack.c.b16 %v889, %v885
        %v910 = vpack.c.b16 %v890, %v886
        %v911 = vpack.c.b16 %v891, %v887
        %v912 = vpack.c.b16 %v892, %v888
        %v913 = vpack.c.b16 %v893, %v893
        %v914 = vpack.c.b16 %v894, %v894
        %v915 = vpack.c.b16 %v895, %v895
        %v916 = vpack.c.b16 %v896, %v896
        %vm933 = vcmask 572416
        %v935 = vsel %vm933, %v834, 0
        %v938 = vsel %vm933, %v835, 0
        %v941 = vsel %vm933, %v836, 0
        %v944 = vsel %vm933, %v837, 0
        %v947 = vsel %vm933, %v838, 0
        %v950 = vsel %vm933, %v839, 0
        %v953 = vsel %vm933, %v840, 0
        %v956 = vsel %vm933, %v841, 0
        %v959 = vsel %vm933, %v842, 0
        %vm961 = vcmask 1042432
        %v963 = vsel %vm961, %v913, 0
        %v966 = vsel %vm961, %v914, 0
        %v969 = vsel %vm961, %v915, 0
        %v972 = vsel %vm961, %v916, 0
        %974 = vmatprep.subr.bf16.mxu0 %v898
        %975 = vmatpush1.bf16.msra.mxu0 %v897
        %976 = vmatprep.subr.bf16.mxu0 %v902
        %977 = vmatpush1.bf16.msra.mxu0 %v901
        %978 = vmatprep.subr.bf16.mxu0 %v906
        %979 = vmatpush1.bf16.msra.mxu0 %v905
        %980 = vmatprep.subr.bf16.mxu0 %v910
        %981 = vmatpush1.bf16.msra.mxu0 %v909
        %982 = vmatprep.subr.bf16.mxu0 %v966
        %983 = vmatpush1.bf16.msra.mxu0 %v963
        %984 = vmatprep.subr.bf16.mxu0 0
        %985 = vmatpush1.bf16.msra.mxu0 0
        %986 = vmatprep.subr.bf16.mxu0 0
        %987 = vmatpush1.bf16.msra.mxu0 0
        %988 = vmatprep.subr.bf16.mxu0 0
        %989 = vmatpush1.bf16.msra.mxu0 0
        %990 = vmatprep.subr.bf16.mxu0 0
        %991 = vmatpush1.bf16.msra.mxu0 0
        %992 = vmatprep.subr.bf16.mxu0 0
        %993 = vmatpush1.bf16.msra.mxu0 0
        %994 = vmatprep.subr.bf16.mxu0 0
        %995 = vmatpush1.bf16.msra.mxu0 0
        %996 = vmatprep.subr.bf16.mxu0 0
        %997 = vmatpush1.bf16.msra.mxu0 0
        %998 = vmatprep.subr.bf16.mxu0 0
        %999 = vmatpush1.bf16.msra.mxu0 0
        %1000 = vmatprep.subr.bf16.mxu0 0
        %1001 = vmatpush1.bf16.msra.mxu0 0
        %1002 = vmatprep.subr.bf16.mxu0 0
        %1003 = vmatpush1.bf16.msra.mxu0 0
        %1004 = vmatprep.subr.bf16.mxu0 0
        %1005 = vmatpush1.bf16.msra.mxu0 0
        %1006 = vmatprep.mubr.bf16.mxu0 0
        %1007 = vmatmul.mubr.bf16.gmra.mrb[0].mxu0 %v935
        %v1008 = vpop.f32.mrb[0].mxu0
        %v1009 = vadd.f32 0.0, %v1008
        %v1010 = vpop.f32.mrb[0].mxu0
        %v1011 = vadd.f32 0.0, %v1010
        %v1012 = vpop.f32.mrb[0].mxu0
        %v1013 = vadd.f32 0.0, %v1012
        %v1014 = vpop.f32.mrb[0].mxu0
        %v1015 = vadd.f32 0.0, %v1014
        %1016 = vmatprep.mubr.bf16.mxu0 0
        %1017 = vmatmul.mubr.bf16.gmra.mrb[0].mxu0 %v938
        %v1018 = vpop.f32.mrb[0].mxu0
        %v1019 = vadd.f32 0.0, %v1018
        %v1020 = vpop.f32.mrb[0].mxu0
        %v1021 = vadd.f32 0.0, %v1020
        %v1022 = vpop.f32.mrb[0].mxu0
        %v1023 = vadd.f32 0.0, %v1022
        %v1024 = vpop.f32.mrb[0].mxu0
        %v1025 = vadd.f32 0.0, %v1024
        %1026 = vmatprep.mubr.bf16.mxu0 0
        %1027 = vmatmul.mubr.bf16.gmra.mrb[0].mxu0 %v941
        %v1028 = vpop.f32.mrb[0].mxu0
        %v1029 = vadd.f32 0.0, %v1028
        %v1030 = vpop.f32.mrb[0].mxu0
        %v1031 = vadd.f32 0.0, %v1030
        %v1032 = vpop.f32.mrb[0].mxu0
        %v1033 = vadd.f32 0.0, %v1032
        %v1034 = vpop.f32.mrb[0].mxu0
        %v1035 = vadd.f32 0.0, %v1034
        %1036 = vmatprep.mubr.bf16.mxu0 0
        %1037 = vmatmul.mubr.bf16.gmra.mrb[0].mxu0 %v944
        %v1038 = vpop.f32.mrb[0].mxu0
        %v1039 = vadd.f32 0.0, %v1038
        %v1040 = vpop.f32.mrb[0].mxu0
        %v1041 = vadd.f32 0.0, %v1040
        %v1042 = vpop.f32.mrb[0].mxu0
        %v1043 = vadd.f32 0.0, %v1042
        %v1044 = vpop.f32.mrb[0].mxu0
        %v1045 = vadd.f32 0.0, %v1044
        %1046 = vmatprep.mubr.bf16.mxu0 0
        %1047 = vmatmul.mubr.bf16.gmra.mrb[0].mxu0 %v947
        %v1048 = vpop.f32.mrb[0].mxu0
        %v1049 = vadd.f32 0.0, %v1048
        %v1050 = vpop.f32.mrb[0].mxu0
        %v1051 = vadd.f32 0.0, %v1050
        %v1052 = vpop.f32.mrb[0].mxu0
        %v1053 = vadd.f32 0.0, %v1052
        %v1054 = vpop.f32.mrb[0].mxu0
        %v1055 = vadd.f32 0.0, %v1054
        %1056 = vmatprep.mubr.bf16.mxu0 0
        %1057 = vmatmul.mubr.bf16.gmra.mrb[0].mxu0 %v950
        %v1058 = vpop.f32.mrb[0].mxu0
        %v1059 = vadd.f32 0.0, %v1058
        %v1060 = vpop.f32.mrb[0].mxu0
        %v1061 = vadd.f32 0.0, %v1060
        %v1062 = vpop.f32.mrb[0].mxu0
        %v1063 = vadd.f32 0.0, %v1062
        %v1064 = vpop.f32.mrb[0].mxu0
        %v1065 = vadd.f32 0.0, %v1064
        %1066 = vmatprep.mubr.bf16.mxu0 0
        %1067 = vmatmul.mubr.bf16.gmra.mrb[0].mxu0 %v953
        %v1068 = vpop.f32.mrb[0].mxu0
        %v1069 = vadd.f32 0.0, %v1068
        %v1070 = vpop.f32.mrb[0].mxu0
        %v1071 = vadd.f32 0.0, %v1070
        %v1072 = vpop.f32.mrb[0].mxu0
        %v1073 = vadd.f32 0.0, %v1072
        %v1074 = vpop.f32.mrb[0].mxu0
        %v1075 = vadd.f32 0.0, %v1074
        %1076 = vmatprep.mubr.bf16.mxu0 0
        %1077 = vmatmul.mubr.bf16.gmra.mrb[0].mxu0 %v956
        %v1078 = vpop.f32.mrb[0].mxu0
        %v1079 = vadd.f32 0.0, %v1078
        %v1080 = vpop.f32.mrb[0].mxu0
        %v1081 = vadd.f32 0.0, %v1080
        %v1082 = vpop.f32.mrb[0].mxu0
        %v1083 = vadd.f32 0.0, %v1082
        %v1084 = vpop.f32.mrb[0].mxu0
        %v1085 = vadd.f32 0.0, %v1084
        %1086 = vmatprep.mubr.bf16.mxu0 0
        %1087 = vmatmul.mubr.bf16.gmra.mrb[0].mxu0 %v959
        %v1088 = vpop.f32.mrb[0].mxu0
        %v1089 = vadd.f32 0.0, %v1088
        %v1090 = vpop.f32.mrb[0].mxu0
        %v1091 = vadd.f32 0.0, %v1090
        %v1092 = vpop.f32.mrb[0].mxu0
        %v1093 = vadd.f32 0.0, %v1092
        %v1094 = vpop.f32.mrb[0].mxu0
        %v1095 = vadd.f32 0.0, %v1094
        %1096 = vdwg.mxu0
        %1097 = vmatprep.subr.bf16.mxu0 %v900
        %1098 = vmatpush1.bf16.msra.mxu0 %v899
        %1099 = vmatprep.subr.bf16.mxu0 %v904
        %1100 = vmatpush1.bf16.msra.mxu0 %v903
        %1101 = vmatprep.subr.bf16.mxu0 %v908
        %1102 = vmatpush1.bf16.msra.mxu0 %v907
        %1103 = vmatprep.subr.bf16.mxu0 %v912
        %1104 = vmatpush1.bf16.msra.mxu0 %v911
        %1105 = vmatprep.subr.bf16.mxu0 %v972
        %1106 = vmatpush1.bf16.msra.mxu0 %v969
        %1107 = vmatprep.subr.bf16.mxu0 0
        %1108 = vmatpush1.bf16.msra.mxu0 0
        %1109 = vmatprep.subr.bf16.mxu0 0
        %1110 = vmatpush1.bf16.msra.mxu0 0
        %1111 = vmatprep.subr.bf16.mxu0 0
        %1112 = vmatpush1.bf16.msra.mxu0 0
        %1113 = vmatprep.subr.bf16.mxu0 0
        %1114 = vmatpush1.bf16.msra.mxu0 0
        %1115 = vmatprep.subr.bf16.mxu0 0
        %1116 = vmatpush1.bf16.msra.mxu0 0
        %1117 = vmatprep.subr.bf16.mxu0 0
        %1118 = vmatpush1.bf16.msra.mxu0 0
        %1119 = vmatprep.subr.bf16.mxu0 0
        %1120 = vmatpush1.bf16.msra.mxu0 0
        %1121 = vmatprep.subr.bf16.mxu0 0
        %1122 = vmatpush1.bf16.msra.mxu0 0
        %1123 = vmatprep.subr.bf16.mxu0 0
        %1124 = vmatpush1.bf16.msra.mxu0 0
        %1125 = vmatprep.subr.bf16.mxu0 0
        %1126 = vmatpush1.bf16.msra.mxu0 0
        %1127 = vmatprep.subr.bf16.mxu0 0
        %1128 = vmatpush1.bf16.msra.mxu0 0
        %1129 = vmatprep.mubr.bf16.mxu0 0
        %1130 = vmatmul.mubr.bf16.gmra.mrb[0].mxu0 %v935
        %v1131 = vpop.f32.mrb[0].mxu0
        %v1132 = vadd.f32 0.0, %v1131
        %v1133 = vpop.f32.mrb[0].mxu0
        %v1134 = vadd.f32 0.0, %v1133
        %v1135 = vpop.f32.mrb[0].mxu0
        %v1136 = vadd.f32 0.0, %v1135
        %v1137 = vpop.f32.mrb[0].mxu0
        %v1138 = vadd.f32 0.0, %v1137
        %1139 = vmatprep.mubr.bf16.mxu0 0
        %1140 = vmatmul.mubr.bf16.gmra.mrb[0].mxu0 %v938
        %v1141 = vpop.f32.mrb[0].mxu0
        %v1142 = vadd.f32 0.0, %v1141
        %v1143 = vpop.f32.mrb[0].mxu0
        %v1144 = vadd.f32 0.0, %v1143
        %v1145 = vpop.f32.mrb[0].mxu0
        %v1146 = vadd.f32 0.0, %v1145
        %v1147 = vpop.f32.mrb[0].mxu0
        %v1148 = vadd.f32 0.0, %v1147
        %1149 = vmatprep.mubr.bf16.mxu0 0
        %1150 = vmatmul.mubr.bf16.gmra.mrb[0].mxu0 %v941
        %v1151 = vpop.f32.mrb[0].mxu0
        %v1152 = vadd.f32 0.0, %v1151
        %v1153 = vpop.f32.mrb[0].mxu0
        %v1154 = vadd.f32 0.0, %v1153
        %v1155 = vpop.f32.mrb[0].mxu0
        %v1156 = vadd.f32 0.0, %v1155
        %v1157 = vpop.f32.mrb[0].mxu0
        %v1158 = vadd.f32 0.0, %v1157
        %1159 = vmatprep.mubr.bf16.mxu0 0
        %1160 = vmatmul.mubr.bf16.gmra.mrb[0].mxu0 %v944
        %v1161 = vpop.f32.mrb[0].mxu0
        %v1162 = vadd.f32 0.0, %v1161
        %v1163 = vpop.f32.mrb[0].mxu0
        %v1164 = vadd.f32 0.0, %v1163
        %v1165 = vpop.f32.mrb[0].mxu0
        %v1166 = vadd.f32 0.0, %v1165
        %v1167 = vpop.f32.mrb[0].mxu0
        %v1168 = vadd.f32 0.0, %v1167
        %1169 = vmatprep.mubr.bf16.mxu0 0
        %1170 = vmatmul.mubr.bf16.gmra.mrb[0].mxu0 %v947
        %v1171 = vpop.f32.mrb[0].mxu0
        %v1172 = vadd.f32 0.0, %v1171
        %v1173 = vpop.f32.mrb[0].mxu0
        %v1174 = vadd.f32 0.0, %v1173
        %v1175 = vpop.f32.mrb[0].mxu0
        %v1176 = vadd.f32 0.0, %v1175
        %v1177 = vpop.f32.mrb[0].mxu0
        %v1178 = vadd.f32 0.0, %v1177
        %1179 = vmatprep.mubr.bf16.mxu0 0
        %1180 = vmatmul.mubr.bf16.gmra.mrb[0].mxu0 %v950
        %v1181 = vpop.f32.mrb[0].mxu0
        %v1182 = vadd.f32 0.0, %v1181
        %v1183 = vpop.f32.mrb[0].mxu0
        %v1184 = vadd.f32 0.0, %v1183
        %v1185 = vpop.f32.mrb[0].mxu0
        %v1186 = vadd.f32 0.0, %v1185
        %v1187 = vpop.f32.mrb[0].mxu0
        %v1188 = vadd.f32 0.0, %v1187
        %1189 = vmatprep.mubr.bf16.mxu0 0
        %1190 = vmatmul.mubr.bf16.gmra.mrb[0].mxu0 %v953
        %v1191 = vpop.f32.mrb[0].mxu0
        %v1192 = vadd.f32 0.0, %v1191
        %v1193 = vpop.f32.mrb[0].mxu0
        %v1194 = vadd.f32 0.0, %v1193
        %v1195 = vpop.f32.mrb[0].mxu0
        %v1196 = vadd.f32 0.0, %v1195
        %v1197 = vpop.f32.mrb[0].mxu0
        %v1198 = vadd.f32 0.0, %v1197
        %1199 = vmatprep.mubr.bf16.mxu0 0
        %1200 = vmatmul.mubr.bf16.gmra.mrb[0].mxu0 %v956
        %v1201 = vpop.f32.mrb[0].mxu0
        %v1202 = vadd.f32 0.0, %v1201
        %v1203 = vpop.f32.mrb[0].mxu0
        %v1204 = vadd.f32 0.0, %v1203
        %v1205 = vpop.f32.mrb[0].mxu0
        %v1206 = vadd.f32 0.0, %v1205
        %v1207 = vpop.f32.mrb[0].mxu0
        %v1208 = vadd.f32 0.0, %v1207
        %1209 = vmatprep.mubr.bf16.mxu0 0
        %1210 = vmatmul.mubr.bf16.gmra.mrb[0].mxu0 %v959
        %v1211 = vpop.f32.mrb[0].mxu0
        %v1212 = vadd.f32 0.0, %v1211
        %v1213 = vpop.f32.mrb[0].mxu0
        %v1214 = vadd.f32 0.0, %v1213
        %v1215 = vpop.f32.mrb[0].mxu0
        %v1216 = vadd.f32 0.0, %v1215
        %v1217 = vpop.f32.mrb[0].mxu0
        %v1218 = vadd.f32 0.0, %v1217
        %1219 = vdwg.mxu0
        %v1238 = vunpack.c.l.b16 %v714
        %v1239 = vunpack.c.h.b16 %v714
        %v1240 = vunpack.c.l.b16 %v715
        %v1241 = vunpack.c.h.b16 %v715
        %v1242 = vunpack.c.l.b16 %v716
        %v1243 = vunpack.c.h.b16 %v716
        %v1244 = vunpack.c.l.b16 %v717
        %v1245 = vunpack.c.h.b16 %v717
        %v1246 = vunpack.c.l.b16 %v718
        %v1247 = vunpack.c.h.b16 %v718
        %v1248 = vunpack.c.l.b16 %v719
        %v1249 = vunpack.c.h.b16 %v719
        %v1250 = vunpack.c.l.b16 %v720
        %v1251 = vunpack.c.h.b16 %v720
        %v1252 = vunpack.c.l.b16 %v721
        %v1253 = vunpack.c.h.b16 %v721
        %v1254 = vunpack.c.l.b16 %v722
        %v1255 = vunpack.c.h.b16 %v722
        %v1256 = vunpack.c.l.b16 %v723
        %v1257 = vunpack.c.h.b16 %v723
        %v1258 = vunpack.c.l.b16 %v724
        %v1259 = vunpack.c.h.b16 %v724
        %v1260 = vunpack.c.l.b16 %v725
        %v1261 = vunpack.c.h.b16 %v725
        %v1262 = vunpack.c.l.b16 %v726
        %v1263 = vunpack.c.h.b16 %v726
        %v1264 = vunpack.c.l.b16 %v727
        %v1265 = vunpack.c.h.b16 %v727
        %v1266 = vunpack.c.l.b16 %v728
        %v1267 = vunpack.c.h.b16 %v728
        %v1268 = vunpack.c.l.b16 %v729
        %v1269 = vunpack.c.h.b16 %v729
        %v1270 = vunpack.c.l.b16 %v730
        %v1271 = vunpack.c.h.b16 %v730
        %v1272 = vunpack.c.l.b16 %v731
        %v1273 = vunpack.c.h.b16 %v731
        %v1274 = vpack.c.b16 %v1242, %v1238
        %v1275 = vpack.c.b16 %v1243, %v1239
        %v1276 = vpack.c.b16 %v1244, %v1240
        %v1277 = vpack.c.b16 %v1245, %v1241
        %v1278 = vpack.c.b16 %v1250, %v1246
        %v1279 = vpack.c.b16 %v1251, %v1247
        %v1280 = vpack.c.b16 %v1252, %v1248
        %v1281 = vpack.c.b16 %v1253, %v1249
        %v1282 = vpack.c.b16 %v1258, %v1254
        %v1283 = vpack.c.b16 %v1259, %v1255
        %v1284 = vpack.c.b16 %v1260, %v1256
        %v1285 = vpack.c.b16 %v1261, %v1257
        %v1286 = vpack.c.b16 %v1266, %v1262
        %v1287 = vpack.c.b16 %v1267, %v1263
        %v1288 = vpack.c.b16 %v1268, %v1264
        %v1289 = vpack.c.b16 %v1269, %v1265
        %v1290 = vpack.c.b16 %v1270, %v1270
        %v1291 = vpack.c.b16 %v1271, %v1271
        %v1292 = vpack.c.b16 %v1272, %v1272
        %v1293 = vpack.c.b16 %v1273, %v1273
        %v1311 = vsel %vm933, %v732, 0
        %v1314 = vsel %vm933, %v733, 0
        %v1317 = vsel %vm933, %v734, 0
        %v1320 = vsel %vm933, %v735, 0
        %v1323 = vsel %vm933, %v736, 0
        %v1326 = vsel %vm933, %v737, 0
        %v1329 = vsel %vm933, %v738, 0
        %v1332 = vsel %vm933, %v739, 0
        %v1335 = vsel %vm933, %v740, 0
        %v1338 = vsel %vm961, %v1290, 0
        %v1341 = vsel %vm961, %v1291, 0
        %v1344 = vsel %vm961, %v1292, 0
        %v1347 = vsel %vm961, %v1293, 0
        %1349 = vmatprep.subr.bf16.mxu0 %v1275
        %1350 = vmatpush1.bf16.msra.mxu0 %v1274
        %1351 = vmatprep.subr.bf16.mxu0 %v1279
        %1352 = vmatpush1.bf16.msra.mxu0 %v1278
        %1353 = vmatprep.subr.bf16.mxu0 %v1283
        %1354 = vmatpush1.bf16.msra.mxu0 %v1282
        %1355 = vmatprep.subr.bf16.mxu0 %v1287
        %1356 = vmatpush1.bf16.msra.mxu0 %v1286
        %1357 = vmatprep.subr.bf16.mxu0 %v1341
        %1358 = vmatpush1.bf16.msra.mxu0 %v1338
        %1359 = vmatprep.subr.bf16.mxu0 0
        %1360 = vmatpush1.bf16.msra.mxu0 0
        %1361 = vmatprep.subr.bf16.mxu0 0
        %1362 = vmatpush1.bf16.msra.mxu0 0
        %1363 = vmatprep.subr.bf16.mxu0 0
        %1364 = vmatpush1.bf16.msra.mxu0 0
        %1365 = vmatprep.subr.bf16.mxu0 0
        %1366 = vmatpush1.bf16.msra.mxu0 0
        %1367 = vmatprep.subr.bf16.mxu0 0
        %1368 = vmatpush1.bf16.msra.mxu0 0
        %1369 = vmatprep.subr.bf16.mxu0 0
        %1370 = vmatpush1.bf16.msra.mxu0 0
        %1371 = vmatprep.subr.bf16.mxu0 0
        %1372 = vmatpush1.bf16.msra.mxu0 0
        %1373 = vmatprep.subr.bf16.mxu0 0
        %1374 = vmatpush1.bf16.msra.mxu0 0
        %1375 = vmatprep.subr.bf16.mxu0 0
        %1376 = vmatpush1.bf16.msra.mxu0 0
        %1377 = vmatprep.subr.bf16.mxu0 0
        %1378 = vmatpush1.bf16.msra.mxu0 0
        %1379 = vmatprep.subr.bf16.mxu0 0
        %1380 = vmatpush1.bf16.msra.mxu0 0
        %1381 = vmatprep.mubr.bf16.mxu0 0
        %1382 = vmatmul.mubr.bf16.gmra.mrb[0].mxu0 %v1311
        %v1383 = vpop.f32.mrb[0].mxu0
        %v1384 = vadd.f32 %v1009, %v1383
        %v1385 = vpop.f32.mrb[0].mxu0
        %v1386 = vadd.f32 %v1011, %v1385
        %v1387 = vpop.f32.mrb[0].mxu0
        %v1388 = vadd.f32 %v1013, %v1387
        %v1389 = vpop.f32.mrb[0].mxu0
        %v1390 = vadd.f32 %v1015, %v1389
        %1391 = vmatprep.mubr.bf16.mxu0 0
        %1392 = vmatmul.mubr.bf16.gmra.mrb[0].mxu0 %v1314
        %v1393 = vpop.f32.mrb[0].mxu0
        %v1394 = vadd.f32 %v1019, %v1393
        %v1395 = vpop.f32.mrb[0].mxu0
        %v1396 = vadd.f32 %v1021, %v1395
        %v1397 = vpop.f32.mrb[0].mxu0
        %v1398 = vadd.f32 %v1023, %v1397
        %v1399 = vpop.f32.mrb[0].mxu0
        %v1400 = vadd.f32 %v1025, %v1399
        %1401 = vmatprep.mubr.bf16.mxu0 0
        %1402 = vmatmul.mubr.bf16.gmra.mrb[0].mxu0 %v1317
        %v1403 = vpop.f32.mrb[0].mxu0
        %v1404 = vadd.f32 %v1029, %v1403
        %v1405 = vpop.f32.mrb[0].mxu0
        %v1406 = vadd.f32 %v1031, %v1405
        %v1407 = vpop.f32.mrb[0].mxu0
        %v1408 = vadd.f32 %v1033, %v1407
        %v1409 = vpop.f32.mrb[0].mxu0
        %v1410 = vadd.f32 %v1035, %v1409
        %1411 = vmatprep.mubr.bf16.mxu0 0
        %1412 = vmatmul.mubr.bf16.gmra.mrb[0].mxu0 %v1320
        %v1413 = vpop.f32.mrb[0].mxu0
        %v1414 = vadd.f32 %v1039, %v1413
        %v1415 = vpop.f32.mrb[0].mxu0
        %v1416 = vadd.f32 %v1041, %v1415
        %v1417 = vpop.f32.mrb[0].mxu0
        %v1418 = vadd.f32 %v1043, %v1417
        %v1419 = vpop.f32.mrb[0].mxu0
        %v1420 = vadd.f32 %v1045, %v1419
        %1421 = vmatprep.mubr.bf16.mxu0 0
        %1422 = vmatmul.mubr.bf16.gmra.mrb[0].mxu0 %v1323
        %v1423 = vpop.f32.mrb[0].mxu0
        %v1424 = vadd.f32 %v1049, %v1423
        %v1425 = vpop.f32.mrb[0].mxu0
        %v1426 = vadd.f32 %v1051, %v1425
        %v1427 = vpop.f32.mrb[0].mxu0
        %v1428 = vadd.f32 %v1053, %v1427
        %v1429 = vpop.f32.mrb[0].mxu0
        %v1430 = vadd.f32 %v1055, %v1429
        %1431 = vmatprep.mubr.bf16.mxu0 0
        %1432 = vmatmul.mubr.bf16.gmra.mrb[0].mxu0 %v1326
        %v1433 = vpop.f32.mrb[0].mxu0
        %v1434 = vadd.f32 %v1059, %v1433
        %v1435 = vpop.f32.mrb[0].mxu0
        %v1436 = vadd.f32 %v1061, %v1435
        %v1437 = vpop.f32.mrb[0].mxu0
        %v1438 = vadd.f32 %v1063, %v1437
        %v1439 = vpop.f32.mrb[0].mxu0
        %v1440 = vadd.f32 %v1065, %v1439
        %1441 = vmatprep.mubr.bf16.mxu0 0
        %1442 = vmatmul.mubr.bf16.gmra.mrb[0].mxu0 %v1329
        %v1443 = vpop.f32.mrb[0].mxu0
        %v1444 = vadd.f32 %v1069, %v1443
        %v1445 = vpop.f32.mrb[0].mxu0
        %v1446 = vadd.f32 %v1071, %v1445
        %v1447 = vpop.f32.mrb[0].mxu0
        %v1448 = vadd.f32 %v1073, %v1447
        %v1449 = vpop.f32.mrb[0].mxu0
        %v1450 = vadd.f32 %v1075, %v1449
        %1451 = vmatprep.mubr.bf16.mxu0 0
        %1452 = vmatmul.mubr.bf16.gmra.mrb[0].mxu0 %v1332
        %v1453 = vpop.f32.mrb[0].mxu0
        %v1454 = vadd.f32 %v1079, %v1453
        %v1455 = vpop.f32.mrb[0].mxu0
        %v1456 = vadd.f32 %v1081, %v1455
        %v1457 = vpop.f32.mrb[0].mxu0
        %v1458 = vadd.f32 %v1083, %v1457
        %v1459 = vpop.f32.mrb[0].mxu0
        %v1460 = vadd.f32 %v1085, %v1459
        %1461 = vmatprep.mubr.bf16.mxu0 0
        %1462 = vmatmul.mubr.bf16.gmra.mrb[0].mxu0 %v1335
        %v1463 = vpop.f32.mrb[0].mxu0
        %v1464 = vadd.f32 %v1089, %v1463
        %v1465 = vpop.f32.mrb[0].mxu0
        %v1466 = vadd.f32 %v1091, %v1465
        %v1467 = vpop.f32.mrb[0].mxu0
        %v1468 = vadd.f32 %v1093, %v1467
        %v1469 = vpop.f32.mrb[0].mxu0
        %v1470 = vadd.f32 %v1095, %v1469
        %1471 = vdwg.mxu0
        %1472 = vmatprep.subr.bf16.mxu0 %v1277
        %1473 = vmatpush1.bf16.msra.mxu0 %v1276
        %1474 = vmatprep.subr.bf16.mxu0 %v1281
        %1475 = vmatpush1.bf16.msra.mxu0 %v1280
        %1476 = vmatprep.subr.bf16.mxu0 %v1285
        %1477 = vmatpush1.bf16.msra.mxu0 %v1284
        %1478 = vmatprep.subr.bf16.mxu0 %v1289
        %1479 = vmatpush1.bf16.msra.mxu0 %v1288
        %1480 = vmatprep.subr.bf16.mxu0 %v1347
        %1481 = vmatpush1.bf16.msra.mxu0 %v1344
        %1482 = vmatprep.subr.bf16.mxu0 0
        %1483 = vmatpush1.bf16.msra.mxu0 0
        %1484 = vmatprep.subr.bf16.mxu0 0
        %1485 = vmatpush1.bf16.msra.mxu0 0
        %1486 = vmatprep.subr.bf16.mxu0 0
        %1487 = vmatpush1.bf16.msra.mxu0 0
        %1488 = vmatprep.subr.bf16.mxu0 0
        %1489 = vmatpush1.bf16.msra.mxu0 0
        %1490 = vmatprep.subr.bf16.mxu0 0
        %1491 = vmatpush1.bf16.msra.mxu0 0
        %1492 = vmatprep.subr.bf16.mxu0 0
        %1493 = vmatpush1.bf16.msra.mxu0 0
        %1494 = vmatprep.subr.bf16.mxu0 0
        %1495 = vmatpush1.bf16.msra.mxu0 0
        %1496 = vmatprep.subr.bf16.mxu0 0
        %1497 = vmatpush1.bf16.msra.mxu0 0
        %1498 = vmatprep.subr.bf16.mxu0 0
        %1499 = vmatpush1.bf16.msra.mxu0 0
        %1500 = vmatprep.subr.bf16.mxu0 0
        %1501 = vmatpush1.bf16.msra.mxu0 0
        %1502 = vmatprep.subr.bf16.mxu0 0
        %1503 = vmatpush1.bf16.msra.mxu0 0
        %1504 = vmatprep.mubr.bf16.mxu0 0
        %1505 = vmatmul.mubr.bf16.gmra.mrb[0].mxu0 %v1311
        %v1506 = vpop.f32.mrb[0].mxu0
        %v1507 = vadd.f32 %v1132, %v1506
        %v1508 = vpop.f32.mrb[0].mxu0
        %v1509 = vadd.f32 %v1134, %v1508
        %v1510 = vpop.f32.mrb[0].mxu0
        %v1511 = vadd.f32 %v1136, %v1510
        %v1512 = vpop.f32.mrb[0].mxu0
        %v1513 = vadd.f32 %v1138, %v1512
        %1514 = vmatprep.mubr.bf16.mxu0 0
        %1515 = vmatmul.mubr.bf16.gmra.mrb[0].mxu0 %v1314
        %v1516 = vpop.f32.mrb[0].mxu0
        %v1517 = vadd.f32 %v1142, %v1516
        %v1518 = vpop.f32.mrb[0].mxu0
        %v1519 = vadd.f32 %v1144, %v1518
        %v1520 = vpop.f32.mrb[0].mxu0
        %v1521 = vadd.f32 %v1146, %v1520
        %v1522 = vpop.f32.mrb[0].mxu0
        %v1523 = vadd.f32 %v1148, %v1522
        %1524 = vmatprep.mubr.bf16.mxu0 0
        %1525 = vmatmul.mubr.bf16.gmra.mrb[0].mxu0 %v1317
        %v1526 = vpop.f32.mrb[0].mxu0
        %v1527 = vadd.f32 %v1152, %v1526
        %v1528 = vpop.f32.mrb[0].mxu0
        %v1529 = vadd.f32 %v1154, %v1528
        %v1530 = vpop.f32.mrb[0].mxu0
        %v1531 = vadd.f32 %v1156, %v1530
        %v1532 = vpop.f32.mrb[0].mxu0
        %v1533 = vadd.f32 %v1158, %v1532
        %1534 = vmatprep.mubr.bf16.mxu0 0
        %1535 = vmatmul.mubr.bf16.gmra.mrb[0].mxu0 %v1320
        %v1536 = vpop.f32.mrb[0].mxu0
        %v1537 = vadd.f32 %v1162, %v1536
        %v1538 = vpop.f32.mrb[0].mxu0
        %v1539 = vadd.f32 %v1164, %v1538
        %v1540 = vpop.f32.mrb[0].mxu0
        %v1541 = vadd.f32 %v1166, %v1540
        %v1542 = vpop.f32.mrb[0].mxu0
        %v1543 = vadd.f32 %v1168, %v1542
        %1544 = vmatprep.mubr.bf16.mxu0 0
        %1545 = vmatmul.mubr.bf16.gmra.mrb[0].mxu0 %v1323
        %v1546 = vpop.f32.mrb[0].mxu0
        %v1547 = vadd.f32 %v1172, %v1546
        %v1548 = vpop.f32.mrb[0].mxu0
        %v1549 = vadd.f32 %v1174, %v1548
        %v1550 = vpop.f32.mrb[0].mxu0
        %v1551 = vadd.f32 %v1176, %v1550
        %v1552 = vpop.f32.mrb[0].mxu0
        %v1553 = vadd.f32 %v1178, %v1552
        %1554 = vmatprep.mubr.bf16.mxu0 0
        %1555 = vmatmul.mubr.bf16.gmra.mrb[0].mxu0 %v1326
        %v1556 = vpop.f32.mrb[0].mxu0
        %v1557 = vadd.f32 %v1182, %v1556
        %v1558 = vpop.f32.mrb[0].mxu0
        %v1559 = vadd.f32 %v1184, %v1558
        %v1560 = vpop.f32.mrb[0].mxu0
        %v1561 = vadd.f32 %v1186, %v1560
        %v1562 = vpop.f32.mrb[0].mxu0
        %v1563 = vadd.f32 %v1188, %v1562
        %1564 = vmatprep.mubr.bf16.mxu0 0
        %1565 = vmatmul.mubr.bf16.gmra.mrb[0].mxu0 %v1329
        %v1566 = vpop.f32.mrb[0].mxu0
        %v1567 = vadd.f32 %v1192, %v1566
        %v1568 = vpop.f32.mrb[0].mxu0
        %v1569 = vadd.f32 %v1194, %v1568
        %v1570 = vpop.f32.mrb[0].mxu0
        %v1571 = vadd.f32 %v1196, %v1570
        %v1572 = vpop.f32.mrb[0].mxu0
        %v1573 = vadd.f32 %v1198, %v1572
        %1574 = vmatprep.mubr.bf16.mxu0 0
        %1575 = vmatmul.mubr.bf16.gmra.mrb[0].mxu0 %v1332
        %v1576 = vpop.f32.mrb[0].mxu0
        %v1577 = vadd.f32 %v1202, %v1576
        %v1578 = vpop.f32.mrb[0].mxu0
        %v1579 = vadd.f32 %v1204, %v1578
        %v1580 = vpop.f32.mrb[0].mxu0
        %v1581 = vadd.f32 %v1206, %v1580
        %v1582 = vpop.f32.mrb[0].mxu0
        %v1583 = vadd.f32 %v1208, %v1582
        %1584 = vmatprep.mubr.bf16.mxu0 0
        %1585 = vmatmul.mubr.bf16.gmra.mrb[0].mxu0 %v1335
        %v1586 = vpop.f32.mrb[0].mxu0
        %v1587 = vadd.f32 %v1212, %v1586
        %v1588 = vpop.f32.mrb[0].mxu0
        %v1589 = vadd.f32 %v1214, %v1588
        %v1590 = vpop.f32.mrb[0].mxu0
        %v1591 = vadd.f32 %v1216, %v1590
        %v1592 = vpop.f32.mrb[0].mxu0
        %v1593 = vadd.f32 %v1218, %v1592
        %1594 = vdwg.mxu0
        %vm1595 = vcmask 1045504
        %v1596 = vrot.slane %v696, 2
        %v1597 = vrot.slane %v697, 2
        %v1598 = vsel %vm1595, %v1596, %v1597
        %v1599 = vrot.slane %v698, 2
        %v1600 = vsel %vm1595, %v1597, %v1599
        %v1601 = vrot.slane %v699, 2
        %v1602 = vsel %vm1595, %v1599, %v1601
        %v1603 = vrot.slane %v700, 2
        %v1604 = vsel %vm1595, %v1601, %v1603
        %v1605 = vrot.slane %v701, 2
        %v1606 = vsel %vm1595, %v1603, %v1605
        %v1607 = vrot.slane %v702, 2
        %v1608 = vsel %vm1595, %v1605, %v1607
        %v1609 = vrot.slane %v703, 2
        %v1610 = vsel %vm1595, %v1607, %v1609
        %v1611 = vrot.slane %v704, 2
        %v1612 = vsel %vm1595, %v1609, %v1611
        %v1613 = vrot.slane %v705, 2
        %v1614 = vsel %vm1595, %v1611, %v1613
        %v1615 = vrot.slane %v706, 2
        %v1616 = vsel %vm1595, %v1613, %v1615
        %v1617 = vrot.slane %v707, 2
        %v1618 = vsel %vm1595, %v1615, %v1617
        %v1619 = vrot.slane %v708, 2
        %v1620 = vsel %vm1595, %v1617, %v1619
        %v1621 = vrot.slane %v709, 2
        %v1622 = vsel %vm1595, %v1619, %v1621
        %v1623 = vrot.slane %v710, 2
        %v1624 = vsel %vm1595, %v1621, %v1623
        %v1625 = vrot.slane %v711, 2
        %v1626 = vsel %vm1595, %v1623, %v1625
        %v1627 = vrot.slane %v712, 2
        %v1628 = vsel %vm1595, %v1625, %v1627
        %v1629 = vrot.slane %v713, 2
        %v1630 = vsel %vm1595, %v1627, %v1629
        %v1650 = vsel %vm1595, %v1629, %v1596
        %s1651 = scalar_lea.vmem [#allocation2], 288
        %v1652 = vld [vmem:[%s1651] sm:$0xff]
        %v1653 = vld [vmem:[%s1651 + $0x8] sm:$0xff]
        %v1654 = vld [vmem:[%s1651 + $0x10] sm:$0xff]
        %v1655 = vld [vmem:[%s1651 + $0x18] sm:$0xff]
        %v1656 = vld [vmem:[%s1651 + $0x20] sm:$0xff]
        %v1657 = vld [vmem:[%s1651 + $0x28] sm:$0xff]
        %v1658 = vld [vmem:[%s1651 + $0x30] sm:$0xff]
        %v1659 = vld [vmem:[%s1651 + $0x38] sm:$0xff]
        %v1660 = vld [vmem:[%s1651 + $0x40] sm:$0xff]
        %v1661 = vld [vmem:[%s1651 + $0x48] sm:$0xff]
        %v1662 = vld [vmem:[%s1651 + $0x50] sm:$0xff]
        %v1663 = vld [vmem:[%s1651 + $0x58] sm:$0xff]
        %v1664 = vld [vmem:[%s1651 + $0x60] sm:$0xff]
        %v1665 = vld [vmem:[%s1651 + $0x68] sm:$0xff]
        %v1666 = vld [vmem:[%s1651 + $0x70] sm:$0xff]
        %v1667 = vld [vmem:[%s1651 + $0x78] sm:$0xff]
        %v1668 = vld [vmem:[%s1651 + $0x80] sm:$0x77]
        %v1669 = vld [vmem:[%s1651 + $0x88] sm:$0x77]
        %v1670 = vpack.c.bf16 %v1600, %v1598
        %v1671 = vpack.c.bf16 %v1604, %v1602
        %v1672 = vpack.c.bf16 %v1608, %v1606
        %v1673 = vpack.c.bf16 %v1612, %v1610
        %v1674 = vpack.c.bf16 %v1616, %v1614
        %v1675 = vpack.c.bf16 %v1620, %v1618
        %v1676 = vpack.c.bf16 %v1624, %v1622
        %v1677 = vpack.c.bf16 %v1628, %v1626
        %v1678 = vpack.c.bf16 %v1650, %v1630
        %v1697 = vunpack.c.l.b16 %v1652
        %v1698 = vunpack.c.h.b16 %v1652
        %v1699 = vunpack.c.l.b16 %v1653
        %v1700 = vunpack.c.h.b16 %v1653
        %v1701 = vunpack.c.l.b16 %v1654
        %v1702 = vunpack.c.h.b16 %v1654
        %v1703 = vunpack.c.l.b16 %v1655
        %v1704 = vunpack.c.h.b16 %v1655
        %v1705 = vunpack.c.l.b16 %v1656
        %v1706 = vunpack.c.h.b16 %v1656
        %v1707 = vunpack.c.l.b16 %v1657
        %v1708 = vunpack.c.h.b16 %v1657
        %v1709 = vunpack.c.l.b16 %v1658
        %v1710 = vunpack.c.h.b16 %v1658
        %v1711 = vunpack.c.l.b16 %v1659
        %v1712 = vunpack.c.h.b16 %v1659
        %v1713 = vunpack.c.l.b16 %v1660
        %v1714 = vunpack.c.h.b16 %v1660
        %v1715 = vunpack.c.l.b16 %v1661
        %v1716 = vunpack.c.h.b16 %v1661
        %v1717 = vunpack.c.l.b16 %v1662
        %v1718 = vunpack.c.h.b16 %v1662
        %v1719 = vunpack.c.l.b16 %v1663
        %v1720 = vunpack.c.h.b16 %v1663
        %v1721 = vunpack.c.l.b16 %v1664
        %v1722 = vunpack.c.h.b16 %v1664
        %v1723 = vunpack.c.l.b16 %v1665
        %v1724 = vunpack.c.h.b16 %v1665
        %v1725 = vunpack.c.l.b16 %v1666
        %v1726 = vunpack.c.h.b16 %v1666
        %v1727 = vunpack.c.l.b16 %v1667
        %v1728 = vunpack.c.h.b16 %v1667
        %v1729 = vunpack.c.l.b16 %v1668
        %v1730 = vunpack.c.h.b16 %v1668
        %v1731 = vunpack.c.l.b16 %v1669
        %v1732 = vunpack.c.h.b16 %v1669
        %v1733 = vpack.c.b16 %v1701, %v1697
        %v1734 = vpack.c.b16 %v1702, %v1698
        %v1735 = vpack.c.b16 %v1703, %v1699
        %v1736 = vpack.c.b16 %v1704, %v1700
        %v1737 = vpack.c.b16 %v1709, %v1705
        %v1738 = vpack.c.b16 %v1710, %v1706
        %v1739 = vpack.c.b16 %v1711, %v1707
        %v1740 = vpack.c.b16 %v1712, %v1708
        %v1741 = vpack.c.b16 %v1717, %v1713
        %v1742 = vpack.c.b16 %v1718, %v1714
        %v1743 = vpack.c.b16 %v1719, %v1715
        %v1744 = vpack.c.b16 %v1720, %v1716
        %v1745 = vpack.c.b16 %v1725, %v1721
        %v1746 = vpack.c.b16 %v1726, %v1722
        %v1747 = vpack.c.b16 %v1727, %v1723
        %v1748 = vpack.c.b16 %v1728, %v1724
        %v1749 = vpack.c.b16 %v1729, %v1729
        %v1750 = vpack.c.b16 %v1730, %v1730
        %v1751 = vpack.c.b16 %v1731, %v1731
        %v1752 = vpack.c.b16 %v1732, %v1732
        %v1770 = vsel %vm933, %v1670, 0
        %v1773 = vsel %vm933, %v1671, 0
        %v1776 = vsel %vm933, %v1672, 0
        %v1779 = vsel %vm933, %v1673, 0
        %v1782 = vsel %vm933, %v1674, 0
        %v1785 = vsel %vm933, %v1675, 0
        %v1788 = vsel %vm933, %v1676, 0
        %v1791 = vsel %vm933, %v1677, 0
        %v1794 = vsel %vm933, %v1678, 0
        %v1797 = vsel %vm961, %v1749, 0
        %v1800 = vsel %vm961, %v1750, 0
        %v1803 = vsel %vm961, %v1751, 0
        %v1806 = vsel %vm961, %v1752, 0
        %1808 = vmatprep.subr.bf16.mxu0 %v1734
        %1809 = vmatpush1.bf16.msra.mxu0 %v1733
        %1810 = vmatprep.subr.bf16.mxu0 %v1738
        %1811 = vmatpush1.bf16.msra.mxu0 %v1737
        %1812 = vmatprep.subr.bf16.mxu0 %v1742
        %1813 = vmatpush1.bf16.msra.mxu0 %v1741
        %1814 = vmatprep.subr.bf16.mxu0 %v1746
        %1815 = vmatpush1.bf16.msra.mxu0 %v1745
        %1816 = vmatprep.subr.bf16.mxu0 %v1800
        %1817 = vmatpush1.bf16.msra.mxu0 %v1797
        %1818 = vmatprep.subr.bf16.mxu0 0
        %1819 = vmatpush1.bf16.msra.mxu0 0
        %1820 = vmatprep.subr.bf16.mxu0 0
        %1821 = vmatpush1.bf16.msra.mxu0 0
        %1822 = vmatprep.subr.bf16.mxu0 0
        %1823 = vmatpush1.bf16.msra.mxu0 0
        %1824 = vmatprep.subr.bf16.mxu0 0
        %1825 = vmatpush1.bf16.msra.mxu0 0
        %1826 = vmatprep.subr.bf16.mxu0 0
        %1827 = vmatpush1.bf16.msra.mxu0 0
        %1828 = vmatprep.subr.bf16.mxu0 0
        %1829 = vmatpush1.bf16.msra.mxu0 0
        %1830 = vmatprep.subr.bf16.mxu0 0
        %1831 = vmatpush1.bf16.msra.mxu0 0
        %1832 = vmatprep.subr.bf16.mxu0 0
        %1833 = vmatpush1.bf16.msra.mxu0 0
        %1834 = vmatprep.subr.bf16.mxu0 0
        %1835 = vmatpush1.bf16.msra.mxu0 0
        %1836 = vmatprep.subr.bf16.mxu0 0
        %1837 = vmatpush1.bf16.msra.mxu0 0
        %1838 = vmatprep.subr.bf16.mxu0 0
        %1839 = vmatpush1.bf16.msra.mxu0 0
        %1840 = vmatprep.mubr.bf16.mxu0 0
        %1841 = vmatmul.mubr.bf16.gmra.mrb[0].mxu0 %v1770
        %v1842 = vpop.f32.mrb[0].mxu0
        %v1843 = vadd.f32 0.0, %v1842
        %v1844 = vpop.f32.mrb[0].mxu0
        %v1845 = vadd.f32 0.0, %v1844
        %v1846 = vpop.f32.mrb[0].mxu0
        %v1847 = vadd.f32 0.0, %v1846
        %v1848 = vpop.f32.mrb[0].mxu0
        %v1849 = vadd.f32 0.0, %v1848
        %1850 = vmatprep.mubr.bf16.mxu0 0
        %1851 = vmatmul.mubr.bf16.gmra.mrb[0].mxu0 %v1773
        %v1852 = vpop.f32.mrb[0].mxu0
        %v1853 = vadd.f32 0.0, %v1852
        %v1854 = vpop.f32.mrb[0].mxu0
        %v1855 = vadd.f32 0.0, %v1854
        %v1856 = vpop.f32.mrb[0].mxu0
        %v1857 = vadd.f32 0.0, %v1856
        %v1858 = vpop.f32.mrb[0].mxu0
        %v1859 = vadd.f32 0.0, %v1858
        %1860 = vmatprep.mubr.bf16.mxu0 0
        %1861 = vmatmul.mubr.bf16.gmra.mrb[0].mxu0 %v1776
        %v1862 = vpop.f32.mrb[0].mxu0
        %v1863 = vadd.f32 0.0, %v1862
        %v1864 = vpop.f32.mrb[0].mxu0
        %v1865 = vadd.f32 0.0, %v1864
        %v1866 = vpop.f32.mrb[0].mxu0
        %v1867 = vadd.f32 0.0, %v1866
        %v1868 = vpop.f32.mrb[0].mxu0
        %v1869 = vadd.f32 0.0, %v1868
        %1870 = vmatprep.mubr.bf16.mxu0 0
        %1871 = vmatmul.mubr.bf16.gmra.mrb[0].mxu0 %v1779
        %v1872 = vpop.f32.mrb[0].mxu0
        %v1873 = vadd.f32 0.0, %v1872
        %v1874 = vpop.f32.mrb[0].mxu0
        %v1875 = vadd.f32 0.0, %v1874
        %v1876 = vpop.f32.mrb[0].mxu0
        %v1877 = vadd.f32 0.0, %v1876
        %v1878 = vpop.f32.mrb[0].mxu0
        %v1879 = vadd.f32 0.0, %v1878
        %1880 = vmatprep.mubr.bf16.mxu0 0
        %1881 = vmatmul.mubr.bf16.gmra.mrb[0].mxu0 %v1782
        %v1882 = vpop.f32.mrb[0].mxu0
        %v1883 = vadd.f32 0.0, %v1882
        %v1884 = vpop.f32.mrb[0].mxu0
        %v1885 = vadd.f32 0.0, %v1884
        %v1886 = vpop.f32.mrb[0].mxu0
        %v1887 = vadd.f32 0.0, %v1886
        %v1888 = vpop.f32.mrb[0].mxu0
        %v1889 = vadd.f32 0.0, %v1888
        %1890 = vmatprep.mubr.bf16.mxu0 0
        %1891 = vmatmul.mubr.bf16.gmra.mrb[0].mxu0 %v1785
        %v1892 = vpop.f32.mrb[0].mxu0
        %v1893 = vadd.f32 0.0, %v1892
        %v1894 = vpop.f32.mrb[0].mxu0
        %v1895 = vadd.f32 0.0, %v1894
        %v1896 = vpop.f32.mrb[0].mxu0
        %v1897 = vadd.f32 0.0, %v1896
        %v1898 = vpop.f32.mrb[0].mxu0
        %v1899 = vadd.f32 0.0, %v1898
        %1900 = vmatprep.mubr.bf16.mxu0 0
        %1901 = vmatmul.mubr.bf16.gmra.mrb[0].mxu0 %v1788
        %v1902 = vpop.f32.mrb[0].mxu0
        %v1903 = vadd.f32 0.0, %v1902
        %v1904 = vpop.f32.mrb[0].mxu0
        %v1905 = vadd.f32 0.0, %v1904
        %v1906 = vpop.f32.mrb[0].mxu0
        %v1907 = vadd.f32 0.0, %v1906
        %v1908 = vpop.f32.mrb[0].mxu0
        %v1909 = vadd.f32 0.0, %v1908
        %1910 = vmatprep.mubr.bf16.mxu0 0
        %1911 = vmatmul.mubr.bf16.gmra.mrb[0].mxu0 %v1791
        %v1912 = vpop.f32.mrb[0].mxu0
        %v1913 = vadd.f32 0.0, %v1912
        %v1914 = vpop.f32.mrb[0].mxu0
        %v1915 = vadd.f32 0.0, %v1914
        %v1916 = vpop.f32.mrb[0].mxu0
        %v1917 = vadd.f32 0.0, %v1916
        %v1918 = vpop.f32.mrb[0].mxu0
        %v1919 = vadd.f32 0.0, %v1918
        %1920 = vmatprep.mubr.bf16.mxu0 0
        %1921 = vmatmul.mubr.bf16.gmra.mrb[0].mxu0 %v1794
        %v1922 = vpop.f32.mrb[0].mxu0
        %v1923 = vadd.f32 0.0, %v1922
        %v1924 = vpop.f32.mrb[0].mxu0
        %v1925 = vadd.f32 0.0, %v1924
        %v1926 = vpop.f32.mrb[0].mxu0
        %v1927 = vadd.f32 0.0, %v1926
        %v1928 = vpop.f32.mrb[0].mxu0
        %v1929 = vadd.f32 0.0, %v1928
        %1930 = vdwg.mxu0
        %1931 = vmatprep.subr.bf16.mxu0 %v1736
        %1932 = vmatpush1.bf16.msra.mxu0 %v1735
        %1933 = vmatprep.subr.bf16.mxu0 %v1740
        %1934 = vmatpush1.bf16.msra.mxu0 %v1739
        %1935 = vmatprep.subr.bf16.mxu0 %v1744
        %1936 = vmatpush1.bf16.msra.mxu0 %v1743
        %1937 = vmatprep.subr.bf16.mxu0 %v1748
        %1938 = vmatpush1.bf16.msra.mxu0 %v1747
        %1939 = vmatprep.subr.bf16.mxu0 %v1806
        %1940 = vmatpush1.bf16.msra.mxu0 %v1803
        %1941 = vmatprep.subr.bf16.mxu0 0
        %1942 = vmatpush1.bf16.msra.mxu0 0
        %1943 = vmatprep.subr.bf16.mxu0 0
        %1944 = vmatpush1.bf16.msra.mxu0 0
        %1945 = vmatprep.subr.bf16.mxu0 0
        %1946 = vmatpush1.bf16.msra.mxu0 0
        %1947 = vmatprep.subr.bf16.mxu0 0
        %1948 = vmatpush1.bf16.msra.mxu0 0
        %1949 = vmatprep.subr.bf16.mxu0 0
        %1950 = vmatpush1.bf16.msra.mxu0 0
        %1951 = vmatprep.subr.bf16.mxu0 0
        %1952 = vmatpush1.bf16.msra.mxu0 0
        %1953 = vmatprep.subr.bf16.mxu0 0
        %1954 = vmatpush1.bf16.msra.mxu0 0
        %1955 = vmatprep.subr.bf16.mxu0 0
        %1956 = vmatpush1.bf16.msra.mxu0 0
        %1957 = vmatprep.subr.bf16.mxu0 0
        %1958 = vmatpush1.bf16.msra.mxu0 0
        %1959 = vmatprep.subr.bf16.mxu0 0
        %1960 = vmatpush1.bf16.msra.mxu0 0
        %1961 = vmatprep.subr.bf16.mxu0 0
        %1962 = vmatpush1.bf16.msra.mxu0 0
        %1963 = vmatprep.mubr.bf16.mxu0 0
        %1964 = vmatmul.mubr.bf16.gmra.mrb[0].mxu0 %v1770
        %v1965 = vpop.f32.mrb[0].mxu0
        %v1966 = vadd.f32 0.0, %v1965
        %v1967 = vpop.f32.mrb[0].mxu0
        %v1968 = vadd.f32 0.0, %v1967
        %v1969 = vpop.f32.mrb[0].mxu0
        %v1970 = vadd.f32 0.0, %v1969
        %v1971 = vpop.f32.mrb[0].mxu0
        %v1972 = vadd.f32 0.0, %v1971
        %1973 = vmatprep.mubr.bf16.mxu0 0
        %1974 = vmatmul.mubr.bf16.gmra.mrb[0].mxu0 %v1773
        %v1975 = vpop.f32.mrb[0].mxu0
        %v1976 = vadd.f32 0.0, %v1975
        %v1977 = vpop.f32.mrb[0].mxu0
        %v1978 = vadd.f32 0.0, %v1977
        %v1979 = vpop.f32.mrb[0].mxu0
        %v1980 = vadd.f32 0.0, %v1979
        %v1981 = vpop.f32.mrb[0].mxu0
        %v1982 = vadd.f32 0.0, %v1981
        %1983 = vmatprep.mubr.bf16.mxu0 0
        %1984 = vmatmul.mubr.bf16.gmra.mrb[0].mxu0 %v1776
        %v1985 = vpop.f32.mrb[0].mxu0
        %v1986 = vadd.f32 0.0, %v1985
        %v1987 = vpop.f32.mrb[0].mxu0
        %v1988 = vadd.f32 0.0, %v1987
        %v1989 = vpop.f32.mrb[0].mxu0
        %v1990 = vadd.f32 0.0, %v1989
        %v1991 = vpop.f32.mrb[0].mxu0
        %v1992 = vadd.f32 0.0, %v1991
        %1993 = vmatprep.mubr.bf16.mxu0 0
        %1994 = vmatmul.mubr.bf16.gmra.mrb[0].mxu0 %v1779
        %v1995 = vpop.f32.mrb[0].mxu0
        %v1996 = vadd.f32 0.0, %v1995
        %v1997 = vpop.f32.mrb[0].mxu0
        %v1998 = vadd.f32 0.0, %v1997
        %v1999 = vpop.f32.mrb[0].mxu0
        %v2000 = vadd.f32 0.0, %v1999
        %v2001 = vpop.f32.mrb[0].mxu0
        %v2002 = vadd.f32 0.0, %v2001
        %2003 = vmatprep.mubr.bf16.mxu0 0
        %2004 = vmatmul.mubr.bf16.gmra.mrb[0].mxu0 %v1782
        %v2005 = vpop.f32.mrb[0].mxu0
        %v2006 = vadd.f32 0.0, %v2005
        %v2007 = vpop.f32.mrb[0].mxu0
        %v2008 = vadd.f32 0.0, %v2007
        %v2009 = vpop.f32.mrb[0].mxu0
        %v2010 = vadd.f32 0.0, %v2009
        %v2011 = vpop.f32.mrb[0].mxu0
        %v2012 = vadd.f32 0.0, %v2011
        %2013 = vmatprep.mubr.bf16.mxu0 0
        %2014 = vmatmul.mubr.bf16.gmra.mrb[0].mxu0 %v1785
        %v2015 = vpop.f32.mrb[0].mxu0
        %v2016 = vadd.f32 0.0, %v2015
        %v2017 = vpop.f32.mrb[0].mxu0
        %v2018 = vadd.f32 0.0, %v2017
        %v2019 = vpop.f32.mrb[0].mxu0
        %v2020 = vadd.f32 0.0, %v2019
        %v2021 = vpop.f32.mrb[0].mxu0
        %v2022 = vadd.f32 0.0, %v2021
        %2023 = vmatprep.mubr.bf16.mxu0 0
        %2024 = vmatmul.mubr.bf16.gmra.mrb[0].mxu0 %v1788
        %v2025 = vpop.f32.mrb[0].mxu0
        %v2026 = vadd.f32 0.0, %v2025
        %v2027 = vpop.f32.mrb[0].mxu0
        %v2028 = vadd.f32 0.0, %v2027
        %v2029 = vpop.f32.mrb[0].mxu0
        %v2030 = vadd.f32 0.0, %v2029
        %v2031 = vpop.f32.mrb[0].mxu0
        %v2032 = vadd.f32 0.0, %v2031
        %2033 = vmatprep.mubr.bf16.mxu0 0
        %2034 = vmatmul.mubr.bf16.gmra.mrb[0].mxu0 %v1791
        %v2035 = vpop.f32.mrb[0].mxu0
        %v2036 = vadd.f32 0.0, %v2035
        %v2037 = vpop.f32.mrb[0].mxu0
        %v2038 = vadd.f32 0.0, %v2037
        %v2039 = vpop.f32.mrb[0].mxu0
        %v2040 = vadd.f32 0.0, %v2039
        %v2041 = vpop.f32.mrb[0].mxu0
        %v2042 = vadd.f32 0.0, %v2041
        %2043 = vmatprep.mubr.bf16.mxu0 0
        %2044 = vmatmul.mubr.bf16.gmra.mrb[0].mxu0 %v1794
        %v2045 = vpop.f32.mrb[0].mxu0
        %v2046 = vadd.f32 0.0, %v2045
        %v2047 = vpop.f32.mrb[0].mxu0
        %v2048 = vadd.f32 0.0, %v2047
        %v2049 = vpop.f32.mrb[0].mxu0
        %v2050 = vadd.f32 0.0, %v2049
        %v2051 = vpop.f32.mrb[0].mxu0
        %v2052 = vadd.f32 0.0, %v2051
        %2053 = vdwg.mxu0
        %v2054 = vadd.f32 %v1384, %v1843
        %v2055 = vadd.f32 %v1386, %v1845
        %v2056 = vadd.f32 %v1507, %v1966
        %v2057 = vadd.f32 %v1509, %v1968
        %v2058 = vadd.f32 %v1388, %v1847
        %v2059 = vadd.f32 %v1390, %v1849
        %v2060 = vadd.f32 %v1511, %v1970
        %v2061 = vadd.f32 %v1513, %v1972
        %v2062 = vadd.f32 %v1394, %v1853
        %v2063 = vadd.f32 %v1396, %v1855
        %v2064 = vadd.f32 %v1517, %v1976
        %v2065 = vadd.f32 %v1519, %v1978
        %v2066 = vadd.f32 %v1398, %v1857
        %v2067 = vadd.f32 %v1400, %v1859
        %v2068 = vadd.f32 %v1521, %v1980
        %v2069 = vadd.f32 %v1523, %v1982
        %v2070 = vadd.f32 %v1404, %v1863
        %v2071 = vadd.f32 %v1406, %v1865
        %v2072 = vadd.f32 %v1527, %v1986
        %v2073 = vadd.f32 %v1529, %v1988
        %v2074 = vadd.f32 %v1408, %v1867
        %v2075 = vadd.f32 %v1410, %v1869
        %v2076 = vadd.f32 %v1531, %v1990
        %v2077 = vadd.f32 %v1533, %v1992
        %v2078 = vadd.f32 %v1414, %v1873
        %v2079 = vadd.f32 %v1416, %v1875
        %v2080 = vadd.f32 %v1537, %v1996
        %v2081 = vadd.f32 %v1539, %v1998
        %v2082 = vadd.f32 %v1418, %v1877
        %v2083 = vadd.f32 %v1420, %v1879
        %v2084 = vadd.f32 %v1541, %v2000
        %v2085 = vadd.f32 %v1543, %v2002
        %v2086 = vadd.f32 %v1424, %v1883
        %v2087 = vadd.f32 %v1426, %v1885
        %v2088 = vadd.f32 %v1547, %v2006
        %v2089 = vadd.f32 %v1549, %v2008
        %v2090 = vadd.f32 %v1428, %v1887
        %v2091 = vadd.f32 %v1430, %v1889
        %v2092 = vadd.f32 %v1551, %v2010
        %v2093 = vadd.f32 %v1553, %v2012
        %v2094 = vadd.f32 %v1434, %v1893
        %v2095 = vadd.f32 %v1436, %v1895
        %v2096 = vadd.f32 %v1557, %v2016
        %v2097 = vadd.f32 %v1559, %v2018
        %v2098 = vadd.f32 %v1438, %v1897
        %v2099 = vadd.f32 %v1440, %v1899
        %v2100 = vadd.f32 %v1561, %v2020
        %v2101 = vadd.f32 %v1563, %v2022
        %v2102 = vadd.f32 %v1444, %v1903
        %v2103 = vadd.f32 %v1446, %v1905
        %v2104 = vadd.f32 %v1567, %v2026
        %v2105 = vadd.f32 %v1569, %v2028
        %v2106 = vadd.f32 %v1448, %v1907
        %v2107 = vadd.f32 %v1450, %v1909
        %v2108 = vadd.f32 %v1571, %v2030
        %v2109 = vadd.f32 %v1573, %v2032
        %v2110 = vadd.f32 %v1454, %v1913
        %v2111 = vadd.f32 %v1456, %v1915
        %v2112 = vadd.f32 %v1577, %v2036
        %v2113 = vadd.f32 %v1579, %v2038
        %v2114 = vadd.f32 %v1458, %v1917
        %v2115 = vadd.f32 %v1460, %v1919
        %v2116 = vadd.f32 %v1581, %v2040
        %v2117 = vadd.f32 %v1583, %v2042
        %v2118 = vadd.f32 %v1464, %v1923
        %v2119 = vadd.f32 %v1466, %v1925
        %v2120 = vadd.f32 %v1587, %v2046
        %v2121 = vadd.f32 %v1589, %v2048
        %v2122 = vadd.f32 %v1468, %v1927
        %v2123 = vadd.f32 %v1470, %v1929
        %v2124 = vadd.f32 %v1591, %v2050
        %v2125 = vadd.f32 %v1593, %v2052
        %v2126 = vld [vmem:[%s2] sm:$0xf]
        %v2128 = vlaneseq
        %v2129 = vshrl.u32 %v2128, 7
        %v2130 = vsub.s32 0, %v2129
        %v2131 = vrot.slane %v2126, %v2130
        %v2132 = vlaneseq
        %v2133 = vshrl.u32 %v2132, 7
        %v2134 = vsub.s32 1, %v2133
        %v2135 = vrot.slane %v2126, %v2134
        %v2136 = vlaneseq
        %v2137 = vshrl.u32 %v2136, 7
        %v2138 = vsub.s32 2, %v2137
        %v2139 = vrot.slane %v2126, %v2138
        %v2140 = vlaneseq
        %v2141 = vshrl.u32 %v2140, 7
        %v2142 = vsub.s32 3, %v2141
        %v2143 = vrot.slane %v2126, %v2142
        %v2148 = vadd.f32 %v2054, %v2131
        %v2149 = vadd.f32 %v2055, %v2135
        %v2150 = vadd.f32 %v2056, %v2139
        %v2151 = vadd.f32 %v2057, %v2143
        %v2152 = vadd.f32 %v2058, %v2131
        %v2153 = vadd.f32 %v2059, %v2135
        %v2154 = vadd.f32 %v2060, %v2139
        %v2155 = vadd.f32 %v2061, %v2143
        %v2156 = vadd.f32 %v2062, %v2131
        %v2157 = vadd.f32 %v2063, %v2135
        %v2158 = vadd.f32 %v2064, %v2139
        %v2159 = vadd.f32 %v2065, %v2143
        %v2160 = vadd.f32 %v2066, %v2131
        %v2161 = vadd.f32 %v2067, %v2135
        %v2162 = vadd.f32 %v2068, %v2139
        %v2163 = vadd.f32 %v2069, %v2143
        %v2164 = vadd.f32 %v2070, %v2131
        %v2165 = vadd.f32 %v2071, %v2135
        %v2166 = vadd.f32 %v2072, %v2139
        %v2167 = vadd.f32 %v2073, %v2143
        %v2168 = vadd.f32 %v2074, %v2131
        %v2169 = vadd.f32 %v2075, %v2135
        %v2170 = vadd.f32 %v2076, %v2139
        %v2171 = vadd.f32 %v2077, %v2143
        %v2172 = vadd.f32 %v2078, %v2131
        %v2173 = vadd.f32 %v2079, %v2135
        %v2174 = vadd.f32 %v2080, %v2139
        %v2175 = vadd.f32 %v2081, %v2143
        %v2176 = vadd.f32 %v2082, %v2131
        %v2177 = vadd.f32 %v2083, %v2135
        %v2178 = vadd.f32 %v2084, %v2139
        %v2179 = vadd.f32 %v2085, %v2143
        %v2180 = vadd.f32 %v2086, %v2131
        %v2181 = vadd.f32 %v2087, %v2135
        %v2182 = vadd.f32 %v2088, %v2139
        %v2183 = vadd.f32 %v2089, %v2143
        %v2184 = vadd.f32 %v2090, %v2131
        %v2185 = vadd.f32 %v2091, %v2135
        %v2186 = vadd.f32 %v2092, %v2139
        %v2187 = vadd.f32 %v2093, %v2143
        %v2188 = vadd.f32 %v2094, %v2131
        %v2189 = vadd.f32 %v2095, %v2135
        %v2190 = vadd.f32 %v2096, %v2139
        %v2191 = vadd.f32 %v2097, %v2143
        %v2192 = vadd.f32 %v2098, %v2131
        %v2193 = vadd.f32 %v2099, %v2135
        %v2194 = vadd.f32 %v2100, %v2139
        %v2195 = vadd.f32 %v2101, %v2143
        %v2196 = vadd.f32 %v2102, %v2131
        %v2197 = vadd.f32 %v2103, %v2135
        %v2198 = vadd.f32 %v2104, %v2139
        %v2199 = vadd.f32 %v2105, %v2143
        %v2200 = vadd.f32 %v2106, %v2131
        %v2201 = vadd.f32 %v2107, %v2135
        %v2202 = vadd.f32 %v2108, %v2139
        %v2203 = vadd.f32 %v2109, %v2143
        %v2204 = vadd.f32 %v2110, %v2131
        %v2205 = vadd.f32 %v2111, %v2135
        %v2206 = vadd.f32 %v2112, %v2139
        %v2207 = vadd.f32 %v2113, %v2143
        %v2208 = vadd.f32 %v2114, %v2131
        %v2209 = vadd.f32 %v2115, %v2135
        %v2210 = vadd.f32 %v2116, %v2139
        %v2211 = vadd.f32 %v2117, %v2143
        %v2212 = vadd.f32 %v2118, %v2131
        %v2213 = vadd.f32 %v2119, %v2135
        %v2214 = vadd.f32 %v2120, %v2139
        %v2215 = vadd.f32 %v2121, %v2143
        %v2216 = vadd.f32 %v2122, %v2131
        %v2217 = vadd.f32 %v2123, %v2135
        %v2218 = vadd.f32 %v2124, %v2139
        %v2219 = vadd.f32 %v2125, %v2143
        %v2220 = vmax.f32 %v2148, 0.0
        %v2221 = vmax.f32 %v2149, 0.0
        %v2222 = vmax.f32 %v2150, 0.0
        %v2223 = vmax.f32 %v2151, 0.0
        %v2224 = vmax.f32 %v2152, 0.0
        %v2225 = vmax.f32 %v2153, 0.0
        %v2226 = vmax.f32 %v2154, 0.0
        %v2227 = vmax.f32 %v2155, 0.0
        %v2228 = vmax.f32 %v2156, 0.0
        %v2229 = vmax.f32 %v2157, 0.0
        %v2230 = vmax.f32 %v2158, 0.0
        %v2231 = vmax.f32 %v2159, 0.0
        %v2232 = vmax.f32 %v2160, 0.0
        %v2233 = vmax.f32 %v2161, 0.0
        %v2234 = vmax.f32 %v2162, 0.0
        %v2235 = vmax.f32 %v2163, 0.0
        %v2236 = vmax.f32 %v2164, 0.0
        %v2237 = vmax.f32 %v2165, 0.0
        %v2238 = vmax.f32 %v2166, 0.0
        %v2239 = vmax.f32 %v2167, 0.0
        %v2240 = vmax.f32 %v2168, 0.0
        %v2241 = vmax.f32 %v2169, 0.0
        %v2242 = vmax.f32 %v2170, 0.0
        %v2243 = vmax.f32 %v2171, 0.0
        %v2244 = vmax.f32 %v2172, 0.0
        %v2245 = vmax.f32 %v2173, 0.0
        %v2246 = vmax.f32 %v2174, 0.0
        %v2247 = vmax.f32 %v2175, 0.0
        %v2248 = vmax.f32 %v2176, 0.0
        %v2249 = vmax.f32 %v2177, 0.0
        %v2250 = vmax.f32 %v2178, 0.0
        %v2251 = vmax.f32 %v2179, 0.0
        %v2252 = vmax.f32 %v2180, 0.0
        %v2253 = vmax.f32 %v2181, 0.0
        %v2254 = vmax.f32 %v2182, 0.0
        %v2255 = vmax.f32 %v2183, 0.0
        %v2256 = vmax.f32 %v2184, 0.0
        %v2257 = vmax.f32 %v2185, 0.0
        %v2258 = vmax.f32 %v2186, 0.0
        %v2259 = vmax.f32 %v2187, 0.0
        %v2260 = vmax.f32 %v2188, 0.0
        %v2261 = vmax.f32 %v2189, 0.0
        %v2262 = vmax.f32 %v2190, 0.0
        %v2263 = vmax.f32 %v2191, 0.0
        %v2264 = vmax.f32 %v2192, 0.0
        %v2265 = vmax.f32 %v2193, 0.0
        %v2266 = vmax.f32 %v2194, 0.0
        %v2267 = vmax.f32 %v2195, 0.0
        %v2268 = vmax.f32 %v2196, 0.0
        %v2269 = vmax.f32 %v2197, 0.0
        %v2270 = vmax.f32 %v2198, 0.0
        %v2271 = vmax.f32 %v2199, 0.0
        %v2272 = vmax.f32 %v2200, 0.0
        %v2273 = vmax.f32 %v2201, 0.0
        %v2274 = vmax.f32 %v2202, 0.0
        %v2275 = vmax.f32 %v2203, 0.0
        %v2276 = vmax.f32 %v2204, 0.0
        %v2277 = vmax.f32 %v2205, 0.0
        %v2278 = vmax.f32 %v2206, 0.0
        %v2279 = vmax.f32 %v2207, 0.0
        %v2280 = vmax.f32 %v2208, 0.0
        %v2281 = vmax.f32 %v2209, 0.0
        %v2282 = vmax.f32 %v2210, 0.0
        %v2283 = vmax.f32 %v2211, 0.0
        %v2284 = vmax.f32 %v2212, 0.0
        %v2285 = vmax.f32 %v2213, 0.0
        %v2286 = vmax.f32 %v2214, 0.0
        %v2287 = vmax.f32 %v2215, 0.0
        %v2288 = vmax.f32 %v2216, 0.0
        %v2289 = vmax.f32 %v2217, 0.0
        %v2290 = vmax.f32 %v2218, 0.0
        %v2291 = vmax.f32 %v2219, 0.0
        %v2292 = vpack.c.bf16 %v2224, %v2220
        %v2293 = vpack.c.bf16 %v2225, %v2221
        %v2294 = vpack.c.bf16 %v2226, %v2222
        %v2295 = vpack.c.bf16 %v2227, %v2223
        %v2296 = vpack.c.bf16 %v2232, %v2228
        %v2297 = vpack.c.bf16 %v2233, %v2229
        %v2298 = vpack.c.bf16 %v2234, %v2230
        %v2299 = vpack.c.bf16 %v2235, %v2231
        %v2300 = vpack.c.bf16 %v2240, %v2236
        %v2301 = vpack.c.bf16 %v2241, %v2237
        %v2302 = vpack.c.bf16 %v2242, %v2238
        %v2303 = vpack.c.bf16 %v2243, %v2239
        %v2304 = vpack.c.bf16 %v2248, %v2244
        %v2305 = vpack.c.bf16 %v2249, %v2245
        %v2306 = vpack.c.bf16 %v2250, %v2246
        %v2307 = vpack.c.bf16 %v2251, %v2247
        %v2308 = vpack.c.bf16 %v2256, %v2252
        %v2309 = vpack.c.bf16 %v2257, %v2253
        %v2310 = vpack.c.bf16 %v2258, %v2254
        %v2311 = vpack.c.bf16 %v2259, %v2255
        %v2312 = vpack.c.bf16 %v2264, %v2260
        %v2313 = vpack.c.bf16 %v2265, %v2261
        %v2314 = vpack.c.bf16 %v2266, %v2262
        %v2315 = vpack.c.bf16 %v2267, %v2263
        %v2316 = vpack.c.bf16 %v2272, %v2268
        %v2317 = vpack.c.bf16 %v2273, %v2269
        %v2318 = vpack.c.bf16 %v2274, %v2270
        %v2319 = vpack.c.bf16 %v2275, %v2271
        %v2320 = vpack.c.bf16 %v2280, %v2276
        %v2321 = vpack.c.bf16 %v2281, %v2277
        %v2322 = vpack.c.bf16 %v2282, %v2278
        %v2323 = vpack.c.bf16 %v2283, %v2279
        %v2324 = vpack.c.bf16 %v2288, %v2284
        %v2325 = vpack.c.bf16 %v2289, %v2285
        %v2326 = vpack.c.bf16 %v2290, %v2286
        %v2327 = vpack.c.bf16 %v2291, %v2287
        %v2328 = vld [vmem:[#allocation5] sm:$0xff]
        %v2329 = vld [vmem:[#allocation5 + $0x8] sm:$0xff]
        %v2330 = vld [vmem:[#allocation5 + $0x10] sm:$0xff]
        %v2331 = vld [vmem:[#allocation5 + $0x18] sm:$0xff]
        %v2332 = vld [vmem:[#allocation5 + $0x20] sm:$0xff]
        %v2333 = vld [vmem:[#allocation5 + $0x28] sm:$0xff]
        %v2334 = vld [vmem:[#allocation5 + $0x30] sm:$0xff]
        %v2335 = vld [vmem:[#allocation5 + $0x38] sm:$0xff]
        %v2336 = vld [vmem:[#allocation5 + $0x40] sm:$0xff]
        %v2337 = vld [vmem:[#allocation5 + $0x48] sm:$0xff]
        %v2338 = vld [vmem:[#allocation5 + $0x50] sm:$0xff]
        %v2339 = vld [vmem:[#allocation5 + $0x58] sm:$0xff]
        %v2340 = vld [vmem:[#allocation5 + $0x60] sm:$0xff]
        %v2341 = vld [vmem:[#allocation5 + $0x68] sm:$0xff]
        %v2342 = vld [vmem:[#allocation5 + $0x70] sm:$0xff]
        %v2343 = vld [vmem:[#allocation5 + $0x78] sm:$0xff]
        %v2344 = vld [vmem:[#allocation5 + $0x80] sm:$0xff]
        %v2345 = vld [vmem:[#allocation5 + $0x88] sm:$0xff]
        %v2346 = vld [vmem:[#allocation5 + $0x90] sm:$0xff]
        %v2347 = vld [vmem:[#allocation5 + $0x98] sm:$0xff]
        %v2348 = vld [vmem:[#allocation5 + $0xa0] sm:$0xff]
        %v2349 = vld [vmem:[#allocation5 + $0xa8] sm:$0xff]
        %v2350 = vld [vmem:[#allocation5 + $0xb0] sm:$0xff]
        %v2351 = vld [vmem:[#allocation5 + $0xb8] sm:$0xff]
        %v2352 = vld [vmem:[#allocation5 + $0xc0] sm:$0xff]
        %v2353 = vld [vmem:[#allocation5 + $0xc8] sm:$0xff]
        %v2354 = vld [vmem:[#allocation5 + $0xd0] sm:$0xff]
        %v2355 = vld [vmem:[#allocation5 + $0xd8] sm:$0xff]
        %v2356 = vld [vmem:[#allocation5 + $0xe0] sm:$0xff]
        %v2357 = vld [vmem:[#allocation5 + $0xe8] sm:$0xff]
        %v2358 = vld [vmem:[#allocation5 + $0xf0] sm:$0xff]
        %v2359 = vld [vmem:[#allocation5 + $0xf8] sm:$0xff]
        %v2360 = vld [vmem:[#allocation5 + $0x100] sm:$0xff]
        %v2361 = vld [vmem:[#allocation5 + $0x108] sm:$0xff]
        %v2362 = vld [vmem:[#allocation5 + $0x110] sm:$0xff]
        %v2363 = vld [vmem:[#allocation5 + $0x118] sm:$0xff]
        %v2364 = vld [vmem:[#allocation5 + $0x120] sm:$0xff]
        %v2365 = vld [vmem:[#allocation5 + $0x128] sm:$0xff]
        %v2366 = vld [vmem:[#allocation5 + $0x130] sm:$0xff]
        %v2367 = vld [vmem:[#allocation5 + $0x138] sm:$0xff]
        %v2368 = vld [vmem:[#allocation5 + $0x140] sm:$0xff]
        %v2369 = vld [vmem:[#allocation5 + $0x148] sm:$0xff]
        %v2370 = vld [vmem:[#allocation5 + $0x150] sm:$0xff]
        %v2371 = vld [vmem:[#allocation5 + $0x158] sm:$0xff]
        %v2372 = vld [vmem:[#allocation5 + $0x160] sm:$0xff]
        %v2373 = vld [vmem:[#allocation5 + $0x168] sm:$0xff]
        %v2374 = vld [vmem:[#allocation5 + $0x170] sm:$0xff]
        %v2375 = vld [vmem:[#allocation5 + $0x178] sm:$0xff]
        %v2376 = vld [vmem:[#allocation5 + $0x180] sm:$0xff]
        %v2377 = vld [vmem:[#allocation5 + $0x188] sm:$0xff]
        %v2378 = vld [vmem:[#allocation5 + $0x190] sm:$0xff]
        %v2430 = vunpack.c.l.b16 %v2328
        %v2431 = vunpack.c.h.b16 %v2328
        %v2432 = vunpack.c.l.b16 %v2329
        %v2433 = vunpack.c.h.b16 %v2329
        %v2434 = vunpack.c.l.b16 %v2330
        %v2435 = vunpack.c.h.b16 %v2330
        %v2436 = vunpack.c.l.b16 %v2331
        %v2437 = vunpack.c.h.b16 %v2331
        %v2438 = vunpack.c.l.b16 %v2332
        %v2439 = vunpack.c.h.b16 %v2332
        %v2440 = vunpack.c.l.b16 %v2333
        %v2441 = vunpack.c.h.b16 %v2333
        %v2442 = vunpack.c.l.b16 %v2334
        %v2443 = vunpack.c.h.b16 %v2334
        %v2444 = vunpack.c.l.b16 %v2335
        %v2445 = vunpack.c.h.b16 %v2335
        %v2446 = vunpack.c.l.b16 %v2336
        %v2447 = vunpack.c.h.b16 %v2336
        %v2448 = vunpack.c.l.b16 %v2337
        %v2449 = vunpack.c.h.b16 %v2337
        %v2450 = vunpack.c.l.b16 %v2338
        %v2451 = vunpack.c.h.b16 %v2338
        %v2452 = vunpack.c.l.b16 %v2339
        %v2453 = vunpack.c.h.b16 %v2339
        %v2454 = vunpack.c.l.b16 %v2340
        %v2455 = vunpack.c.h.b16 %v2340
        %v2456 = vunpack.c.l.b16 %v2341
        %v2457 = vunpack.c.h.b16 %v2341
        %v2458 = vunpack.c.l.b16 %v2342
        %v2459 = vunpack.c.h.b16 %v2342
        %v2460 = vunpack.c.l.b16 %v2343
        %v2461 = vunpack.c.h.b16 %v2343
        %v2462 = vunpack.c.l.b16 %v2344
        %v2463 = vunpack.c.h.b16 %v2344
        %v2464 = vunpack.c.l.b16 %v2345
        %v2465 = vunpack.c.h.b16 %v2345
        %v2466 = vunpack.c.l.b16 %v2346
        %v2467 = vunpack.c.h.b16 %v2346
        %v2468 = vunpack.c.l.b16 %v2347
        %v2469 = vunpack.c.h.b16 %v2347
        %v2470 = vunpack.c.l.b16 %v2348
        %v2471 = vunpack.c.h.b16 %v2348
        %v2472 = vunpack.c.l.b16 %v2349
        %v2473 = vunpack.c.h.b16 %v2349
        %v2474 = vunpack.c.l.b16 %v2350
        %v2475 = vunpack.c.h.b16 %v2350
        %v2476 = vunpack.c.l.b16 %v2351
        %v2477 = vunpack.c.h.b16 %v2351
        %v2478 = vunpack.c.l.b16 %v2352
        %v2479 = vunpack.c.h.b16 %v2352
        %v2480 = vunpack.c.l.b16 %v2353
        %v2481 = vunpack.c.h.b16 %v2353
        %v2482 = vunpack.c.l.b16 %v2354
        %v2483 = vunpack.c.h.b16 %v2354
        %v2484 = vunpack.c.l.b16 %v2355
        %v2485 = vunpack.c.h.b16 %v2355
        %v2486 = vunpack.c.l.b16 %v2356
        %v2487 = vunpack.c.h.b16 %v2356
        %v2488 = vunpack.c.l.b16 %v2357
        %v2489 = vunpack.c.h.b16 %v2357
        %v2490 = vunpack.c.l.b16 %v2358
        %v2491 = vunpack.c.h.b16 %v2358
        %v2492 = vunpack.c.l.b16 %v2359
        %v2493 = vunpack.c.h.b16 %v2359
        %v2494 = vunpack.c.l.b16 %v2360
        %v2495 = vunpack.c.h.b16 %v2360
        %v2496 = vunpack.c.l.b16 %v2361
        %v2497 = vunpack.c.h.b16 %v2361
        %v2498 = vunpack.c.l.b16 %v2362
        %v2499 = vunpack.c.h.b16 %v2362
        %v2500 = vunpack.c.l.b16 %v2363
        %v2501 = vunpack.c.h.b16 %v2363
        %v2502 = vunpack.c.l.b16 %v2364
        %v2503 = vunpack.c.h.b16 %v2364
        %v2504 = vunpack.c.l.b16 %v2365
        %v2505 = vunpack.c.h.b16 %v2365
        %v2506 = vunpack.c.l.b16 %v2366
        %v2507 = vunpack.c.h.b16 %v2366
        %v2508 = vunpack.c.l.b16 %v2367
        %v2509 = vunpack.c.h.b16 %v2367
        %v2510 = vunpack.c.l.b16 %v2368
        %v2511 = vunpack.c.h.b16 %v2368
        %v2512 = vunpack.c.l.b16 %v2369
        %v2513 = vunpack.c.h.b16 %v2369
        %v2514 = vunpack.c.l.b16 %v2370
        %v2515 = vunpack.c.h.b16 %v2370
        %v2516 = vunpack.c.l.b16 %v2371
        %v2517 = vunpack.c.h.b16 %v2371
        %v2518 = vunpack.c.l.b16 %v2372
        %v2519 = vunpack.c.h.b16 %v2372
        %v2520 = vunpack.c.l.b16 %v2373
        %v2521 = vunpack.c.h.b16 %v2373
        %v2522 = vunpack.c.l.b16 %v2374
        %v2523 = vunpack.c.h.b16 %v2374
        %v2524 = vunpack.c.l.b16 %v2375
        %v2525 = vunpack.c.h.b16 %v2375
        %v2526 = vunpack.c.l.b16 %v2376
        %v2527 = vunpack.c.h.b16 %v2376
        %v2528 = vunpack.c.l.b16 %v2377
        %v2529 = vunpack.c.h.b16 %v2377
        %v2530 = vunpack.c.l.b16 %v2378
        %v2531 = vunpack.c.h.b16 %v2378
        %v2532 = vpack.c.b16 %v2432, %v2430
        %v2533 = vpack.c.b16 %v2433, %v2431
        %v2534 = vpack.c.b16 %v2436, %v2434
        %v2535 = vpack.c.b16 %v2437, %v2435
        %v2536 = vpack.c.b16 %v2440, %v2438
        %v2537 = vpack.c.b16 %v2441, %v2439
        %v2538 = vpack.c.b16 %v2444, %v2442
        %v2539 = vpack.c.b16 %v2445, %v2443
        %v2540 = vpack.c.b16 %v2448, %v2446
        %v2541 = vpack.c.b16 %v2449, %v2447
        %v2542 = vpack.c.b16 %v2452, %v2450
        %v2543 = vpack.c.b16 %v2453, %v2451
        %v2544 = vpack.c.b16 %v2456, %v2454
        %v2545 = vpack.c.b16 %v2457, %v2455
        %v2546 = vpack.c.b16 %v2460, %v2458
        %v2547 = vpack.c.b16 %v2461, %v2459
        %v2548 = vpack.c.b16 %v2464, %v2462
        %v2549 = vpack.c.b16 %v2465, %v2463
        %v2550 = vpack.c.b16 %v2468, %v2466
        %v2551 = vpack.c.b16 %v2469, %v2467
        %v2552 = vpack.c.b16 %v2472, %v2470
        %v2553 = vpack.c.b16 %v2473, %v2471
        %v2554 = vpack.c.b16 %v2476, %v2474
        %v2555 = vpack.c.b16 %v2477, %v2475
        %v2556 = vpack.c.b16 %v2480, %v2478
        %v2557 = vpack.c.b16 %v2481, %v2479
        %v2558 = vpack.c.b16 %v2484, %v2482
        %v2559 = vpack.c.b16 %v2485, %v2483
        %v2560 = vpack.c.b16 %v2488, %v2486
        %v2561 = vpack.c.b16 %v2489, %v2487
        %v2562 = vpack.c.b16 %v2492, %v2490
        %v2563 = vpack.c.b16 %v2493, %v2491
        %v2564 = vpack.c.b16 %v2496, %v2494
        %v2565 = vpack.c.b16 %v2497, %v2495
        %v2566 = vpack.c.b16 %v2500, %v2498
        %v2567 = vpack.c.b16 %v2501, %v2499
        %v2568 = vpack.c.b16 %v2504, %v2502
        %v2569 = vpack.c.b16 %v2505, %v2503
        %v2570 = vpack.c.b16 %v2508, %v2506
        %v2571 = vpack.c.b16 %v2509, %v2507
        %v2572 = vpack.c.b16 %v2512, %v2510
        %v2573 = vpack.c.b16 %v2513, %v2511
        %v2574 = vpack.c.b16 %v2516, %v2514
        %v2575 = vpack.c.b16 %v2517, %v2515
        %v2576 = vpack.c.b16 %v2520, %v2518
        %v2577 = vpack.c.b16 %v2521, %v2519
        %v2578 = vpack.c.b16 %v2524, %v2522
        %v2579 = vpack.c.b16 %v2525, %v2523
        %v2580 = vpack.c.b16 %v2528, %v2526
        %v2581 = vpack.c.b16 %v2529, %v2527
        %v2582 = vpack.c.b16 %v2530, %v2530
        %v2583 = vpack.c.b16 %v2531, %v2531
        %vm2634 = vcmask 195584
        %v2636 = vsel %vm2634, %v2295, 0
        %v2639 = vsel %vm2634, %v2299, 0
        %v2642 = vsel %vm2634, %v2303, 0
        %v2645 = vsel %vm2634, %v2307, 0
        %v2648 = vsel %vm2634, %v2311, 0
        %v2651 = vsel %vm2634, %v2315, 0
        %v2654 = vsel %vm2634, %v2319, 0
        %v2657 = vsel %vm2634, %v2323, 0
        %v2660 = vsel %vm2634, %v2327, 0
        %vm2662 = vcmask 1043456
        %v2664 = vsel %vm2662, %v2582, 0
        %v2667 = vsel %vm2662, %v2583, 0
        %2669 = vmatprep.subr.bf16.mxu0 %v2533
        %2670 = vmatpush1.bf16.msra.mxu0 %v2532
        %2671 = vmatprep.subr.bf16.mxu0 %v2535
        %2672 = vmatpush1.bf16.msra.mxu0 %v2534
        %2673 = vmatprep.subr.bf16.mxu0 %v2537
        %2674 = vmatpush1.bf16.msra.mxu0 %v2536
        %2675 = vmatprep.subr.bf16.mxu0 %v2539
        %2676 = vmatpush1.bf16.msra.mxu0 %v2538
        %2677 = vmatprep.subr.bf16.mxu0 %v2541
        %2678 = vmatpush1.bf16.msra.mxu0 %v2540
        %2679 = vmatprep.subr.bf16.mxu0 %v2543
        %2680 = vmatpush1.bf16.msra.mxu0 %v2542
        %2681 = vmatprep.subr.bf16.mxu0 %v2545
        %2682 = vmatpush1.bf16.msra.mxu0 %v2544
        %2683 = vmatprep.subr.bf16.mxu0 %v2547
        %2684 = vmatpush1.bf16.msra.mxu0 %v2546
        %2685 = vmatprep.subr.bf16.mxu0 %v2549
        %2686 = vmatpush1.bf16.msra.mxu0 %v2548
        %2687 = vmatprep.subr.bf16.mxu0 %v2551
        %2688 = vmatpush1.bf16.msra.mxu0 %v2550
        %2689 = vmatprep.subr.bf16.mxu0 %v2553
        %2690 = vmatpush1.bf16.msra.mxu0 %v2552
        %2691 = vmatprep.subr.bf16.mxu0 %v2555
        %2692 = vmatpush1.bf16.msra.mxu0 %v2554
        %2693 = vmatprep.subr.bf16.mxu0 %v2557
        %2694 = vmatpush1.bf16.msra.mxu0 %v2556
        %2695 = vmatprep.subr.bf16.mxu0 %v2559
        %2696 = vmatpush1.bf16.msra.mxu0 %v2558
        %2697 = vmatprep.subr.bf16.mxu0 %v2561
        %2698 = vmatpush1.bf16.msra.mxu0 %v2560
        %2699 = vmatprep.subr.bf16.mxu0 %v2563
        %2700 = vmatpush1.bf16.msra.mxu0 %v2562
        %2701 = vmatprep.mubr.bf16.mxu0 %v2293
        %2702 = vmatmul.mubr.bf16.gmra.mrb[0].mxu0 %v2292
        %v2703 = vpop.f32.mrb[0].mxu0
        %v2704 = vadd.f32 0.0, %v2703
        %v2705 = vpop.f32.mrb[0].mxu0
        %v2706 = vadd.f32 0.0, %v2705
        %v2707 = vpop.f32.mrb[0].mxu0
        %v2708 = vadd.f32 0.0, %v2707
        %v2709 = vpop.f32.mrb[0].mxu0
        %v2710 = vadd.f32 0.0, %v2709
        %2711 = vmatprep.mubr.bf16.mxu0 %v2297
        %2712 = vmatmul.mubr.bf16.gmra.mrb[0].mxu0 %v2296
        %v2713 = vpop.f32.mrb[0].mxu0
        %v2714 = vadd.f32 0.0, %v2713
        %v2715 = vpop.f32.mrb[0].mxu0
        %v2716 = vadd.f32 0.0, %v2715
        %v2717 = vpop.f32.mrb[0].mxu0
        %v2718 = vadd.f32 0.0, %v2717
        %v2719 = vpop.f32.mrb[0].mxu0
        %v2720 = vadd.f32 0.0, %v2719
        %2721 = vmatprep.mubr.bf16.mxu0 %v2301
        %2722 = vmatmul.mubr.bf16.gmra.mrb[0].mxu0 %v2300
        %v2723 = vpop.f32.mrb[0].mxu0
        %v2724 = vadd.f32 0.0, %v2723
        %v2725 = vpop.f32.mrb[0].mxu0
        %v2726 = vadd.f32 0.0, %v2725
        %v2727 = vpop.f32.mrb[0].mxu0
        %v2728 = vadd.f32 0.0, %v2727
        %v2729 = vpop.f32.mrb[0].mxu0
        %v2730 = vadd.f32 0.0, %v2729
        %2731 = vmatprep.mubr.bf16.mxu0 %v2305
        %2732 = vmatmul.mubr.bf16.gmra.mrb[0].mxu0 %v2304
        %v2733 = vpop.f32.mrb[0].mxu0
        %v2734 = vadd.f32 0.0, %v2733
        %v2735 = vpop.f32.mrb[0].mxu0
        %v2736 = vadd.f32 0.0, %v2735
        %v2737 = vpop.f32.mrb[0].mxu0
        %v2738 = vadd.f32 0.0, %v2737
        %v2739 = vpop.f32.mrb[0].mxu0
        %v2740 = vadd.f32 0.0, %v2739
        %2741 = vmatprep.mubr.bf16.mxu0 %v2309
        %2742 = vmatmul.mubr.bf16.gmra.mrb[0].mxu0 %v2308
        %v2743 = vpop.f32.mrb[0].mxu0
        %v2744 = vadd.f32 0.0, %v2743
        %v2745 = vpop.f32.mrb[0].mxu0
        %v2746 = vadd.f32 0.0, %v2745
        %v2747 = vpop.f32.mrb[0].mxu0
        %v2748 = vadd.f32 0.0, %v2747
        %v2749 = vpop.f32.mrb[0].mxu0
        %v2750 = vadd.f32 0.0, %v2749
        %2751 = vmatprep.mubr.bf16.mxu0 %v2313
        %2752 = vmatmul.mubr.bf16.gmra.mrb[0].mxu0 %v2312
        %v2753 = vpop.f32.mrb[0].mxu0
        %v2754 = vadd.f32 0.0, %v2753
        %v2755 = vpop.f32.mrb[0].mxu0
        %v2756 = vadd.f32 0.0, %v2755
        %v2757 = vpop.f32.mrb[0].mxu0
        %v2758 = vadd.f32 0.0, %v2757
        %v2759 = vpop.f32.mrb[0].mxu0
        %v2760 = vadd.f32 0.0, %v2759
        %2761 = vmatprep.mubr.bf16.mxu0 %v2317
        %2762 = vmatmul.mubr.bf16.gmra.mrb[0].mxu0 %v2316
        %v2763 = vpop.f32.mrb[0].mxu0
        %v2764 = vadd.f32 0.0, %v2763
        %v2765 = vpop.f32.mrb[0].mxu0
        %v2766 = vadd.f32 0.0, %v2765
        %v2767 = vpop.f32.mrb[0].mxu0
        %v2768 = vadd.f32 0.0, %v2767
        %v2769 = vpop.f32.mrb[0].mxu0
        %v2770 = vadd.f32 0.0, %v2769
        %2771 = vmatprep.mubr.bf16.mxu0 %v2321
        %2772 = vmatmul.mubr.bf16.gmra.mrb[0].mxu0 %v2320
        %v2773 = vpop.f32.mrb[0].mxu0
        %v2774 = vadd.f32 0.0, %v2773
        %v2775 = vpop.f32.mrb[0].mxu0
        %v2776 = vadd.f32 0.0, %v2775
        %v2777 = vpop.f32.mrb[0].mxu0
        %v2778 = vadd.f32 0.0, %v2777
        %v2779 = vpop.f32.mrb[0].mxu0
        %v2780 = vadd.f32 0.0, %v2779
        %2781 = vmatprep.mubr.bf16.mxu0 %v2325
        %2782 = vmatmul.mubr.bf16.gmra.mrb[0].mxu0 %v2324
        %v2783 = vpop.f32.mrb[0].mxu0
        %v2784 = vadd.f32 0.0, %v2783
        %v2785 = vpop.f32.mrb[0].mxu0
        %v2786 = vadd.f32 0.0, %v2785
        %v2787 = vpop.f32.mrb[0].mxu0
        %v2788 = vadd.f32 0.0, %v2787
        %v2789 = vpop.f32.mrb[0].mxu0
        %v2790 = vadd.f32 0.0, %v2789
        %2791 = vdwg.mxu0
        %2792 = vmatprep.subr.bf16.mxu0 %v2565
        %2793 = vmatpush1.bf16.msra.mxu0 %v2564
        %2794 = vmatprep.subr.bf16.mxu0 %v2567
        %2795 = vmatpush1.bf16.msra.mxu0 %v2566
        %2796 = vmatprep.subr.bf16.mxu0 %v2569
        %2797 = vmatpush1.bf16.msra.mxu0 %v2568
        %2798 = vmatprep.subr.bf16.mxu0 %v2571
        %2799 = vmatpush1.bf16.msra.mxu0 %v2570
        %2800 = vmatprep.subr.bf16.mxu0 %v2573
        %2801 = vmatpush1.bf16.msra.mxu0 %v2572
        %2802 = vmatprep.subr.bf16.mxu0 %v2575
        %2803 = vmatpush1.bf16.msra.mxu0 %v2574
        %2804 = vmatprep.subr.bf16.mxu0 %v2577
        %2805 = vmatpush1.bf16.msra.mxu0 %v2576
        %2806 = vmatprep.subr.bf16.mxu0 %v2579
        %2807 = vmatpush1.bf16.msra.mxu0 %v2578
        %2808 = vmatprep.subr.bf16.mxu0 %v2581
        %2809 = vmatpush1.bf16.msra.mxu0 %v2580
        %2810 = vmatprep.subr.bf16.mxu0 %v2667
        %2811 = vmatpush1.bf16.msra.mxu0 %v2664
        %2812 = vmatprep.subr.bf16.mxu0 0
        %2813 = vmatpush1.bf16.msra.mxu0 0
        %2814 = vmatprep.subr.bf16.mxu0 0
        %2815 = vmatpush1.bf16.msra.mxu0 0
        %2816 = vmatprep.subr.bf16.mxu0 0
        %2817 = vmatpush1.bf16.msra.mxu0 0
        %2818 = vmatprep.subr.bf16.mxu0 0
        %2819 = vmatpush1.bf16.msra.mxu0 0
        %2820 = vmatprep.subr.bf16.mxu0 0
        %2821 = vmatpush1.bf16.msra.mxu0 0
        %2822 = vmatprep.subr.bf16.mxu0 0
        %2823 = vmatpush1.bf16.msra.mxu0 0
        %2824 = vmatprep.mubr.bf16.mxu0 %v2636
        %2825 = vmatmul.mubr.bf16.gmra.mrb[0].mxu0 %v2294
        %v2826 = vpop.f32.mrb[0].mxu0
        %v2827 = vadd.f32 %v2704, %v2826
        %v2828 = vpop.f32.mrb[0].mxu0
        %v2829 = vadd.f32 %v2706, %v2828
        %v2830 = vpop.f32.mrb[0].mxu0
        %v2831 = vadd.f32 %v2708, %v2830
        %v2832 = vpop.f32.mrb[0].mxu0
        %v2833 = vadd.f32 %v2710, %v2832
        %2834 = vmatprep.mubr.bf16.mxu0 %v2639
        %2835 = vmatmul.mubr.bf16.gmra.mrb[0].mxu0 %v2298
        %v2836 = vpop.f32.mrb[0].mxu0
        %v2837 = vadd.f32 %v2714, %v2836
        %v2838 = vpop.f32.mrb[0].mxu0
        %v2839 = vadd.f32 %v2716, %v2838
        %v2840 = vpop.f32.mrb[0].mxu0
        %v2841 = vadd.f32 %v2718, %v2840
        %v2842 = vpop.f32.mrb[0].mxu0
        %v2843 = vadd.f32 %v2720, %v2842
        %2844 = vmatprep.mubr.bf16.mxu0 %v2642
        %2845 = vmatmul.mubr.bf16.gmra.mrb[0].mxu0 %v2302
        %v2846 = vpop.f32.mrb[0].mxu0
        %v2847 = vadd.f32 %v2724, %v2846
        %v2848 = vpop.f32.mrb[0].mxu0
        %v2849 = vadd.f32 %v2726, %v2848
        %v2850 = vpop.f32.mrb[0].mxu0
        %v2851 = vadd.f32 %v2728, %v2850
        %v2852 = vpop.f32.mrb[0].mxu0
        %v2853 = vadd.f32 %v2730, %v2852
        %2854 = vmatprep.mubr.bf16.mxu0 %v2645
        %2855 = vmatmul.mubr.bf16.gmra.mrb[0].mxu0 %v2306
        %v2856 = vpop.f32.mrb[0].mxu0
        %v2857 = vadd.f32 %v2734, %v2856
        %v2858 = vpop.f32.mrb[0].mxu0
        %v2859 = vadd.f32 %v2736, %v2858
        %v2860 = vpop.f32.mrb[0].mxu0
        %v2861 = vadd.f32 %v2738, %v2860
        %v2862 = vpop.f32.mrb[0].mxu0
        %v2863 = vadd.f32 %v2740, %v2862
        %2864 = vmatprep.mubr.bf16.mxu0 %v2648
        %2865 = vmatmul.mubr.bf16.gmra.mrb[0].mxu0 %v2310
        %v2866 = vpop.f32.mrb[0].mxu0
        %v2867 = vadd.f32 %v2744, %v2866
        %v2868 = vpop.f32.mrb[0].mxu0
        %v2869 = vadd.f32 %v2746, %v2868
        %v2870 = vpop.f32.mrb[0].mxu0
        %v2871 = vadd.f32 %v2748, %v2870
        %v2872 = vpop.f32.mrb[0].mxu0
        %v2873 = vadd.f32 %v2750, %v2872
        %2874 = vmatprep.mubr.bf16.mxu0 %v2651
        %2875 = vmatmul.mubr.bf16.gmra.mrb[0].mxu0 %v2314
        %v2876 = vpop.f32.mrb[0].mxu0
        %v2877 = vadd.f32 %v2754, %v2876
        %v2878 = vpop.f32.mrb[0].mxu0
        %v2879 = vadd.f32 %v2756, %v2878
        %v2880 = vpop.f32.mrb[0].mxu0
        %v2881 = vadd.f32 %v2758, %v2880
        %v2882 = vpop.f32.mrb[0].mxu0
        %v2883 = vadd.f32 %v2760, %v2882
        %2884 = vmatprep.mubr.bf16.mxu0 %v2654
        %2885 = vmatmul.mubr.bf16.gmra.mrb[0].mxu0 %v2318
        %v2886 = vpop.f32.mrb[0].mxu0
        %v2887 = vadd.f32 %v2764, %v2886
        %v2888 = vpop.f32.mrb[0].mxu0
        %v2889 = vadd.f32 %v2766, %v2888
        %v2890 = vpop.f32.mrb[0].mxu0
        %v2891 = vadd.f32 %v2768, %v2890
        %v2892 = vpop.f32.mrb[0].mxu0
        %v2893 = vadd.f32 %v2770, %v2892
        %2894 = vmatprep.mubr.bf16.mxu0 %v2657
        %2895 = vmatmul.mubr.bf16.gmra.mrb[0].mxu0 %v2322
        %v2896 = vpop.f32.mrb[0].mxu0
        %v2897 = vadd.f32 %v2774, %v2896
        %v2898 = vpop.f32.mrb[0].mxu0
        %v2899 = vadd.f32 %v2776, %v2898
        %v2900 = vpop.f32.mrb[0].mxu0
        %v2901 = vadd.f32 %v2778, %v2900
        %v2902 = vpop.f32.mrb[0].mxu0
        %v2903 = vadd.f32 %v2780, %v2902
        %2904 = vmatprep.mubr.bf16.mxu0 %v2660
        %2905 = vmatmul.mubr.bf16.gmra.mrb[0].mxu0 %v2326
        %v2906 = vpop.f32.mrb[0].mxu0
        %v2907 = vadd.f32 %v2784, %v2906
        %v2908 = vpop.f32.mrb[0].mxu0
        %v2909 = vadd.f32 %v2786, %v2908
        %v2910 = vpop.f32.mrb[0].mxu0
        %v2911 = vadd.f32 %v2788, %v2910
        %v2912 = vpop.f32.mrb[0].mxu0
        %v2913 = vadd.f32 %v2790, %v2912
        %2914 = vdwg.mxu0
        %v2915 = vld [vmem:[#allocation7] sm:$0xff]
        %v2916 = vld [vmem:[#allocation7 + $0x8] sm:$0xff]
        %v2917 = vld [vmem:[#allocation7 + $0x10] sm:$0xff]
        %v2918 = vld [vmem:[#allocation7 + $0x18] sm:$0xff]
        %v2919 = vld [vmem:[#allocation7 + $0x20] sm:$0xff]
        %v2920 = vld [vmem:[#allocation7 + $0x28] sm:$0xff]
        %v2921 = vld [vmem:[#allocation7 + $0x30] sm:$0xff]
        %v2922 = vld [vmem:[#allocation7 + $0x38] sm:$0xff]
        %v2923 = vld [vmem:[#allocation7 + $0x40] sm:$0xff]
        %v2924 = vld [vmem:[#allocation7 + $0x48] sm:$0xff]
        %v2925 = vld [vmem:[#allocation7 + $0x50] sm:$0xff]
        %v2926 = vld [vmem:[#allocation7 + $0x58] sm:$0xff]
        %v2927 = vld [vmem:[#allocation7 + $0x60] sm:$0xff]
        %v2928 = vld [vmem:[#allocation7 + $0x68] sm:$0xff]
        %v2929 = vld [vmem:[#allocation7 + $0x70] sm:$0xff]
        %v2930 = vld [vmem:[#allocation7 + $0x78] sm:$0xff]
        %v2931 = vld [vmem:[#allocation7 + $0x80] sm:$0xff]
        %v2932 = vld [vmem:[#allocation7 + $0x88] sm:$0xff]
        %v2933 = vld [vmem:[#allocation7 + $0x90] sm:$0xff]
        %v2934 = vld [vmem:[#allocation7 + $0x98] sm:$0xff]
        %v2935 = vld [vmem:[#allocation7 + $0xa0] sm:$0xff]
        %v2936 = vld [vmem:[#allocation7 + $0xa8] sm:$0xff]
        %v2937 = vld [vmem:[#allocation7 + $0xb0] sm:$0xff]
        %v2938 = vld [vmem:[#allocation7 + $0xb8] sm:$0xff]
        %v2939 = vld [vmem:[#allocation7 + $0xc0] sm:$0xff]
        %v2940 = vld [vmem:[#allocation7 + $0xc8] sm:$0xff]
        %v2941 = vld [vmem:[#allocation7 + $0xd0] sm:$0xff]
        %v2942 = vld [vmem:[#allocation7 + $0xd8] sm:$0xff]
        %v2943 = vld [vmem:[#allocation7 + $0xe0] sm:$0xff]
        %v2944 = vld [vmem:[#allocation7 + $0xe8] sm:$0xff]
        %v2945 = vld [vmem:[#allocation7 + $0xf0] sm:$0xff]
        %v2946 = vld [vmem:[#allocation7 + $0xf8] sm:$0xff]
        %v2947 = vld [vmem:[#allocation7 + $0x100] sm:$0xff]
        %v2948 = vld [vmem:[#allocation7 + $0x108] sm:$0xff]
        %v2949 = vld [vmem:[#allocation7 + $0x110] sm:$0xff]
        %v2950 = vld [vmem:[#allocation7 + $0x118] sm:$0xff]
        %v2951 = vld [vmem:[#allocation7 + $0x120] sm:$0xff]
        %v2952 = vld [vmem:[#allocation7 + $0x128] sm:$0xff]
        %v2953 = vld [vmem:[#allocation7 + $0x130] sm:$0xff]
        %v2954 = vld [vmem:[#allocation7 + $0x138] sm:$0xff]
        %v2955 = vld [vmem:[#allocation7 + $0x140] sm:$0xff]
        %v2956 = vld [vmem:[#allocation7 + $0x148] sm:$0xff]
        %v2957 = vld [vmem:[#allocation7 + $0x150] sm:$0xff]
        %v2958 = vld [vmem:[#allocation7 + $0x158] sm:$0xff]
        %v2959 = vld [vmem:[#allocation7 + $0x160] sm:$0xff]
        %v2960 = vld [vmem:[#allocation7 + $0x168] sm:$0xff]
        %v2961 = vld [vmem:[#allocation7 + $0x170] sm:$0xff]
        %v2962 = vld [vmem:[#allocation7 + $0x178] sm:$0xff]
        %v2963 = vld [vmem:[#allocation7 + $0x180] sm:$0xff]
        %v2964 = vld [vmem:[#allocation7 + $0x188] sm:$0xff]
        %v2965 = vld [vmem:[#allocation7 + $0x190] sm:$0xff]
        %v3017 = vunpack.c.l.b16 %v2915
        %v3018 = vunpack.c.h.b16 %v2915
        %v3019 = vunpack.c.l.b16 %v2916
        %v3020 = vunpack.c.h.b16 %v2916
        %v3021 = vunpack.c.l.b16 %v2917
        %v3022 = vunpack.c.h.b16 %v2917
        %v3023 = vunpack.c.l.b16 %v2918
        %v3024 = vunpack.c.h.b16 %v2918
        %v3025 = vunpack.c.l.b16 %v2919
        %v3026 = vunpack.c.h.b16 %v2919
        %v3027 = vunpack.c.l.b16 %v2920
        %v3028 = vunpack.c.h.b16 %v2920
        %v3029 = vunpack.c.l.b16 %v2921
        %v3030 = vunpack.c.h.b16 %v2921
        %v3031 = vunpack.c.l.b16 %v2922
        %v3032 = vunpack.c.h.b16 %v2922
        %v3033 = vunpack.c.l.b16 %v2923
        %v3034 = vunpack.c.h.b16 %v2923
        %v3035 = vunpack.c.l.b16 %v2924
        %v3036 = vunpack.c.h.b16 %v2924
        %v3037 = vunpack.c.l.b16 %v2925
        %v3038 = vunpack.c.h.b16 %v2925
        %v3039 = vunpack.c.l.b16 %v2926
        %v3040 = vunpack.c.h.b16 %v2926
        %v3041 = vunpack.c.l.b16 %v2927
        %v3042 = vunpack.c.h.b16 %v2927
        %v3043 = vunpack.c.l.b16 %v2928
        %v3044 = vunpack.c.h.b16 %v2928
        %v3045 = vunpack.c.l.b16 %v2929
        %v3046 = vunpack.c.h.b16 %v2929
        %v3047 = vunpack.c.l.b16 %v2930
        %v3048 = vunpack.c.h.b16 %v2930
        %v3049 = vunpack.c.l.b16 %v2931
        %v3050 = vunpack.c.h.b16 %v2931
        %v3051 = vunpack.c.l.b16 %v2932
        %v3052 = vunpack.c.h.b16 %v2932
        %v3053 = vunpack.c.l.b16 %v2933
        %v3054 = vunpack.c.h.b16 %v2933
        %v3055 = vunpack.c.l.b16 %v2934
        %v3056 = vunpack.c.h.b16 %v2934
        %v3057 = vunpack.c.l.b16 %v2935
        %v3058 = vunpack.c.h.b16 %v2935
        %v3059 = vunpack.c.l.b16 %v2936
        %v3060 = vunpack.c.h.b16 %v2936
        %v3061 = vunpack.c.l.b16 %v2937
        %v3062 = vunpack.c.h.b16 %v2937
        %v3063 = vunpack.c.l.b16 %v2938
        %v3064 = vunpack.c.h.b16 %v2938
        %v3065 = vunpack.c.l.b16 %v2939
        %v3066 = vunpack.c.h.b16 %v2939
        %v3067 = vunpack.c.l.b16 %v2940
        %v3068 = vunpack.c.h.b16 %v2940
        %v3069 = vunpack.c.l.b16 %v2941
        %v3070 = vunpack.c.h.b16 %v2941
        %v3071 = vunpack.c.l.b16 %v2942
        %v3072 = vunpack.c.h.b16 %v2942
        %v3073 = vunpack.c.l.b16 %v2943
        %v3074 = vunpack.c.h.b16 %v2943
        %v3075 = vunpack.c.l.b16 %v2944
        %v3076 = vunpack.c.h.b16 %v2944
        %v3077 = vunpack.c.l.b16 %v2945
        %v3078 = vunpack.c.h.b16 %v2945
        %v3079 = vunpack.c.l.b16 %v2946
        %v3080 = vunpack.c.h.b16 %v2946
        %v3081 = vunpack.c.l.b16 %v2947
        %v3082 = vunpack.c.h.b16 %v2947
        %v3083 = vunpack.c.l.b16 %v2948
        %v3084 = vunpack.c.h.b16 %v2948
        %v3085 = vunpack.c.l.b16 %v2949
        %v3086 = vunpack.c.h.b16 %v2949
        %v3087 = vunpack.c.l.b16 %v2950
        %v3088 = vunpack.c.h.b16 %v2950
        %v3089 = vunpack.c.l.b16 %v2951
        %v3090 = vunpack.c.h.b16 %v2951
        %v3091 = vunpack.c.l.b16 %v2952
        %v3092 = vunpack.c.h.b16 %v2952
        %v3093 = vunpack.c.l.b16 %v2953
        %v3094 = vunpack.c.h.b16 %v2953
        %v3095 = vunpack.c.l.b16 %v2954
        %v3096 = vunpack.c.h.b16 %v2954
        %v3097 = vunpack.c.l.b16 %v2955
        %v3098 = vunpack.c.h.b16 %v2955
        %v3099 = vunpack.c.l.b16 %v2956
        %v3100 = vunpack.c.h.b16 %v2956
        %v3101 = vunpack.c.l.b16 %v2957
        %v3102 = vunpack.c.h.b16 %v2957
        %v3103 = vunpack.c.l.b16 %v2958
        %v3104 = vunpack.c.h.b16 %v2958
        %v3105 = vunpack.c.l.b16 %v2959
        %v3106 = vunpack.c.h.b16 %v2959
        %v3107 = vunpack.c.l.b16 %v2960
        %v3108 = vunpack.c.h.b16 %v2960
        %v3109 = vunpack.c.l.b16 %v2961
        %v3110 = vunpack.c.h.b16 %v2961
        %v3111 = vunpack.c.l.b16 %v2962
        %v3112 = vunpack.c.h.b16 %v2962
        %v3113 = vunpack.c.l.b16 %v2963
        %v3114 = vunpack.c.h.b16 %v2963
        %v3115 = vunpack.c.l.b16 %v2964
        %v3116 = vunpack.c.h.b16 %v2964
        %v3117 = vunpack.c.l.b16 %v2965
        %v3118 = vunpack.c.h.b16 %v2965
        %v3119 = vpack.c.b16 %v3019, %v3017
        %v3120 = vpack.c.b16 %v3020, %v3018
        %v3121 = vpack.c.b16 %v3023, %v3021
        %v3122 = vpack.c.b16 %v3024, %v3022
        %v3123 = vpack.c.b16 %v3027, %v3025
        %v3124 = vpack.c.b16 %v3028, %v3026
        %v3125 = vpack.c.b16 %v3031, %v3029
        %v3126 = vpack.c.b16 %v3032, %v3030
        %v3127 = vpack.c.b16 %v3035, %v3033
        %v3128 = vpack.c.b16 %v3036, %v3034
        %v3129 = vpack.c.b16 %v3039, %v3037
        %v3130 = vpack.c.b16 %v3040, %v3038
        %v3131 = vpack.c.b16 %v3043, %v3041
        %v3132 = vpack.c.b16 %v3044, %v3042
        %v3133 = vpack.c.b16 %v3047, %v3045
        %v3134 = vpack.c.b16 %v3048, %v3046
        %v3135 = vpack.c.b16 %v3051, %v3049
        %v3136 = vpack.c.b16 %v3052, %v3050
        %v3137 = vpack.c.b16 %v3055, %v3053
        %v3138 = vpack.c.b16 %v3056, %v3054
        %v3139 = vpack.c.b16 %v3059, %v3057
        %v3140 = vpack.c.b16 %v3060, %v3058
        %v3141 = vpack.c.b16 %v3063, %v3061
        %v3142 = vpack.c.b16 %v3064, %v3062
        %v3143 = vpack.c.b16 %v3067, %v3065
        %v3144 = vpack.c.b16 %v3068, %v3066
        %v3145 = vpack.c.b16 %v3071, %v3069
        %v3146 = vpack.c.b16 %v3072, %v3070
        %v3147 = vpack.c.b16 %v3075, %v3073
        %v3148 = vpack.c.b16 %v3076, %v3074
        %v3149 = vpack.c.b16 %v3079, %v3077
        %v3150 = vpack.c.b16 %v3080, %v3078
        %v3151 = vpack.c.b16 %v3083, %v3081
        %v3152 = vpack.c.b16 %v3084, %v3082
        %v3153 = vpack.c.b16 %v3087, %v3085
        %v3154 = vpack.c.b16 %v3088, %v3086
        %v3155 = vpack.c.b16 %v3091, %v3089
        %v3156 = vpack.c.b16 %v3092, %v3090
        %v3157 = vpack.c.b16 %v3095, %v3093
        %v3158 = vpack.c.b16 %v3096, %v3094
        %v3159 = vpack.c.b16 %v3099, %v3097
        %v3160 = vpack.c.b16 %v3100, %v3098
        %v3161 = vpack.c.b16 %v3103, %v3101
        %v3162 = vpack.c.b16 %v3104, %v3102
        %v3163 = vpack.c.b16 %v3107, %v3105
        %v3164 = vpack.c.b16 %v3108, %v3106
        %v3165 = vpack.c.b16 %v3111, %v3109
        %v3166 = vpack.c.b16 %v3112, %v3110
        %v3167 = vpack.c.b16 %v3115, %v3113
        %v3168 = vpack.c.b16 %v3116, %v3114
        %v3169 = vpack.c.b16 %v3117, %v3117
        %v3170 = vpack.c.b16 %v3118, %v3118
        %v3222 = vsel %vm2662, %v3169, 0
        %v3225 = vsel %vm2662, %v3170, 0
        %3227 = vmatprep.subr.bf16.mxu0 %v3120
        %3228 = vmatpush1.bf16.msra.mxu0 %v3119
        %3229 = vmatprep.subr.bf16.mxu0 %v3122
        %3230 = vmatpush1.bf16.msra.mxu0 %v3121
        %3231 = vmatprep.subr.bf16.mxu0 %v3124
        %3232 = vmatpush1.bf16.msra.mxu0 %v3123
        %3233 = vmatprep.subr.bf16.mxu0 %v3126
        %3234 = vmatpush1.bf16.msra.mxu0 %v3125
        %3235 = vmatprep.subr.bf16.mxu0 %v3128
        %3236 = vmatpush1.bf16.msra.mxu0 %v3127
        %3237 = vmatprep.subr.bf16.mxu0 %v3130
        %3238 = vmatpush1.bf16.msra.mxu0 %v3129
        %3239 = vmatprep.subr.bf16.mxu0 %v3132
        %3240 = vmatpush1.bf16.msra.mxu0 %v3131
        %3241 = vmatprep.subr.bf16.mxu0 %v3134
        %3242 = vmatpush1.bf16.msra.mxu0 %v3133
        %3243 = vmatprep.subr.bf16.mxu0 %v3136
        %3244 = vmatpush1.bf16.msra.mxu0 %v3135
        %3245 = vmatprep.subr.bf16.mxu0 %v3138
        %3246 = vmatpush1.bf16.msra.mxu0 %v3137
        %3247 = vmatprep.subr.bf16.mxu0 %v3140
        %3248 = vmatpush1.bf16.msra.mxu0 %v3139
        %3249 = vmatprep.subr.bf16.mxu0 %v3142
        %3250 = vmatpush1.bf16.msra.mxu0 %v3141
        %3251 = vmatprep.subr.bf16.mxu0 %v3144
        %3252 = vmatpush1.bf16.msra.mxu0 %v3143
        %3253 = vmatprep.subr.bf16.mxu0 %v3146
        %3254 = vmatpush1.bf16.msra.mxu0 %v3145
        %3255 = vmatprep.subr.bf16.mxu0 %v3148
        %3256 = vmatpush1.bf16.msra.mxu0 %v3147
        %3257 = vmatprep.subr.bf16.mxu0 %v3150
        %3258 = vmatpush1.bf16.msra.mxu0 %v3149
        %3259 = vmatprep.mubr.bf16.mxu0 %v2293
        %3260 = vmatmul.mubr.bf16.gmra.mrb[0].mxu0 %v2292
        %v3261 = vpop.f32.mrb[0].mxu0
        %v3262 = vadd.f32 0.0, %v3261
        %v3263 = vpop.f32.mrb[0].mxu0
        %v3264 = vadd.f32 0.0, %v3263
        %v3265 = vpop.f32.mrb[0].mxu0
        %v3266 = vadd.f32 0.0, %v3265
        %v3267 = vpop.f32.mrb[0].mxu0
        %v3268 = vadd.f32 0.0, %v3267
        %3269 = vmatprep.mubr.bf16.mxu0 %v2297
        %3270 = vmatmul.mubr.bf16.gmra.mrb[0].mxu0 %v2296
        %v3271 = vpop.f32.mrb[0].mxu0
        %v3272 = vadd.f32 0.0, %v3271
        %v3273 = vpop.f32.mrb[0].mxu0
        %v3274 = vadd.f32 0.0, %v3273
        %v3275 = vpop.f32.mrb[0].mxu0
        %v3276 = vadd.f32 0.0, %v3275
        %v3277 = vpop.f32.mrb[0].mxu0
        %v3278 = vadd.f32 0.0, %v3277
        %3279 = vmatprep.mubr.bf16.mxu0 %v2301
        %3280 = vmatmul.mubr.bf16.gmra.mrb[0].mxu0 %v2300
        %v3281 = vpop.f32.mrb[0].mxu0
        %v3282 = vadd.f32 0.0, %v3281
        %v3283 = vpop.f32.mrb[0].mxu0
        %v3284 = vadd.f32 0.0, %v3283
        %v3285 = vpop.f32.mrb[0].mxu0
        %v3286 = vadd.f32 0.0, %v3285
        %v3287 = vpop.f32.mrb[0].mxu0
        %v3288 = vadd.f32 0.0, %v3287
        %3289 = vmatprep.mubr.bf16.mxu0 %v2305
        %3290 = vmatmul.mubr.bf16.gmra.mrb[0].mxu0 %v2304
        %v3291 = vpop.f32.mrb[0].mxu0
        %v3292 = vadd.f32 0.0, %v3291
        %v3293 = vpop.f32.mrb[0].mxu0
        %v3294 = vadd.f32 0.0, %v3293
        %v3295 = vpop.f32.mrb[0].mxu0
        %v3296 = vadd.f32 0.0, %v3295
        %v3297 = vpop.f32.mrb[0].mxu0
        %v3298 = vadd.f32 0.0, %v3297
        %3299 = vmatprep.mubr.bf16.mxu0 %v2309
        %3300 = vmatmul.mubr.bf16.gmra.mrb[0].mxu0 %v2308
        %v3301 = vpop.f32.mrb[0].mxu0
        %v3302 = vadd.f32 0.0, %v3301
        %v3303 = vpop.f32.mrb[0].mxu0
        %v3304 = vadd.f32 0.0, %v3303
        %v3305 = vpop.f32.mrb[0].mxu0
        %v3306 = vadd.f32 0.0, %v3305
        %v3307 = vpop.f32.mrb[0].mxu0
        %v3308 = vadd.f32 0.0, %v3307
        %3309 = vmatprep.mubr.bf16.mxu0 %v2313
        %3310 = vmatmul.mubr.bf16.gmra.mrb[0].mxu0 %v2312
        %v3311 = vpop.f32.mrb[0].mxu0
        %v3312 = vadd.f32 0.0, %v3311
        %v3313 = vpop.f32.mrb[0].mxu0
        %v3314 = vadd.f32 0.0, %v3313
        %v3315 = vpop.f32.mrb[0].mxu0
        %v3316 = vadd.f32 0.0, %v3315
        %v3317 = vpop.f32.mrb[0].mxu0
        %v3318 = vadd.f32 0.0, %v3317
        %3319 = vmatprep.mubr.bf16.mxu0 %v2317
        %3320 = vmatmul.mubr.bf16.gmra.mrb[0].mxu0 %v2316
        %v3321 = vpop.f32.mrb[0].mxu0
        %v3322 = vadd.f32 0.0, %v3321
        %v3323 = vpop.f32.mrb[0].mxu0
        %v3324 = vadd.f32 0.0, %v3323
        %v3325 = vpop.f32.mrb[0].mxu0
        %v3326 = vadd.f32 0.0, %v3325
        %v3327 = vpop.f32.mrb[0].mxu0
        %v3328 = vadd.f32 0.0, %v3327
        %3329 = vmatprep.mubr.bf16.mxu0 %v2321
        %3330 = vmatmul.mubr.bf16.gmra.mrb[0].mxu0 %v2320
        %v3331 = vpop.f32.mrb[0].mxu0
        %v3332 = vadd.f32 0.0, %v3331
        %v3333 = vpop.f32.mrb[0].mxu0
        %v3334 = vadd.f32 0.0, %v3333
        %v3335 = vpop.f32.mrb[0].mxu0
        %v3336 = vadd.f32 0.0, %v3335
        %v3337 = vpop.f32.mrb[0].mxu0
        %v3338 = vadd.f32 0.0, %v3337
        %3339 = vmatprep.mubr.bf16.mxu0 %v2325
        %3340 = vmatmul.mubr.bf16.gmra.mrb[0].mxu0 %v2324
        %v3341 = vpop.f32.mrb[0].mxu0
        %v3342 = vadd.f32 0.0, %v3341
        %v3343 = vpop.f32.mrb[0].mxu0
        %v3344 = vadd.f32 0.0, %v3343
        %v3345 = vpop.f32.mrb[0].mxu0
        %v3346 = vadd.f32 0.0, %v3345
        %v3347 = vpop.f32.mrb[0].mxu0
        %v3348 = vadd.f32 0.0, %v3347
        %3349 = vdwg.mxu0
        %3350 = vmatprep.subr.bf16.mxu0 %v3152
        %3351 = vmatpush1.bf16.msra.mxu0 %v3151
        %3352 = vmatprep.subr.bf16.mxu0 %v3154
        %3353 = vmatpush1.bf16.msra.mxu0 %v3153
        %3354 = vmatprep.subr.bf16.mxu0 %v3156
        %3355 = vmatpush1.bf16.msra.mxu0 %v3155
        %3356 = vmatprep.subr.bf16.mxu0 %v3158
        %3357 = vmatpush1.bf16.msra.mxu0 %v3157
        %3358 = vmatprep.subr.bf16.mxu0 %v3160
        %3359 = vmatpush1.bf16.msra.mxu0 %v3159
        %3360 = vmatprep.subr.bf16.mxu0 %v3162
        %3361 = vmatpush1.bf16.msra.mxu0 %v3161
        %3362 = vmatprep.subr.bf16.mxu0 %v3164
        %3363 = vmatpush1.bf16.msra.mxu0 %v3163
        %3364 = vmatprep.subr.bf16.mxu0 %v3166
        %3365 = vmatpush1.bf16.msra.mxu0 %v3165
        %3366 = vmatprep.subr.bf16.mxu0 %v3168
        %3367 = vmatpush1.bf16.msra.mxu0 %v3167
        %3368 = vmatprep.subr.bf16.mxu0 %v3225
        %3369 = vmatpush1.bf16.msra.mxu0 %v3222
        %3370 = vmatprep.subr.bf16.mxu0 0
        %3371 = vmatpush1.bf16.msra.mxu0 0
        %3372 = vmatprep.subr.bf16.mxu0 0
        %3373 = vmatpush1.bf16.msra.mxu0 0
        %3374 = vmatprep.subr.bf16.mxu0 0
        %3375 = vmatpush1.bf16.msra.mxu0 0
        %3376 = vmatprep.subr.bf16.mxu0 0
        %3377 = vmatpush1.bf16.msra.mxu0 0
        %3378 = vmatprep.subr.bf16.mxu0 0
        %3379 = vmatpush1.bf16.msra.mxu0 0
        %3380 = vmatprep.subr.bf16.mxu0 0
        %3381 = vmatpush1.bf16.msra.mxu0 0
        %3382 = vmatprep.mubr.bf16.mxu0 %v2636
        %3383 = vmatmul.mubr.bf16.gmra.mrb[0].mxu0 %v2294
        %v3384 = vpop.f32.mrb[0].mxu0
        %v3385 = vadd.f32 %v3262, %v3384
        %v3386 = vpop.f32.mrb[0].mxu0
        %v3387 = vadd.f32 %v3264, %v3386
        %v3388 = vpop.f32.mrb[0].mxu0
        %v3389 = vadd.f32 %v3266, %v3388
        %v3390 = vpop.f32.mrb[0].mxu0
        %v3391 = vadd.f32 %v3268, %v3390
        %3392 = vmatprep.mubr.bf16.mxu0 %v2639
        %3393 = vmatmul.mubr.bf16.gmra.mrb[0].mxu0 %v2298
        %v3394 = vpop.f32.mrb[0].mxu0
        %v3395 = vadd.f32 %v3272, %v3394
        %v3396 = vpop.f32.mrb[0].mxu0
        %v3397 = vadd.f32 %v3274, %v3396
        %v3398 = vpop.f32.mrb[0].mxu0
        %v3399 = vadd.f32 %v3276, %v3398
        %v3400 = vpop.f32.mrb[0].mxu0
        %v3401 = vadd.f32 %v3278, %v3400
        %3402 = vmatprep.mubr.bf16.mxu0 %v2642
        %3403 = vmatmul.mubr.bf16.gmra.mrb[0].mxu0 %v2302
        %v3404 = vpop.f32.mrb[0].mxu0
        %v3405 = vadd.f32 %v3282, %v3404
        %v3406 = vpop.f32.mrb[0].mxu0
        %v3407 = vadd.f32 %v3284, %v3406
        %v3408 = vpop.f32.mrb[0].mxu0
        %v3409 = vadd.f32 %v3286, %v3408
        %v3410 = vpop.f32.mrb[0].mxu0
        %v3411 = vadd.f32 %v3288, %v3410
        %3412 = vmatprep.mubr.bf16.mxu0 %v2645
        %3413 = vmatmul.mubr.bf16.gmra.mrb[0].mxu0 %v2306
        %v3414 = vpop.f32.mrb[0].mxu0
        %v3415 = vadd.f32 %v3292, %v3414
        %v3416 = vpop.f32.mrb[0].mxu0
        %v3417 = vadd.f32 %v3294, %v3416
        %v3418 = vpop.f32.mrb[0].mxu0
        %v3419 = vadd.f32 %v3296, %v3418
        %v3420 = vpop.f32.mrb[0].mxu0
        %v3421 = vadd.f32 %v3298, %v3420
        %3422 = vmatprep.mubr.bf16.mxu0 %v2648
        %3423 = vmatmul.mubr.bf16.gmra.mrb[0].mxu0 %v2310
        %v3424 = vpop.f32.mrb[0].mxu0
        %v3425 = vadd.f32 %v3302, %v3424
        %v3426 = vpop.f32.mrb[0].mxu0
        %v3427 = vadd.f32 %v3304, %v3426
        %v3428 = vpop.f32.mrb[0].mxu0
        %v3429 = vadd.f32 %v3306, %v3428
        %v3430 = vpop.f32.mrb[0].mxu0
        %v3431 = vadd.f32 %v3308, %v3430
        %3432 = vmatprep.mubr.bf16.mxu0 %v2651
        %3433 = vmatmul.mubr.bf16.gmra.mrb[0].mxu0 %v2314
        %v3434 = vpop.f32.mrb[0].mxu0
        %v3435 = vadd.f32 %v3312, %v3434
        %v3436 = vpop.f32.mrb[0].mxu0
        %v3437 = vadd.f32 %v3314, %v3436
        %v3438 = vpop.f32.mrb[0].mxu0
        %v3439 = vadd.f32 %v3316, %v3438
        %v3440 = vpop.f32.mrb[0].mxu0
        %v3441 = vadd.f32 %v3318, %v3440
        %3442 = vmatprep.mubr.bf16.mxu0 %v2654
        %3443 = vmatmul.mubr.bf16.gmra.mrb[0].mxu0 %v2318
        %v3444 = vpop.f32.mrb[0].mxu0
        %v3445 = vadd.f32 %v3322, %v3444
        %v3446 = vpop.f32.mrb[0].mxu0
        %v3447 = vadd.f32 %v3324, %v3446
        %v3448 = vpop.f32.mrb[0].mxu0
        %v3449 = vadd.f32 %v3326, %v3448
        %v3450 = vpop.f32.mrb[0].mxu0
        %v3451 = vadd.f32 %v3328, %v3450
        %3452 = vmatprep.mubr.bf16.mxu0 %v2657
        %3453 = vmatmul.mubr.bf16.gmra.mrb[0].mxu0 %v2322
        %v3454 = vpop.f32.mrb[0].mxu0
        %v3455 = vadd.f32 %v3332, %v3454
        %v3456 = vpop.f32.mrb[0].mxu0
        %v3457 = vadd.f32 %v3334, %v3456
        %v3458 = vpop.f32.mrb[0].mxu0
        %v3459 = vadd.f32 %v3336, %v3458
        %v3460 = vpop.f32.mrb[0].mxu0
        %v3461 = vadd.f32 %v3338, %v3460
        %3462 = vmatprep.mubr.bf16.mxu0 %v2660
        %3463 = vmatmul.mubr.bf16.gmra.mrb[0].mxu0 %v2326
        %v3464 = vpop.f32.mrb[0].mxu0
        %v3465 = vadd.f32 %v3342, %v3464
        %v3466 = vpop.f32.mrb[0].mxu0
        %v3467 = vadd.f32 %v3344, %v3466
        %v3468 = vpop.f32.mrb[0].mxu0
        %v3469 = vadd.f32 %v3346, %v3468
        %v3470 = vpop.f32.mrb[0].mxu0
        %v3471 = vadd.f32 %v3348, %v3470
        %3472 = vdwg.mxu0
        %v3473 = vmax.f32 %v2827, %v3385
        %v3474 = vmax.f32 %v2829, %v3387
        %v3475 = vmax.f32 %v2831, %v3389
        %v3476 = vmax.f32 %v2833, %v3391
        %v3477 = vmax.f32 %v2837, %v3395
        %v3478 = vmax.f32 %v2839, %v3397
        %v3479 = vmax.f32 %v2841, %v3399
        %v3480 = vmax.f32 %v2843, %v3401
        %v3481 = vmax.f32 %v2847, %v3405
        %v3482 = vmax.f32 %v2849, %v3407
        %v3483 = vmax.f32 %v2851, %v3409
        %v3484 = vmax.f32 %v2853, %v3411
        %v3485 = vmax.f32 %v2857, %v3415
        %v3486 = vmax.f32 %v2859, %v3417
        %v3487 = vmax.f32 %v2861, %v3419
        %v3488 = vmax.f32 %v2863, %v3421
        %v3489 = vmax.f32 %v2867, %v3425
        %v3490 = vmax.f32 %v2869, %v3427
        %v3491 = vmax.f32 %v2871, %v3429
        %v3492 = vmax.f32 %v2873, %v3431
        %v3493 = vmax.f32 %v2877, %v3435
        %v3494 = vmax.f32 %v2879, %v3437
        %v3495 = vmax.f32 %v2881, %v3439
        %v3496 = vmax.f32 %v2883, %v3441
        %v3497 = vmax.f32 %v2887, %v3445
        %v3498 = vmax.f32 %v2889, %v3447
        %v3499 = vmax.f32 %v2891, %v3449
        %v3500 = vmax.f32 %v2893, %v3451
        %v3501 = vmax.f32 %v2897, %v3455
        %v3502 = vmax.f32 %v2899, %v3457
        %v3503 = vmax.f32 %v2901, %v3459
        %v3504 = vmax.f32 %v2903, %v3461
        %v3505 = vmax.f32 %v2907, %v3465
        %v3506 = vmax.f32 %v2909, %v3467
        %v3507 = vmax.f32 %v2911, %v3469
        %v3508 = vmax.f32 %v2913, %v3471
        %v3545 = vrot.slane %v3473, 1
        %v3546 = vrot.slane %v3475, 1
        %v3547 = vsel %vm759, %v3545, %v3546
        %v3548 = vrot.slane %v3474, 1
        %v3549 = vrot.slane %v3476, 1
        %v3550 = vsel %vm759, %v3548, %v3549
        %v3551 = vrot.slane %v3477, 1
        %v3552 = vsel %vm759, %v3546, %v3551
        %v3553 = vrot.slane %v3478, 1
        %v3554 = vsel %vm759, %v3549, %v3553
        %v3555 = vrot.slane %v3479, 1
        %v3556 = vsel %vm759, %v3551, %v3555
        %v3557 = vrot.slane %v3480, 1
        %v3558 = vsel %vm759, %v3553, %v3557
        %v3559 = vrot.slane %v3481, 1
        %v3560 = vsel %vm759, %v3555, %v3559
        %v3561 = vrot.slane %v3482, 1
        %v3562 = vsel %vm759, %v3557, %v3561
        %v3563 = vrot.slane %v3483, 1
        %v3564 = vsel %vm759, %v3559, %v3563
        %v3565 = vrot.slane %v3484, 1
        %v3566 = vsel %vm759, %v3561, %v3565
        %v3567 = vrot.slane %v3485, 1
        %v3568 = vsel %vm759, %v3563, %v3567
        %v3569 = vrot.slane %v3486, 1
        %v3570 = vsel %vm759, %v3565, %v3569
        %v3571 = vrot.slane %v3487, 1
        %v3572 = vsel %vm759, %v3567, %v3571
        %v3573 = vrot.slane %v3488, 1
        %v3574 = vsel %vm759, %v3569, %v3573
        %v3575 = vrot.slane %v3489, 1
        %v3576 = vsel %vm759, %v3571, %v3575
        %v3577 = vrot.slane %v3490, 1
        %v3578 = vsel %vm759, %v3573, %v3577
        %v3579 = vrot.slane %v3491, 1
        %v3580 = vsel %vm759, %v3575, %v3579
        %v3581 = vrot.slane %v3492, 1
        %v3582 = vsel %vm759, %v3577, %v3581
        %v3583 = vrot.slane %v3493, 1
        %v3584 = vsel %vm759, %v3579, %v3583
        %v3585 = vrot.slane %v3494, 1
        %v3586 = vsel %vm759, %v3581, %v3585
        %v3587 = vrot.slane %v3495, 1
        %v3588 = vsel %vm759, %v3583, %v3587
        %v3589 = vrot.slane %v3496, 1
        %v3590 = vsel %vm759, %v3585, %v3589
        %v3591 = vrot.slane %v3497, 1
        %v3592 = vsel %vm759, %v3587, %v3591
        %v3593 = vrot.slane %v3498, 1
        %v3594 = vsel %vm759, %v3589, %v3593
        %v3595 = vrot.slane %v3499, 1
        %v3596 = vsel %vm759, %v3591, %v3595
        %v3597 = vrot.slane %v3500, 1
        %v3598 = vsel %vm759, %v3593, %v3597
        %v3599 = vrot.slane %v3501, 1
        %v3600 = vsel %vm759, %v3595, %v3599
        %v3601 = vrot.slane %v3502, 1
        %v3602 = vsel %vm759, %v3597, %v3601
        %v3603 = vrot.slane %v3503, 1
        %v3604 = vsel %vm759, %v3599, %v3603
        %v3605 = vrot.slane %v3504, 1
        %v3606 = vsel %vm759, %v3601, %v3605
        %v3607 = vrot.slane %v3505, 1
        %v3608 = vsel %vm759, %v3603, %v3607
        %v3609 = vrot.slane %v3506, 1
        %v3610 = vsel %vm759, %v3605, %v3609
        %v3611 = vrot.slane %v3507, 1
        %v3612 = vsel %vm759, %v3607, %v3611
        %v3613 = vrot.slane %v3508, 1
        %v3614 = vsel %vm759, %v3609, %v3613
        %v3653 = vsel %vm759, %v3611, %v3545
        %v3654 = vsel %vm759, %v3613, %v3548
        %v3655 = vmax.f32 %v3473, %v3547
        %v3656 = vmax.f32 %v3474, %v3550
        %v3657 = vmax.f32 %v3475, %v3552
        %v3658 = vmax.f32 %v3476, %v3554
        %v3659 = vmax.f32 %v3477, %v3556
        %v3660 = vmax.f32 %v3478, %v3558
        %v3661 = vmax.f32 %v3479, %v3560
        %v3662 = vmax.f32 %v3480, %v3562
        %v3663 = vmax.f32 %v3481, %v3564
        %v3664 = vmax.f32 %v3482, %v3566
        %v3665 = vmax.f32 %v3483, %v3568
        %v3666 = vmax.f32 %v3484, %v3570
        %v3667 = vmax.f32 %v3485, %v3572
        %v3668 = vmax.f32 %v3486, %v3574
        %v3669 = vmax.f32 %v3487, %v3576
        %v3670 = vmax.f32 %v3488, %v3578
        %v3671 = vmax.f32 %v3489, %v3580
        %v3672 = vmax.f32 %v3490, %v3582
        %v3673 = vmax.f32 %v3491, %v3584
        %v3674 = vmax.f32 %v3492, %v3586
        %v3675 = vmax.f32 %v3493, %v3588
        %v3676 = vmax.f32 %v3494, %v3590
        %v3677 = vmax.f32 %v3495, %v3592
        %v3678 = vmax.f32 %v3496, %v3594
        %v3679 = vmax.f32 %v3497, %v3596
        %v3680 = vmax.f32 %v3498, %v3598
        %v3681 = vmax.f32 %v3499, %v3600
        %v3682 = vmax.f32 %v3500, %v3602
        %v3683 = vmax.f32 %v3501, %v3604
        %v3684 = vmax.f32 %v3502, %v3606
        %v3685 = vmax.f32 %v3503, %v3608
        %v3686 = vmax.f32 %v3504, %v3610
        %v3687 = vmax.f32 %v3505, %v3612
        %v3688 = vmax.f32 %v3506, %v3614
        %v3689 = vmax.f32 %v3507, %v3653
        %v3690 = vmax.f32 %v3508, %v3654
        %v3691 = vld [vmem:[#allocation8] sm:$0xff]
        %v3692 = vld [vmem:[#allocation8 + $0x8] sm:$0xff]
        %v3693 = vld [vmem:[#allocation8 + $0x10] sm:$0xff]
        %v3694 = vld [vmem:[#allocation8 + $0x18] sm:$0xff]
        %v3695 = vld [vmem:[#allocation8 + $0x20] sm:$0xff]
        %v3696 = vld [vmem:[#allocation8 + $0x28] sm:$0xff]
        %v3697 = vld [vmem:[#allocation8 + $0x30] sm:$0xff]
        %v3698 = vld [vmem:[#allocation8 + $0x38] sm:$0xff]
        %v3699 = vld [vmem:[#allocation8 + $0x40] sm:$0xff]
        %v3700 = vld [vmem:[#allocation8 + $0x48] sm:$0xff]
        %v3701 = vld [vmem:[#allocation8 + $0x50] sm:$0xff]
        %v3702 = vld [vmem:[#allocation8 + $0x58] sm:$0xff]
        %v3703 = vld [vmem:[#allocation8 + $0x60] sm:$0xff]
        %v3704 = vld [vmem:[#allocation8 + $0x68] sm:$0xff]
        %v3705 = vld [vmem:[#allocation8 + $0x70] sm:$0xff]
        %v3706 = vld [vmem:[#allocation8 + $0x78] sm:$0xff]
        %v3707 = vld [vmem:[#allocation8 + $0x80] sm:$0xff]
        %v3708 = vld [vmem:[#allocation8 + $0x88] sm:$0xff]
        %v3709 = vld [vmem:[#allocation8 + $0x90] sm:$0xff]
        %v3710 = vld [vmem:[#allocation8 + $0x98] sm:$0xff]
        %v3711 = vld [vmem:[#allocation8 + $0xa0] sm:$0xff]
        %v3712 = vld [vmem:[#allocation8 + $0xa8] sm:$0xff]
        %v3713 = vld [vmem:[#allocation8 + $0xb0] sm:$0xff]
        %v3714 = vld [vmem:[#allocation8 + $0xb8] sm:$0xff]
        %v3715 = vld [vmem:[#allocation8 + $0xc0] sm:$0xff]
        %v3716 = vld [vmem:[#allocation8 + $0xc8] sm:$0xff]
        %v3717 = vld [vmem:[#allocation8 + $0xd0] sm:$0xff]
        %v3718 = vld [vmem:[#allocation8 + $0xd8] sm:$0xff]
        %v3719 = vld [vmem:[#allocation8 + $0xe0] sm:$0xff]
        %v3720 = vld [vmem:[#allocation8 + $0xe8] sm:$0xff]
        %v3721 = vld [vmem:[#allocation8 + $0xf0] sm:$0xff]
        %v3722 = vld [vmem:[#allocation8 + $0xf8] sm:$0xff]
        %v3723 = vld [vmem:[#allocation8 + $0x100] sm:$0xff]
        %v3724 = vld [vmem:[#allocation8 + $0x108] sm:$0xff]
        %v3725 = vld [vmem:[#allocation8 + $0x110] sm:$0xff]
        %v3726 = vld [vmem:[#allocation8 + $0x118] sm:$0xff]
        %v3727 = vld [vmem:[#allocation8 + $0x120] sm:$0xff]
        %v3728 = vld [vmem:[#allocation8 + $0x128] sm:$0xff]
        %v3729 = vld [vmem:[#allocation8 + $0x130] sm:$0xff]
        %v3730 = vld [vmem:[#allocation8 + $0x138] sm:$0xff]
        %v3731 = vld [vmem:[#allocation8 + $0x140] sm:$0xff]
        %v3732 = vld [vmem:[#allocation8 + $0x148] sm:$0xff]
        %v3733 = vld [vmem:[#allocation8 + $0x150] sm:$0xff]
        %v3734 = vld [vmem:[#allocation8 + $0x158] sm:$0xff]
        %v3735 = vld [vmem:[#allocation8 + $0x160] sm:$0xff]
        %v3736 = vld [vmem:[#allocation8 + $0x168] sm:$0xff]
        %v3737 = vld [vmem:[#allocation8 + $0x170] sm:$0xff]
        %v3738 = vld [vmem:[#allocation8 + $0x178] sm:$0xff]
        %v3739 = vld [vmem:[#allocation8 + $0x180] sm:$0xff]
        %v3740 = vld [vmem:[#allocation8 + $0x188] sm:$0xff]
        %v3741 = vld [vmem:[#allocation8 + $0x190] sm:$0x33]
        %v3742 = vld [vmem:[#allocation8 + $0x198] sm:$0x33]
        %v3743 = vpack.c.bf16 %v3657, %v3655
        %v3744 = vpack.c.bf16 %v3658, %v3656
        %v3745 = vpack.c.bf16 %v3661, %v3659
        %v3746 = vpack.c.bf16 %v3662, %v3660
        %v3747 = vpack.c.bf16 %v3665, %v3663
        %v3748 = vpack.c.bf16 %v3666, %v3664
        %v3749 = vpack.c.bf16 %v3669, %v3667
        %v3750 = vpack.c.bf16 %v3670, %v3668
        %v3751 = vpack.c.bf16 %v3673, %v3671
        %v3752 = vpack.c.bf16 %v3674, %v3672
        %v3753 = vpack.c.bf16 %v3677, %v3675
        %v3754 = vpack.c.bf16 %v3678, %v3676
        %v3755 = vpack.c.bf16 %v3681, %v3679
        %v3756 = vpack.c.bf16 %v3682, %v3680
        %v3757 = vpack.c.bf16 %v3685, %v3683
        %v3758 = vpack.c.bf16 %v3686, %v3684
        %v3759 = vpack.c.bf16 %v3689, %v3687
        %v3760 = vpack.c.bf16 %v3690, %v3688
        %v3797 = vrot.slane %v3655, 2
        %v3798 = vrot.slane %v3657, 2
        %v3799 = vsel %vm1595, %v3797, %v3798
        %v3800 = vrot.slane %v3656, 2
        %v3801 = vrot.slane %v3658, 2
        %v3802 = vsel %vm1595, %v3800, %v3801
        %v3803 = vrot.slane %v3659, 2
        %v3804 = vsel %vm1595, %v3798, %v3803
        %v3805 = vrot.slane %v3660, 2
        %v3806 = vsel %vm1595, %v3801, %v3805
        %v3807 = vrot.slane %v3661, 2
        %v3808 = vsel %vm1595, %v3803, %v3807
        %v3809 = vrot.slane %v3662, 2
        %v3810 = vsel %vm1595, %v3805, %v3809
        %v3811 = vrot.slane %v3663, 2
        %v3812 = vsel %vm1595, %v3807, %v3811
        %v3813 = vrot.slane %v3664, 2
        %v3814 = vsel %vm1595, %v3809, %v3813
        %v3815 = vrot.slane %v3665, 2
        %v3816 = vsel %vm1595, %v3811, %v3815
        %v3817 = vrot.slane %v3666, 2
        %v3818 = vsel %vm1595, %v3813, %v3817
        %v3819 = vrot.slane %v3667, 2
        %v3820 = vsel %vm1595, %v3815, %v3819
        %v3821 = vrot.slane %v3668, 2
        %v3822 = vsel %vm1595, %v3817, %v3821
        %v3823 = vrot.slane %v3669, 2
        %v3824 = vsel %vm1595, %v3819, %v3823
        %v3825 = vrot.slane %v3670, 2
        %v3826 = vsel %vm1595, %v3821, %v3825
        %v3827 = vrot.slane %v3671, 2
        %v3828 = vsel %vm1595, %v3823, %v3827
        %v3829 = vrot.slane %v3672, 2
        %v3830 = vsel %vm1595, %v3825, %v3829
        %v3831 = vrot.slane %v3673, 2
        %v3832 = vsel %vm1595, %v3827, %v3831
        %v3833 = vrot.slane %v3674, 2
        %v3834 = vsel %vm1595, %v3829, %v3833
        %v3835 = vrot.slane %v3675, 2
        %v3836 = vsel %vm1595, %v3831, %v3835
        %v3837 = vrot.slane %v3676, 2
        %v3838 = vsel %vm1595, %v3833, %v3837
        %v3839 = vrot.slane %v3677, 2
        %v3840 = vsel %vm1595, %v3835, %v3839
        %v3841 = vrot.slane %v3678, 2
        %v3842 = vsel %vm1595, %v3837, %v3841
        %v3843 = vrot.slane %v3679, 2
        %v3844 = vsel %vm1595, %v3839, %v3843
        %v3845 = vrot.slane %v3680, 2
        %v3846 = vsel %vm1595, %v3841, %v3845
        %v3847 = vrot.slane %v3681, 2
        %v3848 = vsel %vm1595, %v3843, %v3847
        %v3849 = vrot.slane %v3682, 2
        %v3850 = vsel %vm1595, %v3845, %v3849
        %v3851 = vrot.slane %v3683, 2
        %v3852 = vsel %vm1595, %v3847, %v3851
        %v3853 = vrot.slane %v3684, 2
        %v3854 = vsel %vm1595, %v3849, %v3853
        %v3855 = vrot.slane %v3685, 2
        %v3856 = vsel %vm1595, %v3851, %v3855
        %v3857 = vrot.slane %v3686, 2
        %v3858 = vsel %vm1595, %v3853, %v3857
        %v3859 = vrot.slane %v3687, 2
        %v3860 = vsel %vm1595, %v3855, %v3859
        %v3861 = vrot.slane %v3688, 2
        %v3862 = vsel %vm1595, %v3857, %v3861
        %v3863 = vrot.slane %v3689, 2
        %v3864 = vsel %vm1595, %v3859, %v3863
        %v3865 = vrot.slane %v3690, 2
        %v3866 = vsel %vm1595, %v3861, %v3865
        %v3905 = vsel %vm1595, %v3863, %v3797
        %v3906 = vsel %vm1595, %v3865, %v3800
        %s3907 = scalar_lea.vmem [#allocation8], 416
        %v3908 = vld [vmem:[%s3907] sm:$0xff]
        %v3909 = vld [vmem:[%s3907 + $0x8] sm:$0xff]
        %v3910 = vld [vmem:[%s3907 + $0x10] sm:$0xff]
        %v3911 = vld [vmem:[%s3907 + $0x18] sm:$0xff]
        %v3912 = vld [vmem:[%s3907 + $0x20] sm:$0xff]
        %v3913 = vld [vmem:[%s3907 + $0x28] sm:$0xff]
        %v3914 = vld [vmem:[%s3907 + $0x30] sm:$0xff]
        %v3915 = vld [vmem:[%s3907 + $0x38] sm:$0xff]
        %v3916 = vld [vmem:[%s3907 + $0x40] sm:$0xff]
        %v3917 = vld [vmem:[%s3907 + $0x48] sm:$0xff]
        %v3918 = vld [vmem:[%s3907 + $0x50] sm:$0xff]
        %v3919 = vld [vmem:[%s3907 + $0x58] sm:$0xff]
        %v3920 = vld [vmem:[%s3907 + $0x60] sm:$0xff]
        %v3921 = vld [vmem:[%s3907 + $0x68] sm:$0xff]
        %v3922 = vld [vmem:[%s3907 + $0x70] sm:$0xff]
        %v3923 = vld [vmem:[%s3907 + $0x78] sm:$0xff]
        %v3924 = vld [vmem:[%s3907 + $0x80] sm:$0xff]
        %v3925 = vld [vmem:[%s3907 + $0x88] sm:$0xff]
        %v3926 = vld [vmem:[%s3907 + $0x90] sm:$0xff]
        %v3927 = vld [vmem:[%s3907 + $0x98] sm:$0xff]
        %v3928 = vld [vmem:[%s3907 + $0xa0] sm:$0xff]
        %v3929 = vld [vmem:[%s3907 + $0xa8] sm:$0xff]
        %v3930 = vld [vmem:[%s3907 + $0xb0] sm:$0xff]
        %v3931 = vld [vmem:[%s3907 + $0xb8] sm:$0xff]
        %v3932 = vld [vmem:[%s3907 + $0xc0] sm:$0xff]
        %v3933 = vld [vmem:[%s3907 + $0xc8] sm:$0xff]
        %v3934 = vld [vmem:[%s3907 + $0xd0] sm:$0xff]
        %v3935 = vld [vmem:[%s3907 + $0xd8] sm:$0xff]
        %v3936 = vld [vmem:[%s3907 + $0xe0] sm:$0xff]
        %v3937 = vld [vmem:[%s3907 + $0xe8] sm:$0xff]
        %v3938 = vld [vmem:[%s3907 + $0xf0] sm:$0xff]
        %v3939 = vld [vmem:[%s3907 + $0xf8] sm:$0xff]
        %v3940 = vld [vmem:[%s3907 + $0x100] sm:$0xff]
        %v3941 = vld [vmem:[%s3907 + $0x108] sm:$0xff]
        %v3942 = vld [vmem:[%s3907 + $0x110] sm:$0xff]
        %v3943 = vld [vmem:[%s3907 + $0x118] sm:$0xff]
        %v3944 = vld [vmem:[%s3907 + $0x120] sm:$0xff]
        %v3945 = vld [vmem:[%s3907 + $0x128] sm:$0xff]
        %v3946 = vld [vmem:[%s3907 + $0x130] sm:$0xff]
        %v3947 = vld [vmem:[%s3907 + $0x138] sm:$0xff]
        %v3948 = vld [vmem:[%s3907 + $0x140] sm:$0xff]
        %v3949 = vld [vmem:[%s3907 + $0x148] sm:$0xff]
        %v3950 = vld [vmem:[%s3907 + $0x150] sm:$0xff]
        %v3951 = vld [vmem:[%s3907 + $0x158] sm:$0xff]
        %v3952 = vld [vmem:[%s3907 + $0x160] sm:$0xff]
        %v3953 = vld [vmem:[%s3907 + $0x168] sm:$0xff]
        %v3954 = vld [vmem:[%s3907 + $0x170] sm:$0xff]
        %v3955 = vld [vmem:[%s3907 + $0x178] sm:$0xff]
        %v3956 = vld [vmem:[%s3907 + $0x180] sm:$0xff]
        %v3957 = vld [vmem:[%s3907 + $0x188] sm:$0xff]
        %v3958 = vld [vmem:[%s3907 + $0x190] sm:$0x33]
        %v3959 = vld [vmem:[%s3907 + $0x198] sm:$0x33]
        %v3960 = vpack.c.bf16 %v3804, %v3799
        %v3961 = vpack.c.bf16 %v3806, %v3802
        %v3962 = vpack.c.bf16 %v3812, %v3808
        %v3963 = vpack.c.bf16 %v3814, %v3810
        %v3964 = vpack.c.bf16 %v3820, %v3816
        %v3965 = vpack.c.bf16 %v3822, %v3818
        %v3966 = vpack.c.bf16 %v3828, %v3824
        %v3967 = vpack.c.bf16 %v3830, %v3826
        %v3968 = vpack.c.bf16 %v3836, %v3832
        %v3969 = vpack.c.bf16 %v3838, %v3834
        %v3970 = vpack.c.bf16 %v3844, %v3840
        %v3971 = vpack.c.bf16 %v3846, %v3842
        %v3972 = vpack.c.bf16 %v3852, %v3848
        %v3973 = vpack.c.bf16 %v3854, %v3850
        %v3974 = vpack.c.bf16 %v3860, %v3856
        %v3975 = vpack.c.bf16 %v3862, %v3858
        %v3976 = vpack.c.bf16 %v3905, %v3864
        %v3977 = vpack.c.bf16 %v3906, %v3866
        %v4030 = vunpack.c.l.b16 %v3908
        %v4031 = vunpack.c.h.b16 %v3908
        %v4032 = vunpack.c.l.b16 %v3909
        %v4033 = vunpack.c.h.b16 %v3909
        %v4034 = vunpack.c.l.b16 %v3910
        %v4035 = vunpack.c.h.b16 %v3910
        %v4036 = vunpack.c.l.b16 %v3911
        %v4037 = vunpack.c.h.b16 %v3911
        %v4038 = vunpack.c.l.b16 %v3912
        %v4039 = vunpack.c.h.b16 %v3912
        %v4040 = vunpack.c.l.b16 %v3913
        %v4041 = vunpack.c.h.b16 %v3913
        %v4042 = vunpack.c.l.b16 %v3914
        %v4043 = vunpack.c.h.b16 %v3914
        %v4044 = vunpack.c.l.b16 %v3915
        %v4045 = vunpack.c.h.b16 %v3915
        %v4046 = vunpack.c.l.b16 %v3916
        %v4047 = vunpack.c.h.b16 %v3916
        %v4048 = vunpack.c.l.b16 %v3917
        %v4049 = vunpack.c.h.b16 %v3917
        %v4050 = vunpack.c.l.b16 %v3918
        %v4051 = vunpack.c.h.b16 %v3918
        %v4052 = vunpack.c.l.b16 %v3919
        %v4053 = vunpack.c.h.b16 %v3919
        %v4054 = vunpack.c.l.b16 %v3920
        %v4055 = vunpack.c.h.b16 %v3920
        %v4056 = vunpack.c.l.b16 %v3921
        %v4057 = vunpack.c.h.b16 %v3921
        %v4058 = vunpack.c.l.b16 %v3922
        %v4059 = vunpack.c.h.b16 %v3922
        %v4060 = vunpack.c.l.b16 %v3923
        %v4061 = vunpack.c.h.b16 %v3923
        %v4062 = vunpack.c.l.b16 %v3924
        %v4063 = vunpack.c.h.b16 %v3924
        %v4064 = vunpack.c.l.b16 %v3925
        %v4065 = vunpack.c.h.b16 %v3925
        %v4066 = vunpack.c.l.b16 %v3926
        %v4067 = vunpack.c.h.b16 %v3926
        %v4068 = vunpack.c.l.b16 %v3927
        %v4069 = vunpack.c.h.b16 %v3927
        %v4070 = vunpack.c.l.b16 %v3928
        %v4071 = vunpack.c.h.b16 %v3928
        %v4072 = vunpack.c.l.b16 %v3929
        %v4073 = vunpack.c.h.b16 %v3929
        %v4074 = vunpack.c.l.b16 %v3930
        %v4075 = vunpack.c.h.b16 %v3930
        %v4076 = vunpack.c.l.b16 %v3931
        %v4077 = vunpack.c.h.b16 %v3931
        %v4078 = vunpack.c.l.b16 %v3932
        %v4079 = vunpack.c.h.b16 %v3932
        %v4080 = vunpack.c.l.b16 %v3933
        %v4081 = vunpack.c.h.b16 %v3933
        %v4082 = vunpack.c.l.b16 %v3934
        %v4083 = vunpack.c.h.b16 %v3934
        %v4084 = vunpack.c.l.b16 %v3935
        %v4085 = vunpack.c.h.b16 %v3935
        %v4086 = vunpack.c.l.b16 %v3936
        %v4087 = vunpack.c.h.b16 %v3936
        %v4088 = vunpack.c.l.b16 %v3937
        %v4089 = vunpack.c.h.b16 %v3937
        %v4090 = vunpack.c.l.b16 %v3938
        %v4091 = vunpack.c.h.b16 %v3938
        %v4092 = vunpack.c.l.b16 %v3939
        %v4093 = vunpack.c.h.b16 %v3939
        %v4094 = vunpack.c.l.b16 %v3940
        %v4095 = vunpack.c.h.b16 %v3940
        %v4096 = vunpack.c.l.b16 %v3941
        %v4097 = vunpack.c.h.b16 %v3941
        %v4098 = vunpack.c.l.b16 %v3942
        %v4099 = vunpack.c.h.b16 %v3942
        %v4100 = vunpack.c.l.b16 %v3943
        %v4101 = vunpack.c.h.b16 %v3943
        %v4102 = vunpack.c.l.b16 %v3944
        %v4103 = vunpack.c.h.b16 %v3944
        %v4104 = vunpack.c.l.b16 %v3945
        %v4105 = vunpack.c.h.b16 %v3945
        %v4106 = vunpack.c.l.b16 %v3946
        %v4107 = vunpack.c.h.b16 %v3946
        %v4108 = vunpack.c.l.b16 %v3947
        %v4109 = vunpack.c.h.b16 %v3947
        %v4110 = vunpack.c.l.b16 %v3948
        %v4111 = vunpack.c.h.b16 %v3948
        %v4112 = vunpack.c.l.b16 %v3949
        %v4113 = vunpack.c.h.b16 %v3949
        %v4114 = vunpack.c.l.b16 %v3950
        %v4115 = vunpack.c.h.b16 %v3950
        %v4116 = vunpack.c.l.b16 %v3951
        %v4117 = vunpack.c.h.b16 %v3951
        %v4118 = vunpack.c.l.b16 %v3952
        %v4119 = vunpack.c.h.b16 %v3952
        %v4120 = vunpack.c.l.b16 %v3953
        %v4121 = vunpack.c.h.b16 %v3953
        %v4122 = vunpack.c.l.b16 %v3954
        %v4123 = vunpack.c.h.b16 %v3954
        %v4124 = vunpack.c.l.b16 %v3955
        %v4125 = vunpack.c.h.b16 %v3955
        %v4126 = vunpack.c.l.b16 %v3956
        %v4127 = vunpack.c.h.b16 %v3956
        %v4128 = vunpack.c.l.b16 %v3957
        %v4129 = vunpack.c.h.b16 %v3957
        %v4130 = vunpack.c.l.b16 %v3958
        %v4131 = vunpack.c.h.b16 %v3958
        %v4132 = vunpack.c.l.b16 %v3959
        %v4133 = vunpack.c.h.b16 %v3959
        %v4134 = vpack.c.b16 %v4034, %v4030
        %v4135 = vpack.c.b16 %v4035, %v4031
        %v4136 = vpack.c.b16 %v4036, %v4032
        %v4137 = vpack.c.b16 %v4037, %v4033
        %v4138 = vpack.c.b16 %v4042, %v4038
        %v4139 = vpack.c.b16 %v4043, %v4039
        %v4140 = vpack.c.b16 %v4044, %v4040
        %v4141 = vpack.c.b16 %v4045, %v4041
        %v4142 = vpack.c.b16 %v4050, %v4046
        %v4143 = vpack.c.b16 %v4051, %v4047
        %v4144 = vpack.c.b16 %v4052, %v4048
        %v4145 = vpack.c.b16 %v4053, %v4049
        %v4146 = vpack.c.b16 %v4058, %v4054
        %v4147 = vpack.c.b16 %v4059, %v4055
        %v4148 = vpack.c.b16 %v4060, %v4056
        %v4149 = vpack.c.b16 %v4061, %v4057
        %v4150 = vpack.c.b16 %v4066, %v4062
        %v4151 = vpack.c.b16 %v4067, %v4063
        %v4152 = vpack.c.b16 %v4068, %v4064
        %v4153 = vpack.c.b16 %v4069, %v4065
        %v4154 = vpack.c.b16 %v4074, %v4070
        %v4155 = vpack.c.b16 %v4075, %v4071
        %v4156 = vpack.c.b16 %v4076, %v4072
        %v4157 = vpack.c.b16 %v4077, %v4073
        %v4158 = vpack.c.b16 %v4082, %v4078
        %v4159 = vpack.c.b16 %v4083, %v4079
        %v4160 = vpack.c.b16 %v4084, %v4080
        %v4161 = vpack.c.b16 %v4085, %v4081
        %v4162 = vpack.c.b16 %v4090, %v4086
        %v4163 = vpack.c.b16 %v4091, %v4087
        %v4164 = vpack.c.b16 %v4092, %v4088
        %v4165 = vpack.c.b16 %v4093, %v4089
        %v4166 = vpack.c.b16 %v4098, %v4094
        %v4167 = vpack.c.b16 %v4099, %v4095
        %v4168 = vpack.c.b16 %v4100, %v4096
        %v4169 = vpack.c.b16 %v4101, %v4097
        %v4170 = vpack.c.b16 %v4106, %v4102
        %v4171 = vpack.c.b16 %v4107, %v4103
        %v4172 = vpack.c.b16 %v4108, %v4104
        %v4173 = vpack.c.b16 %v4109, %v4105
        %v4174 = vpack.c.b16 %v4114, %v4110
        %v4175 = vpack.c.b16 %v4115, %v4111
        %v4176 = vpack.c.b16 %v4116, %v4112
        %v4177 = vpack.c.b16 %v4117, %v4113
        %v4178 = vpack.c.b16 %v4122, %v4118
        %v4179 = vpack.c.b16 %v4123, %v4119
        %v4180 = vpack.c.b16 %v4124, %v4120
        %v4181 = vpack.c.b16 %v4125, %v4121
        %v4182 = vpack.c.b16 %v4130, %v4126
        %v4183 = vpack.c.b16 %v4131, %v4127
        %v4184 = vpack.c.b16 %v4132, %v4128
        %v4185 = vpack.c.b16 %v4133, %v4129
        %vm4234 = vcmask 621568
        %v4236 = vsel %vm4234, %v3961, 0
        %v4239 = vsel %vm4234, %v3963, 0
        %v4242 = vsel %vm4234, %v3965, 0
        %v4245 = vsel %vm4234, %v3967, 0
        %v4248 = vsel %vm4234, %v3969, 0
        %v4251 = vsel %vm4234, %v3971, 0
        %v4254 = vsel %vm4234, %v3973, 0
        %v4257 = vsel %vm4234, %v3975, 0
        %v4260 = vsel %vm4234, %v3977, 0
        %v4263 = vsel %vm1595, %v4182, 0
        %v4266 = vsel %vm1595, %v4183, 0
        %v4269 = vsel %vm1595, %v4184, 0
        %v4272 = vsel %vm1595, %v4185, 0
        %4274 = vmatprep.subr.bf16.mxu0 %v4135
        %4275 = vmatpush1.bf16.msra.mxu0 %v4134
        %4276 = vmatprep.subr.bf16.mxu0 %v4139
        %4277 = vmatpush1.bf16.msra.mxu0 %v4138
        %4278 = vmatprep.subr.bf16.mxu0 %v4143
        %4279 = vmatpush1.bf16.msra.mxu0 %v4142
        %4280 = vmatprep.subr.bf16.mxu0 %v4147
        %4281 = vmatpush1.bf16.msra.mxu0 %v4146
        %4282 = vmatprep.subr.bf16.mxu0 %v4151
        %4283 = vmatpush1.bf16.msra.mxu0 %v4150
        %4284 = vmatprep.subr.bf16.mxu0 %v4155
        %4285 = vmatpush1.bf16.msra.mxu0 %v4154
        %4286 = vmatprep.subr.bf16.mxu0 %v4159
        %4287 = vmatpush1.bf16.msra.mxu0 %v4158
        %4288 = vmatprep.subr.bf16.mxu0 %v4163
        %4289 = vmatpush1.bf16.msra.mxu0 %v4162
        %4290 = vmatprep.subr.bf16.mxu0 %v4167
        %4291 = vmatpush1.bf16.msra.mxu0 %v4166
        %4292 = vmatprep.subr.bf16.mxu0 %v4171
        %4293 = vmatpush1.bf16.msra.mxu0 %v4170
        %4294 = vmatprep.subr.bf16.mxu0 %v4175
        %4295 = vmatpush1.bf16.msra.mxu0 %v4174
        %4296 = vmatprep.subr.bf16.mxu0 %v4179
        %4297 = vmatpush1.bf16.msra.mxu0 %v4178
        %4298 = vmatprep.subr.bf16.mxu0 %v4266
        %4299 = vmatpush1.bf16.msra.mxu0 %v4263
        %4300 = vmatprep.subr.bf16.mxu0 0
        %4301 = vmatpush1.bf16.msra.mxu0 0
        %4302 = vmatprep.subr.bf16.mxu0 0
        %4303 = vmatpush1.bf16.msra.mxu0 0
        %4304 = vmatprep.subr.bf16.mxu0 0
        %4305 = vmatpush1.bf16.msra.mxu0 0
        %4306 = vmatprep.mubr.bf16.mxu0 %v4236
        %4307 = vmatmul.mubr.bf16.gmra.mrb[0].mxu0 %v3960
        %v4308 = vpop.f32.mrb[0].mxu0
        %v4309 = vadd.f32 0.0, %v4308
        %v4310 = vpop.f32.mrb[0].mxu0
        %v4311 = vadd.f32 0.0, %v4310
        %v4312 = vpop.f32.mrb[0].mxu0
        %v4313 = vadd.f32 0.0, %v4312
        %v4314 = vpop.f32.mrb[0].mxu0
        %v4315 = vadd.f32 0.0, %v4314
        %4316 = vmatprep.mubr.bf16.mxu0 %v4239
        %4317 = vmatmul.mubr.bf16.gmra.mrb[0].mxu0 %v3962
        %v4318 = vpop.f32.mrb[0].mxu0
        %v4319 = vadd.f32 0.0, %v4318
        %v4320 = vpop.f32.mrb[0].mxu0
        %v4321 = vadd.f32 0.0, %v4320
        %v4322 = vpop.f32.mrb[0].mxu0
        %v4323 = vadd.f32 0.0, %v4322
        %v4324 = vpop.f32.mrb[0].mxu0
        %v4325 = vadd.f32 0.0, %v4324
        %4326 = vmatprep.mubr.bf16.mxu0 %v4242
        %4327 = vmatmul.mubr.bf16.gmra.mrb[0].mxu0 %v3964
        %v4328 = vpop.f32.mrb[0].mxu0
        %v4329 = vadd.f32 0.0, %v4328
        %v4330 = vpop.f32.mrb[0].mxu0
        %v4331 = vadd.f32 0.0, %v4330
        %v4332 = vpop.f32.mrb[0].mxu0
        %v4333 = vadd.f32 0.0, %v4332
        %v4334 = vpop.f32.mrb[0].mxu0
        %v4335 = vadd.f32 0.0, %v4334
        %4336 = vmatprep.mubr.bf16.mxu0 %v4245
        %4337 = vmatmul.mubr.bf16.gmra.mrb[0].mxu0 %v3966
        %v4338 = vpop.f32.mrb[0].mxu0
        %v4339 = vadd.f32 0.0, %v4338
        %v4340 = vpop.f32.mrb[0].mxu0
        %v4341 = vadd.f32 0.0, %v4340
        %v4342 = vpop.f32.mrb[0].mxu0
        %v4343 = vadd.f32 0.0, %v4342
        %v4344 = vpop.f32.mrb[0].mxu0
        %v4345 = vadd.f32 0.0, %v4344
        %4346 = vmatprep.mubr.bf16.mxu0 %v4248
        %4347 = vmatmul.mubr.bf16.gmra.mrb[0].mxu0 %v3968
        %v4348 = vpop.f32.mrb[0].mxu0
        %v4349 = vadd.f32 0.0, %v4348
        %v4350 = vpop.f32.mrb[0].mxu0
        %v4351 = vadd.f32 0.0, %v4350
        %v4352 = vpop.f32.mrb[0].mxu0
        %v4353 = vadd.f32 0.0, %v4352
        %v4354 = vpop.f32.mrb[0].mxu0
        %v4355 = vadd.f32 0.0, %v4354
        %4356 = vmatprep.mubr.bf16.mxu0 %v4251
        %4357 = vmatmul.mubr.bf16.gmra.mrb[0].mxu0 %v3970
        %v4358 = vpop.f32.mrb[0].mxu0
        %v4359 = vadd.f32 0.0, %v4358
        %v4360 = vpop.f32.mrb[0].mxu0
        %v4361 = vadd.f32 0.0, %v4360
        %v4362 = vpop.f32.mrb[0].mxu0
        %v4363 = vadd.f32 0.0, %v4362
        %v4364 = vpop.f32.mrb[0].mxu0
        %v4365 = vadd.f32 0.0, %v4364
        %4366 = vmatprep.mubr.bf16.mxu0 %v4254
        %4367 = vmatmul.mubr.bf16.gmra.mrb[0].mxu0 %v3972
        %v4368 = vpop.f32.mrb[0].mxu0
        %v4369 = vadd.f32 0.0, %v4368
        %v4370 = vpop.f32.mrb[0].mxu0
        %v4371 = vadd.f32 0.0, %v4370
        %v4372 = vpop.f32.mrb[0].mxu0
        %v4373 = vadd.f32 0.0, %v4372
        %v4374 = vpop.f32.mrb[0].mxu0
        %v4375 = vadd.f32 0.0, %v4374
        %4376 = vmatprep.mubr.bf16.mxu0 %v4257
        %4377 = vmatmul.mubr.bf16.gmra.mrb[0].mxu0 %v3974
        %v4378 = vpop.f32.mrb[0].mxu0
        %v4379 = vadd.f32 0.0, %v4378
        %v4380 = vpop.f32.mrb[0].mxu0
        %v4381 = vadd.f32 0.0, %v4380
        %v4382 = vpop.f32.mrb[0].mxu0
        %v4383 = vadd.f32 0.0, %v4382
        %v4384 = vpop.f32.mrb[0].mxu0
        %v4385 = vadd.f32 0.0, %v4384
        %4386 = vmatprep.mubr.bf16.mxu0 %v4260
        %4387 = vmatmul.mubr.bf16.gmra.mrb[0].mxu0 %v3976
        %v4388 = vpop.f32.mrb[0].mxu0
        %v4389 = vadd.f32 0.0, %v4388
        %v4390 = vpop.f32.mrb[0].mxu0
        %v4391 = vadd.f32 0.0, %v4390
        %v4392 = vpop.f32.mrb[0].mxu0
        %v4393 = vadd.f32 0.0, %v4392
        %v4394 = vpop.f32.mrb[0].mxu0
        %v4395 = vadd.f32 0.0, %v4394
        %4396 = vdwg.mxu0
        %4397 = vmatprep.subr.bf16.mxu0 %v4137
        %4398 = vmatpush1.bf16.msra.mxu0 %v4136
        %4399 = vmatprep.subr.bf16.mxu0 %v4141
        %4400 = vmatpush1.bf16.msra.mxu0 %v4140
        %4401 = vmatprep.subr.bf16.mxu0 %v4145
        %4402 = vmatpush1.bf16.msra.mxu0 %v4144
        %4403 = vmatprep.subr.bf16.mxu0 %v4149
        %4404 = vmatpush1.bf16.msra.mxu0 %v4148
        %4405 = vmatprep.subr.bf16.mxu0 %v4153
        %4406 = vmatpush1.bf16.msra.mxu0 %v4152
        %4407 = vmatprep.subr.bf16.mxu0 %v4157
        %4408 = vmatpush1.bf16.msra.mxu0 %v4156
        %4409 = vmatprep.subr.bf16.mxu0 %v4161
        %4410 = vmatpush1.bf16.msra.mxu0 %v4160
        %4411 = vmatprep.subr.bf16.mxu0 %v4165
        %4412 = vmatpush1.bf16.msra.mxu0 %v4164
        %4413 = vmatprep.subr.bf16.mxu0 %v4169
        %4414 = vmatpush1.bf16.msra.mxu0 %v4168
        %4415 = vmatprep.subr.bf16.mxu0 %v4173
        %4416 = vmatpush1.bf16.msra.mxu0 %v4172
        %4417 = vmatprep.subr.bf16.mxu0 %v4177
        %4418 = vmatpush1.bf16.msra.mxu0 %v4176
        %4419 = vmatprep.subr.bf16.mxu0 %v4181
        %4420 = vmatpush1.bf16.msra.mxu0 %v4180
        %4421 = vmatprep.subr.bf16.mxu0 %v4272
        %4422 = vmatpush1.bf16.msra.mxu0 %v4269
        %4423 = vmatprep.subr.bf16.mxu0 0
        %4424 = vmatpush1.bf16.msra.mxu0 0
        %4425 = vmatprep.subr.bf16.mxu0 0
        %4426 = vmatpush1.bf16.msra.mxu0 0
        %4427 = vmatprep.subr.bf16.mxu0 0
        %4428 = vmatpush1.bf16.msra.mxu0 0
        %4429 = vmatprep.mubr.bf16.mxu0 %v4236
        %4430 = vmatmul.mubr.bf16.gmra.mrb[0].mxu0 %v3960
        %v4431 = vpop.f32.mrb[0].mxu0
        %v4432 = vadd.f32 0.0, %v4431
        %v4433 = vpop.f32.mrb[0].mxu0
        %v4434 = vadd.f32 0.0, %v4433
        %v4435 = vpop.f32.mrb[0].mxu0
        %v4436 = vadd.f32 0.0, %v4435
        %v4437 = vpop.f32.mrb[0].mxu0
        %v4438 = vadd.f32 0.0, %v4437
        %4439 = vmatprep.mubr.bf16.mxu0 %v4239
        %4440 = vmatmul.mubr.bf16.gmra.mrb[0].mxu0 %v3962
        %v4441 = vpop.f32.mrb[0].mxu0
        %v4442 = vadd.f32 0.0, %v4441
        %v4443 = vpop.f32.mrb[0].mxu0
        %v4444 = vadd.f32 0.0, %v4443
        %v4445 = vpop.f32.mrb[0].mxu0
        %v4446 = vadd.f32 0.0, %v4445
        %v4447 = vpop.f32.mrb[0].mxu0
        %v4448 = vadd.f32 0.0, %v4447
        %4449 = vmatprep.mubr.bf16.mxu0 %v4242
        %4450 = vmatmul.mubr.bf16.gmra.mrb[0].mxu0 %v3964
        %v4451 = vpop.f32.mrb[0].mxu0
        %v4452 = vadd.f32 0.0, %v4451
        %v4453 = vpop.f32.mrb[0].mxu0
        %v4454 = vadd.f32 0.0, %v4453
        %v4455 = vpop.f32.mrb[0].mxu0
        %v4456 = vadd.f32 0.0, %v4455
        %v4457 = vpop.f32.mrb[0].mxu0
        %v4458 = vadd.f32 0.0, %v4457
        %4459 = vmatprep.mubr.bf16.mxu0 %v4245
        %4460 = vmatmul.mubr.bf16.gmra.mrb[0].mxu0 %v3966
        %v4461 = vpop.f32.mrb[0].mxu0
        %v4462 = vadd.f32 0.0, %v4461
        %v4463 = vpop.f32.mrb[0].mxu0
        %v4464 = vadd.f32 0.0, %v4463
        %v4465 = vpop.f32.mrb[0].mxu0
        %v4466 = vadd.f32 0.0, %v4465
        %v4467 = vpop.f32.mrb[0].mxu0
        %v4468 = vadd.f32 0.0, %v4467
        %4469 = vmatprep.mubr.bf16.mxu0 %v4248
        %4470 = vmatmul.mubr.bf16.gmra.mrb[0].mxu0 %v3968
        %v4471 = vpop.f32.mrb[0].mxu0
        %v4472 = vadd.f32 0.0, %v4471
        %v4473 = vpop.f32.mrb[0].mxu0
        %v4474 = vadd.f32 0.0, %v4473
        %v4475 = vpop.f32.mrb[0].mxu0
        %v4476 = vadd.f32 0.0, %v4475
        %v4477 = vpop.f32.mrb[0].mxu0
        %v4478 = vadd.f32 0.0, %v4477
        %4479 = vmatprep.mubr.bf16.mxu0 %v4251
        %4480 = vmatmul.mubr.bf16.gmra.mrb[0].mxu0 %v3970
        %v4481 = vpop.f32.mrb[0].mxu0
        %v4482 = vadd.f32 0.0, %v4481
        %v4483 = vpop.f32.mrb[0].mxu0
        %v4484 = vadd.f32 0.0, %v4483
        %v4485 = vpop.f32.mrb[0].mxu0
        %v4486 = vadd.f32 0.0, %v4485
        %v4487 = vpop.f32.mrb[0].mxu0
        %v4488 = vadd.f32 0.0, %v4487
        %4489 = vmatprep.mubr.bf16.mxu0 %v4254
        %4490 = vmatmul.mubr.bf16.gmra.mrb[0].mxu0 %v3972
        %v4491 = vpop.f32.mrb[0].mxu0
        %v4492 = vadd.f32 0.0, %v4491
        %v4493 = vpop.f32.mrb[0].mxu0
        %v4494 = vadd.f32 0.0, %v4493
        %v4495 = vpop.f32.mrb[0].mxu0
        %v4496 = vadd.f32 0.0, %v4495
        %v4497 = vpop.f32.mrb[0].mxu0
        %v4498 = vadd.f32 0.0, %v4497
        %4499 = vmatprep.mubr.bf16.mxu0 %v4257
        %4500 = vmatmul.mubr.bf16.gmra.mrb[0].mxu0 %v3974
        %v4501 = vpop.f32.mrb[0].mxu0
        %v4502 = vadd.f32 0.0, %v4501
        %v4503 = vpop.f32.mrb[0].mxu0
        %v4504 = vadd.f32 0.0, %v4503
        %v4505 = vpop.f32.mrb[0].mxu0
        %v4506 = vadd.f32 0.0, %v4505
        %v4507 = vpop.f32.mrb[0].mxu0
        %v4508 = vadd.f32 0.0, %v4507
        %4509 = vmatprep.mubr.bf16.mxu0 %v4260
        %4510 = vmatmul.mubr.bf16.gmra.mrb[0].mxu0 %v3976
        %v4511 = vpop.f32.mrb[0].mxu0
        %v4512 = vadd.f32 0.0, %v4511
        %v4513 = vpop.f32.mrb[0].mxu0
        %v4514 = vadd.f32 0.0, %v4513
        %v4515 = vpop.f32.mrb[0].mxu0
        %v4516 = vadd.f32 0.0, %v4515
        %v4517 = vpop.f32.mrb[0].mxu0
        %v4518 = vadd.f32 0.0, %v4517
        %4519 = vdwg.mxu0
        %v4572 = vunpack.c.l.b16 %v3691
        %v4573 = vunpack.c.h.b16 %v3691
        %v4574 = vunpack.c.l.b16 %v3692
        %v4575 = vunpack.c.h.b16 %v3692
        %v4576 = vunpack.c.l.b16 %v3693
        %v4577 = vunpack.c.h.b16 %v3693
        %v4578 = vunpack.c.l.b16 %v3694
        %v4579 = vunpack.c.h.b16 %v3694
        %v4580 = vunpack.c.l.b16 %v3695
        %v4581 = vunpack.c.h.b16 %v3695
        %v4582 = vunpack.c.l.b16 %v3696
        %v4583 = vunpack.c.h.b16 %v3696
        %v4584 = vunpack.c.l.b16 %v3697
        %v4585 = vunpack.c.h.b16 %v3697
        %v4586 = vunpack.c.l.b16 %v3698
        %v4587 = vunpack.c.h.b16 %v3698
        %v4588 = vunpack.c.l.b16 %v3699
        %v4589 = vunpack.c.h.b16 %v3699
        %v4590 = vunpack.c.l.b16 %v3700
        %v4591 = vunpack.c.h.b16 %v3700
        %v4592 = vunpack.c.l.b16 %v3701
        %v4593 = vunpack.c.h.b16 %v3701
        %v4594 = vunpack.c.l.b16 %v3702
        %v4595 = vunpack.c.h.b16 %v3702
        %v4596 = vunpack.c.l.b16 %v3703
        %v4597 = vunpack.c.h.b16 %v3703
        %v4598 = vunpack.c.l.b16 %v3704
        %v4599 = vunpack.c.h.b16 %v3704
        %v4600 = vunpack.c.l.b16 %v3705
        %v4601 = vunpack.c.h.b16 %v3705
        %v4602 = vunpack.c.l.b16 %v3706
        %v4603 = vunpack.c.h.b16 %v3706
        %v4604 = vunpack.c.l.b16 %v3707
        %v4605 = vunpack.c.h.b16 %v3707
        %v4606 = vunpack.c.l.b16 %v3708
        %v4607 = vunpack.c.h.b16 %v3708
        %v4608 = vunpack.c.l.b16 %v3709
        %v4609 = vunpack.c.h.b16 %v3709
        %v4610 = vunpack.c.l.b16 %v3710
        %v4611 = vunpack.c.h.b16 %v3710
        %v4612 = vunpack.c.l.b16 %v3711
        %v4613 = vunpack.c.h.b16 %v3711
        %v4614 = vunpack.c.l.b16 %v3712
        %v4615 = vunpack.c.h.b16 %v3712
        %v4616 = vunpack.c.l.b16 %v3713
        %v4617 = vunpack.c.h.b16 %v3713
        %v4618 = vunpack.c.l.b16 %v3714
        %v4619 = vunpack.c.h.b16 %v3714
        %v4620 = vunpack.c.l.b16 %v3715
        %v4621 = vunpack.c.h.b16 %v3715
        %v4622 = vunpack.c.l.b16 %v3716
        %v4623 = vunpack.c.h.b16 %v3716
        %v4624 = vunpack.c.l.b16 %v3717
        %v4625 = vunpack.c.h.b16 %v3717
        %v4626 = vunpack.c.l.b16 %v3718
        %v4627 = vunpack.c.h.b16 %v3718
        %v4628 = vunpack.c.l.b16 %v3719
        %v4629 = vunpack.c.h.b16 %v3719
        %v4630 = vunpack.c.l.b16 %v3720
        %v4631 = vunpack.c.h.b16 %v3720
        %v4632 = vunpack.c.l.b16 %v3721
        %v4633 = vunpack.c.h.b16 %v3721
        %v4634 = vunpack.c.l.b16 %v3722
        %v4635 = vunpack.c.h.b16 %v3722
        %v4636 = vunpack.c.l.b16 %v3723
        %v4637 = vunpack.c.h.b16 %v3723
        %v4638 = vunpack.c.l.b16 %v3724
        %v4639 = vunpack.c.h.b16 %v3724
        %v4640 = vunpack.c.l.b16 %v3725
        %v4641 = vunpack.c.h.b16 %v3725
        %v4642 = vunpack.c.l.b16 %v3726
        %v4643 = vunpack.c.h.b16 %v3726
        %v4644 = vunpack.c.l.b16 %v3727
        %v4645 = vunpack.c.h.b16 %v3727
        %v4646 = vunpack.c.l.b16 %v3728
        %v4647 = vunpack.c.h.b16 %v3728
        %v4648 = vunpack.c.l.b16 %v3729
        %v4649 = vunpack.c.h.b16 %v3729
        %v4650 = vunpack.c.l.b16 %v3730
        %v4651 = vunpack.c.h.b16 %v3730
        %v4652 = vunpack.c.l.b16 %v3731
        %v4653 = vunpack.c.h.b16 %v3731
        %v4654 = vunpack.c.l.b16 %v3732
        %v4655 = vunpack.c.h.b16 %v3732
        %v4656 = vunpack.c.l.b16 %v3733
        %v4657 = vunpack.c.h.b16 %v3733
        %v4658 = vunpack.c.l.b16 %v3734
        %v4659 = vunpack.c.h.b16 %v3734
        %v4660 = vunpack.c.l.b16 %v3735
        %v4661 = vunpack.c.h.b16 %v3735
        %v4662 = vunpack.c.l.b16 %v3736
        %v4663 = vunpack.c.h.b16 %v3736
        %v4664 = vunpack.c.l.b16 %v3737
        %v4665 = vunpack.c.h.b16 %v3737
        %v4666 = vunpack.c.l.b16 %v3738
        %v4667 = vunpack.c.h.b16 %v3738
        %v4668 = vunpack.c.l.b16 %v3739
        %v4669 = vunpack.c.h.b16 %v3739
        %v4670 = vunpack.c.l.b16 %v3740
        %v4671 = vunpack.c.h.b16 %v3740
        %v4672 = vunpack.c.l.b16 %v3741
        %v4673 = vunpack.c.h.b16 %v3741
        %v4674 = vunpack.c.l.b16 %v3742
        %v4675 = vunpack.c.h.b16 %v3742
        %v4676 = vpack.c.b16 %v4576, %v4572
        %v4677 = vpack.c.b16 %v4577, %v4573
        %v4678 = vpack.c.b16 %v4578, %v4574
        %v4679 = vpack.c.b16 %v4579, %v4575
        %v4680 = vpack.c.b16 %v4584, %v4580
        %v4681 = vpack.c.b16 %v4585, %v4581
        %v4682 = vpack.c.b16 %v4586, %v4582
        %v4683 = vpack.c.b16 %v4587, %v4583
        %v4684 = vpack.c.b16 %v4592, %v4588
        %v4685 = vpack.c.b16 %v4593, %v4589
        %v4686 = vpack.c.b16 %v4594, %v4590
        %v4687 = vpack.c.b16 %v4595, %v4591
        %v4688 = vpack.c.b16 %v4600, %v4596
        %v4689 = vpack.c.b16 %v4601, %v4597
        %v4690 = vpack.c.b16 %v4602, %v4598
        %v4691 = vpack.c.b16 %v4603, %v4599
        %v4692 = vpack.c.b16 %v4608, %v4604
        %v4693 = vpack.c.b16 %v4609, %v4605
        %v4694 = vpack.c.b16 %v4610, %v4606
        %v4695 = vpack.c.b16 %v4611, %v4607
        %v4696 = vpack.c.b16 %v4616, %v4612
        %v4697 = vpack.c.b16 %v4617, %v4613
        %v4698 = vpack.c.b16 %v4618, %v4614
        %v4699 = vpack.c.b16 %v4619, %v4615
        %v4700 = vpack.c.b16 %v4624, %v4620
        %v4701 = vpack.c.b16 %v4625, %v4621
        %v4702 = vpack.c.b16 %v4626, %v4622
        %v4703 = vpack.c.b16 %v4627, %v4623
        %v4704 = vpack.c.b16 %v4632, %v4628
        %v4705 = vpack.c.b16 %v4633, %v4629
        %v4706 = vpack.c.b16 %v4634, %v4630
        %v4707 = vpack.c.b16 %v4635, %v4631
        %v4708 = vpack.c.b16 %v4640, %v4636
        %v4709 = vpack.c.b16 %v4641, %v4637
        %v4710 = vpack.c.b16 %v4642, %v4638
        %v4711 = vpack.c.b16 %v4643, %v4639
        %v4712 = vpack.c.b16 %v4648, %v4644
        %v4713 = vpack.c.b16 %v4649, %v4645
        %v4714 = vpack.c.b16 %v4650, %v4646
        %v4715 = vpack.c.b16 %v4651, %v4647
        %v4716 = vpack.c.b16 %v4656, %v4652
        %v4717 = vpack.c.b16 %v4657, %v4653
        %v4718 = vpack.c.b16 %v4658, %v4654
        %v4719 = vpack.c.b16 %v4659, %v4655
        %v4720 = vpack.c.b16 %v4664, %v4660
        %v4721 = vpack.c.b16 %v4665, %v4661
        %v4722 = vpack.c.b16 %v4666, %v4662
        %v4723 = vpack.c.b16 %v4667, %v4663
        %v4724 = vpack.c.b16 %v4672, %v4668
        %v4725 = vpack.c.b16 %v4673, %v4669
        %v4726 = vpack.c.b16 %v4674, %v4670
        %v4727 = vpack.c.b16 %v4675, %v4671
        %v4777 = vsel %vm4234, %v3744, 0
        %v4780 = vsel %vm4234, %v3746, 0
        %v4783 = vsel %vm4234, %v3748, 0
        %v4786 = vsel %vm4234, %v3750, 0
        %v4789 = vsel %vm4234, %v3752, 0
        %v4792 = vsel %vm4234, %v3754, 0
        %v4795 = vsel %vm4234, %v3756, 0
        %v4798 = vsel %vm4234, %v3758, 0
        %v4801 = vsel %vm4234, %v3760, 0
        %v4804 = vsel %vm1595, %v4724, 0
        %v4807 = vsel %vm1595, %v4725, 0
        %v4810 = vsel %vm1595, %v4726, 0
        %v4813 = vsel %vm1595, %v4727, 0
        %4815 = vmatprep.subr.bf16.mxu0 %v4677
        %4816 = vmatpush1.bf16.msra.mxu0 %v4676
        %4817 = vmatprep.subr.bf16.mxu0 %v4681
        %4818 = vmatpush1.bf16.msra.mxu0 %v4680
        %4819 = vmatprep.subr.bf16.mxu0 %v4685
        %4820 = vmatpush1.bf16.msra.mxu0 %v4684
        %4821 = vmatprep.subr.bf16.mxu0 %v4689
        %4822 = vmatpush1.bf16.msra.mxu0 %v4688
        %4823 = vmatprep.subr.bf16.mxu0 %v4693
        %4824 = vmatpush1.bf16.msra.mxu0 %v4692
        %4825 = vmatprep.subr.bf16.mxu0 %v4697
        %4826 = vmatpush1.bf16.msra.mxu0 %v4696
        %4827 = vmatprep.subr.bf16.mxu0 %v4701
        %4828 = vmatpush1.bf16.msra.mxu0 %v4700
        %4829 = vmatprep.subr.bf16.mxu0 %v4705
        %4830 = vmatpush1.bf16.msra.mxu0 %v4704
        %4831 = vmatprep.subr.bf16.mxu0 %v4709
        %4832 = vmatpush1.bf16.msra.mxu0 %v4708
        %4833 = vmatprep.subr.bf16.mxu0 %v4713
        %4834 = vmatpush1.bf16.msra.mxu0 %v4712
        %4835 = vmatprep.subr.bf16.mxu0 %v4717
        %4836 = vmatpush1.bf16.msra.mxu0 %v4716
        %4837 = vmatprep.subr.bf16.mxu0 %v4721
        %4838 = vmatpush1.bf16.msra.mxu0 %v4720
        %4839 = vmatprep.subr.bf16.mxu0 %v4807
        %4840 = vmatpush1.bf16.msra.mxu0 %v4804
        %4841 = vmatprep.subr.bf16.mxu0 0
        %4842 = vmatpush1.bf16.msra.mxu0 0
        %4843 = vmatprep.subr.bf16.mxu0 0
        %4844 = vmatpush1.bf16.msra.mxu0 0
        %4845 = vmatprep.subr.bf16.mxu0 0
        %4846 = vmatpush1.bf16.msra.mxu0 0
        %4847 = vmatprep.mubr.bf16.mxu0 %v4777
        %4848 = vmatmul.mubr.bf16.gmra.mrb[0].mxu0 %v3743
        %v4849 = vpop.f32.mrb[0].mxu0
        %v4850 = vadd.f32 %v4309, %v4849
        %v4851 = vpop.f32.mrb[0].mxu0
        %v4852 = vadd.f32 %v4311, %v4851
        %v4853 = vpop.f32.mrb[0].mxu0
        %v4854 = vadd.f32 %v4313, %v4853
        %v4855 = vpop.f32.mrb[0].mxu0
        %v4856 = vadd.f32 %v4315, %v4855
        %4857 = vmatprep.mubr.bf16.mxu0 %v4780
        %4858 = vmatmul.mubr.bf16.gmra.mrb[0].mxu0 %v3745
        %v4859 = vpop.f32.mrb[0].mxu0
        %v4860 = vadd.f32 %v4319, %v4859
        %v4861 = vpop.f32.mrb[0].mxu0
        %v4862 = vadd.f32 %v4321, %v4861
        %v4863 = vpop.f32.mrb[0].mxu0
        %v4864 = vadd.f32 %v4323, %v4863
        %v4865 = vpop.f32.mrb[0].mxu0
        %v4866 = vadd.f32 %v4325, %v4865
        %4867 = vmatprep.mubr.bf16.mxu0 %v4783
        %4868 = vmatmul.mubr.bf16.gmra.mrb[0].mxu0 %v3747
        %v4869 = vpop.f32.mrb[0].mxu0
        %v4870 = vadd.f32 %v4329, %v4869
        %v4871 = vpop.f32.mrb[0].mxu0
        %v4872 = vadd.f32 %v4331, %v4871
        %v4873 = vpop.f32.mrb[0].mxu0
        %v4874 = vadd.f32 %v4333, %v4873
        %v4875 = vpop.f32.mrb[0].mxu0
        %v4876 = vadd.f32 %v4335, %v4875
        %4877 = vmatprep.mubr.bf16.mxu0 %v4786
        %4878 = vmatmul.mubr.bf16.gmra.mrb[0].mxu0 %v3749
        %v4879 = vpop.f32.mrb[0].mxu0
        %v4880 = vadd.f32 %v4339, %v4879
        %v4881 = vpop.f32.mrb[0].mxu0
        %v4882 = vadd.f32 %v4341, %v4881
        %v4883 = vpop.f32.mrb[0].mxu0
        %v4884 = vadd.f32 %v4343, %v4883
        %v4885 = vpop.f32.mrb[0].mxu0
        %v4886 = vadd.f32 %v4345, %v4885
        %4887 = vmatprep.mubr.bf16.mxu0 %v4789
        %4888 = vmatmul.mubr.bf16.gmra.mrb[0].mxu0 %v3751
        %v4889 = vpop.f32.mrb[0].mxu0
        %v4890 = vadd.f32 %v4349, %v4889
        %v4891 = vpop.f32.mrb[0].mxu0
        %v4892 = vadd.f32 %v4351, %v4891
        %v4893 = vpop.f32.mrb[0].mxu0
        %v4894 = vadd.f32 %v4353, %v4893
        %v4895 = vpop.f32.mrb[0].mxu0
        %v4896 = vadd.f32 %v4355, %v4895
        %4897 = vmatprep.mubr.bf16.mxu0 %v4792
        %4898 = vmatmul.mubr.bf16.gmra.mrb[0].mxu0 %v3753
        %v4899 = vpop.f32.mrb[0].mxu0
        %v4900 = vadd.f32 %v4359, %v4899
        %v4901 = vpop.f32.mrb[0].mxu0
        %v4902 = vadd.f32 %v4361, %v4901
        %v4903 = vpop.f32.mrb[0].mxu0
        %v4904 = vadd.f32 %v4363, %v4903
        %v4905 = vpop.f32.mrb[0].mxu0
        %v4906 = vadd.f32 %v4365, %v4905
        %4907 = vmatprep.mubr.bf16.mxu0 %v4795
        %4908 = vmatmul.mubr.bf16.gmra.mrb[0].mxu0 %v3755
        %v4909 = vpop.f32.mrb[0].mxu0
        %v4910 = vadd.f32 %v4369, %v4909
        %v4911 = vpop.f32.mrb[0].mxu0
        %v4912 = vadd.f32 %v4371, %v4911
        %v4913 = vpop.f32.mrb[0].mxu0
        %v4914 = vadd.f32 %v4373, %v4913
        %v4915 = vpop.f32.mrb[0].mxu0
        %v4916 = vadd.f32 %v4375, %v4915
        %4917 = vmatprep.mubr.bf16.mxu0 %v4798
        %4918 = vmatmul.mubr.bf16.gmra.mrb[0].mxu0 %v3757
        %v4919 = vpop.f32.mrb[0].mxu0
        %v4920 = vadd.f32 %v4379, %v4919
        %v4921 = vpop.f32.mrb[0].mxu0
        %v4922 = vadd.f32 %v4381, %v4921
        %v4923 = vpop.f32.mrb[0].mxu0
        %v4924 = vadd.f32 %v4383, %v4923
        %v4925 = vpop.f32.mrb[0].mxu0
        %v4926 = vadd.f32 %v4385, %v4925
        %4927 = vmatprep.mubr.bf16.mxu0 %v4801
        %4928 = vmatmul.mubr.bf16.gmra.mrb[0].mxu0 %v3759
        %v4929 = vpop.f32.mrb[0].mxu0
        %v4930 = vadd.f32 %v4389, %v4929
        %v4931 = vpop.f32.mrb[0].mxu0
        %v4932 = vadd.f32 %v4391, %v4931
        %v4933 = vpop.f32.mrb[0].mxu0
        %v4934 = vadd.f32 %v4393, %v4933
        %v4935 = vpop.f32.mrb[0].mxu0
        %v4936 = vadd.f32 %v4395, %v4935
        %4937 = vdwg.mxu0
        %4938 = vmatprep.subr.bf16.mxu0 %v4679
        %4939 = vmatpush1.bf16.msra.mxu0 %v4678
        %4940 = vmatprep.subr.bf16.mxu0 %v4683
        %4941 = vmatpush1.bf16.msra.mxu0 %v4682
        %4942 = vmatprep.subr.bf16.mxu0 %v4687
        %4943 = vmatpush1.bf16.msra.mxu0 %v4686
        %4944 = vmatprep.subr.bf16.mxu0 %v4691
        %4945 = vmatpush1.bf16.msra.mxu0 %v4690
        %4946 = vmatprep.subr.bf16.mxu0 %v4695
        %4947 = vmatpush1.bf16.msra.mxu0 %v4694
        %4948 = vmatprep.subr.bf16.mxu0 %v4699
        %4949 = vmatpush1.bf16.msra.mxu0 %v4698
        %4950 = vmatprep.subr.bf16.mxu0 %v4703
        %4951 = vmatpush1.bf16.msra.mxu0 %v4702
        %4952 = vmatprep.subr.bf16.mxu0 %v4707
        %4953 = vmatpush1.bf16.msra.mxu0 %v4706
        %4954 = vmatprep.subr.bf16.mxu0 %v4711
        %4955 = vmatpush1.bf16.msra.mxu0 %v4710
        %4956 = vmatprep.subr.bf16.mxu0 %v4715
        %4957 = vmatpush1.bf16.msra.mxu0 %v4714
        %4958 = vmatprep.subr.bf16.mxu0 %v4719
        %4959 = vmatpush1.bf16.msra.mxu0 %v4718
        %4960 = vmatprep.subr.bf16.mxu0 %v4723
        %4961 = vmatpush1.bf16.msra.mxu0 %v4722
        %4962 = vmatprep.subr.bf16.mxu0 %v4813
        %4963 = vmatpush1.bf16.msra.mxu0 %v4810
        %4964 = vmatprep.subr.bf16.mxu0 0
        %4965 = vmatpush1.bf16.msra.mxu0 0
        %4966 = vmatprep.subr.bf16.mxu0 0
        %4967 = vmatpush1.bf16.msra.mxu0 0
        %4968 = vmatprep.subr.bf16.mxu0 0
        %4969 = vmatpush1.bf16.msra.mxu0 0
        %4970 = vmatprep.mubr.bf16.mxu0 %v4777
        %4971 = vmatmul.mubr.bf16.gmra.mrb[0].mxu0 %v3743
        %v4972 = vpop.f32.mrb[0].mxu0
        %v4973 = vadd.f32 %v4432, %v4972
        %v4974 = vpop.f32.mrb[0].mxu0
        %v4975 = vadd.f32 %v4434, %v4974
        %v4976 = vpop.f32.mrb[0].mxu0
        %v4977 = vadd.f32 %v4436, %v4976
        %v4978 = vpop.f32.mrb[0].mxu0
        %v4979 = vadd.f32 %v4438, %v4978
        %4980 = vmatprep.mubr.bf16.mxu0 %v4780
        %4981 = vmatmul.mubr.bf16.gmra.mrb[0].mxu0 %v3745
        %v4982 = vpop.f32.mrb[0].mxu0
        %v4983 = vadd.f32 %v4442, %v4982
        %v4984 = vpop.f32.mrb[0].mxu0
        %v4985 = vadd.f32 %v4444, %v4984
        %v4986 = vpop.f32.mrb[0].mxu0
        %v4987 = vadd.f32 %v4446, %v4986
        %v4988 = vpop.f32.mrb[0].mxu0
        %v4989 = vadd.f32 %v4448, %v4988
        %4990 = vmatprep.mubr.bf16.mxu0 %v4783
        %4991 = vmatmul.mubr.bf16.gmra.mrb[0].mxu0 %v3747
        %v4992 = vpop.f32.mrb[0].mxu0
        %v4993 = vadd.f32 %v4452, %v4992
        %v4994 = vpop.f32.mrb[0].mxu0
        %v4995 = vadd.f32 %v4454, %v4994
        %v4996 = vpop.f32.mrb[0].mxu0
        %v4997 = vadd.f32 %v4456, %v4996
        %v4998 = vpop.f32.mrb[0].mxu0
        %v4999 = vadd.f32 %v4458, %v4998
        %5000 = vmatprep.mubr.bf16.mxu0 %v4786
        %5001 = vmatmul.mubr.bf16.gmra.mrb[0].mxu0 %v3749
        %v5002 = vpop.f32.mrb[0].mxu0
        %v5003 = vadd.f32 %v4462, %v5002
        %v5004 = vpop.f32.mrb[0].mxu0
        %v5005 = vadd.f32 %v4464, %v5004
        %v5006 = vpop.f32.mrb[0].mxu0
        %v5007 = vadd.f32 %v4466, %v5006
        %v5008 = vpop.f32.mrb[0].mxu0
        %v5009 = vadd.f32 %v4468, %v5008
        %5010 = vmatprep.mubr.bf16.mxu0 %v4789
        %5011 = vmatmul.mubr.bf16.gmra.mrb[0].mxu0 %v3751
        %v5012 = vpop.f32.mrb[0].mxu0
        %v5013 = vadd.f32 %v4472, %v5012
        %v5014 = vpop.f32.mrb[0].mxu0
        %v5015 = vadd.f32 %v4474, %v5014
        %v5016 = vpop.f32.mrb[0].mxu0
        %v5017 = vadd.f32 %v4476, %v5016
        %v5018 = vpop.f32.mrb[0].mxu0
        %v5019 = vadd.f32 %v4478, %v5018
        %5020 = vmatprep.mubr.bf16.mxu0 %v4792
        %5021 = vmatmul.mubr.bf16.gmra.mrb[0].mxu0 %v3753
        %v5022 = vpop.f32.mrb[0].mxu0
        %v5023 = vadd.f32 %v4482, %v5022
        %v5024 = vpop.f32.mrb[0].mxu0
        %v5025 = vadd.f32 %v4484, %v5024
        %v5026 = vpop.f32.mrb[0].mxu0
        %v5027 = vadd.f32 %v4486, %v5026
        %v5028 = vpop.f32.mrb[0].mxu0
        %v5029 = vadd.f32 %v4488, %v5028
        %5030 = vmatprep.mubr.bf16.mxu0 %v4795
        %5031 = vmatmul.mubr.bf16.gmra.mrb[0].mxu0 %v3755
        %v5032 = vpop.f32.mrb[0].mxu0
        %v5033 = vadd.f32 %v4492, %v5032
        %v5034 = vpop.f32.mrb[0].mxu0
        %v5035 = vadd.f32 %v4494, %v5034
        %v5036 = vpop.f32.mrb[0].mxu0
        %v5037 = vadd.f32 %v4496, %v5036
        %v5038 = vpop.f32.mrb[0].mxu0
        %v5039 = vadd.f32 %v4498, %v5038
        %5040 = vmatprep.mubr.bf16.mxu0 %v4798
        %5041 = vmatmul.mubr.bf16.gmra.mrb[0].mxu0 %v3757
        %v5042 = vpop.f32.mrb[0].mxu0
        %v5043 = vadd.f32 %v4502, %v5042
        %v5044 = vpop.f32.mrb[0].mxu0
        %v5045 = vadd.f32 %v4504, %v5044
        %v5046 = vpop.f32.mrb[0].mxu0
        %v5047 = vadd.f32 %v4506, %v5046
        %v5048 = vpop.f32.mrb[0].mxu0
        %v5049 = vadd.f32 %v4508, %v5048
        %5050 = vmatprep.mubr.bf16.mxu0 %v4801
        %5051 = vmatmul.mubr.bf16.gmra.mrb[0].mxu0 %v3759
        %v5052 = vpop.f32.mrb[0].mxu0
        %v5053 = vadd.f32 %v4512, %v5052
        %v5054 = vpop.f32.mrb[0].mxu0
        %v5055 = vadd.f32 %v4514, %v5054
        %v5056 = vpop.f32.mrb[0].mxu0
        %v5057 = vadd.f32 %v4516, %v5056
        %v5058 = vpop.f32.mrb[0].mxu0
        %v5059 = vadd.f32 %v4518, %v5058
        %5060 = vdwg.mxu0
        %v5061 = vrot.slane %v3655, 4
        %v5062 = vrot.slane %v3657, 4
        %v5063 = vsel %vm2662, %v5061, %v5062
        %v5064 = vrot.slane %v3656, 4
        %v5065 = vrot.slane %v3658, 4
        %v5066 = vsel %vm2662, %v5064, %v5065
        %v5067 = vrot.slane %v3659, 4
        %v5068 = vsel %vm2662, %v5062, %v5067
        %v5069 = vrot.slane %v3660, 4
        %v5070 = vsel %vm2662, %v5065, %v5069
        %v5071 = vrot.slane %v3661, 4
        %v5072 = vsel %vm2662, %v5067, %v5071
        %v5073 = vrot.slane %v3662, 4
        %v5074 = vsel %vm2662, %v5069, %v5073
        %v5075 = vrot.slane %v3663, 4
        %v5076 = vsel %vm2662, %v5071, %v5075
        %v5077 = vrot.slane %v3664, 4
        %v5078 = vsel %vm2662, %v5073, %v5077
        %v5079 = vrot.slane %v3665, 4
        %v5080 = vsel %vm2662, %v5075, %v5079
        %v5081 = vrot.slane %v3666, 4
        %v5082 = vsel %vm2662, %v5077, %v5081
        %v5083 = vrot.slane %v3667, 4
        %v5084 = vsel %vm2662, %v5079, %v5083
        %v5085 = vrot.slane %v3668, 4
        %v5086 = vsel %vm2662, %v5081, %v5085
        %v5087 = vrot.slane %v3669, 4
        %v5088 = vsel %vm2662, %v5083, %v5087
        %v5089 = vrot.slane %v3670, 4
        %v5090 = vsel %vm2662, %v5085, %v5089
        %v5091 = vrot.slane %v3671, 4
        %v5092 = vsel %vm2662, %v5087, %v5091
        %v5093 = vrot.slane %v3672, 4
        %v5094 = vsel %vm2662, %v5089, %v5093
        %v5095 = vrot.slane %v3673, 4
        %v5096 = vsel %vm2662, %v5091, %v5095
        %v5097 = vrot.slane %v3674, 4
        %v5098 = vsel %vm2662, %v5093, %v5097
        %v5099 = vrot.slane %v3675, 4
        %v5100 = vsel %vm2662, %v5095, %v5099
        %v5101 = vrot.slane %v3676, 4
        %v5102 = vsel %vm2662, %v5097, %v5101
        %v5103 = vrot.slane %v3677, 4
        %v5104 = vsel %vm2662, %v5099, %v5103
        %v5105 = vrot.slane %v3678, 4
        %v5106 = vsel %vm2662, %v5101, %v5105
        %v5107 = vrot.slane %v3679, 4
        %v5108 = vsel %vm2662, %v5103, %v5107
        %v5109 = vrot.slane %v3680, 4
        %v5110 = vsel %vm2662, %v5105, %v5109
        %v5111 = vrot.slane %v3681, 4
        %v5112 = vsel %vm2662, %v5107, %v5111
        %v5113 = vrot.slane %v3682, 4
        %v5114 = vsel %vm2662, %v5109, %v5113
        %v5115 = vrot.slane %v3683, 4
        %v5116 = vsel %vm2662, %v5111, %v5115
        %v5117 = vrot.slane %v3684, 4
        %v5118 = vsel %vm2662, %v5113, %v5117
        %v5119 = vrot.slane %v3685, 4
        %v5120 = vsel %vm2662, %v5115, %v5119
        %v5121 = vrot.slane %v3686, 4
        %v5122 = vsel %vm2662, %v5117, %v5121
        %v5123 = vrot.slane %v3687, 4
        %v5124 = vsel %vm2662, %v5119, %v5123
        %v5125 = vrot.slane %v3688, 4
        %v5126 = vsel %vm2662, %v5121, %v5125
        %v5127 = vrot.slane %v3689, 4
        %v5128 = vsel %vm2662, %v5123, %v5127
        %v5129 = vrot.slane %v3690, 4
        %v5130 = vsel %vm2662, %v5125, %v5129
        %v5169 = vsel %vm2662, %v5127, %v5061
        %v5170 = vsel %vm2662, %v5129, %v5064
        %s5171 = scalar_lea.vmem [#allocation8], 832
        %v5172 = vld [vmem:[%s5171] sm:$0xff]
        %v5173 = vld [vmem:[%s5171 + $0x8] sm:$0xff]
        %v5174 = vld [vmem:[%s5171 + $0x10] sm:$0xff]
        %v5175 = vld [vmem:[%s5171 + $0x18] sm:$0xff]
        %v5176 = vld [vmem:[%s5171 + $0x20] sm:$0xff]
        %v5177 = vld [vmem:[%s5171 + $0x28] sm:$0xff]
        %v5178 = vld [vmem:[%s5171 + $0x30] sm:$0xff]
        %v5179 = vld [vmem:[%s5171 + $0x38] sm:$0xff]
        %v5180 = vld [vmem:[%s5171 + $0x40] sm:$0xff]
        %v5181 = vld [vmem:[%s5171 + $0x48] sm:$0xff]
        %v5182 = vld [vmem:[%s5171 + $0x50] sm:$0xff]
        %v5183 = vld [vmem:[%s5171 + $0x58] sm:$0xff]
        %v5184 = vld [vmem:[%s5171 + $0x60] sm:$0xff]
        %v5185 = vld [vmem:[%s5171 + $0x68] sm:$0xff]
        %v5186 = vld [vmem:[%s5171 + $0x70] sm:$0xff]
        %v5187 = vld [vmem:[%s5171 + $0x78] sm:$0xff]
        %v5188 = vld [vmem:[%s5171 + $0x80] sm:$0xff]
        %v5189 = vld [vmem:[%s5171 + $0x88] sm:$0xff]
        %v5190 = vld [vmem:[%s5171 + $0x90] sm:$0xff]
        %v5191 = vld [vmem:[%s5171 + $0x98] sm:$0xff]
        %v5192 = vld [vmem:[%s5171 + $0xa0] sm:$0xff]
        %v5193 = vld [vmem:[%s5171 + $0xa8] sm:$0xff]
        %v5194 = vld [vmem:[%s5171 + $0xb0] sm:$0xff]
        %v5195 = vld [vmem:[%s5171 + $0xb8] sm:$0xff]
        %v5196 = vld [vmem:[%s5171 + $0xc0] sm:$0xff]
        %v5197 = vld [vmem:[%s5171 + $0xc8] sm:$0xff]
        %v5198 = vld [vmem:[%s5171 + $0xd0] sm:$0xff]
        %v5199 = vld [vmem:[%s5171 + $0xd8] sm:$0xff]
        %v5200 = vld [vmem:[%s5171 + $0xe0] sm:$0xff]
        %v5201 = vld [vmem:[%s5171 + $0xe8] sm:$0xff]
        %v5202 = vld [vmem:[%s5171 + $0xf0] sm:$0xff]
        %v5203 = vld [vmem:[%s5171 + $0xf8] sm:$0xff]
        %v5204 = vld [vmem:[%s5171 + $0x100] sm:$0xff]
        %v5205 = vld [vmem:[%s5171 + $0x108] sm:$0xff]
        %v5206 = vld [vmem:[%s5171 + $0x110] sm:$0xff]
        %v5207 = vld [vmem:[%s5171 + $0x118] sm:$0xff]
        %v5208 = vld [vmem:[%s5171 + $0x120] sm:$0xff]
        %v5209 = vld [vmem:[%s5171 + $0x128] sm:$0xff]
        %v5210 = vld [vmem:[%s5171 + $0x130] sm:$0xff]
        %v5211 = vld [vmem:[%s5171 + $0x138] sm:$0xff]
        %v5212 = vld [vmem:[%s5171 + $0x140] sm:$0xff]
        %v5213 = vld [vmem:[%s5171 + $0x148] sm:$0xff]
        %v5214 = vld [vmem:[%s5171 + $0x150] sm:$0xff]
        %v5215 = vld [vmem:[%s5171 + $0x158] sm:$0xff]
        %v5216 = vld [vmem:[%s5171 + $0x160] sm:$0xff]
        %v5217 = vld [vmem:[%s5171 + $0x168] sm:$0xff]
        %v5218 = vld [vmem:[%s5171 + $0x170] sm:$0xff]
        %v5219 = vld [vmem:[%s5171 + $0x178] sm:$0xff]
        %v5220 = vld [vmem:[%s5171 + $0x180] sm:$0xff]
        %v5221 = vld [vmem:[%s5171 + $0x188] sm:$0xff]
        %v5222 = vld [vmem:[%s5171 + $0x190] sm:$0x33]
        %v5223 = vld [vmem:[%s5171 + $0x198] sm:$0x33]
        %v5224 = vpack.c.bf16 %v5068, %v5063
        %v5225 = vpack.c.bf16 %v5070, %v5066
        %v5226 = vpack.c.bf16 %v5076, %v5072
        %v5227 = vpack.c.bf16 %v5078, %v5074
        %v5228 = vpack.c.bf16 %v5084, %v5080
        %v5229 = vpack.c.bf16 %v5086, %v5082
        %v5230 = vpack.c.bf16 %v5092, %v5088
        %v5231 = vpack.c.bf16 %v5094, %v5090
        %v5232 = vpack.c.bf16 %v5100, %v5096
        %v5233 = vpack.c.bf16 %v5102, %v5098
        %v5234 = vpack.c.bf16 %v5108, %v5104
        %v5235 = vpack.c.bf16 %v5110, %v5106
        %v5236 = vpack.c.bf16 %v5116, %v5112
        %v5237 = vpack.c.bf16 %v5118, %v5114
        %v5238 = vpack.c.bf16 %v5124, %v5120
        %v5239 = vpack.c.bf16 %v5126, %v5122
        %v5240 = vpack.c.bf16 %v5169, %v5128
        %v5241 = vpack.c.bf16 %v5170, %v5130
        %v5294 = vunpack.c.l.b16 %v5172
        %v5295 = vunpack.c.h.b16 %v5172
        %v5296 = vunpack.c.l.b16 %v5173
        %v5297 = vunpack.c.h.b16 %v5173
        %v5298 = vunpack.c.l.b16 %v5174
        %v5299 = vunpack.c.h.b16 %v5174
        %v5300 = vunpack.c.l.b16 %v5175
        %v5301 = vunpack.c.h.b16 %v5175
        %v5302 = vunpack.c.l.b16 %v5176
        %v5303 = vunpack.c.h.b16 %v5176
        %v5304 = vunpack.c.l.b16 %v5177
        %v5305 = vunpack.c.h.b16 %v5177
        %v5306 = vunpack.c.l.b16 %v5178
        %v5307 = vunpack.c.h.b16 %v5178
        %v5308 = vunpack.c.l.b16 %v5179
        %v5309 = vunpack.c.h.b16 %v5179
        %v5310 = vunpack.c.l.b16 %v5180
        %v5311 = vunpack.c.h.b16 %v5180
        %v5312 = vunpack.c.l.b16 %v5181
        %v5313 = vunpack.c.h.b16 %v5181
        %v5314 = vunpack.c.l.b16 %v5182
        %v5315 = vunpack.c.h.b16 %v5182
        %v5316 = vunpack.c.l.b16 %v5183
        %v5317 = vunpack.c.h.b16 %v5183
        %v5318 = vunpack.c.l.b16 %v5184
        %v5319 = vunpack.c.h.b16 %v5184
        %v5320 = vunpack.c.l.b16 %v5185
        %v5321 = vunpack.c.h.b16 %v5185
        %v5322 = vunpack.c.l.b16 %v5186
        %v5323 = vunpack.c.h.b16 %v5186
        %v5324 = vunpack.c.l.b16 %v5187
        %v5325 = vunpack.c.h.b16 %v5187
        %v5326 = vunpack.c.l.b16 %v5188
        %v5327 = vunpack.c.h.b16 %v5188
        %v5328 = vunpack.c.l.b16 %v5189
        %v5329 = vunpack.c.h.b16 %v5189
        %v5330 = vunpack.c.l.b16 %v5190
        %v5331 = vunpack.c.h.b16 %v5190
        %v5332 = vunpack.c.l.b16 %v5191
        %v5333 = vunpack.c.h.b16 %v5191
        %v5334 = vunpack.c.l.b16 %v5192
        %v5335 = vunpack.c.h.b16 %v5192
        %v5336 = vunpack.c.l.b16 %v5193
        %v5337 = vunpack.c.h.b16 %v5193
        %v5338 = vunpack.c.l.b16 %v5194
        %v5339 = vunpack.c.h.b16 %v5194
        %v5340 = vunpack.c.l.b16 %v5195
        %v5341 = vunpack.c.h.b16 %v5195
        %v5342 = vunpack.c.l.b16 %v5196
        %v5343 = vunpack.c.h.b16 %v5196
        %v5344 = vunpack.c.l.b16 %v5197
        %v5345 = vunpack.c.h.b16 %v5197
        %v5346 = vunpack.c.l.b16 %v5198
        %v5347 = vunpack.c.h.b16 %v5198
        %v5348 = vunpack.c.l.b16 %v5199
        %v5349 = vunpack.c.h.b16 %v5199
        %v5350 = vunpack.c.l.b16 %v5200
        %v5351 = vunpack.c.h.b16 %v5200
        %v5352 = vunpack.c.l.b16 %v5201
        %v5353 = vunpack.c.h.b16 %v5201
        %v5354 = vunpack.c.l.b16 %v5202
        %v5355 = vunpack.c.h.b16 %v5202
        %v5356 = vunpack.c.l.b16 %v5203
        %v5357 = vunpack.c.h.b16 %v5203
        %v5358 = vunpack.c.l.b16 %v5204
        %v5359 = vunpack.c.h.b16 %v5204
        %v5360 = vunpack.c.l.b16 %v5205
        %v5361 = vunpack.c.h.b16 %v5205
        %v5362 = vunpack.c.l.b16 %v5206
        %v5363 = vunpack.c.h.b16 %v5206
        %v5364 = vunpack.c.l.b16 %v5207
        %v5365 = vunpack.c.h.b16 %v5207
        %v5366 = vunpack.c.l.b16 %v5208
        %v5367 = vunpack.c.h.b16 %v5208
        %v5368 = vunpack.c.l.b16 %v5209
        %v5369 = vunpack.c.h.b16 %v5209
        %v5370 = vunpack.c.l.b16 %v5210
        %v5371 = vunpack.c.h.b16 %v5210
        %v5372 = vunpack.c.l.b16 %v5211
        %v5373 = vunpack.c.h.b16 %v5211
        %v5374 = vunpack.c.l.b16 %v5212
        %v5375 = vunpack.c.h.b16 %v5212
        %v5376 = vunpack.c.l.b16 %v5213
        %v5377 = vunpack.c.h.b16 %v5213
        %v5378 = vunpack.c.l.b16 %v5214
        %v5379 = vunpack.c.h.b16 %v5214
        %v5380 = vunpack.c.l.b16 %v5215
        %v5381 = vunpack.c.h.b16 %v5215
        %v5382 = vunpack.c.l.b16 %v5216
        %v5383 = vunpack.c.h.b16 %v5216
        %v5384 = vunpack.c.l.b16 %v5217
        %v5385 = vunpack.c.h.b16 %v5217
        %v5386 = vunpack.c.l.b16 %v5218
        %v5387 = vunpack.c.h.b16 %v5218
        %v5388 = vunpack.c.l.b16 %v5219
        %v5389 = vunpack.c.h.b16 %v5219
        %v5390 = vunpack.c.l.b16 %v5220
        %v5391 = vunpack.c.h.b16 %v5220
        %v5392 = vunpack.c.l.b16 %v5221
        %v5393 = vunpack.c.h.b16 %v5221
        %v5394 = vunpack.c.l.b16 %v5222
        %v5395 = vunpack.c.h.b16 %v5222
        %v5396 = vunpack.c.l.b16 %v5223
        %v5397 = vunpack.c.h.b16 %v5223
        %v5398 = vpack.c.b16 %v5298, %v5294
        %v5399 = vpack.c.b16 %v5299, %v5295
        %v5400 = vpack.c.b16 %v5300, %v5296
        %v5401 = vpack.c.b16 %v5301, %v5297
        %v5402 = vpack.c.b16 %v5306, %v5302
        %v5403 = vpack.c.b16 %v5307, %v5303
        %v5404 = vpack.c.b16 %v5308, %v5304
        %v5405 = vpack.c.b16 %v5309, %v5305
        %v5406 = vpack.c.b16 %v5314, %v5310
        %v5407 = vpack.c.b16 %v5315, %v5311
        %v5408 = vpack.c.b16 %v5316, %v5312
        %v5409 = vpack.c.b16 %v5317, %v5313
        %v5410 = vpack.c.b16 %v5322, %v5318
        %v5411 = vpack.c.b16 %v5323, %v5319
        %v5412 = vpack.c.b16 %v5324, %v5320
        %v5413 = vpack.c.b16 %v5325, %v5321
        %v5414 = vpack.c.b16 %v5330, %v5326
        %v5415 = vpack.c.b16 %v5331, %v5327
        %v5416 = vpack.c.b16 %v5332, %v5328
        %v5417 = vpack.c.b16 %v5333, %v5329
        %v5418 = vpack.c.b16 %v5338, %v5334
        %v5419 = vpack.c.b16 %v5339, %v5335
        %v5420 = vpack.c.b16 %v5340, %v5336
        %v5421 = vpack.c.b16 %v5341, %v5337
        %v5422 = vpack.c.b16 %v5346, %v5342
        %v5423 = vpack.c.b16 %v5347, %v5343
        %v5424 = vpack.c.b16 %v5348, %v5344
        %v5425 = vpack.c.b16 %v5349, %v5345
        %v5426 = vpack.c.b16 %v5354, %v5350
        %v5427 = vpack.c.b16 %v5355, %v5351
        %v5428 = vpack.c.b16 %v5356, %v5352
        %v5429 = vpack.c.b16 %v5357, %v5353
        %v5430 = vpack.c.b16 %v5362, %v5358
        %v5431 = vpack.c.b16 %v5363, %v5359
        %v5432 = vpack.c.b16 %v5364, %v5360
        %v5433 = vpack.c.b16 %v5365, %v5361
        %v5434 = vpack.c.b16 %v5370, %v5366
        %v5435 = vpack.c.b16 %v5371, %v5367
        %v5436 = vpack.c.b16 %v5372, %v5368
        %v5437 = vpack.c.b16 %v5373, %v5369
        %v5438 = vpack.c.b16 %v5378, %v5374
        %v5439 = vpack.c.b16 %v5379, %v5375
        %v5440 = vpack.c.b16 %v5380, %v5376
        %v5441 = vpack.c.b16 %v5381, %v5377
        %v5442 = vpack.c.b16 %v5386, %v5382
        %v5443 = vpack.c.b16 %v5387, %v5383
        %v5444 = vpack.c.b16 %v5388, %v5384
        %v5445 = vpack.c.b16 %v5389, %v5385
        %v5446 = vpack.c.b16 %v5394, %v5390
        %v5447 = vpack.c.b16 %v5395, %v5391
        %v5448 = vpack.c.b16 %v5396, %v5392
        %v5449 = vpack.c.b16 %v5397, %v5393
        %v5499 = vsel %vm4234, %v5225, 0
        %v5502 = vsel %vm4234, %v5227, 0
        %v5505 = vsel %vm4234, %v5229, 0
        %v5508 = vsel %vm4234, %v5231, 0
        %v5511 = vsel %vm4234, %v5233, 0
        %v5514 = vsel %vm4234, %v5235, 0
        %v5517 = vsel %vm4234, %v5237, 0
        %v5520 = vsel %vm4234, %v5239, 0
        %v5523 = vsel %vm4234, %v5241, 0
        %v5526 = vsel %vm1595, %v5446, 0
        %v5529 = vsel %vm1595, %v5447, 0
        %v5532 = vsel %vm1595, %v5448, 0
        %v5535 = vsel %vm1595, %v5449, 0
        %5537 = vmatprep.subr.bf16.mxu0 %v5399
        %5538 = vmatpush1.bf16.msra.mxu0 %v5398
        %5539 = vmatprep.subr.bf16.mxu0 %v5403
        %5540 = vmatpush1.bf16.msra.mxu0 %v5402
        %5541 = vmatprep.subr.bf16.mxu0 %v5407
        %5542 = vmatpush1.bf16.msra.mxu0 %v5406
        %5543 = vmatprep.subr.bf16.mxu0 %v5411
        %5544 = vmatpush1.bf16.msra.mxu0 %v5410
        %5545 = vmatprep.subr.bf16.mxu0 %v5415
        %5546 = vmatpush1.bf16.msra.mxu0 %v5414
        %5547 = vmatprep.subr.bf16.mxu0 %v5419
        %5548 = vmatpush1.bf16.msra.mxu0 %v5418
        %5549 = vmatprep.subr.bf16.mxu0 %v5423
        %5550 = vmatpush1.bf16.msra.mxu0 %v5422
        %5551 = vmatprep.subr.bf16.mxu0 %v5427
        %5552 = vmatpush1.bf16.msra.mxu0 %v5426
        %5553 = vmatprep.subr.bf16.mxu0 %v5431
        %5554 = vmatpush1.bf16.msra.mxu0 %v5430
        %5555 = vmatprep.subr.bf16.mxu0 %v5435
        %5556 = vmatpush1.bf16.msra.mxu0 %v5434
        %5557 = vmatprep.subr.bf16.mxu0 %v5439
        %5558 = vmatpush1.bf16.msra.mxu0 %v5438
        %5559 = vmatprep.subr.bf16.mxu0 %v5443
        %5560 = vmatpush1.bf16.msra.mxu0 %v5442
        %5561 = vmatprep.subr.bf16.mxu0 %v5529
        %5562 = vmatpush1.bf16.msra.mxu0 %v5526
        %5563 = vmatprep.subr.bf16.mxu0 0
        %5564 = vmatpush1.bf16.msra.mxu0 0
        %5565 = vmatprep.subr.bf16.mxu0 0
        %5566 = vmatpush1.bf16.msra.mxu0 0
        %5567 = vmatprep.subr.bf16.mxu0 0
        %5568 = vmatpush1.bf16.msra.mxu0 0
        %5569 = vmatprep.mubr.bf16.mxu0 %v5499
        %5570 = vmatmul.mubr.bf16.gmra.mrb[0].mxu0 %v5224
        %v5571 = vpop.f32.mrb[0].mxu0
        %v5572 = vadd.f32 0.0, %v5571
        %v5573 = vpop.f32.mrb[0].mxu0
        %v5574 = vadd.f32 0.0, %v5573
        %v5575 = vpop.f32.mrb[0].mxu0
        %v5576 = vadd.f32 0.0, %v5575
        %v5577 = vpop.f32.mrb[0].mxu0
        %v5578 = vadd.f32 0.0, %v5577
        %5579 = vmatprep.mubr.bf16.mxu0 %v5502
        %5580 = vmatmul.mubr.bf16.gmra.mrb[0].mxu0 %v5226
        %v5581 = vpop.f32.mrb[0].mxu0
        %v5582 = vadd.f32 0.0, %v5581
        %v5583 = vpop.f32.mrb[0].mxu0
        %v5584 = vadd.f32 0.0, %v5583
        %v5585 = vpop.f32.mrb[0].mxu0
        %v5586 = vadd.f32 0.0, %v5585
        %v5587 = vpop.f32.mrb[0].mxu0
        %v5588 = vadd.f32 0.0, %v5587
        %5589 = vmatprep.mubr.bf16.mxu0 %v5505
        %5590 = vmatmul.mubr.bf16.gmra.mrb[0].mxu0 %v5228
        %v5591 = vpop.f32.mrb[0].mxu0
        %v5592 = vadd.f32 0.0, %v5591
        %v5593 = vpop.f32.mrb[0].mxu0
        %v5594 = vadd.f32 0.0, %v5593
        %v5595 = vpop.f32.mrb[0].mxu0
        %v5596 = vadd.f32 0.0, %v5595
        %v5597 = vpop.f32.mrb[0].mxu0
        %v5598 = vadd.f32 0.0, %v5597
        %5599 = vmatprep.mubr.bf16.mxu0 %v5508
        %5600 = vmatmul.mubr.bf16.gmra.mrb[0].mxu0 %v5230
        %v5601 = vpop.f32.mrb[0].mxu0
        %v5602 = vadd.f32 0.0, %v5601
        %v5603 = vpop.f32.mrb[0].mxu0
        %v5604 = vadd.f32 0.0, %v5603
        %v5605 = vpop.f32.mrb[0].mxu0
        %v5606 = vadd.f32 0.0, %v5605
        %v5607 = vpop.f32.mrb[0].mxu0
        %v5608 = vadd.f32 0.0, %v5607
        %5609 = vmatprep.mubr.bf16.mxu0 %v5511
        %5610 = vmatmul.mubr.bf16.gmra.mrb[0].mxu0 %v5232
        %v5611 = vpop.f32.mrb[0].mxu0
        %v5612 = vadd.f32 0.0, %v5611
        %v5613 = vpop.f32.mrb[0].mxu0
        %v5614 = vadd.f32 0.0, %v5613
        %v5615 = vpop.f32.mrb[0].mxu0
        %v5616 = vadd.f32 0.0, %v5615
        %v5617 = vpop.f32.mrb[0].mxu0
        %v5618 = vadd.f32 0.0, %v5617
        %5619 = vmatprep.mubr.bf16.mxu0 %v5514
        %5620 = vmatmul.mubr.bf16.gmra.mrb[0].mxu0 %v5234
        %v5621 = vpop.f32.mrb[0].mxu0
        %v5622 = vadd.f32 0.0, %v5621
        %v5623 = vpop.f32.mrb[0].mxu0
        %v5624 = vadd.f32 0.0, %v5623
        %v5625 = vpop.f32.mrb[0].mxu0
        %v5626 = vadd.f32 0.0, %v5625
        %v5627 = vpop.f32.mrb[0].mxu0
        %v5628 = vadd.f32 0.0, %v5627
        %5629 = vmatprep.mubr.bf16.mxu0 %v5517
        %5630 = vmatmul.mubr.bf16.gmra.mrb[0].mxu0 %v5236
        %v5631 = vpop.f32.mrb[0].mxu0
        %v5632 = vadd.f32 0.0, %v5631
        %v5633 = vpop.f32.mrb[0].mxu0
        %v5634 = vadd.f32 0.0, %v5633
        %v5635 = vpop.f32.mrb[0].mxu0
        %v5636 = vadd.f32 0.0, %v5635
        %v5637 = vpop.f32.mrb[0].mxu0
        %v5638 = vadd.f32 0.0, %v5637
        %5639 = vmatprep.mubr.bf16.mxu0 %v5520
        %5640 = vmatmul.mubr.bf16.gmra.mrb[0].mxu0 %v5238
        %v5641 = vpop.f32.mrb[0].mxu0
        %v5642 = vadd.f32 0.0, %v5641
        %v5643 = vpop.f32.mrb[0].mxu0
        %v5644 = vadd.f32 0.0, %v5643
        %v5645 = vpop.f32.mrb[0].mxu0
        %v5646 = vadd.f32 0.0, %v5645
        %v5647 = vpop.f32.mrb[0].mxu0
        %v5648 = vadd.f32 0.0, %v5647
        %5649 = vmatprep.mubr.bf16.mxu0 %v5523
        %5650 = vmatmul.mubr.bf16.gmra.mrb[0].mxu0 %v5240
        %v5651 = vpop.f32.mrb[0].mxu0
        %v5652 = vadd.f32 0.0, %v5651
        %v5653 = vpop.f32.mrb[0].mxu0
        %v5654 = vadd.f32 0.0, %v5653
        %v5655 = vpop.f32.mrb[0].mxu0
        %v5656 = vadd.f32 0.0, %v5655
        %v5657 = vpop.f32.mrb[0].mxu0
        %v5658 = vadd.f32 0.0, %v5657
        %5659 = vdwg.mxu0
        %5660 = vmatprep.subr.bf16.mxu0 %v5401
        %5661 = vmatpush1.bf16.msra.mxu0 %v5400
        %5662 = vmatprep.subr.bf16.mxu0 %v5405
        %5663 = vmatpush1.bf16.msra.mxu0 %v5404
        %5664 = vmatprep.subr.bf16.mxu0 %v5409
        %5665 = vmatpush1.bf16.msra.mxu0 %v5408
        %5666 = vmatprep.subr.bf16.mxu0 %v5413
        %5667 = vmatpush1.bf16.msra.mxu0 %v5412
        %5668 = vmatprep.subr.bf16.mxu0 %v5417
        %5669 = vmatpush1.bf16.msra.mxu0 %v5416
        %5670 = vmatprep.subr.bf16.mxu0 %v5421
        %5671 = vmatpush1.bf16.msra.mxu0 %v5420
        %5672 = vmatprep.subr.bf16.mxu0 %v5425
        %5673 = vmatpush1.bf16.msra.mxu0 %v5424
        %5674 = vmatprep.subr.bf16.mxu0 %v5429
        %5675 = vmatpush1.bf16.msra.mxu0 %v5428
        %5676 = vmatprep.subr.bf16.mxu0 %v5433
        %5677 = vmatpush1.bf16.msra.mxu0 %v5432
        %5678 = vmatprep.subr.bf16.mxu0 %v5437
        %5679 = vmatpush1.bf16.msra.mxu0 %v5436
        %5680 = vmatprep.subr.bf16.mxu0 %v5441
        %5681 = vmatpush1.bf16.msra.mxu0 %v5440
        %5682 = vmatprep.subr.bf16.mxu0 %v5445
        %5683 = vmatpush1.bf16.msra.mxu0 %v5444
        %5684 = vmatprep.subr.bf16.mxu0 %v5535
        %5685 = vmatpush1.bf16.msra.mxu0 %v5532
        %5686 = vmatprep.subr.bf16.mxu0 0
        %5687 = vmatpush1.bf16.msra.mxu0 0
        %5688 = vmatprep.subr.bf16.mxu0 0
        %5689 = vmatpush1.bf16.msra.mxu0 0
        %5690 = vmatprep.subr.bf16.mxu0 0
        %5691 = vmatpush1.bf16.msra.mxu0 0
        %5692 = vmatprep.mubr.bf16.mxu0 %v5499
        %5693 = vmatmul.mubr.bf16.gmra.mrb[0].mxu0 %v5224
        %v5694 = vpop.f32.mrb[0].mxu0
        %v5695 = vadd.f32 0.0, %v5694
        %v5696 = vpop.f32.mrb[0].mxu0
        %v5697 = vadd.f32 0.0, %v5696
        %v5698 = vpop.f32.mrb[0].mxu0
        %v5699 = vadd.f32 0.0, %v5698
        %v5700 = vpop.f32.mrb[0].mxu0
        %v5701 = vadd.f32 0.0, %v5700
        %5702 = vmatprep.mubr.bf16.mxu0 %v5502
        %5703 = vmatmul.mubr.bf16.gmra.mrb[0].mxu0 %v5226
        %v5704 = vpop.f32.mrb[0].mxu0
        %v5705 = vadd.f32 0.0, %v5704
        %v5706 = vpop.f32.mrb[0].mxu0
        %v5707 = vadd.f32 0.0, %v5706
        %v5708 = vpop.f32.mrb[0].mxu0
        %v5709 = vadd.f32 0.0, %v5708
        %v5710 = vpop.f32.mrb[0].mxu0
        %v5711 = vadd.f32 0.0, %v5710
        %5712 = vmatprep.mubr.bf16.mxu0 %v5505
        %5713 = vmatmul.mubr.bf16.gmra.mrb[0].mxu0 %v5228
        %v5714 = vpop.f32.mrb[0].mxu0
        %v5715 = vadd.f32 0.0, %v5714
        %v5716 = vpop.f32.mrb[0].mxu0
        %v5717 = vadd.f32 0.0, %v5716
        %v5718 = vpop.f32.mrb[0].mxu0
        %v5719 = vadd.f32 0.0, %v5718
        %v5720 = vpop.f32.mrb[0].mxu0
        %v5721 = vadd.f32 0.0, %v5720
        %5722 = vmatprep.mubr.bf16.mxu0 %v5508
        %5723 = vmatmul.mubr.bf16.gmra.mrb[0].mxu0 %v5230
        %v5724 = vpop.f32.mrb[0].mxu0
        %v5725 = vadd.f32 0.0, %v5724
        %v5726 = vpop.f32.mrb[0].mxu0
        %v5727 = vadd.f32 0.0, %v5726
        %v5728 = vpop.f32.mrb[0].mxu0
        %v5729 = vadd.f32 0.0, %v5728
        %v5730 = vpop.f32.mrb[0].mxu0
        %v5731 = vadd.f32 0.0, %v5730
        %5732 = vmatprep.mubr.bf16.mxu0 %v5511
        %5733 = vmatmul.mubr.bf16.gmra.mrb[0].mxu0 %v5232
        %v5734 = vpop.f32.mrb[0].mxu0
        %v5735 = vadd.f32 0.0, %v5734
        %v5736 = vpop.f32.mrb[0].mxu0
        %v5737 = vadd.f32 0.0, %v5736
        %v5738 = vpop.f32.mrb[0].mxu0
        %v5739 = vadd.f32 0.0, %v5738
        %v5740 = vpop.f32.mrb[0].mxu0
        %v5741 = vadd.f32 0.0, %v5740
        %5742 = vmatprep.mubr.bf16.mxu0 %v5514
        %5743 = vmatmul.mubr.bf16.gmra.mrb[0].mxu0 %v5234
        %v5744 = vpop.f32.mrb[0].mxu0
        %v5745 = vadd.f32 0.0, %v5744
        %v5746 = vpop.f32.mrb[0].mxu0
        %v5747 = vadd.f32 0.0, %v5746
        %v5748 = vpop.f32.mrb[0].mxu0
        %v5749 = vadd.f32 0.0, %v5748
        %v5750 = vpop.f32.mrb[0].mxu0
        %v5751 = vadd.f32 0.0, %v5750
        %5752 = vmatprep.mubr.bf16.mxu0 %v5517
        %5753 = vmatmul.mubr.bf16.gmra.mrb[0].mxu0 %v5236
        %v5754 = vpop.f32.mrb[0].mxu0
        %v5755 = vadd.f32 0.0, %v5754
        %v5756 = vpop.f32.mrb[0].mxu0
        %v5757 = vadd.f32 0.0, %v5756
        %v5758 = vpop.f32.mrb[0].mxu0
        %v5759 = vadd.f32 0.0, %v5758
        %v5760 = vpop.f32.mrb[0].mxu0
        %v5761 = vadd.f32 0.0, %v5760
        %5762 = vmatprep.mubr.bf16.mxu0 %v5520
        %5763 = vmatmul.mubr.bf16.gmra.mrb[0].mxu0 %v5238
        %v5764 = vpop.f32.mrb[0].mxu0
        %v5765 = vadd.f32 0.0, %v5764
        %v5766 = vpop.f32.mrb[0].mxu0
        %v5767 = vadd.f32 0.0, %v5766
        %v5768 = vpop.f32.mrb[0].mxu0
        %v5769 = vadd.f32 0.0, %v5768
        %v5770 = vpop.f32.mrb[0].mxu0
        %v5771 = vadd.f32 0.0, %v5770
        %5772 = vmatprep.mubr.bf16.mxu0 %v5523
        %5773 = vmatmul.mubr.bf16.gmra.mrb[0].mxu0 %v5240
        %v5774 = vpop.f32.mrb[0].mxu0
        %v5775 = vadd.f32 0.0, %v5774
        %v5776 = vpop.f32.mrb[0].mxu0
        %v5777 = vadd.f32 0.0, %v5776
        %v5778 = vpop.f32.mrb[0].mxu0
        %v5779 = vadd.f32 0.0, %v5778
        %v5780 = vpop.f32.mrb[0].mxu0
        %v5781 = vadd.f32 0.0, %v5780
        %5782 = vdwg.mxu0
        %v5783 = vadd.f32 %v4850, %v5572
        %v5784 = vadd.f32 %v4852, %v5574
        %v5785 = vadd.f32 %v4973, %v5695
        %v5786 = vadd.f32 %v4975, %v5697
        %v5787 = vadd.f32 %v4854, %v5576
        %v5788 = vadd.f32 %v4856, %v5578
        %v5789 = vadd.f32 %v4977, %v5699
        %v5790 = vadd.f32 %v4979, %v5701
        %v5791 = vadd.f32 %v4860, %v5582
        %v5792 = vadd.f32 %v4862, %v5584
        %v5793 = vadd.f32 %v4983, %v5705
        %v5794 = vadd.f32 %v4985, %v5707
        %v5795 = vadd.f32 %v4864, %v5586
        %v5796 = vadd.f32 %v4866, %v5588
        %v5797 = vadd.f32 %v4987, %v5709
        %v5798 = vadd.f32 %v4989, %v5711
        %v5799 = vadd.f32 %v4870, %v5592
        %v5800 = vadd.f32 %v4872, %v5594
        %v5801 = vadd.f32 %v4993, %v5715
        %v5802 = vadd.f32 %v4995, %v5717
        %v5803 = vadd.f32 %v4874, %v5596
        %v5804 = vadd.f32 %v4876, %v5598
        %v5805 = vadd.f32 %v4997, %v5719
        %v5806 = vadd.f32 %v4999, %v5721
        %v5807 = vadd.f32 %v4880, %v5602
        %v5808 = vadd.f32 %v4882, %v5604
        %v5809 = vadd.f32 %v5003, %v5725
        %v5810 = vadd.f32 %v5005, %v5727
        %v5811 = vadd.f32 %v4884, %v5606
        %v5812 = vadd.f32 %v4886, %v5608
        %v5813 = vadd.f32 %v5007, %v5729
        %v5814 = vadd.f32 %v5009, %v5731
        %v5815 = vadd.f32 %v4890, %v5612
        %v5816 = vadd.f32 %v4892, %v5614
        %v5817 = vadd.f32 %v5013, %v5735
        %v5818 = vadd.f32 %v5015, %v5737
        %v5819 = vadd.f32 %v4894, %v5616
        %v5820 = vadd.f32 %v4896, %v5618
        %v5821 = vadd.f32 %v5017, %v5739
        %v5822 = vadd.f32 %v5019, %v5741
        %v5823 = vadd.f32 %v4900, %v5622
        %v5824 = vadd.f32 %v4902, %v5624
        %v5825 = vadd.f32 %v5023, %v5745
        %v5826 = vadd.f32 %v5025, %v5747
        %v5827 = vadd.f32 %v4904, %v5626
        %v5828 = vadd.f32 %v4906, %v5628
        %v5829 = vadd.f32 %v5027, %v5749
        %v5830 = vadd.f32 %v5029, %v5751
        %v5831 = vadd.f32 %v4910, %v5632
        %v5832 = vadd.f32 %v4912, %v5634
        %v5833 = vadd.f32 %v5033, %v5755
        %v5834 = vadd.f32 %v5035, %v5757
        %v5835 = vadd.f32 %v4914, %v5636
        %v5836 = vadd.f32 %v4916, %v5638
        %v5837 = vadd.f32 %v5037, %v5759
        %v5838 = vadd.f32 %v5039, %v5761
        %v5839 = vadd.f32 %v4920, %v5642
        %v5840 = vadd.f32 %v4922, %v5644
        %v5841 = vadd.f32 %v5043, %v5765
        %v5842 = vadd.f32 %v5045, %v5767
        %v5843 = vadd.f32 %v4924, %v5646
        %v5844 = vadd.f32 %v4926, %v5648
        %v5845 = vadd.f32 %v5047, %v5769
        %v5846 = vadd.f32 %v5049, %v5771
        %v5847 = vadd.f32 %v4930, %v5652
        %v5848 = vadd.f32 %v4932, %v5654
        %v5849 = vadd.f32 %v5053, %v5775
        %v5850 = vadd.f32 %v5055, %v5777
        %v5851 = vadd.f32 %v4934, %v5656
        %v5852 = vadd.f32 %v4936, %v5658
        %v5853 = vadd.f32 %v5057, %v5779
        %v5854 = vadd.f32 %v5059, %v5781
        %v5855 = vld [vmem:[%s6] sm:$0xf]
        %v5857 = vlaneseq
        %v5858 = vshrl.u32 %v5857, 7
        %v5859 = vsub.s32 0, %v5858
        %v5860 = vrot.slane %v5855, %v5859
        %v5861 = vlaneseq
        %v5862 = vshrl.u32 %v5861, 7
        %v5863 = vsub.s32 1, %v5862
        %v5864 = vrot.slane %v5855, %v5863
        %v5865 = vlaneseq
        %v5866 = vshrl.u32 %v5865, 7
        %v5867 = vsub.s32 2, %v5866
        %v5868 = vrot.slane %v5855, %v5867
        %v5869 = vlaneseq
        %v5870 = vshrl.u32 %v5869, 7
        %v5871 = vsub.s32 3, %v5870
        %v5872 = vrot.slane %v5855, %v5871
        %v5877 = vadd.f32 %v5783, %v5860
        %v5878 = vadd.f32 %v5784, %v5864
        %v5879 = vadd.f32 %v5785, %v5868
        %v5880 = vadd.f32 %v5786, %v5872
        %v5881 = vadd.f32 %v5787, %v5860
        %v5882 = vadd.f32 %v5788, %v5864
        %v5883 = vadd.f32 %v5789, %v5868
        %v5884 = vadd.f32 %v5790, %v5872
        %v5885 = vadd.f32 %v5791, %v5860
        %v5886 = vadd.f32 %v5792, %v5864
        %v5887 = vadd.f32 %v5793, %v5868
        %v5888 = vadd.f32 %v5794, %v5872
        %v5889 = vadd.f32 %v5795, %v5860
        %v5890 = vadd.f32 %v5796, %v5864
        %v5891 = vadd.f32 %v5797, %v5868
        %v5892 = vadd.f32 %v5798, %v5872
        %v5893 = vadd.f32 %v5799, %v5860
        %v5894 = vadd.f32 %v5800, %v5864
        %v5895 = vadd.f32 %v5801, %v5868
        %v5896 = vadd.f32 %v5802, %v5872
        %v5897 = vadd.f32 %v5803, %v5860
        %v5898 = vadd.f32 %v5804, %v5864
        %v5899 = vadd.f32 %v5805, %v5868
        %v5900 = vadd.f32 %v5806, %v5872
        %v5901 = vadd.f32 %v5807, %v5860
        %v5902 = vadd.f32 %v5808, %v5864
        %v5903 = vadd.f32 %v5809, %v5868
        %v5904 = vadd.f32 %v5810, %v5872
        %v5905 = vadd.f32 %v5811, %v5860
        %v5906 = vadd.f32 %v5812, %v5864
        %v5907 = vadd.f32 %v5813, %v5868
        %v5908 = vadd.f32 %v5814, %v5872
        %v5909 = vadd.f32 %v5815, %v5860
        %v5910 = vadd.f32 %v5816, %v5864
        %v5911 = vadd.f32 %v5817, %v5868
        %v5912 = vadd.f32 %v5818, %v5872
        %v5913 = vadd.f32 %v5819, %v5860
        %v5914 = vadd.f32 %v5820, %v5864
        %v5915 = vadd.f32 %v5821, %v5868
        %v5916 = vadd.f32 %v5822, %v5872
        %v5917 = vadd.f32 %v5823, %v5860
        %v5918 = vadd.f32 %v5824, %v5864
        %v5919 = vadd.f32 %v5825, %v5868
        %v5920 = vadd.f32 %v5826, %v5872
        %v5921 = vadd.f32 %v5827, %v5860
        %v5922 = vadd.f32 %v5828, %v5864
        %v5923 = vadd.f32 %v5829, %v5868
        %v5924 = vadd.f32 %v5830, %v5872
        %v5925 = vadd.f32 %v5831, %v5860
        %v5926 = vadd.f32 %v5832, %v5864
        %v5927 = vadd.f32 %v5833, %v5868
        %v5928 = vadd.f32 %v5834, %v5872
        %v5929 = vadd.f32 %v5835, %v5860
        %v5930 = vadd.f32 %v5836, %v5864
        %v5931 = vadd.f32 %v5837, %v5868
        %v5932 = vadd.f32 %v5838, %v5872
        %v5933 = vadd.f32 %v5839, %v5860
        %v5934 = vadd.f32 %v5840, %v5864
        %v5935 = vadd.f32 %v5841, %v5868
        %v5936 = vadd.f32 %v5842, %v5872
        %v5937 = vadd.f32 %v5843, %v5860
        %v5938 = vadd.f32 %v5844, %v5864
        %v5939 = vadd.f32 %v5845, %v5868
        %v5940 = vadd.f32 %v5846, %v5872
        %v5941 = vadd.f32 %v5847, %v5860
        %v5942 = vadd.f32 %v5848, %v5864
        %v5943 = vadd.f32 %v5849, %v5868
        %v5944 = vadd.f32 %v5850, %v5872
        %v5945 = vadd.f32 %v5851, %v5860
        %v5946 = vadd.f32 %v5852, %v5864
        %v5947 = vadd.f32 %v5853, %v5868
        %v5948 = vadd.f32 %v5854, %v5872
        %v5949 = vmax.f32 %v5877, 0.0
        %v5950 = vmax.f32 %v5878, 0.0
        %v5951 = vmax.f32 %v5879, 0.0
        %v5952 = vmax.f32 %v5880, 0.0
        %v5953 = vmax.f32 %v5881, 0.0
        %v5954 = vmax.f32 %v5882, 0.0
        %v5955 = vmax.f32 %v5883, 0.0
        %v5956 = vmax.f32 %v5884, 0.0
        %v5957 = vmax.f32 %v5885, 0.0
        %v5958 = vmax.f32 %v5886, 0.0
        %v5959 = vmax.f32 %v5887, 0.0
        %v5960 = vmax.f32 %v5888, 0.0
        %v5961 = vmax.f32 %v5889, 0.0
        %v5962 = vmax.f32 %v5890, 0.0
        %v5963 = vmax.f32 %v5891, 0.0
        %v5964 = vmax.f32 %v5892, 0.0
        %v5965 = vmax.f32 %v5893, 0.0
        %v5966 = vmax.f32 %v5894, 0.0
        %v5967 = vmax.f32 %v5895, 0.0
        %v5968 = vmax.f32 %v5896, 0.0
        %v5969 = vmax.f32 %v5897, 0.0
        %v5970 = vmax.f32 %v5898, 0.0
        %v5971 = vmax.f32 %v5899, 0.0
        %v5972 = vmax.f32 %v5900, 0.0
        %v5973 = vmax.f32 %v5901, 0.0
        %v5974 = vmax.f32 %v5902, 0.0
        %v5975 = vmax.f32 %v5903, 0.0
        %v5976 = vmax.f32 %v5904, 0.0
        %v5977 = vmax.f32 %v5905, 0.0
        %v5978 = vmax.f32 %v5906, 0.0
        %v5979 = vmax.f32 %v5907, 0.0
        %v5980 = vmax.f32 %v5908, 0.0
        %v5981 = vmax.f32 %v5909, 0.0
        %v5982 = vmax.f32 %v5910, 0.0
        %v5983 = vmax.f32 %v5911, 0.0
        %v5984 = vmax.f32 %v5912, 0.0
        %v5985 = vmax.f32 %v5913, 0.0
        %v5986 = vmax.f32 %v5914, 0.0
        %v5987 = vmax.f32 %v5915, 0.0
        %v5988 = vmax.f32 %v5916, 0.0
        %v5989 = vmax.f32 %v5917, 0.0
        %v5990 = vmax.f32 %v5918, 0.0
        %v5991 = vmax.f32 %v5919, 0.0
        %v5992 = vmax.f32 %v5920, 0.0
        %v5993 = vmax.f32 %v5921, 0.0
        %v5994 = vmax.f32 %v5922, 0.0
        %v5995 = vmax.f32 %v5923, 0.0
        %v5996 = vmax.f32 %v5924, 0.0
        %v5997 = vmax.f32 %v5925, 0.0
        %v5998 = vmax.f32 %v5926, 0.0
        %v5999 = vmax.f32 %v5927, 0.0
        %v6000 = vmax.f32 %v5928, 0.0
        %v6001 = vmax.f32 %v5929, 0.0
        %v6002 = vmax.f32 %v5930, 0.0
        %v6003 = vmax.f32 %v5931, 0.0
        %v6004 = vmax.f32 %v5932, 0.0
        %v6005 = vmax.f32 %v5933, 0.0
        %v6006 = vmax.f32 %v5934, 0.0
        %v6007 = vmax.f32 %v5935, 0.0
        %v6008 = vmax.f32 %v5936, 0.0
        %v6009 = vmax.f32 %v5937, 0.0
        %v6010 = vmax.f32 %v5938, 0.0
        %v6011 = vmax.f32 %v5939, 0.0
        %v6012 = vmax.f32 %v5940, 0.0
        %v6013 = vmax.f32 %v5941, 0.0
        %v6014 = vmax.f32 %v5942, 0.0
        %v6015 = vmax.f32 %v5943, 0.0
        %v6016 = vmax.f32 %v5944, 0.0
        %v6017 = vmax.f32 %v5945, 0.0
        %v6018 = vmax.f32 %v5946, 0.0
        %v6019 = vmax.f32 %v5947, 0.0
        %v6020 = vmax.f32 %v5948, 0.0
        %v6021 = vpack.c.bf16 %v5953, %v5949
        %v6022 = vpack.c.bf16 %v5954, %v5950
        %v6023 = vpack.c.bf16 %v5955, %v5951
        %v6024 = vpack.c.bf16 %v5956, %v5952
        %v6025 = vpack.c.bf16 %v5961, %v5957
        %v6026 = vpack.c.bf16 %v5962, %v5958
        %v6027 = vpack.c.bf16 %v5963, %v5959
        %v6028 = vpack.c.bf16 %v5964, %v5960
        %v6029 = vpack.c.bf16 %v5969, %v5965
        %v6030 = vpack.c.bf16 %v5970, %v5966
        %v6031 = vpack.c.bf16 %v5971, %v5967
        %v6032 = vpack.c.bf16 %v5972, %v5968
        %v6033 = vpack.c.bf16 %v5977, %v5973
        %v6034 = vpack.c.bf16 %v5978, %v5974
        %v6035 = vpack.c.bf16 %v5979, %v5975
        %v6036 = vpack.c.bf16 %v5980, %v5976
        %v6037 = vpack.c.bf16 %v5985, %v5981
        %v6038 = vpack.c.bf16 %v5986, %v5982
        %v6039 = vpack.c.bf16 %v5987, %v5983
        %v6040 = vpack.c.bf16 %v5988, %v5984
        %v6041 = vpack.c.bf16 %v5993, %v5989
        %v6042 = vpack.c.bf16 %v5994, %v5990
        %v6043 = vpack.c.bf16 %v5995, %v5991
        %v6044 = vpack.c.bf16 %v5996, %v5992
        %v6045 = vpack.c.bf16 %v6001, %v5997
        %v6046 = vpack.c.bf16 %v6002, %v5998
        %v6047 = vpack.c.bf16 %v6003, %v5999
        %v6048 = vpack.c.bf16 %v6004, %v6000
        %v6049 = vpack.c.bf16 %v6009, %v6005
        %v6050 = vpack.c.bf16 %v6010, %v6006
        %v6051 = vpack.c.bf16 %v6011, %v6007
        %v6052 = vpack.c.bf16 %v6012, %v6008
        %v6053 = vpack.c.bf16 %v6017, %v6013
        %v6054 = vpack.c.bf16 %v6018, %v6014
        %v6055 = vpack.c.bf16 %v6019, %v6015
        %v6056 = vpack.c.bf16 %v6020, %v6016
        %v6057 = vld [vmem:[%s7] sm:$0xff]
        %v6058 = vld [vmem:[%s7 + $0x8] sm:$0xff]
        %v6059 = vld [vmem:[%s7 + $0x10] sm:$0xff]
        %v6060 = vld [vmem:[%s7 + $0x18] sm:$0xff]
        %v6061 = vld [vmem:[%s7 + $0x20] sm:$0xff]
        %v6062 = vld [vmem:[%s7 + $0x28] sm:$0xff]
        %v6063 = vld [vmem:[%s7 + $0x30] sm:$0xff]
        %v6064 = vld [vmem:[%s7 + $0x38] sm:$0xff]
        %v6065 = vld [vmem:[%s7 + $0x40] sm:$0xff]
        %v6066 = vld [vmem:[%s7 + $0x48] sm:$0xff]
        %v6067 = vld [vmem:[%s7 + $0x50] sm:$0xff]
        %v6068 = vld [vmem:[%s7 + $0x58] sm:$0xff]
        %v6069 = vld [vmem:[%s7 + $0x60] sm:$0xff]
        %v6070 = vld [vmem:[%s7 + $0x68] sm:$0xff]
        %v6071 = vld [vmem:[%s7 + $0x70] sm:$0xff]
        %v6072 = vld [vmem:[%s7 + $0x78] sm:$0xff]
        %v6073 = vld [vmem:[%s7 + $0x80] sm:$0xff]
        %v6074 = vld [vmem:[%s7 + $0x88] sm:$0xff]
        %v6075 = vld [vmem:[%s7 + $0x90] sm:$0xff]
        %v6076 = vld [vmem:[%s7 + $0x98] sm:$0xff]
        %v6077 = vld [vmem:[%s7 + $0xa0] sm:$0xff]
        %v6078 = vld [vmem:[%s7 + $0xa8] sm:$0xff]
        %v6079 = vld [vmem:[%s7 + $0xb0] sm:$0xff]
        %v6080 = vld [vmem:[%s7 + $0xb8] sm:$0xff]
        %v6081 = vld [vmem:[%s7 + $0xc0] sm:$0xff]
        %v6082 = vld [vmem:[%s7 + $0xc8] sm:$0xff]
        %v6083 = vld [vmem:[%s7 + $0xd0] sm:$0xff]
        %v6084 = vld [vmem:[%s7 + $0xd8] sm:$0xff]
        %v6085 = vld [vmem:[%s7 + $0xe0] sm:$0xff]
        %v6086 = vld [vmem:[%s7 + $0xe8] sm:$0xff]
        %v6087 = vld [vmem:[%s7 + $0xf0] sm:$0xff]
        %v6088 = vld [vmem:[%s7 + $0xf8] sm:$0xff]
        %v6089 = vld [vmem:[%s7 + $0x100] sm:$0xff]
        %v6090 = vld [vmem:[%s7 + $0x108] sm:$0xff]
        %v6091 = vld [vmem:[%s7 + $0x110] sm:$0xff]
        %v6092 = vld [vmem:[%s7 + $0x118] sm:$0xff]
        %v6093 = vld [vmem:[%s7 + $0x120] sm:$0xff]
        %v6094 = vld [vmem:[%s7 + $0x128] sm:$0xff]
        %v6095 = vld [vmem:[%s7 + $0x130] sm:$0xff]
        %v6096 = vld [vmem:[%s7 + $0x138] sm:$0xff]
        %v6097 = vld [vmem:[%s7 + $0x140] sm:$0xff]
        %v6098 = vld [vmem:[%s7 + $0x148] sm:$0xff]
        %v6099 = vld [vmem:[%s7 + $0x150] sm:$0xff]
        %v6100 = vld [vmem:[%s7 + $0x158] sm:$0xff]
        %v6101 = vld [vmem:[%s7 + $0x160] sm:$0xff]
        %v6102 = vld [vmem:[%s7 + $0x168] sm:$0xff]
        %v6103 = vld [vmem:[%s7 + $0x170] sm:$0xff]
        %v6104 = vld [vmem:[%s7 + $0x178] sm:$0xff]
        %v6105 = vld [vmem:[%s7 + $0x180] sm:$0xff]
        %v6106 = vld [vmem:[%s7 + $0x188] sm:$0xff]
        %v6107 = vld [vmem:[%s7 + $0x190] sm:$0xff]
        %v6108 = vld [vmem:[%s7 + $0x198] sm:$0xff]
        %v6109 = vld [vmem:[%s7 + $0x1a0] sm:$0xff]
        %v6110 = vld [vmem:[%s7 + $0x1a8] sm:$0xff]
        %v6111 = vld [vmem:[%s7 + $0x1b0] sm:$0xff]
        %v6112 = vld [vmem:[%s7 + $0x1b8] sm:$0xff]
        %v6113 = vld [vmem:[%s7 + $0x1c0] sm:$0xff]
        %v6114 = vld [vmem:[%s7 + $0x1c8] sm:$0xff]
        %v6115 = vld [vmem:[%s7 + $0x1d0] sm:$0xff]
        %v6116 = vld [vmem:[%s7 + $0x1d8] sm:$0xff]
        %v6117 = vld [vmem:[%s7 + $0x1e0] sm:$0xff]
        %v6118 = vld [vmem:[%s7 + $0x1e8] sm:$0xff]
        %v6119 = vld [vmem:[%s7 + $0x1f0] sm:$0xff]
        %v6120 = vld [vmem:[%s7 + $0x1f8] sm:$0xff]
        %v6185 = vunpack.c.l.b16 %v6057
        %v6186 = vunpack.c.h.b16 %v6057
        %v6187 = vunpack.c.l.b16 %v6058
        %v6188 = vunpack.c.h.b16 %v6058
        %v6189 = vunpack.c.l.b16 %v6059
        %v6190 = vunpack.c.h.b16 %v6059
        %v6191 = vunpack.c.l.b16 %v6060
        %v6192 = vunpack.c.h.b16 %v6060
        %v6193 = vunpack.c.l.b16 %v6061
        %v6194 = vunpack.c.h.b16 %v6061
        %v6195 = vunpack.c.l.b16 %v6062
        %v6196 = vunpack.c.h.b16 %v6062
        %v6197 = vunpack.c.l.b16 %v6063
        %v6198 = vunpack.c.h.b16 %v6063
        %v6199 = vunpack.c.l.b16 %v6064
        %v6200 = vunpack.c.h.b16 %v6064
        %v6201 = vunpack.c.l.b16 %v6065
        %v6202 = vunpack.c.h.b16 %v6065
        %v6203 = vunpack.c.l.b16 %v6066
        %v6204 = vunpack.c.h.b16 %v6066
        %v6205 = vunpack.c.l.b16 %v6067
        %v6206 = vunpack.c.h.b16 %v6067
        %v6207 = vunpack.c.l.b16 %v6068
        %v6208 = vunpack.c.h.b16 %v6068
        %v6209 = vunpack.c.l.b16 %v6069
        %v6210 = vunpack.c.h.b16 %v6069
        %v6211 = vunpack.c.l.b16 %v6070
        %v6212 = vunpack.c.h.b16 %v6070
        %v6213 = vunpack.c.l.b16 %v6071
        %v6214 = vunpack.c.h.b16 %v6071
        %v6215 = vunpack.c.l.b16 %v6072
        %v6216 = vunpack.c.h.b16 %v6072
        %v6217 = vunpack.c.l.b16 %v6073
        %v6218 = vunpack.c.h.b16 %v6073
        %v6219 = vunpack.c.l.b16 %v6074
        %v6220 = vunpack.c.h.b16 %v6074
        %v6221 = vunpack.c.l.b16 %v6075
        %v6222 = vunpack.c.h.b16 %v6075
        %v6223 = vunpack.c.l.b16 %v6076
        %v6224 = vunpack.c.h.b16 %v6076
        %v6225 = vunpack.c.l.b16 %v6077
        %v6226 = vunpack.c.h.b16 %v6077
        %v6227 = vunpack.c.l.b16 %v6078
        %v6228 = vunpack.c.h.b16 %v6078
        %v6229 = vunpack.c.l.b16 %v6079
        %v6230 = vunpack.c.h.b16 %v6079
        %v6231 = vunpack.c.l.b16 %v6080
        %v6232 = vunpack.c.h.b16 %v6080
        %v6233 = vunpack.c.l.b16 %v6081
        %v6234 = vunpack.c.h.b16 %v6081
        %v6235 = vunpack.c.l.b16 %v6082
        %v6236 = vunpack.c.h.b16 %v6082
        %v6237 = vunpack.c.l.b16 %v6083
        %v6238 = vunpack.c.h.b16 %v6083
        %v6239 = vunpack.c.l.b16 %v6084
        %v6240 = vunpack.c.h.b16 %v6084
        %v6241 = vunpack.c.l.b16 %v6085
        %v6242 = vunpack.c.h.b16 %v6085
        %v6243 = vunpack.c.l.b16 %v6086
        %v6244 = vunpack.c.h.b16 %v6086
        %v6245 = vunpack.c.l.b16 %v6087
        %v6246 = vunpack.c.h.b16 %v6087
        %v6247 = vunpack.c.l.b16 %v6088
        %v6248 = vunpack.c.h.b16 %v6088
        %v6249 = vunpack.c.l.b16 %v6089
        %v6250 = vunpack.c.h.b16 %v6089
        %v6251 = vunpack.c.l.b16 %v6090
        %v6252 = vunpack.c.h.b16 %v6090
        %v6253 = vunpack.c.l.b16 %v6091
        %v6254 = vunpack.c.h.b16 %v6091
        %v6255 = vunpack.c.l.b16 %v6092
        %v6256 = vunpack.c.h.b16 %v6092
        %v6257 = vunpack.c.l.b16 %v6093
        %v6258 = vunpack.c.h.b16 %v6093
        %v6259 = vunpack.c.l.b16 %v6094
        %v6260 = vunpack.c.h.b16 %v6094
        %v6261 = vunpack.c.l.b16 %v6095
        %v6262 = vunpack.c.h.b16 %v6095
        %v6263 = vunpack.c.l.b16 %v6096
        %v6264 = vunpack.c.h.b16 %v6096
        %v6265 = vunpack.c.l.b16 %v6097
        %v6266 = vunpack.c.h.b16 %v6097
        %v6267 = vunpack.c.l.b16 %v6098
        %v6268 = vunpack.c.h.b16 %v6098
        %v6269 = vunpack.c.l.b16 %v6099
        %v6270 = vunpack.c.h.b16 %v6099
        %v6271 = vunpack.c.l.b16 %v6100
        %v6272 = vunpack.c.h.b16 %v6100
        %v6273 = vunpack.c.l.b16 %v6101
        %v6274 = vunpack.c.h.b16 %v6101
        %v6275 = vunpack.c.l.b16 %v6102
        %v6276 = vunpack.c.h.b16 %v6102
        %v6277 = vunpack.c.l.b16 %v6103
        %v6278 = vunpack.c.h.b16 %v6103
        %v6279 = vunpack.c.l.b16 %v6104
        %v6280 = vunpack.c.h.b16 %v6104
        %v6281 = vunpack.c.l.b16 %v6105
        %v6282 = vunpack.c.h.b16 %v6105
        %v6283 = vunpack.c.l.b16 %v6106
        %v6284 = vunpack.c.h.b16 %v6106
        %v6285 = vunpack.c.l.b16 %v6107
        %v6286 = vunpack.c.h.b16 %v6107
        %v6287 = vunpack.c.l.b16 %v6108
        %v6288 = vunpack.c.h.b16 %v6108
        %v6289 = vunpack.c.l.b16 %v6109
        %v6290 = vunpack.c.h.b16 %v6109
        %v6291 = vunpack.c.l.b16 %v6110
        %v6292 = vunpack.c.h.b16 %v6110
        %v6293 = vunpack.c.l.b16 %v6111
        %v6294 = vunpack.c.h.b16 %v6111
        %v6295 = vunpack.c.l.b16 %v6112
        %v6296 = vunpack.c.h.b16 %v6112
        %v6297 = vunpack.c.l.b16 %v6113
        %v6298 = vunpack.c.h.b16 %v6113
        %v6299 = vunpack.c.l.b16 %v6114
        %v6300 = vunpack.c.h.b16 %v6114
        %v6301 = vunpack.c.l.b16 %v6115
        %v6302 = vunpack.c.h.b16 %v6115
        %v6303 = vunpack.c.l.b16 %v6116
        %v6304 = vunpack.c.h.b16 %v6116
        %v6305 = vunpack.c.l.b16 %v6117
        %v6306 = vunpack.c.h.b16 %v6117
        %v6307 = vunpack.c.l.b16 %v6118
        %v6308 = vunpack.c.h.b16 %v6118
        %v6309 = vunpack.c.l.b16 %v6119
        %v6310 = vunpack.c.h.b16 %v6119
        %v6311 = vunpack.c.l.b16 %v6120
        %v6312 = vunpack.c.h.b16 %v6120
        %v6313 = vpack.c.b16 %v6187, %v6185
        %v6314 = vpack.c.b16 %v6188, %v6186
        %v6315 = vpack.c.b16 %v6191, %v6189
        %v6316 = vpack.c.b16 %v6192, %v6190
        %v6317 = vpack.c.b16 %v6195, %v6193
        %v6318 = vpack.c.b16 %v6196, %v6194
        %v6319 = vpack.c.b16 %v6199, %v6197
        %v6320 = vpack.c.b16 %v6200, %v6198
        %v6321 = vpack.c.b16 %v6203, %v6201
        %v6322 = vpack.c.b16 %v6204, %v6202
        %v6323 = vpack.c.b16 %v6207, %v6205
        %v6324 = vpack.c.b16 %v6208, %v6206
        %v6325 = vpack.c.b16 %v6211, %v6209
        %v6326 = vpack.c.b16 %v6212, %v6210
        %v6327 = vpack.c.b16 %v6215, %v6213
        %v6328 = vpack.c.b16 %v6216, %v6214
        %v6329 = vpack.c.b16 %v6219, %v6217
        %v6330 = vpack.c.b16 %v6220, %v6218
        %v6331 = vpack.c.b16 %v6223, %v6221
        %v6332 = vpack.c.b16 %v6224, %v6222
        %v6333 = vpack.c.b16 %v6227, %v6225
        %v6334 = vpack.c.b16 %v6228, %v6226
        %v6335 = vpack.c.b16 %v6231, %v6229
        %v6336 = vpack.c.b16 %v6232, %v6230
        %v6337 = vpack.c.b16 %v6235, %v6233
        %v6338 = vpack.c.b16 %v6236, %v6234
        %v6339 = vpack.c.b16 %v6239, %v6237
        %v6340 = vpack.c.b16 %v6240, %v6238
        %v6341 = vpack.c.b16 %v6243, %v6241
        %v6342 = vpack.c.b16 %v6244, %v6242
        %v6343 = vpack.c.b16 %v6247, %v6245
        %v6344 = vpack.c.b16 %v6248, %v6246
        %v6345 = vpack.c.b16 %v6251, %v6249
        %v6346 = vpack.c.b16 %v6252, %v6250
        %v6347 = vpack.c.b16 %v6255, %v6253
        %v6348 = vpack.c.b16 %v6256, %v6254
        %v6349 = vpack.c.b16 %v6259, %v6257
        %v6350 = vpack.c.b16 %v6260, %v6258
        %v6351 = vpack.c.b16 %v6263, %v6261
        %v6352 = vpack.c.b16 %v6264, %v6262
        %v6353 = vpack.c.b16 %v6267, %v6265
        %v6354 = vpack.c.b16 %v6268, %v6266
        %v6355 = vpack.c.b16 %v6271, %v6269
        %v6356 = vpack.c.b16 %v6272, %v6270
        %v6357 = vpack.c.b16 %v6275, %v6273
        %v6358 = vpack.c.b16 %v6276, %v6274
        %v6359 = vpack.c.b16 %v6279, %v6277
        %v6360 = vpack.c.b16 %v6280, %v6278
        %v6361 = vpack.c.b16 %v6283, %v6281
        %v6362 = vpack.c.b16 %v6284, %v6282
        %v6363 = vpack.c.b16 %v6287, %v6285
        %v6364 = vpack.c.b16 %v6288, %v6286
        %v6365 = vpack.c.b16 %v6291, %v6289
        %v6366 = vpack.c.b16 %v6292, %v6290
        %v6367 = vpack.c.b16 %v6295, %v6293
        %v6368 = vpack.c.b16 %v6296, %v6294
        %v6369 = vpack.c.b16 %v6299, %v6297
        %v6370 = vpack.c.b16 %v6300, %v6298
        %v6371 = vpack.c.b16 %v6303, %v6301
        %v6372 = vpack.c.b16 %v6304, %v6302
        %v6373 = vpack.c.b16 %v6307, %v6305
        %v6374 = vpack.c.b16 %v6308, %v6306
        %v6375 = vpack.c.b16 %v6311, %v6309
        %v6376 = vpack.c.b16 %v6312, %v6310
        %6441 = vmatprep.subr.bf16.mxu0 %v6314
        %6442 = vmatpush1.bf16.msra.mxu0 %v6313
        %6443 = vmatprep.subr.bf16.mxu0 %v6316
        %6444 = vmatpush1.bf16.msra.mxu0 %v6315
        %6445 = vmatprep.subr.bf16.mxu0 %v6318
        %6446 = vmatpush1.bf16.msra.mxu0 %v6317
        %6447 = vmatprep.subr.bf16.mxu0 %v6320
        %6448 = vmatpush1.bf16.msra.mxu0 %v6319
        %6449 = vmatprep.subr.bf16.mxu0 %v6322
        %6450 = vmatpush1.bf16.msra.mxu0 %v6321
        %6451 = vmatprep.subr.bf16.mxu0 %v6324
        %6452 = vmatpush1.bf16.msra.mxu0 %v6323
        %6453 = vmatprep.subr.bf16.mxu0 %v6326
        %6454 = vmatpush1.bf16.msra.mxu0 %v6325
        %6455 = vmatprep.subr.bf16.mxu0 %v6328
        %6456 = vmatpush1.bf16.msra.mxu0 %v6327
        %6457 = vmatprep.subr.bf16.mxu0 %v6330
        %6458 = vmatpush1.bf16.msra.mxu0 %v6329
        %6459 = vmatprep.subr.bf16.mxu0 %v6332
        %6460 = vmatpush1.bf16.msra.mxu0 %v6331
        %6461 = vmatprep.subr.bf16.mxu0 %v6334
        %6462 = vmatpush1.bf16.msra.mxu0 %v6333
        %6463 = vmatprep.subr.bf16.mxu0 %v6336
        %6464 = vmatpush1.bf16.msra.mxu0 %v6335
        %6465 = vmatprep.subr.bf16.mxu0 %v6338
        %6466 = vmatpush1.bf16.msra.mxu0 %v6337
        %6467 = vmatprep.subr.bf16.mxu0 %v6340
        %6468 = vmatpush1.bf16.msra.mxu0 %v6339
        %6469 = vmatprep.subr.bf16.mxu0 %v6342
        %6470 = vmatpush1.bf16.msra.mxu0 %v6341
        %6471 = vmatprep.subr.bf16.mxu0 %v6344
        %6472 = vmatpush1.bf16.msra.mxu0 %v6343
        %6473 = vmatprep.mubr.bf16.mxu0 %v6022
        %6474 = vmatmul.mubr.bf16.gmra.mrb[0].mxu0 %v6021
        %v6475 = vpop.f32.mrb[0].mxu0
        %v6476 = vadd.f32 0.0, %v6475
        %v6477 = vpop.f32.mrb[0].mxu0
        %v6478 = vadd.f32 0.0, %v6477
        %v6479 = vpop.f32.mrb[0].mxu0
        %v6480 = vadd.f32 0.0, %v6479
        %v6481 = vpop.f32.mrb[0].mxu0
        %v6482 = vadd.f32 0.0, %v6481
        %6483 = vmatprep.mubr.bf16.mxu0 %v6026
        %6484 = vmatmul.mubr.bf16.gmra.mrb[0].mxu0 %v6025
        %v6485 = vpop.f32.mrb[0].mxu0
        %v6486 = vadd.f32 0.0, %v6485
        %v6487 = vpop.f32.mrb[0].mxu0
        %v6488 = vadd.f32 0.0, %v6487
        %v6489 = vpop.f32.mrb[0].mxu0
        %v6490 = vadd.f32 0.0, %v6489
        %v6491 = vpop.f32.mrb[0].mxu0
        %v6492 = vadd.f32 0.0, %v6491
        %6493 = vmatprep.mubr.bf16.mxu0 %v6030
        %6494 = vmatmul.mubr.bf16.gmra.mrb[0].mxu0 %v6029
        %v6495 = vpop.f32.mrb[0].mxu0
        %v6496 = vadd.f32 0.0, %v6495
        %v6497 = vpop.f32.mrb[0].mxu0
        %v6498 = vadd.f32 0.0, %v6497
        %v6499 = vpop.f32.mrb[0].mxu0
        %v6500 = vadd.f32 0.0, %v6499
        %v6501 = vpop.f32.mrb[0].mxu0
        %v6502 = vadd.f32 0.0, %v6501
        %6503 = vmatprep.mubr.bf16.mxu0 %v6034
        %6504 = vmatmul.mubr.bf16.gmra.mrb[0].mxu0 %v6033
        %v6505 = vpop.f32.mrb[0].mxu0
        %v6506 = vadd.f32 0.0, %v6505
        %v6507 = vpop.f32.mrb[0].mxu0
        %v6508 = vadd.f32 0.0, %v6507
        %v6509 = vpop.f32.mrb[0].mxu0
        %v6510 = vadd.f32 0.0, %v6509
        %v6511 = vpop.f32.mrb[0].mxu0
        %v6512 = vadd.f32 0.0, %v6511
        %6513 = vmatprep.mubr.bf16.mxu0 %v6038
        %6514 = vmatmul.mubr.bf16.gmra.mrb[0].mxu0 %v6037
        %v6515 = vpop.f32.mrb[0].mxu0
        %v6516 = vadd.f32 0.0, %v6515
        %v6517 = vpop.f32.mrb[0].mxu0
        %v6518 = vadd.f32 0.0, %v6517
        %v6519 = vpop.f32.mrb[0].mxu0
        %v6520 = vadd.f32 0.0, %v6519
        %v6521 = vpop.f32.mrb[0].mxu0
        %v6522 = vadd.f32 0.0, %v6521
        %6523 = vmatprep.mubr.bf16.mxu0 %v6042
        %6524 = vmatmul.mubr.bf16.gmra.mrb[0].mxu0 %v6041
        %v6525 = vpop.f32.mrb[0].mxu0
        %v6526 = vadd.f32 0.0, %v6525
        %v6527 = vpop.f32.mrb[0].mxu0
        %v6528 = vadd.f32 0.0, %v6527
        %v6529 = vpop.f32.mrb[0].mxu0
        %v6530 = vadd.f32 0.0, %v6529
        %v6531 = vpop.f32.mrb[0].mxu0
        %v6532 = vadd.f32 0.0, %v6531
        %6533 = vmatprep.mubr.bf16.mxu0 %v6046
        %6534 = vmatmul.mubr.bf16.gmra.mrb[0].mxu0 %v6045
        %v6535 = vpop.f32.mrb[0].mxu0
        %v6536 = vadd.f32 0.0, %v6535
        %v6537 = vpop.f32.mrb[0].mxu0
        %v6538 = vadd.f32 0.0, %v6537
        %v6539 = vpop.f32.mrb[0].mxu0
        %v6540 = vadd.f32 0.0, %v6539
        %v6541 = vpop.f32.mrb[0].mxu0
        %v6542 = vadd.f32 0.0, %v6541
        %6543 = vmatprep.mubr.bf16.mxu0 %v6050
        %6544 = vmatmul.mubr.bf16.gmra.mrb[0].mxu0 %v6049
        %v6545 = vpop.f32.mrb[0].mxu0
        %v6546 = vadd.f32 0.0, %v6545
        %v6547 = vpop.f32.mrb[0].mxu0
        %v6548 = vadd.f32 0.0, %v6547
        %v6549 = vpop.f32.mrb[0].mxu0
        %v6550 = vadd.f32 0.0, %v6549
        %v6551 = vpop.f32.mrb[0].mxu0
        %v6552 = vadd.f32 0.0, %v6551
        %6553 = vmatprep.mubr.bf16.mxu0 %v6054
        %6554 = vmatmul.mubr.bf16.gmra.mrb[0].mxu0 %v6053
        %v6555 = vpop.f32.mrb[0].mxu0
        %v6556 = vadd.f32 0.0, %v6555
        %v6557 = vpop.f32.mrb[0].mxu0
        %v6558 = vadd.f32 0.0, %v6557
        %v6559 = vpop.f32.mrb[0].mxu0
        %v6560 = vadd.f32 0.0, %v6559
        %v6561 = vpop.f32.mrb[0].mxu0
        %v6562 = vadd.f32 0.0, %v6561
        %6563 = vdwg.mxu0
        %6564 = vmatprep.subr.bf16.mxu0 %v6346
        %6565 = vmatpush1.bf16.msra.mxu0 %v6345
        %6566 = vmatprep.subr.bf16.mxu0 %v6348
        %6567 = vmatpush1.bf16.msra.mxu0 %v6347
        %6568 = vmatprep.subr.bf16.mxu0 %v6350
        %6569 = vmatpush1.bf16.msra.mxu0 %v6349
        %6570 = vmatprep.subr.bf16.mxu0 %v6352
        %6571 = vmatpush1.bf16.msra.mxu0 %v6351
        %6572 = vmatprep.subr.bf16.mxu0 %v6354
        %6573 = vmatpush1.bf16.msra.mxu0 %v6353
        %6574 = vmatprep.subr.bf16.mxu0 %v6356
        %6575 = vmatpush1.bf16.msra.mxu0 %v6355
        %6576 = vmatprep.subr.bf16.mxu0 %v6358
        %6577 = vmatpush1.bf16.msra.mxu0 %v6357
        %6578 = vmatprep.subr.bf16.mxu0 %v6360
        %6579 = vmatpush1.bf16.msra.mxu0 %v6359
        %6580 = vmatprep.subr.bf16.mxu0 %v6362
        %6581 = vmatpush1.bf16.msra.mxu0 %v6361
        %6582 = vmatprep.subr.bf16.mxu0 %v6364
        %6583 = vmatpush1.bf16.msra.mxu0 %v6363
        %6584 = vmatprep.subr.bf16.mxu0 %v6366
        %6585 = vmatpush1.bf16.msra.mxu0 %v6365
        %6586 = vmatprep.subr.bf16.mxu0 %v6368
        %6587 = vmatpush1.bf16.msra.mxu0 %v6367
        %6588 = vmatprep.subr.bf16.mxu0 %v6370
        %6589 = vmatpush1.bf16.msra.mxu0 %v6369
        %6590 = vmatprep.subr.bf16.mxu0 %v6372
        %6591 = vmatpush1.bf16.msra.mxu0 %v6371
        %6592 = vmatprep.subr.bf16.mxu0 %v6374
        %6593 = vmatpush1.bf16.msra.mxu0 %v6373
        %6594 = vmatprep.subr.bf16.mxu0 %v6376
        %6595 = vmatpush1.bf16.msra.mxu0 %v6375
        %6596 = vmatprep.mubr.bf16.mxu0 %v6024
        %6597 = vmatmul.mubr.bf16.gmra.mrb[0].mxu0 %v6023
        %v6598 = vpop.f32.mrb[0].mxu0
        %v6599 = vadd.f32 %v6476, %v6598
        %v6600 = vpop.f32.mrb[0].mxu0
        %v6601 = vadd.f32 %v6478, %v6600
        %v6602 = vpop.f32.mrb[0].mxu0
        %v6603 = vadd.f32 %v6480, %v6602
        %v6604 = vpop.f32.mrb[0].mxu0
        %v6605 = vadd.f32 %v6482, %v6604
        %6606 = vmatprep.mubr.bf16.mxu0 %v6028
        %6607 = vmatmul.mubr.bf16.gmra.mrb[0].mxu0 %v6027
        %v6608 = vpop.f32.mrb[0].mxu0
        %v6609 = vadd.f32 %v6486, %v6608
        %v6610 = vpop.f32.mrb[0].mxu0
        %v6611 = vadd.f32 %v6488, %v6610
        %v6612 = vpop.f32.mrb[0].mxu0
        %v6613 = vadd.f32 %v6490, %v6612
        %v6614 = vpop.f32.mrb[0].mxu0
        %v6615 = vadd.f32 %v6492, %v6614
        %6616 = vmatprep.mubr.bf16.mxu0 %v6032
        %6617 = vmatmul.mubr.bf16.gmra.mrb[0].mxu0 %v6031
        %v6618 = vpop.f32.mrb[0].mxu0
        %v6619 = vadd.f32 %v6496, %v6618
        %v6620 = vpop.f32.mrb[0].mxu0
        %v6621 = vadd.f32 %v6498, %v6620
        %v6622 = vpop.f32.mrb[0].mxu0
        %v6623 = vadd.f32 %v6500, %v6622
        %v6624 = vpop.f32.mrb[0].mxu0
        %v6625 = vadd.f32 %v6502, %v6624
        %6626 = vmatprep.mubr.bf16.mxu0 %v6036
        %6627 = vmatmul.mubr.bf16.gmra.mrb[0].mxu0 %v6035
        %v6628 = vpop.f32.mrb[0].mxu0
        %v6629 = vadd.f32 %v6506, %v6628
        %v6630 = vpop.f32.mrb[0].mxu0
        %v6631 = vadd.f32 %v6508, %v6630
        %v6632 = vpop.f32.mrb[0].mxu0
        %v6633 = vadd.f32 %v6510, %v6632
        %v6634 = vpop.f32.mrb[0].mxu0
        %v6635 = vadd.f32 %v6512, %v6634
        %6636 = vmatprep.mubr.bf16.mxu0 %v6040
        %6637 = vmatmul.mubr.bf16.gmra.mrb[0].mxu0 %v6039
        %v6638 = vpop.f32.mrb[0].mxu0
        %v6639 = vadd.f32 %v6516, %v6638
        %v6640 = vpop.f32.mrb[0].mxu0
        %v6641 = vadd.f32 %v6518, %v6640
        %v6642 = vpop.f32.mrb[0].mxu0
        %v6643 = vadd.f32 %v6520, %v6642
        %v6644 = vpop.f32.mrb[0].mxu0
        %v6645 = vadd.f32 %v6522, %v6644
        %6646 = vmatprep.mubr.bf16.mxu0 %v6044
        %6647 = vmatmul.mubr.bf16.gmra.mrb[0].mxu0 %v6043
        %v6648 = vpop.f32.mrb[0].mxu0
        %v6649 = vadd.f32 %v6526, %v6648
        %v6650 = vpop.f32.mrb[0].mxu0
        %v6651 = vadd.f32 %v6528, %v6650
        %v6652 = vpop.f32.mrb[0].mxu0
        %v6653 = vadd.f32 %v6530, %v6652
        %v6654 = vpop.f32.mrb[0].mxu0
        %v6655 = vadd.f32 %v6532, %v6654
        %6656 = vmatprep.mubr.bf16.mxu0 %v6048
        %6657 = vmatmul.mubr.bf16.gmra.mrb[0].mxu0 %v6047
        %v6658 = vpop.f32.mrb[0].mxu0
        %v6659 = vadd.f32 %v6536, %v6658
        %v6660 = vpop.f32.mrb[0].mxu0
        %v6661 = vadd.f32 %v6538, %v6660
        %v6662 = vpop.f32.mrb[0].mxu0
        %v6663 = vadd.f32 %v6540, %v6662
        %v6664 = vpop.f32.mrb[0].mxu0
        %v6665 = vadd.f32 %v6542, %v6664
        %6666 = vmatprep.mubr.bf16.mxu0 %v6052
        %6667 = vmatmul.mubr.bf16.gmra.mrb[0].mxu0 %v6051
        %v6668 = vpop.f32.mrb[0].mxu0
        %v6669 = vadd.f32 %v6546, %v6668
        %v6670 = vpop.f32.mrb[0].mxu0
        %v6671 = vadd.f32 %v6548, %v6670
        %v6672 = vpop.f32.mrb[0].mxu0
        %v6673 = vadd.f32 %v6550, %v6672
        %v6674 = vpop.f32.mrb[0].mxu0
        %v6675 = vadd.f32 %v6552, %v6674
        %6676 = vmatprep.mubr.bf16.mxu0 %v6056
        %6677 = vmatmul.mubr.bf16.gmra.mrb[0].mxu0 %v6055
        %v6678 = vpop.f32.mrb[0].mxu0
        %v6679 = vadd.f32 %v6556, %v6678
        %v6680 = vpop.f32.mrb[0].mxu0
        %v6681 = vadd.f32 %v6558, %v6680
        %v6682 = vpop.f32.mrb[0].mxu0
        %v6683 = vadd.f32 %v6560, %v6682
        %v6684 = vpop.f32.mrb[0].mxu0
        %v6685 = vadd.f32 %v6562, %v6684
        %6686 = vdwg.mxu0
        %v6687 = vld [vmem:[#allocation10] sm:$0xff]
        %v6688 = vld [vmem:[#allocation10 + $0x8] sm:$0xff]
        %v6689 = vld [vmem:[#allocation10 + $0x10] sm:$0xff]
        %v6690 = vld [vmem:[#allocation10 + $0x18] sm:$0xff]
        %v6691 = vld [vmem:[#allocation10 + $0x20] sm:$0xff]
        %v6692 = vld [vmem:[#allocation10 + $0x28] sm:$0xff]
        %v6693 = vld [vmem:[#allocation10 + $0x30] sm:$0xff]
        %v6694 = vld [vmem:[#allocation10 + $0x38] sm:$0xff]
        %v6695 = vld [vmem:[#allocation10 + $0x40] sm:$0xff]
        %v6696 = vld [vmem:[#allocation10 + $0x48] sm:$0xff]
        %v6697 = vld [vmem:[#allocation10 + $0x50] sm:$0xff]
        %v6698 = vld [vmem:[#allocation10 + $0x58] sm:$0xff]
        %v6699 = vld [vmem:[#allocation10 + $0x60] sm:$0xff]
        %v6700 = vld [vmem:[#allocation10 + $0x68] sm:$0xff]
        %v6701 = vld [vmem:[#allocation10 + $0x70] sm:$0xff]
        %v6702 = vld [vmem:[#allocation10 + $0x78] sm:$0xff]
        %v6703 = vld [vmem:[#allocation10 + $0x80] sm:$0xff]
        %v6704 = vld [vmem:[#allocation10 + $0x88] sm:$0xff]
        %v6705 = vld [vmem:[#allocation10 + $0x90] sm:$0xff]
        %v6706 = vld [vmem:[#allocation10 + $0x98] sm:$0xff]
        %v6707 = vld [vmem:[#allocation10 + $0xa0] sm:$0xff]
        %v6708 = vld [vmem:[#allocation10 + $0xa8] sm:$0xff]
        %v6709 = vld [vmem:[#allocation10 + $0xb0] sm:$0xff]
        %v6710 = vld [vmem:[#allocation10 + $0xb8] sm:$0xff]
        %v6711 = vld [vmem:[#allocation10 + $0xc0] sm:$0xff]
        %v6712 = vld [vmem:[#allocation10 + $0xc8] sm:$0xff]
        %v6713 = vld [vmem:[#allocation10 + $0xd0] sm:$0xff]
        %v6714 = vld [vmem:[#allocation10 + $0xd8] sm:$0xff]
        %v6715 = vld [vmem:[#allocation10 + $0xe0] sm:$0xff]
        %v6716 = vld [vmem:[#allocation10 + $0xe8] sm:$0xff]
        %v6717 = vld [vmem:[#allocation10 + $0xf0] sm:$0xff]
        %v6718 = vld [vmem:[#allocation10 + $0xf8] sm:$0xff]
        %v6719 = vld [vmem:[#allocation10 + $0x100] sm:$0xff]
        %v6720 = vld [vmem:[#allocation10 + $0x108] sm:$0xff]
        %v6721 = vld [vmem:[#allocation10 + $0x110] sm:$0xff]
        %v6722 = vld [vmem:[#allocation10 + $0x118] sm:$0xff]
        %v6723 = vld [vmem:[#allocation10 + $0x120] sm:$0xff]
        %v6724 = vld [vmem:[#allocation10 + $0x128] sm:$0xff]
        %v6725 = vld [vmem:[#allocation10 + $0x130] sm:$0xff]
        %v6726 = vld [vmem:[#allocation10 + $0x138] sm:$0xff]
        %v6727 = vld [vmem:[#allocation10 + $0x140] sm:$0xff]
        %v6728 = vld [vmem:[#allocation10 + $0x148] sm:$0xff]
        %v6729 = vld [vmem:[#allocation10 + $0x150] sm:$0xff]
        %v6730 = vld [vmem:[#allocation10 + $0x158] sm:$0xff]
        %v6731 = vld [vmem:[#allocation10 + $0x160] sm:$0xff]
        %v6732 = vld [vmem:[#allocation10 + $0x168] sm:$0xff]
        %v6733 = vld [vmem:[#allocation10 + $0x170] sm:$0xff]
        %v6734 = vld [vmem:[#allocation10 + $0x178] sm:$0xff]
        %v6735 = vld [vmem:[#allocation10 + $0x180] sm:$0xff]
        %v6736 = vld [vmem:[#allocation10 + $0x188] sm:$0xff]
        %v6737 = vld [vmem:[#allocation10 + $0x190] sm:$0xff]
        %v6738 = vld [vmem:[#allocation10 + $0x198] sm:$0xff]
        %v6739 = vld [vmem:[#allocation10 + $0x1a0] sm:$0xff]
        %v6740 = vld [vmem:[#allocation10 + $0x1a8] sm:$0xff]
        %v6741 = vld [vmem:[#allocation10 + $0x1b0] sm:$0xff]
        %v6742 = vld [vmem:[#allocation10 + $0x1b8] sm:$0xff]
        %v6743 = vld [vmem:[#allocation10 + $0x1c0] sm:$0xff]
        %v6744 = vld [vmem:[#allocation10 + $0x1c8] sm:$0xff]
        %v6745 = vld [vmem:[#allocation10 + $0x1d0] sm:$0xff]
        %v6746 = vld [vmem:[#allocation10 + $0x1d8] sm:$0xff]
        %v6747 = vld [vmem:[#allocation10 + $0x1e0] sm:$0xff]
        %v6748 = vld [vmem:[#allocation10 + $0x1e8] sm:$0xff]
        %v6749 = vld [vmem:[#allocation10 + $0x1f0] sm:$0xff]
        %v6750 = vld [vmem:[#allocation10 + $0x1f8] sm:$0xff]
        %v6815 = vunpack.c.l.b16 %v6687
        %v6816 = vunpack.c.h.b16 %v6687
        %v6817 = vunpack.c.l.b16 %v6688
        %v6818 = vunpack.c.h.b16 %v6688
        %v6819 = vunpack.c.l.b16 %v6689
        %v6820 = vunpack.c.h.b16 %v6689
        %v6821 = vunpack.c.l.b16 %v6690
        %v6822 = vunpack.c.h.b16 %v6690
        %v6823 = vunpack.c.l.b16 %v6691
        %v6824 = vunpack.c.h.b16 %v6691
        %v6825 = vunpack.c.l.b16 %v6692
        %v6826 = vunpack.c.h.b16 %v6692
        %v6827 = vunpack.c.l.b16 %v6693
        %v6828 = vunpack.c.h.b16 %v6693
        %v6829 = vunpack.c.l.b16 %v6694
        %v6830 = vunpack.c.h.b16 %v6694
        %v6831 = vunpack.c.l.b16 %v6695
        %v6832 = vunpack.c.h.b16 %v6695
        %v6833 = vunpack.c.l.b16 %v6696
        %v6834 = vunpack.c.h.b16 %v6696
        %v6835 = vunpack.c.l.b16 %v6697
        %v6836 = vunpack.c.h.b16 %v6697
        %v6837 = vunpack.c.l.b16 %v6698
        %v6838 = vunpack.c.h.b16 %v6698
        %v6839 = vunpack.c.l.b16 %v6699
        %v6840 = vunpack.c.h.b16 %v6699
        %v6841 = vunpack.c.l.b16 %v6700
        %v6842 = vunpack.c.h.b16 %v6700
        %v6843 = vunpack.c.l.b16 %v6701
        %v6844 = vunpack.c.h.b16 %v6701
        %v6845 = vunpack.c.l.b16 %v6702
        %v6846 = vunpack.c.h.b16 %v6702
        %v6847 = vunpack.c.l.b16 %v6703
        %v6848 = vunpack.c.h.b16 %v6703
        %v6849 = vunpack.c.l.b16 %v6704
        %v6850 = vunpack.c.h.b16 %v6704
        %v6851 = vunpack.c.l.b16 %v6705
        %v6852 = vunpack.c.h.b16 %v6705
        %v6853 = vunpack.c.l.b16 %v6706
        %v6854 = vunpack.c.h.b16 %v6706
        %v6855 = vunpack.c.l.b16 %v6707
        %v6856 = vunpack.c.h.b16 %v6707
        %v6857 = vunpack.c.l.b16 %v6708
        %v6858 = vunpack.c.h.b16 %v6708
        %v6859 = vunpack.c.l.b16 %v6709
        %v6860 = vunpack.c.h.b16 %v6709
        %v6861 = vunpack.c.l.b16 %v6710
        %v6862 = vunpack.c.h.b16 %v6710
        %v6863 = vunpack.c.l.b16 %v6711
        %v6864 = vunpack.c.h.b16 %v6711
        %v6865 = vunpack.c.l.b16 %v6712
        %v6866 = vunpack.c.h.b16 %v6712
        %v6867 = vunpack.c.l.b16 %v6713
        %v6868 = vunpack.c.h.b16 %v6713
        %v6869 = vunpack.c.l.b16 %v6714
        %v6870 = vunpack.c.h.b16 %v6714
        %v6871 = vunpack.c.l.b16 %v6715
        %v6872 = vunpack.c.h.b16 %v6715
        %v6873 = vunpack.c.l.b16 %v6716
        %v6874 = vunpack.c.h.b16 %v6716
        %v6875 = vunpack.c.l.b16 %v6717
        %v6876 = vunpack.c.h.b16 %v6717
        %v6877 = vunpack.c.l.b16 %v6718
        %v6878 = vunpack.c.h.b16 %v6718
        %v6879 = vunpack.c.l.b16 %v6719
        %v6880 = vunpack.c.h.b16 %v6719
        %v6881 = vunpack.c.l.b16 %v6720
        %v6882 = vunpack.c.h.b16 %v6720
        %v6883 = vunpack.c.l.b16 %v6721
        %v6884 = vunpack.c.h.b16 %v6721
        %v6885 = vunpack.c.l.b16 %v6722
        %v6886 = vunpack.c.h.b16 %v6722
        %v6887 = vunpack.c.l.b16 %v6723
        %v6888 = vunpack.c.h.b16 %v6723
        %v6889 = vunpack.c.l.b16 %v6724
        %v6890 = vunpack.c.h.b16 %v6724
        %v6891 = vunpack.c.l.b16 %v6725
        %v6892 = vunpack.c.h.b16 %v6725
        %v6893 = vunpack.c.l.b16 %v6726
        %v6894 = vunpack.c.h.b16 %v6726
        %v6895 = vunpack.c.l.b16 %v6727
        %v6896 = vunpack.c.h.b16 %v6727
        %v6897 = vunpack.c.l.b16 %v6728
        %v6898 = vunpack.c.h.b16 %v6728
        %v6899 = vunpack.c.l.b16 %v6729
        %v6900 = vunpack.c.h.b16 %v6729
        %v6901 = vunpack.c.l.b16 %v6730
        %v6902 = vunpack.c.h.b16 %v6730
        %v6903 = vunpack.c.l.b16 %v6731
        %v6904 = vunpack.c.h.b16 %v6731
        %v6905 = vunpack.c.l.b16 %v6732
        %v6906 = vunpack.c.h.b16 %v6732
        %v6907 = vunpack.c.l.b16 %v6733
        %v6908 = vunpack.c.h.b16 %v6733
        %v6909 = vunpack.c.l.b16 %v6734
        %v6910 = vunpack.c.h.b16 %v6734
        %v6911 = vunpack.c.l.b16 %v6735
        %v6912 = vunpack.c.h.b16 %v6735
        %v6913 = vunpack.c.l.b16 %v6736
        %v6914 = vunpack.c.h.b16 %v6736
        %v6915 = vunpack.c.l.b16 %v6737
        %v6916 = vunpack.c.h.b16 %v6737
        %v6917 = vunpack.c.l.b16 %v6738
        %v6918 = vunpack.c.h.b16 %v6738
        %v6919 = vunpack.c.l.b16 %v6739
        %v6920 = vunpack.c.h.b16 %v6739
        %v6921 = vunpack.c.l.b16 %v6740
        %v6922 = vunpack.c.h.b16 %v6740
        %v6923 = vunpack.c.l.b16 %v6741
        %v6924 = vunpack.c.h.b16 %v6741
        %v6925 = vunpack.c.l.b16 %v6742
        %v6926 = vunpack.c.h.b16 %v6742
        %v6927 = vunpack.c.l.b16 %v6743
        %v6928 = vunpack.c.h.b16 %v6743
        %v6929 = vunpack.c.l.b16 %v6744
        %v6930 = vunpack.c.h.b16 %v6744
        %v6931 = vunpack.c.l.b16 %v6745
        %v6932 = vunpack.c.h.b16 %v6745
        %v6933 = vunpack.c.l.b16 %v6746
        %v6934 = vunpack.c.h.b16 %v6746
        %v6935 = vunpack.c.l.b16 %v6747
        %v6936 = vunpack.c.h.b16 %v6747
        %v6937 = vunpack.c.l.b16 %v6748
        %v6938 = vunpack.c.h.b16 %v6748
        %v6939 = vunpack.c.l.b16 %v6749
        %v6940 = vunpack.c.h.b16 %v6749
        %v6941 = vunpack.c.l.b16 %v6750
        %v6942 = vunpack.c.h.b16 %v6750
        %v6943 = vpack.c.b16 %v6817, %v6815
        %v6944 = vpack.c.b16 %v6818, %v6816
        %v6945 = vpack.c.b16 %v6821, %v6819
        %v6946 = vpack.c.b16 %v6822, %v6820
        %v6947 = vpack.c.b16 %v6825, %v6823
        %v6948 = vpack.c.b16 %v6826, %v6824
        %v6949 = vpack.c.b16 %v6829, %v6827
        %v6950 = vpack.c.b16 %v6830, %v6828
        %v6951 = vpack.c.b16 %v6833, %v6831
        %v6952 = vpack.c.b16 %v6834, %v6832
        %v6953 = vpack.c.b16 %v6837, %v6835
        %v6954 = vpack.c.b16 %v6838, %v6836
        %v6955 = vpack.c.b16 %v6841, %v6839
        %v6956 = vpack.c.b16 %v6842, %v6840
        %v6957 = vpack.c.b16 %v6845, %v6843
        %v6958 = vpack.c.b16 %v6846, %v6844
        %v6959 = vpack.c.b16 %v6849, %v6847
        %v6960 = vpack.c.b16 %v6850, %v6848
        %v6961 = vpack.c.b16 %v6853, %v6851
        %v6962 = vpack.c.b16 %v6854, %v6852
        %v6963 = vpack.c.b16 %v6857, %v6855
        %v6964 = vpack.c.b16 %v6858, %v6856
        %v6965 = vpack.c.b16 %v6861, %v6859
        %v6966 = vpack.c.b16 %v6862, %v6860
        %v6967 = vpack.c.b16 %v6865, %v6863
        %v6968 = vpack.c.b16 %v6866, %v6864
        %v6969 = vpack.c.b16 %v6869, %v6867
        %v6970 = vpack.c.b16 %v6870, %v6868
        %v6971 = vpack.c.b16 %v6873, %v6871
        %v6972 = vpack.c.b16 %v6874, %v6872
        %v6973 = vpack.c.b16 %v6877, %v6875
        %v6974 = vpack.c.b16 %v6878, %v6876
        %v6975 = vpack.c.b16 %v6881, %v6879
        %v6976 = vpack.c.b16 %v6882, %v6880
        %v6977 = vpack.c.b16 %v6885, %v6883
        %v6978 = vpack.c.b16 %v6886, %v6884
        %v6979 = vpack.c.b16 %v6889, %v6887
        %v6980 = vpack.c.b16 %v6890, %v6888
        %v6981 = vpack.c.b16 %v6893, %v6891
        %v6982 = vpack.c.b16 %v6894, %v6892
        %v6983 = vpack.c.b16 %v6897, %v6895
        %v6984 = vpack.c.b16 %v6898, %v6896
        %v6985 = vpack.c.b16 %v6901, %v6899
        %v6986 = vpack.c.b16 %v6902, %v6900
        %v6987 = vpack.c.b16 %v6905, %v6903
        %v6988 = vpack.c.b16 %v6906, %v6904
        %v6989 = vpack.c.b16 %v6909, %v6907
        %v6990 = vpack.c.b16 %v6910, %v6908
        %v6991 = vpack.c.b16 %v6913, %v6911
        %v6992 = vpack.c.b16 %v6914, %v6912
        %v6993 = vpack.c.b16 %v6917, %v6915
        %v6994 = vpack.c.b16 %v6918, %v6916
        %v6995 = vpack.c.b16 %v6921, %v6919
        %v6996 = vpack.c.b16 %v6922, %v6920
        %v6997 = vpack.c.b16 %v6925, %v6923
        %v6998 = vpack.c.b16 %v6926, %v6924
        %v6999 = vpack.c.b16 %v6929, %v6927
        %v7000 = vpack.c.b16 %v6930, %v6928
        %v7001 = vpack.c.b16 %v6933, %v6931
        %v7002 = vpack.c.b16 %v6934, %v6932
        %v7003 = vpack.c.b16 %v6937, %v6935
        %v7004 = vpack.c.b16 %v6938, %v6936
        %v7005 = vpack.c.b16 %v6941, %v6939
        %v7006 = vpack.c.b16 %v6942, %v6940
        %7071 = vmatprep.subr.bf16.mxu0 %v6944
        %7072 = vmatpush1.bf16.msra.mxu0 %v6943
        %7073 = vmatprep.subr.bf16.mxu0 %v6946
        %7074 = vmatpush1.bf16.msra.mxu0 %v6945
        %7075 = vmatprep.subr.bf16.mxu0 %v6948
        %7076 = vmatpush1.bf16.msra.mxu0 %v6947
        %7077 = vmatprep.subr.bf16.mxu0 %v6950
        %7078 = vmatpush1.bf16.msra.mxu0 %v6949
        %7079 = vmatprep.subr.bf16.mxu0 %v6952
        %7080 = vmatpush1.bf16.msra.mxu0 %v6951
        %7081 = vmatprep.subr.bf16.mxu0 %v6954
        %7082 = vmatpush1.bf16.msra.mxu0 %v6953
        %7083 = vmatprep.subr.bf16.mxu0 %v6956
        %7084 = vmatpush1.bf16.msra.mxu0 %v6955
        %7085 = vmatprep.subr.bf16.mxu0 %v6958
        %7086 = vmatpush1.bf16.msra.mxu0 %v6957
        %7087 = vmatprep.subr.bf16.mxu0 %v6960
        %7088 = vmatpush1.bf16.msra.mxu0 %v6959
        %7089 = vmatprep.subr.bf16.mxu0 %v6962
        %7090 = vmatpush1.bf16.msra.mxu0 %v6961
        %7091 = vmatprep.subr.bf16.mxu0 %v6964
        %7092 = vmatpush1.bf16.msra.mxu0 %v6963
        %7093 = vmatprep.subr.bf16.mxu0 %v6966
        %7094 = vmatpush1.bf16.msra.mxu0 %v6965
        %7095 = vmatprep.subr.bf16.mxu0 %v6968
        %7096 = vmatpush1.bf16.msra.mxu0 %v6967
        %7097 = vmatprep.subr.bf16.mxu0 %v6970
        %7098 = vmatpush1.bf16.msra.mxu0 %v6969
        %7099 = vmatprep.subr.bf16.mxu0 %v6972
        %7100 = vmatpush1.bf16.msra.mxu0 %v6971
        %7101 = vmatprep.subr.bf16.mxu0 %v6974
        %7102 = vmatpush1.bf16.msra.mxu0 %v6973
        %7103 = vmatprep.mubr.bf16.mxu0 %v6022
        %7104 = vmatmul.mubr.bf16.gmra.mrb[0].mxu0 %v6021
        %v7105 = vpop.f32.mrb[0].mxu0
        %v7106 = vadd.f32 0.0, %v7105
        %v7107 = vpop.f32.mrb[0].mxu0
        %v7108 = vadd.f32 0.0, %v7107
        %v7109 = vpop.f32.mrb[0].mxu0
        %v7110 = vadd.f32 0.0, %v7109
        %v7111 = vpop.f32.mrb[0].mxu0
        %v7112 = vadd.f32 0.0, %v7111
        %7113 = vmatprep.mubr.bf16.mxu0 %v6026
        %7114 = vmatmul.mubr.bf16.gmra.mrb[0].mxu0 %v6025
        %v7115 = vpop.f32.mrb[0].mxu0
        %v7116 = vadd.f32 0.0, %v7115
        %v7117 = vpop.f32.mrb[0].mxu0
        %v7118 = vadd.f32 0.0, %v7117
        %v7119 = vpop.f32.mrb[0].mxu0
        %v7120 = vadd.f32 0.0, %v7119
        %v7121 = vpop.f32.mrb[0].mxu0
        %v7122 = vadd.f32 0.0, %v7121
        %7123 = vmatprep.mubr.bf16.mxu0 %v6030
        %7124 = vmatmul.mubr.bf16.gmra.mrb[0].mxu0 %v6029
        %v7125 = vpop.f32.mrb[0].mxu0
        %v7126 = vadd.f32 0.0, %v7125
        %v7127 = vpop.f32.mrb[0].mxu0
        %v7128 = vadd.f32 0.0, %v7127
        %v7129 = vpop.f32.mrb[0].mxu0
        %v7130 = vadd.f32 0.0, %v7129
        %v7131 = vpop.f32.mrb[0].mxu0
        %v7132 = vadd.f32 0.0, %v7131
        %7133 = vmatprep.mubr.bf16.mxu0 %v6034
        %7134 = vmatmul.mubr.bf16.gmra.mrb[0].mxu0 %v6033
        %v7135 = vpop.f32.mrb[0].mxu0
        %v7136 = vadd.f32 0.0, %v7135
        %v7137 = vpop.f32.mrb[0].mxu0
        %v7138 = vadd.f32 0.0, %v7137
        %v7139 = vpop.f32.mrb[0].mxu0
        %v7140 = vadd.f32 0.0, %v7139
        %v7141 = vpop.f32.mrb[0].mxu0
        %v7142 = vadd.f32 0.0, %v7141
        %7143 = vmatprep.mubr.bf16.mxu0 %v6038
        %7144 = vmatmul.mubr.bf16.gmra.mrb[0].mxu0 %v6037
        %v7145 = vpop.f32.mrb[0].mxu0
        %v7146 = vadd.f32 0.0, %v7145
        %v7147 = vpop.f32.mrb[0].mxu0
        %v7148 = vadd.f32 0.0, %v7147
        %v7149 = vpop.f32.mrb[0].mxu0
        %v7150 = vadd.f32 0.0, %v7149
        %v7151 = vpop.f32.mrb[0].mxu0
        %v7152 = vadd.f32 0.0, %v7151
        %7153 = vmatprep.mubr.bf16.mxu0 %v6042
        %7154 = vmatmul.mubr.bf16.gmra.mrb[0].mxu0 %v6041
        %v7155 = vpop.f32.mrb[0].mxu0
        %v7156 = vadd.f32 0.0, %v7155
        %v7157 = vpop.f32.mrb[0].mxu0
        %v7158 = vadd.f32 0.0, %v7157
        %v7159 = vpop.f32.mrb[0].mxu0
        %v7160 = vadd.f32 0.0, %v7159
        %v7161 = vpop.f32.mrb[0].mxu0
        %v7162 = vadd.f32 0.0, %v7161
        %7163 = vmatprep.mubr.bf16.mxu0 %v6046
        %7164 = vmatmul.mubr.bf16.gmra.mrb[0].mxu0 %v6045
        %v7165 = vpop.f32.mrb[0].mxu0
        %v7166 = vadd.f32 0.0, %v7165
        %v7167 = vpop.f32.mrb[0].mxu0
        %v7168 = vadd.f32 0.0, %v7167
        %v7169 = vpop.f32.mrb[0].mxu0
        %v7170 = vadd.f32 0.0, %v7169
        %v7171 = vpop.f32.mrb[0].mxu0
        %v7172 = vadd.f32 0.0, %v7171
        %7173 = vmatprep.mubr.bf16.mxu0 %v6050
        %7174 = vmatmul.mubr.bf16.gmra.mrb[0].mxu0 %v6049
        %v7175 = vpop.f32.mrb[0].mxu0
        %v7176 = vadd.f32 0.0, %v7175
        %v7177 = vpop.f32.mrb[0].mxu0
        %v7178 = vadd.f32 0.0, %v7177
        %v7179 = vpop.f32.mrb[0].mxu0
        %v7180 = vadd.f32 0.0, %v7179
        %v7181 = vpop.f32.mrb[0].mxu0
        %v7182 = vadd.f32 0.0, %v7181
        %7183 = vmatprep.mubr.bf16.mxu0 %v6054
        %7184 = vmatmul.mubr.bf16.gmra.mrb[0].mxu0 %v6053
        %v7185 = vpop.f32.mrb[0].mxu0
        %v7186 = vadd.f32 0.0, %v7185
        %v7187 = vpop.f32.mrb[0].mxu0
        %v7188 = vadd.f32 0.0, %v7187
        %v7189 = vpop.f32.mrb[0].mxu0
        %v7190 = vadd.f32 0.0, %v7189
        %v7191 = vpop.f32.mrb[0].mxu0
        %v7192 = vadd.f32 0.0, %v7191
        %7193 = vdwg.mxu0
        %7194 = vmatprep.subr.bf16.mxu0 %v6976
        %7195 = vmatpush1.bf16.msra.mxu0 %v6975
        %7196 = vmatprep.subr.bf16.mxu0 %v6978
        %7197 = vmatpush1.bf16.msra.mxu0 %v6977
        %7198 = vmatprep.subr.bf16.mxu0 %v6980
        %7199 = vmatpush1.bf16.msra.mxu0 %v6979
        %7200 = vmatprep.subr.bf16.mxu0 %v6982
        %7201 = vmatpush1.bf16.msra.mxu0 %v6981
        %7202 = vmatprep.subr.bf16.mxu0 %v6984
        %7203 = vmatpush1.bf16.msra.mxu0 %v6983
        %7204 = vmatprep.subr.bf16.mxu0 %v6986
        %7205 = vmatpush1.bf16.msra.mxu0 %v6985
        %7206 = vmatprep.subr.bf16.mxu0 %v6988
        %7207 = vmatpush1.bf16.msra.mxu0 %v6987
        %7208 = vmatprep.subr.bf16.mxu0 %v6990
        %7209 = vmatpush1.bf16.msra.mxu0 %v6989
        %7210 = vmatprep.subr.bf16.mxu0 %v6992
        %7211 = vmatpush1.bf16.msra.mxu0 %v6991
        %7212 = vmatprep.subr.bf16.mxu0 %v6994
        %7213 = vmatpush1.bf16.msra.mxu0 %v6993
        %7214 = vmatprep.subr.bf16.mxu0 %v6996
        %7215 = vmatpush1.bf16.msra.mxu0 %v6995
        %7216 = vmatprep.subr.bf16.mxu0 %v6998
        %7217 = vmatpush1.bf16.msra.mxu0 %v6997
        %7218 = vmatprep.subr.bf16.mxu0 %v7000
        %7219 = vmatpush1.bf16.msra.mxu0 %v6999
        %7220 = vmatprep.subr.bf16.mxu0 %v7002
        %7221 = vmatpush1.bf16.msra.mxu0 %v7001
        %7222 = vmatprep.subr.bf16.mxu0 %v7004
        %7223 = vmatpush1.bf16.msra.mxu0 %v7003
        %7224 = vmatprep.subr.bf16.mxu0 %v7006
        %7225 = vmatpush1.bf16.msra.mxu0 %v7005
        %7226 = vmatprep.mubr.bf16.mxu0 %v6024
        %7227 = vmatmul.mubr.bf16.gmra.mrb[0].mxu0 %v6023
        %v7228 = vpop.f32.mrb[0].mxu0
        %v7229 = vadd.f32 %v7106, %v7228
        %v7230 = vpop.f32.mrb[0].mxu0
        %v7231 = vadd.f32 %v7108, %v7230
        %v7232 = vpop.f32.mrb[0].mxu0
        %v7233 = vadd.f32 %v7110, %v7232
        %v7234 = vpop.f32.mrb[0].mxu0
        %v7235 = vadd.f32 %v7112, %v7234
        %7236 = vmatprep.mubr.bf16.mxu0 %v6028
        %7237 = vmatmul.mubr.bf16.gmra.mrb[0].mxu0 %v6027
        %v7238 = vpop.f32.mrb[0].mxu0
        %v7239 = vadd.f32 %v7116, %v7238
        %v7240 = vpop.f32.mrb[0].mxu0
        %v7241 = vadd.f32 %v7118, %v7240
        %v7242 = vpop.f32.mrb[0].mxu0
        %v7243 = vadd.f32 %v7120, %v7242
        %v7244 = vpop.f32.mrb[0].mxu0
        %v7245 = vadd.f32 %v7122, %v7244
        %7246 = vmatprep.mubr.bf16.mxu0 %v6032
        %7247 = vmatmul.mubr.bf16.gmra.mrb[0].mxu0 %v6031
        %v7248 = vpop.f32.mrb[0].mxu0
        %v7249 = vadd.f32 %v7126, %v7248
        %v7250 = vpop.f32.mrb[0].mxu0
        %v7251 = vadd.f32 %v7128, %v7250
        %v7252 = vpop.f32.mrb[0].mxu0
        %v7253 = vadd.f32 %v7130, %v7252
        %v7254 = vpop.f32.mrb[0].mxu0
        %v7255 = vadd.f32 %v7132, %v7254
        %7256 = vmatprep.mubr.bf16.mxu0 %v6036
        %7257 = vmatmul.mubr.bf16.gmra.mrb[0].mxu0 %v6035
        %v7258 = vpop.f32.mrb[0].mxu0
        %v7259 = vadd.f32 %v7136, %v7258
        %v7260 = vpop.f32.mrb[0].mxu0
        %v7261 = vadd.f32 %v7138, %v7260
        %v7262 = vpop.f32.mrb[0].mxu0
        %v7263 = vadd.f32 %v7140, %v7262
        %v7264 = vpop.f32.mrb[0].mxu0
        %v7265 = vadd.f32 %v7142, %v7264
        %7266 = vmatprep.mubr.bf16.mxu0 %v6040
        %7267 = vmatmul.mubr.bf16.gmra.mrb[0].mxu0 %v6039
        %v7268 = vpop.f32.mrb[0].mxu0
        %v7269 = vadd.f32 %v7146, %v7268
        %v7270 = vpop.f32.mrb[0].mxu0
        %v7271 = vadd.f32 %v7148, %v7270
        %v7272 = vpop.f32.mrb[0].mxu0
        %v7273 = vadd.f32 %v7150, %v7272
        %v7274 = vpop.f32.mrb[0].mxu0
        %v7275 = vadd.f32 %v7152, %v7274
        %7276 = vmatprep.mubr.bf16.mxu0 %v6044
        %7277 = vmatmul.mubr.bf16.gmra.mrb[0].mxu0 %v6043
        %v7278 = vpop.f32.mrb[0].mxu0
        %v7279 = vadd.f32 %v7156, %v7278
        %v7280 = vpop.f32.mrb[0].mxu0
        %v7281 = vadd.f32 %v7158, %v7280
        %v7282 = vpop.f32.mrb[0].mxu0
        %v7283 = vadd.f32 %v7160, %v7282
        %v7284 = vpop.f32.mrb[0].mxu0
        %v7285 = vadd.f32 %v7162, %v7284
        %7286 = vmatprep.mubr.bf16.mxu0 %v6048
        %7287 = vmatmul.mubr.bf16.gmra.mrb[0].mxu0 %v6047
        %v7288 = vpop.f32.mrb[0].mxu0
        %v7289 = vadd.f32 %v7166, %v7288
        %v7290 = vpop.f32.mrb[0].mxu0
        %v7291 = vadd.f32 %v7168, %v7290
        %v7292 = vpop.f32.mrb[0].mxu0
        %v7293 = vadd.f32 %v7170, %v7292
        %v7294 = vpop.f32.mrb[0].mxu0
        %v7295 = vadd.f32 %v7172, %v7294
        %7296 = vmatprep.mubr.bf16.mxu0 %v6052
        %7297 = vmatmul.mubr.bf16.gmra.mrb[0].mxu0 %v6051
        %v7298 = vpop.f32.mrb[0].mxu0
        %v7299 = vadd.f32 %v7176, %v7298
        %v7300 = vpop.f32.mrb[0].mxu0
        %v7301 = vadd.f32 %v7178, %v7300
        %v7302 = vpop.f32.mrb[0].mxu0
        %v7303 = vadd.f32 %v7180, %v7302
        %v7304 = vpop.f32.mrb[0].mxu0
        %v7305 = vadd.f32 %v7182, %v7304
        %7306 = vmatprep.mubr.bf16.mxu0 %v6056
        %7307 = vmatmul.mubr.bf16.gmra.mrb[0].mxu0 %v6055
        %v7308 = vpop.f32.mrb[0].mxu0
        %v7309 = vadd.f32 %v7186, %v7308
        %v7310 = vpop.f32.mrb[0].mxu0
        %v7311 = vadd.f32 %v7188, %v7310
        %v7312 = vpop.f32.mrb[0].mxu0
        %v7313 = vadd.f32 %v7190, %v7312
        %v7314 = vpop.f32.mrb[0].mxu0
        %v7315 = vadd.f32 %v7192, %v7314
        %7316 = vdwg.mxu0
        %v7317 = vmax.f32 %v6599, %v7229
        %v7318 = vmax.f32 %v6601, %v7231
        %v7319 = vmax.f32 %v6603, %v7233
        %v7320 = vmax.f32 %v6605, %v7235
        %v7321 = vmax.f32 %v6609, %v7239
        %v7322 = vmax.f32 %v6611, %v7241
        %v7323 = vmax.f32 %v6613, %v7243
        %v7324 = vmax.f32 %v6615, %v7245
        %v7325 = vmax.f32 %v6619, %v7249
        %v7326 = vmax.f32 %v6621, %v7251
        %v7327 = vmax.f32 %v6623, %v7253
        %v7328 = vmax.f32 %v6625, %v7255
        %v7329 = vmax.f32 %v6629, %v7259
        %v7330 = vmax.f32 %v6631, %v7261
        %v7331 = vmax.f32 %v6633, %v7263
        %v7332 = vmax.f32 %v6635, %v7265
        %v7333 = vmax.f32 %v6639, %v7269
        %v7334 = vmax.f32 %v6641, %v7271
        %v7335 = vmax.f32 %v6643, %v7273
        %v7336 = vmax.f32 %v6645, %v7275
        %v7337 = vmax.f32 %v6649, %v7279
        %v7338 = vmax.f32 %v6651, %v7281
        %v7339 = vmax.f32 %v6653, %v7283
        %v7340 = vmax.f32 %v6655, %v7285
        %v7341 = vmax.f32 %v6659, %v7289
        %v7342 = vmax.f32 %v6661, %v7291
        %v7343 = vmax.f32 %v6663, %v7293
        %v7344 = vmax.f32 %v6665, %v7295
        %v7345 = vmax.f32 %v6669, %v7299
        %v7346 = vmax.f32 %v6671, %v7301
        %v7347 = vmax.f32 %v6673, %v7303
        %v7348 = vmax.f32 %v6675, %v7305
        %v7349 = vmax.f32 %v6679, %v7309
        %v7350 = vmax.f32 %v6681, %v7311
        %v7351 = vmax.f32 %v6683, %v7313
        %v7352 = vmax.f32 %v6685, %v7315
        %v7353 = vpack.c.bf16 %v7319, %v7317
        %v7354 = vpack.c.bf16 %v7320, %v7318
        %v7355 = vpack.c.bf16 %v7323, %v7321
        %v7356 = vpack.c.bf16 %v7324, %v7322
        %v7357 = vpack.c.bf16 %v7327, %v7325
        %v7358 = vpack.c.bf16 %v7328, %v7326
        %v7359 = vpack.c.bf16 %v7331, %v7329
        %v7360 = vpack.c.bf16 %v7332, %v7330
        %v7361 = vpack.c.bf16 %v7335, %v7333
        %v7362 = vpack.c.bf16 %v7336, %v7334
        %v7363 = vpack.c.bf16 %v7339, %v7337
        %v7364 = vpack.c.bf16 %v7340, %v7338
        %v7365 = vpack.c.bf16 %v7343, %v7341
        %v7366 = vpack.c.bf16 %v7344, %v7342
        %v7367 = vpack.c.bf16 %v7347, %v7345
        %v7368 = vpack.c.bf16 %v7348, %v7346
        %v7369 = vpack.c.bf16 %v7351, %v7349
        %v7370 = vpack.c.bf16 %v7352, %v7350
        %v7371 = vld [vmem:[#allocation11] sm:$0xff]
        %v7372 = vld [vmem:[#allocation11 + $0x8] sm:$0xff]
        %v7373 = vld [vmem:[#allocation11 + $0x10] sm:$0xff]
        %v7374 = vld [vmem:[#allocation11 + $0x18] sm:$0xff]
        %v7379 = vunpack.c.l.b16 %v7371
        %v7380 = vunpack.c.h.b16 %v7371
        %v7381 = vunpack.c.l.b16 %v7372
        %v7382 = vunpack.c.h.b16 %v7372
        %v7383 = vunpack.c.l.b16 %v7373
        %v7384 = vunpack.c.h.b16 %v7373
        %v7385 = vunpack.c.l.b16 %v7374
        %v7386 = vunpack.c.h.b16 %v7374
        %v7387 = vpack.c.b16 %v7381, %v7379
        %v7388 = vpack.c.b16 %v7382, %v7380
        %v7389 = vpack.c.b16 %v7385, %v7383
        %v7390 = vpack.c.b16 %v7386, %v7384
        %vm7393 = vcmask 130048
        %v7395 = vsel %vm7393, %v7388, 0
        %v7398 = vsel %vm7393, %v7390, 0
        %7400 = vmatprep.subr.bf16.mxu0 %v7354
        %7401 = vmatpush1.bf16.msra.mxu0 %v7353
        %7402 = vmatprep.subr.bf16.mxu0 %v7356
        %7403 = vmatpush1.bf16.msra.mxu0 %v7355
        %7404 = vmatprep.subr.bf16.mxu0 %v7358
        %7405 = vmatpush1.bf16.msra.mxu0 %v7357
        %7406 = vmatprep.subr.bf16.mxu0 %v7360
        %7407 = vmatpush1.bf16.msra.mxu0 %v7359
        %7408 = vmatprep.subr.bf16.mxu0 %v7362
        %7409 = vmatpush1.bf16.msra.mxu0 %v7361
        %7410 = vmatprep.subr.bf16.mxu0 %v7364
        %7411 = vmatpush1.bf16.msra.mxu0 %v7363
        %7412 = vmatprep.subr.bf16.mxu0 %v7366
        %7413 = vmatpush1.bf16.msra.mxu0 %v7365
        %7414 = vmatprep.subr.bf16.mxu0 %v7368
        %7415 = vmatpush1.bf16.msra.mxu0 %v7367
        %7416 = vmatprep.subr.bf16.mxu0 %v7370
        %7417 = vmatpush1.bf16.msra.mxu0 %v7369
        %7418 = vmatprep.subr.bf16.mxu0 0
        %7419 = vmatpush1.bf16.msra.mxu0 0
        %7420 = vmatprep.subr.bf16.mxu0 0
        %7421 = vmatpush1.bf16.msra.mxu0 0
        %7422 = vmatprep.subr.bf16.mxu0 0
        %7423 = vmatpush1.bf16.msra.mxu0 0
        %7424 = vmatprep.subr.bf16.mxu0 0
        %7425 = vmatpush1.bf16.msra.mxu0 0
        %7426 = vmatprep.subr.bf16.mxu0 0
        %7427 = vmatpush1.bf16.msra.mxu0 0
        %7428 = vmatprep.subr.bf16.mxu0 0
        %7429 = vmatpush1.bf16.msra.mxu0 0
        %7430 = vmatprep.subr.bf16.mxu0 0
        %7431 = vmatpush1.bf16.msra.mxu0 0
        %7432 = vmatprep.mubr.bf16.mxu0 %v7395
        %7433 = vmatmul.mubr.bf16.gmra.mrb[0].mxu0 %v7387
        %v7434 = vpop.f32.mrb[0].mxu0
        %v7435 = vadd.f32 0.0, %v7434
        %v7436 = vpop.f32.mrb[0].mxu0
        %v7437 = vadd.f32 0.0, %v7436
        %v7438 = vpop.f32.mrb[0].mxu0
        %v7439 = vadd.f32 0.0, %v7438
        %v7440 = vpop.f32.mrb[0].mxu0
        %v7441 = vadd.f32 0.0, %v7440
        %7442 = vmatprep.mubr.bf16.mxu0 %v7398
        %7443 = vmatmul.mubr.bf16.gmra.mrb[0].mxu0 %v7389
        %v7444 = vpop.f32.mrb[0].mxu0
        %v7445 = vadd.f32 0.0, %v7444
        %v7446 = vpop.f32.mrb[0].mxu0
        %v7447 = vadd.f32 0.0, %v7446
        %v7448 = vpop.f32.mrb[0].mxu0
        %v7449 = vadd.f32 0.0, %v7448
        %v7450 = vpop.f32.mrb[0].mxu0
        %v7451 = vadd.f32 0.0, %v7450
        %7452 = vdwg.mxu0
        %v7453 = vld [vmem:[#allocation13] sm:$0xff]
        %v7454 = vld [vmem:[#allocation13 + $0x8] sm:$0xff]
        %v7455 = vld [vmem:[#allocation13 + $0x10] sm:$0xff]
        %v7456 = vld [vmem:[#allocation13 + $0x18] sm:$0xff]
        %v7461 = vunpack.c.l.b16 %v7453
        %v7462 = vunpack.c.h.b16 %v7453
        %v7463 = vunpack.c.l.b16 %v7454
        %v7464 = vunpack.c.h.b16 %v7454
        %v7465 = vunpack.c.l.b16 %v7455
        %v7466 = vunpack.c.h.b16 %v7455
        %v7467 = vunpack.c.l.b16 %v7456
        %v7468 = vunpack.c.h.b16 %v7456
        %v7469 = vpack.c.b16 %v7463, %v7461
        %v7470 = vpack.c.b16 %v7464, %v7462
        %v7471 = vpack.c.b16 %v7467, %v7465
        %v7472 = vpack.c.b16 %v7468, %v7466
        %v7476 = vsel %vm7393, %v7470, 0
        %v7479 = vsel %vm7393, %v7472, 0
        %7481 = vmatprep.subr.bf16.mxu0 %v7354
        %7482 = vmatpush1.bf16.msra.mxu0 %v7353
        %7483 = vmatprep.subr.bf16.mxu0 %v7356
        %7484 = vmatpush1.bf16.msra.mxu0 %v7355
        %7485 = vmatprep.subr.bf16.mxu0 %v7358
        %7486 = vmatpush1.bf16.msra.mxu0 %v7357
        %7487 = vmatprep.subr.bf16.mxu0 %v7360
        %7488 = vmatpush1.bf16.msra.mxu0 %v7359
        %7489 = vmatprep.subr.bf16.mxu0 %v7362
        %7490 = vmatpush1.bf16.msra.mxu0 %v7361
        %7491 = vmatprep.subr.bf16.mxu0 %v7364
        %7492 = vmatpush1.bf16.msra.mxu0 %v7363
        %7493 = vmatprep.subr.bf16.mxu0 %v7366
        %7494 = vmatpush1.bf16.msra.mxu0 %v7365
        %7495 = vmatprep.subr.bf16.mxu0 %v7368
        %7496 = vmatpush1.bf16.msra.mxu0 %v7367
        %7497 = vmatprep.subr.bf16.mxu0 %v7370
        %7498 = vmatpush1.bf16.msra.mxu0 %v7369
        %7499 = vmatprep.subr.bf16.mxu0 0
        %7500 = vmatpush1.bf16.msra.mxu0 0
        %7501 = vmatprep.subr.bf16.mxu0 0
        %7502 = vmatpush1.bf16.msra.mxu0 0
        %7503 = vmatprep.subr.bf16.mxu0 0
        %7504 = vmatpush1.bf16.msra.mxu0 0
        %7505 = vmatprep.subr.bf16.mxu0 0
        %7506 = vmatpush1.bf16.msra.mxu0 0
        %7507 = vmatprep.subr.bf16.mxu0 0
        %7508 = vmatpush1.bf16.msra.mxu0 0
        %7509 = vmatprep.subr.bf16.mxu0 0
        %7510 = vmatpush1.bf16.msra.mxu0 0
        %7511 = vmatprep.subr.bf16.mxu0 0
        %7512 = vmatpush1.bf16.msra.mxu0 0
        %7513 = vmatprep.mubr.bf16.mxu0 %v7476
        %7514 = vmatmul.mubr.bf16.gmra.mrb[0].mxu0 %v7469
        %v7515 = vpop.f32.mrb[0].mxu0
        %v7516 = vadd.f32 0.0, %v7515
        %v7517 = vpop.f32.mrb[0].mxu0
        %v7518 = vadd.f32 0.0, %v7517
        %v7519 = vpop.f32.mrb[0].mxu0
        %v7520 = vadd.f32 0.0, %v7519
        %v7521 = vpop.f32.mrb[0].mxu0
        %v7522 = vadd.f32 0.0, %v7521
        %7523 = vmatprep.mubr.bf16.mxu0 %v7479
        %7524 = vmatmul.mubr.bf16.gmra.mrb[0].mxu0 %v7471
        %v7525 = vpop.f32.mrb[0].mxu0
        %v7526 = vadd.f32 0.0, %v7525
        %v7527 = vpop.f32.mrb[0].mxu0
        %v7528 = vadd.f32 0.0, %v7527
        %v7529 = vpop.f32.mrb[0].mxu0
        %v7530 = vadd.f32 0.0, %v7529
        %v7531 = vpop.f32.mrb[0].mxu0
        %v7532 = vadd.f32 0.0, %v7531
        %7533 = vdwg.mxu0
        %v7534 = vmax.f32 %v7435, %v7516
        %v7535 = vmax.f32 %v7437, %v7518
        %v7536 = vmax.f32 %v7439, %v7520
        %v7537 = vmax.f32 %v7441, %v7522
        %v7538 = vmax.f32 %v7445, %v7526
        %v7539 = vmax.f32 %v7447, %v7528
        %v7540 = vmax.f32 %v7449, %v7530
        %v7541 = vmax.f32 %v7451, %v7532
        %v7544 = vrot.slane %v7534, 2
        %v7545 = vrot.slane %v7535, 2
        %v7548 = vrot.slane %v7534, 4
        %v7549 = vrot.slane %v7535, 4
        %v7552 = vrot.slane %v7534, 6
        %v7553 = vrot.slane %v7535, 6
        %v7558 = vrot.slane %v7536, 2
        %v7559 = vrot.slane %v7537, 2
        %v7562 = vrot.slane %v7536, 4
        %v7563 = vrot.slane %v7537, 4
        %v7566 = vrot.slane %v7536, 6
        %v7567 = vrot.slane %v7537, 6
        %v7572 = vrot.slane %v7538, 2
        %v7573 = vrot.slane %v7539, 2
        %v7576 = vrot.slane %v7538, 4
        %v7577 = vrot.slane %v7539, 4
        %v7580 = vrot.slane %v7538, 6
        %v7581 = vrot.slane %v7539, 6
        %v7586 = vrot.slane %v7540, 2
        %v7587 = vrot.slane %v7541, 2
        %v7590 = vrot.slane %v7540, 4
        %v7591 = vrot.slane %v7541, 4
        %v7594 = vrot.slane %v7540, 6
        %v7595 = vrot.slane %v7541, 6
        %v7598 = vld [vmem:[#allocation14] sm:$0xf]
        %v7599 = vld [vmem:[#allocation14 + $0x4] sm:$0xf]
        %v7600 = vld [vmem:[#allocation14 + $0x8] sm:$0xf]
        %v7601 = vld [vmem:[#allocation14 + $0xc] sm:$0xf]
        %v7602 = vld [vmem:[#allocation14 + $0x10] sm:$0xf]
        %v7603 = vld [vmem:[#allocation14 + $0x14] sm:$0xf]
        %v7604 = vld [vmem:[#allocation14 + $0x18] sm:$0xf]
        %v7605 = vld [vmem:[#allocation14 + $0x1c] sm:$0xf]
        %v7606 = vld [vmem:[#allocation14 + $0x20] sm:$0xf]
        %v7607 = vld [vmem:[#allocation14 + $0x24] sm:$0xf]
        %v7608 = vld [vmem:[#allocation14 + $0x28] sm:$0xf]
        %v7609 = vld [vmem:[#allocation14 + $0x2c] sm:$0xf]
        %v7610 = vld [vmem:[#allocation14 + $0x30] sm:$0xf]
        %v7611 = vld [vmem:[#allocation14 + $0x34] sm:$0xf]
        %v7612 = vld [vmem:[#allocation14 + $0x38] sm:$0xf]
        %v7613 = vld [vmem:[#allocation14 + $0x3c] sm:$0xf]
        %v7614 = vld [vmem:[#allocation14 + $0x40] sm:$0xf]
        %v7615 = vld [vmem:[#allocation14 + $0x44] sm:$0xf]
        %v7616 = vld [vmem:[#allocation14 + $0x48] sm:$0xf]
        %v7617 = vld [vmem:[#allocation14 + $0x4c] sm:$0xf]
        %v7618 = vld [vmem:[#allocation14 + $0x50] sm:$0xf]
        %v7619 = vld [vmem:[#allocation14 + $0x54] sm:$0xf]
        %v7620 = vld [vmem:[#allocation14 + $0x58] sm:$0xf]
        %v7621 = vld [vmem:[#allocation14 + $0x5c] sm:$0xf]
        %v7622 = vld [vmem:[#allocation14 + $0x60] sm:$0xf]
        %v7623 = vld [vmem:[#allocation14 + $0x64] sm:$0xf]
        %v7624 = vld [vmem:[#allocation14 + $0x68] sm:$0xf]
        %v7625 = vld [vmem:[#allocation14 + $0x6c] sm:$0xf]
        %v7626 = vld [vmem:[#allocation14 + $0x70] sm:$0xf]
        %v7627 = vld [vmem:[#allocation14 + $0x74] sm:$0xf]
        %v7628 = vld [vmem:[#allocation14 + $0x78] sm:$0xf]
        %v7629 = vld [vmem:[#allocation14 + $0x7c] sm:$0xf]
        %v7630 = vld [vmem:[#allocation14 + $0x80] sm:$0xf]
        %v7631 = vld [vmem:[#allocation14 + $0x84] sm:$0xf]
        %v7632 = vld [vmem:[#allocation14 + $0x88] sm:$0xf]
        %v7633 = vld [vmem:[#allocation14 + $0x8c] sm:$0xf]
        %v7634 = vld [vmem:[#allocation14 + $0x90] sm:$0xf]
        %v7635 = vld [vmem:[#allocation14 + $0x94] sm:$0xf]
        %v7636 = vld [vmem:[#allocation14 + $0x98] sm:$0xf]
        %v7637 = vld [vmem:[#allocation14 + $0x9c] sm:$0xf]
        %v7638 = vld [vmem:[#allocation14 + $0xa0] sm:$0xf]
        %v7639 = vld [vmem:[#allocation14 + $0xa4] sm:$0xf]
        %v7640 = vld [vmem:[#allocation14 + $0xa8] sm:$0xf]
        %v7641 = vld [vmem:[#allocation14 + $0xac] sm:$0xf]
        %v7642 = vld [vmem:[#allocation14 + $0xb0] sm:$0xf]
        %v7643 = vld [vmem:[#allocation14 + $0xb4] sm:$0xf]
        %v7644 = vld [vmem:[#allocation14 + $0xb8] sm:$0xf]
        %v7645 = vld [vmem:[#allocation14 + $0xbc] sm:$0xf]
        %v7646 = vld [vmem:[#allocation14 + $0xc0] sm:$0xf]
        %v7647 = vld [vmem:[#allocation14 + $0xc4] sm:$0xf]
        %v7648 = vld [vmem:[#allocation14 + $0xc8] sm:$0xf]
        %v7649 = vld [vmem:[#allocation14 + $0xcc] sm:$0xf]
        %v7650 = vld [vmem:[#allocation14 + $0xd0] sm:$0xf]
        %v7651 = vld [vmem:[#allocation14 + $0xd4] sm:$0xf]
        %v7652 = vld [vmem:[#allocation14 + $0xd8] sm:$0xf]
        %v7653 = vld [vmem:[#allocation14 + $0xdc] sm:$0xf]
        %v7654 = vld [vmem:[#allocation14 + $0xe0] sm:$0xf]
        %v7655 = vld [vmem:[#allocation14 + $0xe4] sm:$0xf]
        %v7656 = vld [vmem:[#allocation14 + $0xe8] sm:$0xf]
        %v7657 = vld [vmem:[#allocation14 + $0xec] sm:$0xf]
        %v7658 = vld [vmem:[#allocation14 + $0xf0] sm:$0xf]
        %v7659 = vld [vmem:[#allocation14 + $0xf4] sm:$0xf]
        %v7660 = vld [vmem:[#allocation14 + $0xf8] sm:$0xf]
        %v7661 = vld [vmem:[#allocation14 + $0xfc] sm:$0xf]
        %v7662 = vld [vmem:[#allocation14 + $0x100] sm:$0xf]
        %v7663 = vld [vmem:[#allocation14 + $0x104] sm:$0xf]
        %v7664 = vld [vmem:[#allocation14 + $0x108] sm:$0xf]
        %v7665 = vld [vmem:[#allocation14 + $0x10c] sm:$0xf]
        %v7666 = vld [vmem:[#allocation14 + $0x110] sm:$0xf]
        %v7667 = vld [vmem:[#allocation14 + $0x114] sm:$0xf]
        %v7668 = vld [vmem:[#allocation14 + $0x118] sm:$0xf]
        %v7669 = vld [vmem:[#allocation14 + $0x11c] sm:$0xf]
        %v7670 = vld [vmem:[#allocation14 + $0x120] sm:$0xf]
        %v7671 = vld [vmem:[#allocation14 + $0x124] sm:$0xf]
        %v7672 = vld [vmem:[#allocation14 + $0x128] sm:$0xf]
        %v7673 = vld [vmem:[#allocation14 + $0x12c] sm:$0xf]
        %v7674 = vld [vmem:[#allocation14 + $0x130] sm:$0xf]
        %v7675 = vld [vmem:[#allocation14 + $0x134] sm:$0xf]
        %v7676 = vld [vmem:[#allocation14 + $0x138] sm:$0xf]
        %v7677 = vld [vmem:[#allocation14 + $0x13c] sm:$0xf]
        %v7678 = vld [vmem:[#allocation14 + $0x140] sm:$0xf]
        %v7679 = vld [vmem:[#allocation14 + $0x144] sm:$0xf]
        %v7680 = vld [vmem:[#allocation14 + $0x148] sm:$0xf]
        %v7681 = vld [vmem:[#allocation14 + $0x14c] sm:$0xf]
        %v7682 = vld [vmem:[#allocation14 + $0x150] sm:$0xf]
        %v7683 = vld [vmem:[#allocation14 + $0x154] sm:$0xf]
        %v7684 = vld [vmem:[#allocation14 + $0x158] sm:$0xf]
        %v7685 = vld [vmem:[#allocation14 + $0x15c] sm:$0xf]
        %v7686 = vld [vmem:[#allocation14 + $0x160] sm:$0xf]
        %v7687 = vld [vmem:[#allocation14 + $0x164] sm:$0xf]
        %v7688 = vld [vmem:[#allocation14 + $0x168] sm:$0xf]
        %v7689 = vld [vmem:[#allocation14 + $0x16c] sm:$0xf]
        %v7690 = vld [vmem:[#allocation14 + $0x170] sm:$0xf]
        %v7691 = vld [vmem:[#allocation14 + $0x174] sm:$0xf]
        %v7692 = vld [vmem:[#allocation14 + $0x178] sm:$0xf]
        %v7693 = vld [vmem:[#allocation14 + $0x17c] sm:$0xf]
        %v7694 = vld [vmem:[#allocation14 + $0x180] sm:$0xf]
        %v7695 = vld [vmem:[#allocation14 + $0x184] sm:$0xf]
        %v7696 = vld [vmem:[#allocation14 + $0x188] sm:$0xf]
        %v7697 = vld [vmem:[#allocation14 + $0x18c] sm:$0xf]
        %v7698 = vld [vmem:[#allocation14 + $0x190] sm:$0xf]
        %v7699 = vld [vmem:[#allocation14 + $0x194] sm:$0xf]
        %v7700 = vld [vmem:[#allocation14 + $0x198] sm:$0xf]
        %v7701 = vld [vmem:[#allocation14 + $0x19c] sm:$0xf]
        %v7702 = vld [vmem:[#allocation14 + $0x1a0] sm:$0xf]
        %v7703 = vld [vmem:[#allocation14 + $0x1a4] sm:$0xf]
        %v7704 = vld [vmem:[#allocation14 + $0x1a8] sm:$0xf]
        %v7705 = vld [vmem:[#allocation14 + $0x1ac] sm:$0xf]
        %v7706 = vld [vmem:[#allocation14 + $0x1b0] sm:$0xf]
        %v7707 = vld [vmem:[#allocation14 + $0x1b4] sm:$0xf]
        %v7708 = vld [vmem:[#allocation14 + $0x1b8] sm:$0xf]
        %v7709 = vld [vmem:[#allocation14 + $0x1bc] sm:$0xf]
        %v7710 = vld [vmem:[#allocation14 + $0x1c0] sm:$0xf]
        %v7711 = vld [vmem:[#allocation14 + $0x1c4] sm:$0xf]
        %v7712 = vld [vmem:[#allocation14 + $0x1c8] sm:$0xf]
        %v7713 = vld [vmem:[#allocation14 + $0x1cc] sm:$0xf]
        %v7714 = vld [vmem:[#allocation14 + $0x1d0] sm:$0xf]
        %v7715 = vld [vmem:[#allocation14 + $0x1d4] sm:$0xf]
        %v7716 = vld [vmem:[#allocation14 + $0x1d8] sm:$0xf]
        %v7717 = vld [vmem:[#allocation14 + $0x1dc] sm:$0xf]
        %v7718 = vld [vmem:[#allocation14 + $0x1e0] sm:$0xf]
        %v7719 = vld [vmem:[#allocation14 + $0x1e4] sm:$0xf]
        %v7720 = vld [vmem:[#allocation14 + $0x1e8] sm:$0xf]
        %v7721 = vld [vmem:[#allocation14 + $0x1ec] sm:$0xf]
        %v7722 = vld [vmem:[#allocation14 + $0x1f0] sm:$0xf]
        %v7723 = vld [vmem:[#allocation14 + $0x1f4] sm:$0xf]
        %v7724 = vld [vmem:[#allocation14 + $0x1f8] sm:$0xf]
        %v7725 = vld [vmem:[#allocation14 + $0x1fc] sm:$0xf]
        %v7726 = vld [vmem:[#allocation14 + $0x200] sm:$0xf]
        %v7727 = vld [vmem:[#allocation14 + $0x204] sm:$0xf]
        %v7728 = vld [vmem:[#allocation14 + $0x208] sm:$0xf]
        %v7729 = vld [vmem:[#allocation14 + $0x20c] sm:$0xf]
        %v7730 = vld [vmem:[#allocation14 + $0x210] sm:$0xf]
        %v7731 = vld [vmem:[#allocation14 + $0x214] sm:$0xf]
        %v7732 = vld [vmem:[#allocation14 + $0x218] sm:$0xf]
        %v7733 = vld [vmem:[#allocation14 + $0x21c] sm:$0xf]
        %v7734 = vld [vmem:[#allocation14 + $0x220] sm:$0xf]
        %v7735 = vld [vmem:[#allocation14 + $0x224] sm:$0xf]
        %v7736 = vld [vmem:[#allocation14 + $0x228] sm:$0xf]
        %v7737 = vld [vmem:[#allocation14 + $0x22c] sm:$0xf]
        %v7738 = vld [vmem:[#allocation14 + $0x230] sm:$0xf]
        %v7739 = vld [vmem:[#allocation14 + $0x234] sm:$0xf]
        %v7740 = vld [vmem:[#allocation14 + $0x238] sm:$0xf]
        %v7741 = vld [vmem:[#allocation14 + $0x23c] sm:$0xf]
        %v7742 = vld [vmem:[#allocation14 + $0x240] sm:$0xf]
        %v7743 = vld [vmem:[#allocation14 + $0x244] sm:$0xf]
        %v7744 = vld [vmem:[#allocation14 + $0x248] sm:$0xf]
        %v7745 = vld [vmem:[#allocation14 + $0x24c] sm:$0xf]
        %v7746 = vld [vmem:[#allocation14 + $0x250] sm:$0xf]
        %v7747 = vld [vmem:[#allocation14 + $0x254] sm:$0xf]
        %v7748 = vld [vmem:[#allocation14 + $0x258] sm:$0xf]
        %v7749 = vld [vmem:[#allocation14 + $0x25c] sm:$0xf]
        %v7750 = vld [vmem:[#allocation14 + $0x260] sm:$0xf]
        %v7751 = vld [vmem:[#allocation14 + $0x264] sm:$0xf]
        %v7752 = vld [vmem:[#allocation14 + $0x268] sm:$0xf]
        %v7753 = vld [vmem:[#allocation14 + $0x26c] sm:$0xf]
        %v7754 = vld [vmem:[#allocation14 + $0x270] sm:$0xf]
        %v7755 = vld [vmem:[#allocation14 + $0x274] sm:$0xf]
        %v7756 = vld [vmem:[#allocation14 + $0x278] sm:$0xf]
        %v7757 = vld [vmem:[#allocation14 + $0x27c] sm:$0xf]
        %v7758 = vld [vmem:[#allocation14 + $0x280] sm:$0xf]
        %v7759 = vld [vmem:[#allocation14 + $0x284] sm:$0xf]
        %v7760 = vld [vmem:[#allocation14 + $0x288] sm:$0xf]
        %v7761 = vld [vmem:[#allocation14 + $0x28c] sm:$0xf]
        %v7762 = vld [vmem:[#allocation14 + $0x290] sm:$0xf]
        %v7763 = vld [vmem:[#allocation14 + $0x294] sm:$0xf]
        %v7764 = vld [vmem:[#allocation14 + $0x298] sm:$0xf]
        %v7765 = vld [vmem:[#allocation14 + $0x29c] sm:$0xf]
        %v7766 = vld [vmem:[#allocation14 + $0x2a0] sm:$0xf]
        %v7767 = vld [vmem:[#allocation14 + $0x2a4] sm:$0xf]
        %v7768 = vld [vmem:[#allocation14 + $0x2a8] sm:$0xf]
        %v7769 = vld [vmem:[#allocation14 + $0x2ac] sm:$0xf]
        %v7770 = vld [vmem:[#allocation14 + $0x2b0] sm:$0xf]
        %v7771 = vld [vmem:[#allocation14 + $0x2b4] sm:$0xf]
        %v7772 = vld [vmem:[#allocation14 + $0x2b8] sm:$0xf]
        %v7773 = vld [vmem:[#allocation14 + $0x2bc] sm:$0xf]
        %v7774 = vld [vmem:[#allocation14 + $0x2c0] sm:$0xf]
        %v7775 = vld [vmem:[#allocation14 + $0x2c4] sm:$0xf]
        %v7776 = vld [vmem:[#allocation14 + $0x2c8] sm:$0xf]
        %v7777 = vld [vmem:[#allocation14 + $0x2cc] sm:$0xf]
        %v7778 = vld [vmem:[#allocation14 + $0x2d0] sm:$0xf]
        %v7779 = vld [vmem:[#allocation14 + $0x2d4] sm:$0xf]
        %v7780 = vld [vmem:[#allocation14 + $0x2d8] sm:$0xf]
        %v7781 = vld [vmem:[#allocation14 + $0x2dc] sm:$0xf]
        %v7782 = vld [vmem:[#allocation14 + $0x2e0] sm:$0xf]
        %v7783 = vld [vmem:[#allocation14 + $0x2e4] sm:$0xf]
        %v7784 = vld [vmem:[#allocation14 + $0x2e8] sm:$0xf]
        %v7785 = vld [vmem:[#allocation14 + $0x2ec] sm:$0xf]
        %v7786 = vld [vmem:[#allocation14 + $0x2f0] sm:$0xf]
        %v7787 = vld [vmem:[#allocation14 + $0x2f4] sm:$0xf]
        %v7788 = vld [vmem:[#allocation14 + $0x2f8] sm:$0xf]
        %v7789 = vld [vmem:[#allocation14 + $0x2fc] sm:$0xf]
        %v7790 = vld [vmem:[#allocation14 + $0x300] sm:$0xf]
        %v7791 = vld [vmem:[#allocation14 + $0x304] sm:$0xf]
        %v7792 = vld [vmem:[#allocation14 + $0x308] sm:$0xf]
        %v7793 = vld [vmem:[#allocation14 + $0x30c] sm:$0xf]
        %v7794 = vld [vmem:[#allocation14 + $0x310] sm:$0xf]
        %v7795 = vld [vmem:[#allocation14 + $0x314] sm:$0xf]
        %v7796 = vld [vmem:[#allocation14 + $0x318] sm:$0xf]
        %v7797 = vld [vmem:[#allocation14 + $0x31c] sm:$0xf]
        %v7798 = vld [vmem:[#allocation14 + $0x320] sm:$0xf]
        %v7799 = vld [vmem:[#allocation14 + $0x324] sm:$0xf]
        %v7800 = vld [vmem:[#allocation14 + $0x328] sm:$0xf]
        %v7801 = vld [vmem:[#allocation14 + $0x32c] sm:$0xf]
        %v7802 = vld [vmem:[#allocation14 + $0x330] sm:$0xf]
        %v7803 = vld [vmem:[#allocation14 + $0x334] sm:$0xf]
        %v7804 = vld [vmem:[#allocation14 + $0x338] sm:$0xf]
        %v7805 = vld [vmem:[#allocation14 + $0x33c] sm:$0xf]
        %v7806 = vld [vmem:[#allocation14 + $0x340] sm:$0xf]
        %v7807 = vld [vmem:[#allocation14 + $0x344] sm:$0xf]
        %v7808 = vld [vmem:[#allocation14 + $0x348] sm:$0xf]
        %v7809 = vld [vmem:[#allocation14 + $0x34c] sm:$0xf]
        %v7810 = vld [vmem:[#allocation14 + $0x350] sm:$0xf]
        %v7811 = vld [vmem:[#allocation14 + $0x354] sm:$0xf]
        %v7812 = vld [vmem:[#allocation14 + $0x358] sm:$0xf]
        %v7813 = vld [vmem:[#allocation14 + $0x35c] sm:$0xf]
        %v7814 = vld [vmem:[#allocation14 + $0x360] sm:$0xf]
        %v7815 = vld [vmem:[#allocation14 + $0x364] sm:$0xf]
        %v7816 = vld [vmem:[#allocation14 + $0x368] sm:$0xf]
        %v7817 = vld [vmem:[#allocation14 + $0x36c] sm:$0xf]
        %v7818 = vld [vmem:[#allocation14 + $0x370] sm:$0xf]
        %v7819 = vld [vmem:[#allocation14 + $0x374] sm:$0xf]
        %v7820 = vld [vmem:[#allocation14 + $0x378] sm:$0xf]
        %v7821 = vld [vmem:[#allocation14 + $0x37c] sm:$0xf]
        %v7822 = vld [vmem:[#allocation14 + $0x380] sm:$0xf]
        %v7823 = vld [vmem:[#allocation14 + $0x384] sm:$0xf]
        %v7824 = vld [vmem:[#allocation14 + $0x388] sm:$0xf]
        %v7825 = vld [vmem:[#allocation14 + $0x38c] sm:$0xf]
        %v7826 = vld [vmem:[#allocation14 + $0x390] sm:$0xf]
        %v7827 = vld [vmem:[#allocation14 + $0x394] sm:$0xf]
        %v7828 = vld [vmem:[#allocation14 + $0x398] sm:$0xf]
        %v7829 = vld [vmem:[#allocation14 + $0x39c] sm:$0xf]
        %v7830 = vld [vmem:[#allocation14 + $0x3a0] sm:$0xf]
        %v7831 = vld [vmem:[#allocation14 + $0x3a4] sm:$0xf]
        %v7832 = vld [vmem:[#allocation14 + $0x3a8] sm:$0xf]
        %v7833 = vld [vmem:[#allocation14 + $0x3ac] sm:$0xf]
        %v7834 = vld [vmem:[#allocation14 + $0x3b0] sm:$0xf]
        %v7835 = vld [vmem:[#allocation14 + $0x3b4] sm:$0xf]
        %v7836 = vld [vmem:[#allocation14 + $0x3b8] sm:$0xf]
        %v7837 = vld [vmem:[#allocation14 + $0x3bc] sm:$0xf]
        %v7838 = vld [vmem:[#allocation14 + $0x3c0] sm:$0xf]
        %v7839 = vld [vmem:[#allocation14 + $0x3c4] sm:$0xf]
        %v7840 = vld [vmem:[#allocation14 + $0x3c8] sm:$0xf]
        %v7841 = vld [vmem:[#allocation14 + $0x3cc] sm:$0xf]
        %v7842 = vld [vmem:[#allocation14 + $0x3d0] sm:$0xf]
        %v7843 = vld [vmem:[#allocation14 + $0x3d4] sm:$0xf]
        %v7844 = vld [vmem:[#allocation14 + $0x3d8] sm:$0xf]
        %v7845 = vld [vmem:[#allocation14 + $0x3dc] sm:$0xf]
        %v7846 = vld [vmem:[#allocation14 + $0x3e0] sm:$0xf]
        %v7847 = vld [vmem:[#allocation14 + $0x3e4] sm:$0xf]
        %v7848 = vld [vmem:[#allocation14 + $0x3e8] sm:$0xf]
        %v7849 = vld [vmem:[#allocation14 + $0x3ec] sm:$0xf]
        %v7850 = vld [vmem:[#allocation14 + $0x3f0] sm:$0xf]
        %v7851 = vld [vmem:[#allocation14 + $0x3f4] sm:$0xf]
        %v7852 = vld [vmem:[#allocation14 + $0x3f8] sm:$0xf]
        %v7853 = vld [vmem:[#allocation14 + $0x3fc] sm:$0xf]
        %v7854 = vld [vmem:[#allocation14 + $0x400] sm:$0xf]
        %v7855 = vld [vmem:[#allocation14 + $0x404] sm:$0xf]
        %v7856 = vld [vmem:[#allocation14 + $0x408] sm:$0xf]
        %v7857 = vld [vmem:[#allocation14 + $0x40c] sm:$0xf]
        %v7858 = vld [vmem:[#allocation14 + $0x410] sm:$0xf]
        %v7859 = vld [vmem:[#allocation14 + $0x414] sm:$0xf]
        %v7860 = vld [vmem:[#allocation14 + $0x418] sm:$0xf]
        %v7861 = vld [vmem:[#allocation14 + $0x41c] sm:$0xf]
        %v7862 = vld [vmem:[#allocation14 + $0x420] sm:$0xf]
        %v7863 = vld [vmem:[#allocation14 + $0x424] sm:$0xf]
        %v7864 = vld [vmem:[#allocation14 + $0x428] sm:$0xf]
        %v7865 = vld [vmem:[#allocation14 + $0x42c] sm:$0xf]
        %v7866 = vld [vmem:[#allocation14 + $0x430] sm:$0xf]
        %v7867 = vld [vmem:[#allocation14 + $0x434] sm:$0xf]
        %v7868 = vld [vmem:[#allocation14 + $0x438] sm:$0xf]
        %v7869 = vld [vmem:[#allocation14 + $0x43c] sm:$0xf]
        %v7870 = vld [vmem:[#allocation14 + $0x440] sm:$0xf]
        %v7871 = vld [vmem:[#allocation14 + $0x444] sm:$0xf]
        %v7872 = vld [vmem:[#allocation14 + $0x448] sm:$0xf]
        %v7873 = vld [vmem:[#allocation14 + $0x44c] sm:$0xf]
        %v7874 = vld [vmem:[#allocation14 + $0x450] sm:$0xf]
        %v7875 = vld [vmem:[#allocation14 + $0x454] sm:$0xf]
        %v7876 = vld [vmem:[#allocation14 + $0x458] sm:$0xf]
        %v7877 = vld [vmem:[#allocation14 + $0x45c] sm:$0xf]
        %v7878 = vld [vmem:[#allocation14 + $0x460] sm:$0xf]
        %v7879 = vld [vmem:[#allocation14 + $0x464] sm:$0xf]
        %v7880 = vld [vmem:[#allocation14 + $0x468] sm:$0xf]
        %v7881 = vld [vmem:[#allocation14 + $0x46c] sm:$0xf]
        %v7882 = vld [vmem:[#allocation14 + $0x470] sm:$0xf]
        %v7883 = vld [vmem:[#allocation14 + $0x474] sm:$0xf]
        %v7884 = vld [vmem:[#allocation14 + $0x478] sm:$0xf]
        %v7885 = vld [vmem:[#allocation14 + $0x47c] sm:$0xf]
        %v7886 = vld [vmem:[#allocation14 + $0x480] sm:$0xf]
        %v7887 = vld [vmem:[#allocation14 + $0x484] sm:$0xf]
        %v7888 = vld [vmem:[#allocation14 + $0x488] sm:$0xf]
        %v7889 = vld [vmem:[#allocation14 + $0x48c] sm:$0xf]
        %v7890 = vld [vmem:[#allocation14 + $0x490] sm:$0xf]
        %v7891 = vld [vmem:[#allocation14 + $0x494] sm:$0xf]
        %v7892 = vld [vmem:[#allocation14 + $0x498] sm:$0xf]
        %v7893 = vld [vmem:[#allocation14 + $0x49c] sm:$0xf]
        %v7894 = vld [vmem:[#allocation14 + $0x4a0] sm:$0xf]
        %v7895 = vld [vmem:[#allocation14 + $0x4a4] sm:$0xf]
        %v7896 = vld [vmem:[#allocation14 + $0x4a8] sm:$0xf]
        %v7897 = vld [vmem:[#allocation14 + $0x4ac] sm:$0xf]
        %v7898 = vld [vmem:[#allocation14 + $0x4b0] sm:$0xf]
        %v7899 = vld [vmem:[#allocation14 + $0x4b4] sm:$0xf]
        %v7900 = vld [vmem:[#allocation14 + $0x4b8] sm:$0xf]
        %v7901 = vld [vmem:[#allocation14 + $0x4bc] sm:$0xf]
        %v7902 = vld [vmem:[#allocation14 + $0x4c0] sm:$0xf]
        %v7903 = vld [vmem:[#allocation14 + $0x4c4] sm:$0xf]
        %v7904 = vld [vmem:[#allocation14 + $0x4c8] sm:$0xf]
        %v7905 = vld [vmem:[#allocation14 + $0x4cc] sm:$0xf]
        %v7906 = vld [vmem:[#allocation14 + $0x4d0] sm:$0xf]
        %v7907 = vld [vmem:[#allocation14 + $0x4d4] sm:$0xf]
        %v7908 = vld [vmem:[#allocation14 + $0x4d8] sm:$0xf]
        %v7909 = vld [vmem:[#allocation14 + $0x4dc] sm:$0xf]
        %v7910 = vld [vmem:[#allocation14 + $0x4e0] sm:$0xf]
        %v7911 = vld [vmem:[#allocation14 + $0x4e4] sm:$0xf]
        %v7912 = vld [vmem:[#allocation14 + $0x4e8] sm:$0xf]
        %v7913 = vld [vmem:[#allocation14 + $0x4ec] sm:$0xf]
        %v7914 = vld [vmem:[#allocation14 + $0x4f0] sm:$0xf]
        %v7915 = vld [vmem:[#allocation14 + $0x4f4] sm:$0xf]
        %v7916 = vld [vmem:[#allocation14 + $0x4f8] sm:$0xf]
        %v7917 = vld [vmem:[#allocation14 + $0x4fc] sm:$0xf]
        %v7918 = vld [vmem:[#allocation14 + $0x500] sm:$0xf]
        %v7919 = vld [vmem:[#allocation14 + $0x504] sm:$0xf]
        %v7920 = vld [vmem:[#allocation14 + $0x508] sm:$0xf]
        %v7921 = vld [vmem:[#allocation14 + $0x50c] sm:$0xf]
        %v7922 = vld [vmem:[#allocation14 + $0x510] sm:$0xf]
        %v7923 = vld [vmem:[#allocation14 + $0x514] sm:$0xf]
        %v7924 = vld [vmem:[#allocation14 + $0x518] sm:$0xf]
        %v7925 = vld [vmem:[#allocation14 + $0x51c] sm:$0xf]
        %v7926 = vld [vmem:[#allocation14 + $0x520] sm:$0xf]
        %v7927 = vld [vmem:[#allocation14 + $0x524] sm:$0xf]
        %v7928 = vld [vmem:[#allocation14 + $0x528] sm:$0xf]
        %v7929 = vld [vmem:[#allocation14 + $0x52c] sm:$0xf]
        %v7930 = vld [vmem:[#allocation14 + $0x530] sm:$0xf]
        %v7931 = vld [vmem:[#allocation14 + $0x534] sm:$0xf]
        %v7932 = vld [vmem:[#allocation14 + $0x538] sm:$0xf]
        %v7933 = vld [vmem:[#allocation14 + $0x53c] sm:$0xf]
        %v7934 = vld [vmem:[#allocation14 + $0x540] sm:$0xf]
        %v7935 = vld [vmem:[#allocation14 + $0x544] sm:$0xf]
        %v7936 = vld [vmem:[#allocation14 + $0x548] sm:$0xf]
        %v7937 = vld [vmem:[#allocation14 + $0x54c] sm:$0xf]
        %v7938 = vld [vmem:[#allocation14 + $0x550] sm:$0xf]
        %v7939 = vld [vmem:[#allocation14 + $0x554] sm:$0xf]
        %v7940 = vld [vmem:[#allocation14 + $0x558] sm:$0xf]
        %v7941 = vld [vmem:[#allocation14 + $0x55c] sm:$0xf]
        %v7942 = vld [vmem:[#allocation14 + $0x560] sm:$0xf]
        %v7943 = vld [vmem:[#allocation14 + $0x564] sm:$0xf]
        %v7944 = vld [vmem:[#allocation14 + $0x568] sm:$0xf]
        %v7945 = vld [vmem:[#allocation14 + $0x56c] sm:$0xf]
        %v7946 = vld [vmem:[#allocation14 + $0x570] sm:$0xf]
        %v7947 = vld [vmem:[#allocation14 + $0x574] sm:$0xf]
        %v7948 = vld [vmem:[#allocation14 + $0x578] sm:$0xf]
        %v7949 = vld [vmem:[#allocation14 + $0x57c] sm:$0xf]
        %v7950 = vld [vmem:[#allocation14 + $0x580] sm:$0xf]
        %v7951 = vld [vmem:[#allocation14 + $0x584] sm:$0xf]
        %v7952 = vld [vmem:[#allocation14 + $0x588] sm:$0xf]
        %v7953 = vld [vmem:[#allocation14 + $0x58c] sm:$0xf]
        %v7954 = vld [vmem:[#allocation14 + $0x590] sm:$0xf]
        %v7955 = vld [vmem:[#allocation14 + $0x594] sm:$0xf]
        %v7956 = vld [vmem:[#allocation14 + $0x598] sm:$0xf]
        %v7957 = vld [vmem:[#allocation14 + $0x59c] sm:$0xf]
        %v7958 = vld [vmem:[#allocation14 + $0x5a0] sm:$0xf]
        %v7959 = vld [vmem:[#allocation14 + $0x5a4] sm:$0xf]
        %v7960 = vld [vmem:[#allocation14 + $0x5a8] sm:$0xf]
        %v7961 = vld [vmem:[#allocation14 + $0x5ac] sm:$0xf]
        %v7962 = vld [vmem:[#allocation14 + $0x5b0] sm:$0xf]
        %v7963 = vld [vmem:[#allocation14 + $0x5b4] sm:$0xf]
        %v7964 = vld [vmem:[#allocation14 + $0x5b8] sm:$0xf]
        %v7965 = vld [vmem:[#allocation14 + $0x5bc] sm:$0xf]
        %v7966 = vld [vmem:[#allocation14 + $0x5c0] sm:$0xf]
        %v7967 = vld [vmem:[#allocation14 + $0x5c4] sm:$0xf]
        %v7968 = vld [vmem:[#allocation14 + $0x5c8] sm:$0xf]
        %v7969 = vld [vmem:[#allocation14 + $0x5cc] sm:$0xf]
        %v7970 = vld [vmem:[#allocation14 + $0x5d0] sm:$0xf]
        %v7971 = vld [vmem:[#allocation14 + $0x5d4] sm:$0xf]
        %v7972 = vld [vmem:[#allocation14 + $0x5d8] sm:$0xf]
        %v7973 = vld [vmem:[#allocation14 + $0x5dc] sm:$0xf]
        %v7974 = vld [vmem:[#allocation14 + $0x5e0] sm:$0xf]
        %v7975 = vld [vmem:[#allocation14 + $0x5e4] sm:$0xf]
        %v7976 = vld [vmem:[#allocation14 + $0x5e8] sm:$0xf]
        %v7977 = vld [vmem:[#allocation14 + $0x5ec] sm:$0xf]
        %v7978 = vld [vmem:[#allocation14 + $0x5f0] sm:$0xf]
        %v7979 = vld [vmem:[#allocation14 + $0x5f4] sm:$0xf]
        %v7980 = vld [vmem:[#allocation14 + $0x5f8] sm:$0xf]
        %v7981 = vld [vmem:[#allocation14 + $0x5fc] sm:$0xf]
        %v7982 = vld [vmem:[#allocation14 + $0x600] sm:$0xf]
        %v7983 = vld [vmem:[#allocation14 + $0x604] sm:$0xf]
        %v7984 = vld [vmem:[#allocation14 + $0x608] sm:$0xf]
        %v7985 = vld [vmem:[#allocation14 + $0x60c] sm:$0xf]
        %v7986 = vld [vmem:[#allocation14 + $0x610] sm:$0xf]
        %v7987 = vld [vmem:[#allocation14 + $0x614] sm:$0xf]
        %v7988 = vld [vmem:[#allocation14 + $0x618] sm:$0xf]
        %v7989 = vld [vmem:[#allocation14 + $0x61c] sm:$0xf]
        %v7990 = vld [vmem:[#allocation14 + $0x620] sm:$0xf]
        %v7991 = vld [vmem:[#allocation14 + $0x624] sm:$0xf]
        %v7992 = vld [vmem:[#allocation14 + $0x628] sm:$0xf]
        %v7993 = vld [vmem:[#allocation14 + $0x62c] sm:$0xf]
        %v7994 = vld [vmem:[#allocation14 + $0x630] sm:$0xf]
        %v7995 = vld [vmem:[#allocation14 + $0x634] sm:$0xf]
        %v7996 = vld [vmem:[#allocation14 + $0x638] sm:$0xf]
        %v7997 = vld [vmem:[#allocation14 + $0x63c] sm:$0xf]
        %v7998 = vld [vmem:[#allocation14 + $0x640] sm:$0xf]
        %v7999 = vld [vmem:[#allocation14 + $0x644] sm:$0xf]
        %v8000 = vld [vmem:[#allocation14 + $0x648] sm:$0xf]
        %v8001 = vld [vmem:[#allocation14 + $0x64c] sm:$0xf]
        %v8002 = vld [vmem:[#allocation14 + $0x650] sm:$0xf]
        %v8003 = vld [vmem:[#allocation14 + $0x654] sm:$0xf]
        %v8004 = vld [vmem:[#allocation14 + $0x658] sm:$0xf]
        %v8005 = vld [vmem:[#allocation14 + $0x65c] sm:$0xf]
        %v8006 = vld [vmem:[#allocation14 + $0x660] sm:$0xf]
        %v8007 = vld [vmem:[#allocation14 + $0x664] sm:$0xf]
        %v8008 = vld [vmem:[#allocation14 + $0x668] sm:$0xf]
        %v8009 = vld [vmem:[#allocation14 + $0x66c] sm:$0xf]
        %v8010 = vld [vmem:[#allocation14 + $0x670] sm:$0xf]
        %v8011 = vld [vmem:[#allocation14 + $0x674] sm:$0xf]
        %v8012 = vld [vmem:[#allocation14 + $0x678] sm:$0xf]
        %v8013 = vld [vmem:[#allocation14 + $0x67c] sm:$0xf]
        %v8014 = vld [vmem:[#allocation14 + $0x680] sm:$0xf]
        %v8015 = vld [vmem:[#allocation14 + $0x684] sm:$0xf]
        %v8016 = vld [vmem:[#allocation14 + $0x688] sm:$0xf]
        %v8017 = vld [vmem:[#allocation14 + $0x68c] sm:$0xf]
        %v8018 = vld [vmem:[#allocation14 + $0x690] sm:$0xf]
        %v8019 = vld [vmem:[#allocation14 + $0x694] sm:$0xf]
        %v8020 = vld [vmem:[#allocation14 + $0x698] sm:$0xf]
        %v8021 = vld [vmem:[#allocation14 + $0x69c] sm:$0xf]
        %v8022 = vld [vmem:[#allocation14 + $0x6a0] sm:$0xf]
        %v8023 = vld [vmem:[#allocation14 + $0x6a4] sm:$0xf]
        %v8024 = vld [vmem:[#allocation14 + $0x6a8] sm:$0xf]
        %v8025 = vld [vmem:[#allocation14 + $0x6ac] sm:$0xf]
        %v8026 = vld [vmem:[#allocation14 + $0x6b0] sm:$0xf]
        %v8027 = vld [vmem:[#allocation14 + $0x6b4] sm:$0xf]
        %v8028 = vld [vmem:[#allocation14 + $0x6b8] sm:$0xf]
        %v8029 = vld [vmem:[#allocation14 + $0x6bc] sm:$0xf]
        %v8030 = vld [vmem:[#allocation14 + $0x6c0] sm:$0xf]
        %v8031 = vld [vmem:[#allocation14 + $0x6c4] sm:$0xf]
        %v8032 = vld [vmem:[#allocation14 + $0x6c8] sm:$0xf]
        %v8033 = vld [vmem:[#allocation14 + $0x6cc] sm:$0xf]
        %v8034 = vld [vmem:[#allocation14 + $0x6d0] sm:$0xf]
        %v8035 = vld [vmem:[#allocation14 + $0x6d4] sm:$0xf]
        %v8036 = vld [vmem:[#allocation14 + $0x6d8] sm:$0xf]
        %v8037 = vld [vmem:[#allocation14 + $0x6dc] sm:$0xf]
        %v8038 = vld [vmem:[#allocation14 + $0x6e0] sm:$0xf]
        %v8039 = vld [vmem:[#allocation14 + $0x6e4] sm:$0xf]
        %v8040 = vld [vmem:[#allocation14 + $0x6e8] sm:$0xf]
        %v8041 = vld [vmem:[#allocation14 + $0x6ec] sm:$0xf]
        %v8042 = vld [vmem:[#allocation14 + $0x6f0] sm:$0xf]
        %v8043 = vld [vmem:[#allocation14 + $0x6f4] sm:$0xf]
        %v8044 = vld [vmem:[#allocation14 + $0x6f8] sm:$0xf]
        %v8045 = vld [vmem:[#allocation14 + $0x6fc] sm:$0xf]
        %v8046 = vld [vmem:[#allocation14 + $0x700] sm:$0xf]
        %v8047 = vld [vmem:[#allocation14 + $0x704] sm:$0xf]
        %v8048 = vld [vmem:[#allocation14 + $0x708] sm:$0xf]
        %v8049 = vld [vmem:[#allocation14 + $0x70c] sm:$0xf]
        %v8050 = vld [vmem:[#allocation14 + $0x710] sm:$0xf]
        %v8051 = vld [vmem:[#allocation14 + $0x714] sm:$0xf]
        %v8052 = vld [vmem:[#allocation14 + $0x718] sm:$0xf]
        %v8053 = vld [vmem:[#allocation14 + $0x71c] sm:$0xf]
        %v8054 = vld [vmem:[#allocation14 + $0x720] sm:$0xf]
        %v8055 = vld [vmem:[#allocation14 + $0x724] sm:$0xf]
        %v8056 = vld [vmem:[#allocation14 + $0x728] sm:$0xf]
        %v8057 = vld [vmem:[#allocation14 + $0x72c] sm:$0xf]
        %v8058 = vld [vmem:[#allocation14 + $0x730] sm:$0xf]
        %v8059 = vld [vmem:[#allocation14 + $0x734] sm:$0xf]
        %v8060 = vld [vmem:[#allocation14 + $0x738] sm:$0xf]
        %v8061 = vld [vmem:[#allocation14 + $0x73c] sm:$0xf]
        %v8062 = vld [vmem:[#allocation14 + $0x740] sm:$0xf]
        %v8063 = vld [vmem:[#allocation14 + $0x744] sm:$0xf]
        %v8064 = vld [vmem:[#allocation14 + $0x748] sm:$0xf]
        %v8065 = vld [vmem:[#allocation14 + $0x74c] sm:$0xf]
        %v8066 = vld [vmem:[#allocation14 + $0x750] sm:$0xf]
        %v8067 = vld [vmem:[#allocation14 + $0x754] sm:$0xf]
        %v8068 = vld [vmem:[#allocation14 + $0x758] sm:$0xf]
        %v8069 = vld [vmem:[#allocation14 + $0x75c] sm:$0xf]
        %v8070 = vld [vmem:[#allocation14 + $0x760] sm:$0xf]
        %v8071 = vld [vmem:[#allocation14 + $0x764] sm:$0xf]
        %v8072 = vld [vmem:[#allocation14 + $0x768] sm:$0xf]
        %v8073 = vld [vmem:[#allocation14 + $0x76c] sm:$0xf]
        %v8074 = vld [vmem:[#allocation14 + $0x770] sm:$0xf]
        %v8075 = vld [vmem:[#allocation14 + $0x774] sm:$0xf]
        %v8076 = vld [vmem:[#allocation14 + $0x778] sm:$0xf]
        %v8077 = vld [vmem:[#allocation14 + $0x77c] sm:$0xf]
        %v8078 = vld [vmem:[#allocation14 + $0x780] sm:$0xf]
        %v8079 = vld [vmem:[#allocation14 + $0x784] sm:$0xf]
        %v8080 = vld [vmem:[#allocation14 + $0x788] sm:$0xf]
        %v8081 = vld [vmem:[#allocation14 + $0x78c] sm:$0xf]
        %v8082 = vld [vmem:[#allocation14 + $0x790] sm:$0xf]
        %v8083 = vld [vmem:[#allocation14 + $0x794] sm:$0xf]
        %v8084 = vld [vmem:[#allocation14 + $0x798] sm:$0xf]
        %v8085 = vld [vmem:[#allocation14 + $0x79c] sm:$0xf]
        %v8086 = vld [vmem:[#allocation14 + $0x7a0] sm:$0xf]
        %v8087 = vld [vmem:[#allocation14 + $0x7a4] sm:$0xf]
        %v8088 = vld [vmem:[#allocation14 + $0x7a8] sm:$0xf]
        %v8089 = vld [vmem:[#allocation14 + $0x7ac] sm:$0xf]
        %v8090 = vld [vmem:[#allocation14 + $0x7b0] sm:$0xf]
        %v8091 = vld [vmem:[#allocation14 + $0x7b4] sm:$0xf]
        %v8092 = vld [vmem:[#allocation14 + $0x7b8] sm:$0xf]
        %v8093 = vld [vmem:[#allocation14 + $0x7bc] sm:$0xf]
        %v8094 = vld [vmem:[#allocation14 + $0x7c0] sm:$0xf]
        %v8095 = vld [vmem:[#allocation14 + $0x7c4] sm:$0xf]
        %v8096 = vld [vmem:[#allocation14 + $0x7c8] sm:$0xf]
        %v8097 = vld [vmem:[#allocation14 + $0x7cc] sm:$0xf]
        %v8098 = vld [vmem:[#allocation14 + $0x7d0] sm:$0xf]
        %v8099 = vld [vmem:[#allocation14 + $0x7d4] sm:$0xf]
        %v8100 = vld [vmem:[#allocation14 + $0x7d8] sm:$0xf]
        %v8101 = vld [vmem:[#allocation14 + $0x7dc] sm:$0xf]
        %v8102 = vld [vmem:[#allocation14 + $0x7e0] sm:$0xf]
        %v8103 = vld [vmem:[#allocation14 + $0x7e4] sm:$0xf]
        %v8104 = vld [vmem:[#allocation14 + $0x7e8] sm:$0xf]
        %v8105 = vld [vmem:[#allocation14 + $0x7ec] sm:$0xf]
        %v8106 = vld [vmem:[#allocation14 + $0x7f0] sm:$0xf]
        %v8107 = vld [vmem:[#allocation14 + $0x7f4] sm:$0xf]
        %v8108 = vld [vmem:[#allocation14 + $0x7f8] sm:$0xf]
        %v8109 = vld [vmem:[#allocation14 + $0x7fc] sm:$0xf]
        %v8110 = vpack.c.bf16 %v7534, %v7534
        %v8111 = vpack.c.bf16 %v7535, %v7535
        %v8112 = vpack.c.bf16 %v7544, %v7544
        %v8113 = vpack.c.bf16 %v7545, %v7545
        %v8114 = vpack.c.bf16 %v7548, %v7548
        %v8115 = vpack.c.bf16 %v7549, %v7549
        %v8116 = vpack.c.bf16 %v7552, %v7552
        %v8117 = vpack.c.bf16 %v7553, %v7553
        %v8118 = vpack.c.bf16 %v7536, %v7536
        %v8119 = vpack.c.bf16 %v7537, %v7537
        %v8120 = vpack.c.bf16 %v7558, %v7558
        %v8121 = vpack.c.bf16 %v7559, %v7559
        %v8122 = vpack.c.bf16 %v7562, %v7562
        %v8123 = vpack.c.bf16 %v7563, %v7563
        %v8124 = vpack.c.bf16 %v7566, %v7566
        %v8125 = vpack.c.bf16 %v7567, %v7567
        %v8126 = vpack.c.bf16 %v7538, %v7538
        %v8127 = vpack.c.bf16 %v7539, %v7539
        %v8128 = vpack.c.bf16 %v7572, %v7572
        %v8129 = vpack.c.bf16 %v7573, %v7573
        %v8130 = vpack.c.bf16 %v7576, %v7576
        %v8131 = vpack.c.bf16 %v7577, %v7577
        %v8132 = vpack.c.bf16 %v7580, %v7580
        %v8133 = vpack.c.bf16 %v7581, %v7581
        %v8134 = vpack.c.bf16 %v7540, %v7540
        %v8135 = vpack.c.bf16 %v7541, %v7541
        %v8136 = vpack.c.bf16 %v7586, %v7586
        %v8137 = vpack.c.bf16 %v7587, %v7587
        %v8138 = vpack.c.bf16 %v7590, %v7590
        %v8139 = vpack.c.bf16 %v7591, %v7591
        %v8140 = vpack.c.bf16 %v7594, %v7594
        %v8141 = vpack.c.bf16 %v7595, %v7595
        %v8142 = vld [vmem:[%s12] sm:$0x1]
        %v8144 = vlaneseq
        %v8145 = vshrl.u32 %v8144, 7
        %v8146 = vsub.s32 0, %v8145
        %v8147 = vrot.slane %v8142, %v8146
        %v8661 = vunpack.c.l.b16 %v7598
        %v8662 = vunpack.c.l.b16 %v7599
        %v8663 = vunpack.c.l.b16 %v7600
        %v8664 = vunpack.c.l.b16 %v7601
        %v8665 = vunpack.c.l.b16 %v7602
        %v8666 = vunpack.c.l.b16 %v7603
        %v8667 = vunpack.c.l.b16 %v7604
        %v8668 = vunpack.c.l.b16 %v7605
        %v8669 = vunpack.c.l.b16 %v7606
        %v8670 = vunpack.c.l.b16 %v7607
        %v8671 = vunpack.c.l.b16 %v7608
        %v8672 = vunpack.c.l.b16 %v7609
        %v8673 = vunpack.c.l.b16 %v7610
        %v8674 = vunpack.c.l.b16 %v7611
        %v8675 = vunpack.c.l.b16 %v7612
        %v8676 = vunpack.c.l.b16 %v7613
        %v8677 = vunpack.c.l.b16 %v7614
        %v8678 = vunpack.c.l.b16 %v7615
        %v8679 = vunpack.c.l.b16 %v7616
        %v8680 = vunpack.c.l.b16 %v7617
        %v8681 = vunpack.c.l.b16 %v7618
        %v8682 = vunpack.c.l.b16 %v7619
        %v8683 = vunpack.c.l.b16 %v7620
        %v8684 = vunpack.c.l.b16 %v7621
        %v8685 = vunpack.c.l.b16 %v7622
        %v8686 = vunpack.c.l.b16 %v7623
        %v8687 = vunpack.c.l.b16 %v7624
        %v8688 = vunpack.c.l.b16 %v7625
        %v8689 = vunpack.c.l.b16 %v7626
        %v8690 = vunpack.c.l.b16 %v7627
        %v8691 = vunpack.c.l.b16 %v7628
        %v8692 = vunpack.c.l.b16 %v7629
        %v8693 = vunpack.c.l.b16 %v7630
        %v8694 = vunpack.c.l.b16 %v7631
        %v8695 = vunpack.c.l.b16 %v7632
        %v8696 = vunpack.c.l.b16 %v7633
        %v8697 = vunpack.c.l.b16 %v7634
        %v8698 = vunpack.c.l.b16 %v7635
        %v8699 = vunpack.c.l.b16 %v7636
        %v8700 = vunpack.c.l.b16 %v7637
        %v8701 = vunpack.c.l.b16 %v7638
        %v8702 = vunpack.c.l.b16 %v7639
        %v8703 = vunpack.c.l.b16 %v7640
        %v8704 = vunpack.c.l.b16 %v7641
        %v8705 = vunpack.c.l.b16 %v7642
        %v8706 = vunpack.c.l.b16 %v7643
        %v8707 = vunpack.c.l.b16 %v7644
        %v8708 = vunpack.c.l.b16 %v7645
        %v8709 = vunpack.c.l.b16 %v7646
        %v8710 = vunpack.c.l.b16 %v7647
        %v8711 = vunpack.c.l.b16 %v7648
        %v8712 = vunpack.c.l.b16 %v7649
        %v8713 = vunpack.c.l.b16 %v7650
        %v8714 = vunpack.c.l.b16 %v7651
        %v8715 = vunpack.c.l.b16 %v7652
        %v8716 = vunpack.c.l.b16 %v7653
        %v8717 = vunpack.c.l.b16 %v7654
        %v8718 = vunpack.c.l.b16 %v7655
        %v8719 = vunpack.c.l.b16 %v7656
        %v8720 = vunpack.c.l.b16 %v7657
        %v8721 = vunpack.c.l.b16 %v7658
        %v8722 = vunpack.c.l.b16 %v7659
        %v8723 = vunpack.c.l.b16 %v7660
        %v8724 = vunpack.c.l.b16 %v7661
        %v8725 = vunpack.c.l.b16 %v7662
        %v8726 = vunpack.c.l.b16 %v7663
        %v8727 = vunpack.c.l.b16 %v7664
        %v8728 = vunpack.c.l.b16 %v7665
        %v8729 = vunpack.c.l.b16 %v7666
        %v8730 = vunpack.c.l.b16 %v7667
        %v8731 = vunpack.c.l.b16 %v7668
        %v8732 = vunpack.c.l.b16 %v7669
        %v8733 = vunpack.c.l.b16 %v7670
        %v8734 = vunpack.c.l.b16 %v7671
        %v8735 = vunpack.c.l.b16 %v7672
        %v8736 = vunpack.c.l.b16 %v7673
        %v8737 = vunpack.c.l.b16 %v7674
        %v8738 = vunpack.c.l.b16 %v7675
        %v8739 = vunpack.c.l.b16 %v7676
        %v8740 = vunpack.c.l.b16 %v7677
        %v8741 = vunpack.c.l.b16 %v7678
        %v8742 = vunpack.c.l.b16 %v7679
        %v8743 = vunpack.c.l.b16 %v7680
        %v8744 = vunpack.c.l.b16 %v7681
        %v8745 = vunpack.c.l.b16 %v7682
        %v8746 = vunpack.c.l.b16 %v7683
        %v8747 = vunpack.c.l.b16 %v7684
        %v8748 = vunpack.c.l.b16 %v7685
        %v8749 = vunpack.c.l.b16 %v7686
        %v8750 = vunpack.c.l.b16 %v7687
        %v8751 = vunpack.c.l.b16 %v7688
        %v8752 = vunpack.c.l.b16 %v7689
        %v8753 = vunpack.c.l.b16 %v7690
        %v8754 = vunpack.c.l.b16 %v7691
        %v8755 = vunpack.c.l.b16 %v7692
        %v8756 = vunpack.c.l.b16 %v7693
        %v8757 = vunpack.c.l.b16 %v7694
        %v8758 = vunpack.c.l.b16 %v7695
        %v8759 = vunpack.c.l.b16 %v7696
        %v8760 = vunpack.c.l.b16 %v7697
        %v8761 = vunpack.c.l.b16 %v7698
        %v8762 = vunpack.c.l.b16 %v7699
        %v8763 = vunpack.c.l.b16 %v7700
        %v8764 = vunpack.c.l.b16 %v7701
        %v8765 = vunpack.c.l.b16 %v7702
        %v8766 = vunpack.c.l.b16 %v7703
        %v8767 = vunpack.c.l.b16 %v7704
        %v8768 = vunpack.c.l.b16 %v7705
        %v8769 = vunpack.c.l.b16 %v7706
        %v8770 = vunpack.c.l.b16 %v7707
        %v8771 = vunpack.c.l.b16 %v7708
        %v8772 = vunpack.c.l.b16 %v7709
        %v8773 = vunpack.c.l.b16 %v7710
        %v8774 = vunpack.c.l.b16 %v7711
        %v8775 = vunpack.c.l.b16 %v7712
        %v8776 = vunpack.c.l.b16 %v7713
        %v8777 = vunpack.c.l.b16 %v7714
        %v8778 = vunpack.c.l.b16 %v7715
        %v8779 = vunpack.c.l.b16 %v7716
        %v8780 = vunpack.c.l.b16 %v7717
        %v8781 = vunpack.c.l.b16 %v7718
        %v8782 = vunpack.c.l.b16 %v7719
        %v8783 = vunpack.c.l.b16 %v7720
        %v8784 = vunpack.c.l.b16 %v7721
        %v8785 = vunpack.c.l.b16 %v7722
        %v8786 = vunpack.c.l.b16 %v7723
        %v8787 = vunpack.c.l.b16 %v7724
        %v8788 = vunpack.c.l.b16 %v7725
        %v8789 = vunpack.c.l.b16 %v7726
        %v8790 = vunpack.c.l.b16 %v7727
        %v8791 = vunpack.c.l.b16 %v7728
        %v8792 = vunpack.c.l.b16 %v7729
        %v8793 = vunpack.c.l.b16 %v7730
        %v8794 = vunpack.c.l.b16 %v7731
        %v8795 = vunpack.c.l.b16 %v7732
        %v8796 = vunpack.c.l.b16 %v7733
        %v8797 = vunpack.c.l.b16 %v7734
        %v8798 = vunpack.c.l.b16 %v7735
        %v8799 = vunpack.c.l.b16 %v7736
        %v8800 = vunpack.c.l.b16 %v7737
        %v8801 = vunpack.c.l.b16 %v7738
        %v8802 = vunpack.c.l.b16 %v7739
        %v8803 = vunpack.c.l.b16 %v7740
        %v8804 = vunpack.c.l.b16 %v7741
        %v8805 = vunpack.c.l.b16 %v7742
        %v8806 = vunpack.c.l.b16 %v7743
        %v8807 = vunpack.c.l.b16 %v7744
        %v8808 = vunpack.c.l.b16 %v7745
        %v8809 = vunpack.c.l.b16 %v7746
        %v8810 = vunpack.c.l.b16 %v7747
        %v8811 = vunpack.c.l.b16 %v7748
        %v8812 = vunpack.c.l.b16 %v7749
        %v8813 = vunpack.c.l.b16 %v7750
        %v8814 = vunpack.c.l.b16 %v7751
        %v8815 = vunpack.c.l.b16 %v7752
        %v8816 = vunpack.c.l.b16 %v7753
        %v8817 = vunpack.c.l.b16 %v7754
        %v8818 = vunpack.c.l.b16 %v7755
        %v8819 = vunpack.c.l.b16 %v7756
        %v8820 = vunpack.c.l.b16 %v7757
        %v8821 = vunpack.c.l.b16 %v7758
        %v8822 = vunpack.c.l.b16 %v7759
        %v8823 = vunpack.c.l.b16 %v7760
        %v8824 = vunpack.c.l.b16 %v7761
        %v8825 = vunpack.c.l.b16 %v7762
        %v8826 = vunpack.c.l.b16 %v7763
        %v8827 = vunpack.c.l.b16 %v7764
        %v8828 = vunpack.c.l.b16 %v7765
        %v8829 = vunpack.c.l.b16 %v7766
        %v8830 = vunpack.c.l.b16 %v7767
        %v8831 = vunpack.c.l.b16 %v7768
        %v8832 = vunpack.c.l.b16 %v7769
        %v8833 = vunpack.c.l.b16 %v7770
        %v8834 = vunpack.c.l.b16 %v7771
        %v8835 = vunpack.c.l.b16 %v7772
        %v8836 = vunpack.c.l.b16 %v7773
        %v8837 = vunpack.c.l.b16 %v7774
        %v8838 = vunpack.c.l.b16 %v7775
        %v8839 = vunpack.c.l.b16 %v7776
        %v8840 = vunpack.c.l.b16 %v7777
        %v8841 = vunpack.c.l.b16 %v7778
        %v8842 = vunpack.c.l.b16 %v7779
        %v8843 = vunpack.c.l.b16 %v7780
        %v8844 = vunpack.c.l.b16 %v7781
        %v8845 = vunpack.c.l.b16 %v7782
        %v8846 = vunpack.c.l.b16 %v7783
        %v8847 = vunpack.c.l.b16 %v7784
        %v8848 = vunpack.c.l.b16 %v7785
        %v8849 = vunpack.c.l.b16 %v7786
        %v8850 = vunpack.c.l.b16 %v7787
        %v8851 = vunpack.c.l.b16 %v7788
        %v8852 = vunpack.c.l.b16 %v7789
        %v8853 = vunpack.c.l.b16 %v7790
        %v8854 = vunpack.c.l.b16 %v7791
        %v8855 = vunpack.c.l.b16 %v7792
        %v8856 = vunpack.c.l.b16 %v7793
        %v8857 = vunpack.c.l.b16 %v7794
        %v8858 = vunpack.c.l.b16 %v7795
        %v8859 = vunpack.c.l.b16 %v7796
        %v8860 = vunpack.c.l.b16 %v7797
        %v8861 = vunpack.c.l.b16 %v7798
        %v8862 = vunpack.c.l.b16 %v7799
        %v8863 = vunpack.c.l.b16 %v7800
        %v8864 = vunpack.c.l.b16 %v7801
        %v8865 = vunpack.c.l.b16 %v7802
        %v8866 = vunpack.c.l.b16 %v7803
        %v8867 = vunpack.c.l.b16 %v7804
        %v8868 = vunpack.c.l.b16 %v7805
        %v8869 = vunpack.c.l.b16 %v7806
        %v8870 = vunpack.c.l.b16 %v7807
        %v8871 = vunpack.c.l.b16 %v7808
        %v8872 = vunpack.c.l.b16 %v7809
        %v8873 = vunpack.c.l.b16 %v7810
        %v8874 = vunpack.c.l.b16 %v7811
        %v8875 = vunpack.c.l.b16 %v7812
        %v8876 = vunpack.c.l.b16 %v7813
        %v8877 = vunpack.c.l.b16 %v7814
        %v8878 = vunpack.c.l.b16 %v7815
        %v8879 = vunpack.c.l.b16 %v7816
        %v8880 = vunpack.c.l.b16 %v7817
        %v8881 = vunpack.c.l.b16 %v7818
        %v8882 = vunpack.c.l.b16 %v7819
        %v8883 = vunpack.c.l.b16 %v7820
        %v8884 = vunpack.c.l.b16 %v7821
        %v8885 = vunpack.c.l.b16 %v7822
        %v8886 = vunpack.c.l.b16 %v7823
        %v8887 = vunpack.c.l.b16 %v7824
        %v8888 = vunpack.c.l.b16 %v7825
        %v8889 = vunpack.c.l.b16 %v7826
        %v8890 = vunpack.c.l.b16 %v7827
        %v8891 = vunpack.c.l.b16 %v7828
        %v8892 = vunpack.c.l.b16 %v7829
        %v8893 = vunpack.c.l.b16 %v7830
        %v8894 = vunpack.c.l.b16 %v7831
        %v8895 = vunpack.c.l.b16 %v7832
        %v8896 = vunpack.c.l.b16 %v7833
        %v8897 = vunpack.c.l.b16 %v7834
        %v8898 = vunpack.c.l.b16 %v7835
        %v8899 = vunpack.c.l.b16 %v7836
        %v8900 = vunpack.c.l.b16 %v7837
        %v8901 = vunpack.c.l.b16 %v7838
        %v8902 = vunpack.c.l.b16 %v7839
        %v8903 = vunpack.c.l.b16 %v7840
        %v8904 = vunpack.c.l.b16 %v7841
        %v8905 = vunpack.c.l.b16 %v7842
        %v8906 = vunpack.c.l.b16 %v7843
        %v8907 = vunpack.c.l.b16 %v7844
        %v8908 = vunpack.c.l.b16 %v7845
        %v8909 = vunpack.c.l.b16 %v7846
        %v8910 = vunpack.c.l.b16 %v7847
        %v8911 = vunpack.c.l.b16 %v7848
        %v8912 = vunpack.c.l.b16 %v7849
        %v8913 = vunpack.c.l.b16 %v7850
        %v8914 = vunpack.c.l.b16 %v7851
        %v8915 = vunpack.c.l.b16 %v7852
        %v8916 = vunpack.c.l.b16 %v7853
        %v8917 = vunpack.c.l.b16 %v7854
        %v8918 = vunpack.c.l.b16 %v7855
        %v8919 = vunpack.c.l.b16 %v7856
        %v8920 = vunpack.c.l.b16 %v7857
        %v8921 = vunpack.c.l.b16 %v7858
        %v8922 = vunpack.c.l.b16 %v7859
        %v8923 = vunpack.c.l.b16 %v7860
        %v8924 = vunpack.c.l.b16 %v7861
        %v8925 = vunpack.c.l.b16 %v7862
        %v8926 = vunpack.c.l.b16 %v7863
        %v8927 = vunpack.c.l.b16 %v7864
        %v8928 = vunpack.c.l.b16 %v7865
        %v8929 = vunpack.c.l.b16 %v7866
        %v8930 = vunpack.c.l.b16 %v7867
        %v8931 = vunpack.c.l.b16 %v7868
        %v8932 = vunpack.c.l.b16 %v7869
        %v8933 = vunpack.c.l.b16 %v7870
        %v8934 = vunpack.c.l.b16 %v7871
        %v8935 = vunpack.c.l.b16 %v7872
        %v8936 = vunpack.c.l.b16 %v7873
        %v8937 = vunpack.c.l.b16 %v7874
        %v8938 = vunpack.c.l.b16 %v7875
        %v8939 = vunpack.c.l.b16 %v7876
        %v8940 = vunpack.c.l.b16 %v7877
        %v8941 = vunpack.c.l.b16 %v7878
        %v8942 = vunpack.c.l.b16 %v7879
        %v8943 = vunpack.c.l.b16 %v7880
        %v8944 = vunpack.c.l.b16 %v7881
        %v8945 = vunpack.c.l.b16 %v7882
        %v8946 = vunpack.c.l.b16 %v7883
        %v8947 = vunpack.c.l.b16 %v7884
        %v8948 = vunpack.c.l.b16 %v7885
        %v8949 = vunpack.c.l.b16 %v7886
        %v8950 = vunpack.c.l.b16 %v7887
        %v8951 = vunpack.c.l.b16 %v7888
        %v8952 = vunpack.c.l.b16 %v7889
        %v8953 = vunpack.c.l.b16 %v7890
        %v8954 = vunpack.c.l.b16 %v7891
        %v8955 = vunpack.c.l.b16 %v7892
        %v8956 = vunpack.c.l.b16 %v7893
        %v8957 = vunpack.c.l.b16 %v7894
        %v8958 = vunpack.c.l.b16 %v7895
        %v8959 = vunpack.c.l.b16 %v7896
        %v8960 = vunpack.c.l.b16 %v7897
        %v8961 = vunpack.c.l.b16 %v7898
        %v8962 = vunpack.c.l.b16 %v7899
        %v8963 = vunpack.c.l.b16 %v7900
        %v8964 = vunpack.c.l.b16 %v7901
        %v8965 = vunpack.c.l.b16 %v7902
        %v8966 = vunpack.c.l.b16 %v7903
        %v8967 = vunpack.c.l.b16 %v7904
        %v8968 = vunpack.c.l.b16 %v7905
        %v8969 = vunpack.c.l.b16 %v7906
        %v8970 = vunpack.c.l.b16 %v7907
        %v8971 = vunpack.c.l.b16 %v7908
        %v8972 = vunpack.c.l.b16 %v7909
        %v8973 = vunpack.c.l.b16 %v7910
        %v8974 = vunpack.c.l.b16 %v7911
        %v8975 = vunpack.c.l.b16 %v7912
        %v8976 = vunpack.c.l.b16 %v7913
        %v8977 = vunpack.c.l.b16 %v7914
        %v8978 = vunpack.c.l.b16 %v7915
        %v8979 = vunpack.c.l.b16 %v7916
        %v8980 = vunpack.c.l.b16 %v7917
        %v8981 = vunpack.c.l.b16 %v7918
        %v8982 = vunpack.c.l.b16 %v7919
        %v8983 = vunpack.c.l.b16 %v7920
        %v8984 = vunpack.c.l.b16 %v7921
        %v8985 = vunpack.c.l.b16 %v7922
        %v8986 = vunpack.c.l.b16 %v7923
        %v8987 = vunpack.c.l.b16 %v7924
        %v8988 = vunpack.c.l.b16 %v7925
        %v8989 = vunpack.c.l.b16 %v7926
        %v8990 = vunpack.c.l.b16 %v7927
        %v8991 = vunpack.c.l.b16 %v7928
        %v8992 = vunpack.c.l.b16 %v7929
        %v8993 = vunpack.c.l.b16 %v7930
        %v8994 = vunpack.c.l.b16 %v7931
        %v8995 = vunpack.c.l.b16 %v7932
        %v8996 = vunpack.c.l.b16 %v7933
        %v8997 = vunpack.c.l.b16 %v7934
        %v8998 = vunpack.c.l.b16 %v7935
        %v8999 = vunpack.c.l.b16 %v7936
        %v9000 = vunpack.c.l.b16 %v7937
        %v9001 = vunpack.c.l.b16 %v7938
        %v9002 = vunpack.c.l.b16 %v7939
        %v9003 = vunpack.c.l.b16 %v7940
        %v9004 = vunpack.c.l.b16 %v7941
        %v9005 = vunpack.c.l.b16 %v7942
        %v9006 = vunpack.c.l.b16 %v7943
        %v9007 = vunpack.c.l.b16 %v7944
        %v9008 = vunpack.c.l.b16 %v7945
        %v9009 = vunpack.c.l.b16 %v7946
        %v9010 = vunpack.c.l.b16 %v7947
        %v9011 = vunpack.c.l.b16 %v7948
        %v9012 = vunpack.c.l.b16 %v7949
        %v9013 = vunpack.c.l.b16 %v7950
        %v9014 = vunpack.c.l.b16 %v7951
        %v9015 = vunpack.c.l.b16 %v7952
        %v9016 = vunpack.c.l.b16 %v7953
        %v9017 = vunpack.c.l.b16 %v7954
        %v9018 = vunpack.c.l.b16 %v7955
        %v9019 = vunpack.c.l.b16 %v7956
        %v9020 = vunpack.c.l.b16 %v7957
        %v9021 = vunpack.c.l.b16 %v7958
        %v9022 = vunpack.c.l.b16 %v7959
        %v9023 = vunpack.c.l.b16 %v7960
        %v9024 = vunpack.c.l.b16 %v7961
        %v9025 = vunpack.c.l.b16 %v7962
        %v9026 = vunpack.c.l.b16 %v7963
        %v9027 = vunpack.c.l.b16 %v7964
        %v9028 = vunpack.c.l.b16 %v7965
        %v9029 = vunpack.c.l.b16 %v7966
        %v9030 = vunpack.c.l.b16 %v7967
        %v9031 = vunpack.c.l.b16 %v7968
        %v9032 = vunpack.c.l.b16 %v7969
        %v9033 = vunpack.c.l.b16 %v7970
        %v9034 = vunpack.c.l.b16 %v7971
        %v9035 = vunpack.c.l.b16 %v7972
        %v9036 = vunpack.c.l.b16 %v7973
        %v9037 = vunpack.c.l.b16 %v7974
        %v9038 = vunpack.c.l.b16 %v7975
        %v9039 = vunpack.c.l.b16 %v7976
        %v9040 = vunpack.c.l.b16 %v7977
        %v9041 = vunpack.c.l.b16 %v7978
        %v9042 = vunpack.c.l.b16 %v7979
        %v9043 = vunpack.c.l.b16 %v7980
        %v9044 = vunpack.c.l.b16 %v7981
        %v9045 = vunpack.c.l.b16 %v7982
        %v9046 = vunpack.c.l.b16 %v7983
        %v9047 = vunpack.c.l.b16 %v7984
        %v9048 = vunpack.c.l.b16 %v7985
        %v9049 = vunpack.c.l.b16 %v7986
        %v9050 = vunpack.c.l.b16 %v7987
        %v9051 = vunpack.c.l.b16 %v7988
        %v9052 = vunpack.c.l.b16 %v7989
        %v9053 = vunpack.c.l.b16 %v7990
        %v9054 = vunpack.c.l.b16 %v7991
        %v9055 = vunpack.c.l.b16 %v7992
        %v9056 = vunpack.c.l.b16 %v7993
        %v9057 = vunpack.c.l.b16 %v7994
        %v9058 = vunpack.c.l.b16 %v7995
        %v9059 = vunpack.c.l.b16 %v7996
        %v9060 = vunpack.c.l.b16 %v7997
        %v9061 = vunpack.c.l.b16 %v7998
        %v9062 = vunpack.c.l.b16 %v7999
        %v9063 = vunpack.c.l.b16 %v8000
        %v9064 = vunpack.c.l.b16 %v8001
        %v9065 = vunpack.c.l.b16 %v8002
        %v9066 = vunpack.c.l.b16 %v8003
        %v9067 = vunpack.c.l.b16 %v8004
        %v9068 = vunpack.c.l.b16 %v8005
        %v9069 = vunpack.c.l.b16 %v8006
        %v9070 = vunpack.c.l.b16 %v8007
        %v9071 = vunpack.c.l.b16 %v8008
        %v9072 = vunpack.c.l.b16 %v8009
        %v9073 = vunpack.c.l.b16 %v8010
        %v9074 = vunpack.c.l.b16 %v8011
        %v9075 = vunpack.c.l.b16 %v8012
        %v9076 = vunpack.c.l.b16 %v8013
        %v9077 = vunpack.c.l.b16 %v8014
        %v9078 = vunpack.c.l.b16 %v8015
        %v9079 = vunpack.c.l.b16 %v8016
        %v9080 = vunpack.c.l.b16 %v8017
        %v9081 = vunpack.c.l.b16 %v8018
        %v9082 = vunpack.c.l.b16 %v8019
        %v9083 = vunpack.c.l.b16 %v8020
        %v9084 = vunpack.c.l.b16 %v8021
        %v9085 = vunpack.c.l.b16 %v8022
        %v9086 = vunpack.c.l.b16 %v8023
        %v9087 = vunpack.c.l.b16 %v8024
        %v9088 = vunpack.c.l.b16 %v8025
        %v9089 = vunpack.c.l.b16 %v8026
        %v9090 = vunpack.c.l.b16 %v8027
        %v9091 = vunpack.c.l.b16 %v8028
        %v9092 = vunpack.c.l.b16 %v8029
        %v9093 = vunpack.c.l.b16 %v8030
        %v9094 = vunpack.c.l.b16 %v8031
        %v9095 = vunpack.c.l.b16 %v8032
        %v9096 = vunpack.c.l.b16 %v8033
        %v9097 = vunpack.c.l.b16 %v8034
        %v9098 = vunpack.c.l.b16 %v8035
        %v9099 = vunpack.c.l.b16 %v8036
        %v9100 = vunpack.c.l.b16 %v8037
        %v9101 = vunpack.c.l.b16 %v8038
        %v9102 = vunpack.c.l.b16 %v8039
        %v9103 = vunpack.c.l.b16 %v8040
        %v9104 = vunpack.c.l.b16 %v8041
        %v9105 = vunpack.c.l.b16 %v8042
        %v9106 = vunpack.c.l.b16 %v8043
        %v9107 = vunpack.c.l.b16 %v8044
        %v9108 = vunpack.c.l.b16 %v8045
        %v9109 = vunpack.c.l.b16 %v8046
        %v9110 = vunpack.c.l.b16 %v8047
        %v9111 = vunpack.c.l.b16 %v8048
        %v9112 = vunpack.c.l.b16 %v8049
        %v9113 = vunpack.c.l.b16 %v8050
        %v9114 = vunpack.c.l.b16 %v8051
        %v9115 = vunpack.c.l.b16 %v8052
        %v9116 = vunpack.c.l.b16 %v8053
        %v9117 = vunpack.c.l.b16 %v8054
        %v9118 = vunpack.c.l.b16 %v8055
        %v9119 = vunpack.c.l.b16 %v8056
        %v9120 = vunpack.c.l.b16 %v8057
        %v9121 = vunpack.c.l.b16 %v8058
        %v9122 = vunpack.c.l.b16 %v8059
        %v9123 = vunpack.c.l.b16 %v8060
        %v9124 = vunpack.c.l.b16 %v8061
        %v9125 = vunpack.c.l.b16 %v8062
        %v9126 = vunpack.c.l.b16 %v8063
        %v9127 = vunpack.c.l.b16 %v8064
        %v9128 = vunpack.c.l.b16 %v8065
        %v9129 = vunpack.c.l.b16 %v8066
        %v9130 = vunpack.c.l.b16 %v8067
        %v9131 = vunpack.c.l.b16 %v8068
        %v9132 = vunpack.c.l.b16 %v8069
        %v9133 = vunpack.c.l.b16 %v8070
        %v9134 = vunpack.c.l.b16 %v8071
        %v9135 = vunpack.c.l.b16 %v8072
        %v9136 = vunpack.c.l.b16 %v8073
        %v9137 = vunpack.c.l.b16 %v8074
        %v9138 = vunpack.c.l.b16 %v8075
        %v9139 = vunpack.c.l.b16 %v8076
        %v9140 = vunpack.c.l.b16 %v8077
        %v9141 = vunpack.c.l.b16 %v8078
        %v9142 = vunpack.c.l.b16 %v8079
        %v9143 = vunpack.c.l.b16 %v8080
        %v9144 = vunpack.c.l.b16 %v8081
        %v9145 = vunpack.c.l.b16 %v8082
        %v9146 = vunpack.c.l.b16 %v8083
        %v9147 = vunpack.c.l.b16 %v8084
        %v9148 = vunpack.c.l.b16 %v8085
        %v9149 = vunpack.c.l.b16 %v8086
        %v9150 = vunpack.c.l.b16 %v8087
        %v9151 = vunpack.c.l.b16 %v8088
        %v9152 = vunpack.c.l.b16 %v8089
        %v9153 = vunpack.c.l.b16 %v8090
        %v9154 = vunpack.c.l.b16 %v8091
        %v9155 = vunpack.c.l.b16 %v8092
        %v9156 = vunpack.c.l.b16 %v8093
        %v9157 = vunpack.c.l.b16 %v8094
        %v9158 = vunpack.c.l.b16 %v8095
        %v9159 = vunpack.c.l.b16 %v8096
        %v9160 = vunpack.c.l.b16 %v8097
        %v9161 = vunpack.c.l.b16 %v8098
        %v9162 = vunpack.c.l.b16 %v8099
        %v9163 = vunpack.c.l.b16 %v8100
        %v9164 = vunpack.c.l.b16 %v8101
        %v9165 = vunpack.c.l.b16 %v8102
        %v9166 = vunpack.c.l.b16 %v8103
        %v9167 = vunpack.c.l.b16 %v8104
        %v9168 = vunpack.c.l.b16 %v8105
        %v9169 = vunpack.c.l.b16 %v8106
        %v9170 = vunpack.c.l.b16 %v8107
        %v9171 = vunpack.c.l.b16 %v8108
        %v9172 = vunpack.c.l.b16 %v8109
        %v9173 = vpack.c.b16 %v8662, %v8661
        %v9174 = vpack.c.b16 %v8664, %v8663
        %v9175 = vpack.c.b16 %v8666, %v8665
        %v9176 = vpack.c.b16 %v8668, %v8667
        %v9177 = vpack.c.b16 %v8670, %v8669
        %v9178 = vpack.c.b16 %v8672, %v8671
        %v9179 = vpack.c.b16 %v8674, %v8673
        %v9180 = vpack.c.b16 %v8676, %v8675
        %v9181 = vpack.c.b16 %v8678, %v8677
        %v9182 = vpack.c.b16 %v8680, %v8679
        %v9183 = vpack.c.b16 %v8682, %v8681
        %v9184 = vpack.c.b16 %v8684, %v8683
        %v9185 = vpack.c.b16 %v8686, %v8685
        %v9186 = vpack.c.b16 %v8688, %v8687
        %v9187 = vpack.c.b16 %v8690, %v8689
        %v9188 = vpack.c.b16 %v8692, %v8691
        %v9189 = vpack.c.b16 %v8694, %v8693
        %v9190 = vpack.c.b16 %v8696, %v8695
        %v9191 = vpack.c.b16 %v8698, %v8697
        %v9192 = vpack.c.b16 %v8700, %v8699
        %v9193 = vpack.c.b16 %v8702, %v8701
        %v9194 = vpack.c.b16 %v8704, %v8703
        %v9195 = vpack.c.b16 %v8706, %v8705
        %v9196 = vpack.c.b16 %v8708, %v8707
        %v9197 = vpack.c.b16 %v8710, %v8709
        %v9198 = vpack.c.b16 %v8712, %v8711
        %v9199 = vpack.c.b16 %v8714, %v8713
        %v9200 = vpack.c.b16 %v8716, %v8715
        %v9201 = vpack.c.b16 %v8718, %v8717
        %v9202 = vpack.c.b16 %v8720, %v8719
        %v9203 = vpack.c.b16 %v8722, %v8721
        %v9204 = vpack.c.b16 %v8724, %v8723
        %v9205 = vpack.c.b16 %v8726, %v8725
        %v9206 = vpack.c.b16 %v8728, %v8727
        %v9207 = vpack.c.b16 %v8730, %v8729
        %v9208 = vpack.c.b16 %v8732, %v8731
        %v9209 = vpack.c.b16 %v8734, %v8733
        %v9210 = vpack.c.b16 %v8736, %v8735
        %v9211 = vpack.c.b16 %v8738, %v8737
        %v9212 = vpack.c.b16 %v8740, %v8739
        %v9213 = vpack.c.b16 %v8742, %v8741
        %v9214 = vpack.c.b16 %v8744, %v8743
        %v9215 = vpack.c.b16 %v8746, %v8745
        %v9216 = vpack.c.b16 %v8748, %v8747
        %v9217 = vpack.c.b16 %v8750, %v8749
        %v9218 = vpack.c.b16 %v8752, %v8751
        %v9219 = vpack.c.b16 %v8754, %v8753
        %v9220 = vpack.c.b16 %v8756, %v8755
        %v9221 = vpack.c.b16 %v8758, %v8757
        %v9222 = vpack.c.b16 %v8760, %v8759
        %v9223 = vpack.c.b16 %v8762, %v8761
        %v9224 = vpack.c.b16 %v8764, %v8763
        %v9225 = vpack.c.b16 %v8766, %v8765
        %v9226 = vpack.c.b16 %v8768, %v8767
        %v9227 = vpack.c.b16 %v8770, %v8769
        %v9228 = vpack.c.b16 %v8772, %v8771
        %v9229 = vpack.c.b16 %v8774, %v8773
        %v9230 = vpack.c.b16 %v8776, %v8775
        %v9231 = vpack.c.b16 %v8778, %v8777
        %v9232 = vpack.c.b16 %v8780, %v8779
        %v9233 = vpack.c.b16 %v8782, %v8781
        %v9234 = vpack.c.b16 %v8784, %v8783
        %v9235 = vpack.c.b16 %v8786, %v8785
        %v9236 = vpack.c.b16 %v8788, %v8787
        %v9237 = vpack.c.b16 %v8790, %v8789
        %v9238 = vpack.c.b16 %v8792, %v8791
        %v9239 = vpack.c.b16 %v8794, %v8793
        %v9240 = vpack.c.b16 %v8796, %v8795
        %v9241 = vpack.c.b16 %v8798, %v8797
        %v9242 = vpack.c.b16 %v8800, %v8799
        %v9243 = vpack.c.b16 %v8802, %v8801
        %v9244 = vpack.c.b16 %v8804, %v8803
        %v9245 = vpack.c.b16 %v8806, %v8805
        %v9246 = vpack.c.b16 %v8808, %v8807
        %v9247 = vpack.c.b16 %v8810, %v8809
        %v9248 = vpack.c.b16 %v8812, %v8811
        %v9249 = vpack.c.b16 %v8814, %v8813
        %v9250 = vpack.c.b16 %v8816, %v8815
        %v9251 = vpack.c.b16 %v8818, %v8817
        %v9252 = vpack.c.b16 %v8820, %v8819
        %v9253 = vpack.c.b16 %v8822, %v8821
        %v9254 = vpack.c.b16 %v8824, %v8823
        %v9255 = vpack.c.b16 %v8826, %v8825
        %v9256 = vpack.c.b16 %v8828, %v8827
        %v9257 = vpack.c.b16 %v8830, %v8829
        %v9258 = vpack.c.b16 %v8832, %v8831
        %v9259 = vpack.c.b16 %v8834, %v8833
        %v9260 = vpack.c.b16 %v8836, %v8835
        %v9261 = vpack.c.b16 %v8838, %v8837
        %v9262 = vpack.c.b16 %v8840, %v8839
        %v9263 = vpack.c.b16 %v8842, %v8841
        %v9264 = vpack.c.b16 %v8844, %v8843
        %v9265 = vpack.c.b16 %v8846, %v8845
        %v9266 = vpack.c.b16 %v8848, %v8847
        %v9267 = vpack.c.b16 %v8850, %v8849
        %v9268 = vpack.c.b16 %v8852, %v8851
        %v9269 = vpack.c.b16 %v8854, %v8853
        %v9270 = vpack.c.b16 %v8856, %v8855
        %v9271 = vpack.c.b16 %v8858, %v8857
        %v9272 = vpack.c.b16 %v8860, %v8859
        %v9273 = vpack.c.b16 %v8862, %v8861
        %v9274 = vpack.c.b16 %v8864, %v8863
        %v9275 = vpack.c.b16 %v8866, %v8865
        %v9276 = vpack.c.b16 %v8868, %v8867
        %v9277 = vpack.c.b16 %v8870, %v8869
        %v9278 = vpack.c.b16 %v8872, %v8871
        %v9279 = vpack.c.b16 %v8874, %v8873
        %v9280 = vpack.c.b16 %v8876, %v8875
        %v9281 = vpack.c.b16 %v8878, %v8877
        %v9282 = vpack.c.b16 %v8880, %v8879
        %v9283 = vpack.c.b16 %v8882, %v8881
        %v9284 = vpack.c.b16 %v8884, %v8883
        %v9285 = vpack.c.b16 %v8886, %v8885
        %v9286 = vpack.c.b16 %v8888, %v8887
        %v9287 = vpack.c.b16 %v8890, %v8889
        %v9288 = vpack.c.b16 %v8892, %v8891
        %v9289 = vpack.c.b16 %v8894, %v8893
        %v9290 = vpack.c.b16 %v8896, %v8895
        %v9291 = vpack.c.b16 %v8898, %v8897
        %v9292 = vpack.c.b16 %v8900, %v8899
        %v9293 = vpack.c.b16 %v8902, %v8901
        %v9294 = vpack.c.b16 %v8904, %v8903
        %v9295 = vpack.c.b16 %v8906, %v8905
        %v9296 = vpack.c.b16 %v8908, %v8907
        %v9297 = vpack.c.b16 %v8910, %v8909
        %v9298 = vpack.c.b16 %v8912, %v8911
        %v9299 = vpack.c.b16 %v8914, %v8913
        %v9300 = vpack.c.b16 %v8916, %v8915
        %v9301 = vpack.c.b16 %v8918, %v8917
        %v9302 = vpack.c.b16 %v8920, %v8919
        %v9303 = vpack.c.b16 %v8922, %v8921
        %v9304 = vpack.c.b16 %v8924, %v8923
        %v9305 = vpack.c.b16 %v8926, %v8925
        %v9306 = vpack.c.b16 %v8928, %v8927
        %v9307 = vpack.c.b16 %v8930, %v8929
        %v9308 = vpack.c.b16 %v8932, %v8931
        %v9309 = vpack.c.b16 %v8934, %v8933
        %v9310 = vpack.c.b16 %v8936, %v8935
        %v9311 = vpack.c.b16 %v8938, %v8937
        %v9312 = vpack.c.b16 %v8940, %v8939
        %v9313 = vpack.c.b16 %v8942, %v8941
        %v9314 = vpack.c.b16 %v8944, %v8943
        %v9315 = vpack.c.b16 %v8946, %v8945
        %v9316 = vpack.c.b16 %v8948, %v8947
        %v9317 = vpack.c.b16 %v8950, %v8949
        %v9318 = vpack.c.b16 %v8952, %v8951
        %v9319 = vpack.c.b16 %v8954, %v8953
        %v9320 = vpack.c.b16 %v8956, %v8955
        %v9321 = vpack.c.b16 %v8958, %v8957
        %v9322 = vpack.c.b16 %v8960, %v8959
        %v9323 = vpack.c.b16 %v8962, %v8961
        %v9324 = vpack.c.b16 %v8964, %v8963
        %v9325 = vpack.c.b16 %v8966, %v8965
        %v9326 = vpack.c.b16 %v8968, %v8967
        %v9327 = vpack.c.b16 %v8970, %v8969
        %v9328 = vpack.c.b16 %v8972, %v8971
        %v9329 = vpack.c.b16 %v8974, %v8973
        %v9330 = vpack.c.b16 %v8976, %v8975
        %v9331 = vpack.c.b16 %v8978, %v8977
        %v9332 = vpack.c.b16 %v8980, %v8979
        %v9333 = vpack.c.b16 %v8982, %v8981
        %v9334 = vpack.c.b16 %v8984, %v8983
        %v9335 = vpack.c.b16 %v8986, %v8985
        %v9336 = vpack.c.b16 %v8988, %v8987
        %v9337 = vpack.c.b16 %v8990, %v8989
        %v9338 = vpack.c.b16 %v8992, %v8991
        %v9339 = vpack.c.b16 %v8994, %v8993
        %v9340 = vpack.c.b16 %v8996, %v8995
        %v9341 = vpack.c.b16 %v8998, %v8997
        %v9342 = vpack.c.b16 %v9000, %v8999
        %v9343 = vpack.c.b16 %v9002, %v9001
        %v9344 = vpack.c.b16 %v9004, %v9003
        %v9345 = vpack.c.b16 %v9006, %v9005
        %v9346 = vpack.c.b16 %v9008, %v9007
        %v9347 = vpack.c.b16 %v9010, %v9009
        %v9348 = vpack.c.b16 %v9012, %v9011
        %v9349 = vpack.c.b16 %v9014, %v9013
        %v9350 = vpack.c.b16 %v9016, %v9015
        %v9351 = vpack.c.b16 %v9018, %v9017
        %v9352 = vpack.c.b16 %v9020, %v9019
        %v9353 = vpack.c.b16 %v9022, %v9021
        %v9354 = vpack.c.b16 %v9024, %v9023
        %v9355 = vpack.c.b16 %v9026, %v9025
        %v9356 = vpack.c.b16 %v9028, %v9027
        %v9357 = vpack.c.b16 %v9030, %v9029
        %v9358 = vpack.c.b16 %v9032, %v9031
        %v9359 = vpack.c.b16 %v9034, %v9033
        %v9360 = vpack.c.b16 %v9036, %v9035
        %v9361 = vpack.c.b16 %v9038, %v9037
        %v9362 = vpack.c.b16 %v9040, %v9039
        %v9363 = vpack.c.b16 %v9042, %v9041
        %v9364 = vpack.c.b16 %v9044, %v9043
        %v9365 = vpack.c.b16 %v9046, %v9045
        %v9366 = vpack.c.b16 %v9048, %v9047
        %v9367 = vpack.c.b16 %v9050, %v9049
        %v9368 = vpack.c.b16 %v9052, %v9051
        %v9369 = vpack.c.b16 %v9054, %v9053
        %v9370 = vpack.c.b16 %v9056, %v9055
        %v9371 = vpack.c.b16 %v9058, %v9057
        %v9372 = vpack.c.b16 %v9060, %v9059
        %v9373 = vpack.c.b16 %v9062, %v9061
        %v9374 = vpack.c.b16 %v9064, %v9063
        %v9375 = vpack.c.b16 %v9066, %v9065
        %v9376 = vpack.c.b16 %v9068, %v9067
        %v9377 = vpack.c.b16 %v9070, %v9069
        %v9378 = vpack.c.b16 %v9072, %v9071
        %v9379 = vpack.c.b16 %v9074, %v9073
        %v9380 = vpack.c.b16 %v9076, %v9075
        %v9381 = vpack.c.b16 %v9078, %v9077
        %v9382 = vpack.c.b16 %v9080, %v9079
        %v9383 = vpack.c.b16 %v9082, %v9081
        %v9384 = vpack.c.b16 %v9084, %v9083
        %v9385 = vpack.c.b16 %v9086, %v9085
        %v9386 = vpack.c.b16 %v9088, %v9087
        %v9387 = vpack.c.b16 %v9090, %v9089
        %v9388 = vpack.c.b16 %v9092, %v9091
        %v9389 = vpack.c.b16 %v9094, %v9093
        %v9390 = vpack.c.b16 %v9096, %v9095
        %v9391 = vpack.c.b16 %v9098, %v9097
        %v9392 = vpack.c.b16 %v9100, %v9099
        %v9393 = vpack.c.b16 %v9102, %v9101
        %v9394 = vpack.c.b16 %v9104, %v9103
        %v9395 = vpack.c.b16 %v9106, %v9105
        %v9396 = vpack.c.b16 %v9108, %v9107
        %v9397 = vpack.c.b16 %v9110, %v9109
        %v9398 = vpack.c.b16 %v9112, %v9111
        %v9399 = vpack.c.b16 %v9114, %v9113
        %v9400 = vpack.c.b16 %v9116, %v9115
        %v9401 = vpack.c.b16 %v9118, %v9117
        %v9402 = vpack.c.b16 %v9120, %v9119
        %v9403 = vpack.c.b16 %v9122, %v9121
        %v9404 = vpack.c.b16 %v9124, %v9123
        %v9405 = vpack.c.b16 %v9126, %v9125
        %v9406 = vpack.c.b16 %v9128, %v9127
        %v9407 = vpack.c.b16 %v9130, %v9129
        %v9408 = vpack.c.b16 %v9132, %v9131
        %v9409 = vpack.c.b16 %v9134, %v9133
        %v9410 = vpack.c.b16 %v9136, %v9135
        %v9411 = vpack.c.b16 %v9138, %v9137
        %v9412 = vpack.c.b16 %v9140, %v9139
        %v9413 = vpack.c.b16 %v9142, %v9141
        %v9414 = vpack.c.b16 %v9144, %v9143
        %v9415 = vpack.c.b16 %v9146, %v9145
        %v9416 = vpack.c.b16 %v9148, %v9147
        %v9417 = vpack.c.b16 %v9150, %v9149
        %v9418 = vpack.c.b16 %v9152, %v9151
        %v9419 = vpack.c.b16 %v9154, %v9153
        %v9420 = vpack.c.b16 %v9156, %v9155
        %v9421 = vpack.c.b16 %v9158, %v9157
        %v9422 = vpack.c.b16 %v9160, %v9159
        %v9423 = vpack.c.b16 %v9162, %v9161
        %v9424 = vpack.c.b16 %v9164, %v9163
        %v9425 = vpack.c.b16 %v9166, %v9165
        %v9426 = vpack.c.b16 %v9168, %v9167
        %v9427 = vpack.c.b16 %v9170, %v9169
        %v9428 = vpack.c.b16 %v9172, %v9171
        %9685 = vmatprep.subr.bf16.mxu0 0
        %9686 = vmatpush1.bf16.msra.mxu0 %v9173
        %9687 = vmatprep.subr.bf16.mxu0 0
        %9688 = vmatpush1.bf16.msra.mxu0 %v9174
        %9689 = vmatprep.subr.bf16.mxu0 0
        %9690 = vmatpush1.bf16.msra.mxu0 %v9175
        %9691 = vmatprep.subr.bf16.mxu0 0
        %9692 = vmatpush1.bf16.msra.mxu0 %v9176
        %9693 = vmatprep.subr.bf16.mxu0 0
        %9694 = vmatpush1.bf16.msra.mxu0 %v9177
        %9695 = vmatprep.subr.bf16.mxu0 0
        %9696 = vmatpush1.bf16.msra.mxu0 %v9178
        %9697 = vmatprep.subr.bf16.mxu0 0
        %9698 = vmatpush1.bf16.msra.mxu0 %v9179
        %9699 = vmatprep.subr.bf16.mxu0 0
        %9700 = vmatpush1.bf16.msra.mxu0 %v9180
        %9701 = vmatprep.subr.bf16.mxu0 0
        %9702 = vmatpush1.bf16.msra.mxu0 %v9181
        %9703 = vmatprep.subr.bf16.mxu0 0
        %9704 = vmatpush1.bf16.msra.mxu0 %v9182
        %9705 = vmatprep.subr.bf16.mxu0 0
        %9706 = vmatpush1.bf16.msra.mxu0 %v9183
        %9707 = vmatprep.subr.bf16.mxu0 0
        %9708 = vmatpush1.bf16.msra.mxu0 %v9184
        %9709 = vmatprep.subr.bf16.mxu0 0
        %9710 = vmatpush1.bf16.msra.mxu0 %v9185
        %9711 = vmatprep.subr.bf16.mxu0 0
        %9712 = vmatpush1.bf16.msra.mxu0 %v9186
        %9713 = vmatprep.subr.bf16.mxu0 0
        %9714 = vmatpush1.bf16.msra.mxu0 %v9187
        %9715 = vmatprep.subr.bf16.mxu0 0
        %9716 = vmatpush1.bf16.msra.mxu0 %v9188
        %9717 = vmatprep.mubr.bf16.mxu0 %v8111
        %9718 = vmatmul.mubr.bf16.gmra.mrb[0].mxu0 %v8110
        %v9719 = vpop.f32.mrb[0].mxu0
        %v9720 = vadd.f32 %v8147, %v9719
        %v9721 = vpop.f32.mrb[0].mxu0
        %v9722 = vpop.f32.mrb[0].mxu0
        %v9723 = vpop.f32.mrb[0].mxu0
        %9724 = vdwg.mxu0
        %9725 = vmatprep.subr.bf16.mxu0 0
        %9726 = vmatpush1.bf16.msra.mxu0 %v9189
        %9727 = vmatprep.subr.bf16.mxu0 0
        %9728 = vmatpush1.bf16.msra.mxu0 %v9190
        %9729 = vmatprep.subr.bf16.mxu0 0
        %9730 = vmatpush1.bf16.msra.mxu0 %v9191
        %9731 = vmatprep.subr.bf16.mxu0 0
        %9732 = vmatpush1.bf16.msra.mxu0 %v9192
        %9733 = vmatprep.subr.bf16.mxu0 0
        %9734 = vmatpush1.bf16.msra.mxu0 %v9193
        %9735 = vmatprep.subr.bf16.mxu0 0
        %9736 = vmatpush1.bf16.msra.mxu0 %v9194
        %9737 = vmatprep.subr.bf16.mxu0 0
        %9738 = vmatpush1.bf16.msra.mxu0 %v9195
        %9739 = vmatprep.subr.bf16.mxu0 0
        %9740 = vmatpush1.bf16.msra.mxu0 %v9196
        %9741 = vmatprep.subr.bf16.mxu0 0
        %9742 = vmatpush1.bf16.msra.mxu0 %v9197
        %9743 = vmatprep.subr.bf16.mxu0 0
        %9744 = vmatpush1.bf16.msra.mxu0 %v9198
        %9745 = vmatprep.subr.bf16.mxu0 0
        %9746 = vmatpush1.bf16.msra.mxu0 %v9199
        %9747 = vmatprep.subr.bf16.mxu0 0
        %9748 = vmatpush1.bf16.msra.mxu0 %v9200
        %9749 = vmatprep.subr.bf16.mxu0 0
        %9750 = vmatpush1.bf16.msra.mxu0 %v9201
        %9751 = vmatprep.subr.bf16.mxu0 0
        %9752 = vmatpush1.bf16.msra.mxu0 %v9202
        %9753 = vmatprep.subr.bf16.mxu0 0
        %9754 = vmatpush1.bf16.msra.mxu0 %v9203
        %9755 = vmatprep.subr.bf16.mxu0 0
        %9756 = vmatpush1.bf16.msra.mxu0 %v9204
        %9757 = vmatprep.mubr.bf16.mxu0 %v8113
        %9758 = vmatmul.mubr.bf16.gmra.mrb[0].mxu0 %v8112
        %v9759 = vpop.f32.mrb[0].mxu0
        %v9760 = vadd.f32 %v9720, %v9759
        %v9761 = vpop.f32.mrb[0].mxu0
        %v9762 = vpop.f32.mrb[0].mxu0
        %v9763 = vpop.f32.mrb[0].mxu0
        %9764 = vdwg.mxu0
        %9765 = vmatprep.subr.bf16.mxu0 0
        %9766 = vmatpush1.bf16.msra.mxu0 %v9205
        %9767 = vmatprep.subr.bf16.mxu0 0
        %9768 = vmatpush1.bf16.msra.mxu0 %v9206
        %9769 = vmatprep.subr.bf16.mxu0 0
        %9770 = vmatpush1.bf16.msra.mxu0 %v9207
        %9771 = vmatprep.subr.bf16.mxu0 0
        %9772 = vmatpush1.bf16.msra.mxu0 %v9208
        %9773 = vmatprep.subr.bf16.mxu0 0
        %9774 = vmatpush1.bf16.msra.mxu0 %v9209
        %9775 = vmatprep.subr.bf16.mxu0 0
        %9776 = vmatpush1.bf16.msra.mxu0 %v9210
        %9777 = vmatprep.subr.bf16.mxu0 0
        %9778 = vmatpush1.bf16.msra.mxu0 %v9211
        %9779 = vmatprep.subr.bf16.mxu0 0
        %9780 = vmatpush1.bf16.msra.mxu0 %v9212
        %9781 = vmatprep.subr.bf16.mxu0 0
        %9782 = vmatpush1.bf16.msra.mxu0 %v9213
        %9783 = vmatprep.subr.bf16.mxu0 0
        %9784 = vmatpush1.bf16.msra.mxu0 %v9214
        %9785 = vmatprep.subr.bf16.mxu0 0
        %9786 = vmatpush1.bf16.msra.mxu0 %v9215
        %9787 = vmatprep.subr.bf16.mxu0 0
        %9788 = vmatpush1.bf16.msra.mxu0 %v9216
        %9789 = vmatprep.subr.bf16.mxu0 0
        %9790 = vmatpush1.bf16.msra.mxu0 %v9217
        %9791 = vmatprep.subr.bf16.mxu0 0
        %9792 = vmatpush1.bf16.msra.mxu0 %v9218
        %9793 = vmatprep.subr.bf16.mxu0 0
        %9794 = vmatpush1.bf16.msra.mxu0 %v9219
        %9795 = vmatprep.subr.bf16.mxu0 0
        %9796 = vmatpush1.bf16.msra.mxu0 %v9220
        %9797 = vmatprep.mubr.bf16.mxu0 %v8115
        %9798 = vmatmul.mubr.bf16.gmra.mrb[0].mxu0 %v8114
        %v9799 = vpop.f32.mrb[0].mxu0
        %v9800 = vadd.f32 %v9760, %v9799
        %v9801 = vpop.f32.mrb[0].mxu0
        %v9802 = vpop.f32.mrb[0].mxu0
        %v9803 = vpop.f32.mrb[0].mxu0
        %9804 = vdwg.mxu0
        %9805 = vmatprep.subr.bf16.mxu0 0
        %9806 = vmatpush1.bf16.msra.mxu0 %v9221
        %9807 = vmatprep.subr.bf16.mxu0 0
        %9808 = vmatpush1.bf16.msra.mxu0 %v9222
        %9809 = vmatprep.subr.bf16.mxu0 0
        %9810 = vmatpush1.bf16.msra.mxu0 %v9223
        %9811 = vmatprep.subr.bf16.mxu0 0
        %9812 = vmatpush1.bf16.msra.mxu0 %v9224
        %9813 = vmatprep.subr.bf16.mxu0 0
        %9814 = vmatpush1.bf16.msra.mxu0 %v9225
        %9815 = vmatprep.subr.bf16.mxu0 0
        %9816 = vmatpush1.bf16.msra.mxu0 %v9226
        %9817 = vmatprep.subr.bf16.mxu0 0
        %9818 = vmatpush1.bf16.msra.mxu0 %v9227
        %9819 = vmatprep.subr.bf16.mxu0 0
        %9820 = vmatpush1.bf16.msra.mxu0 %v9228
        %9821 = vmatprep.subr.bf16.mxu0 0
        %9822 = vmatpush1.bf16.msra.mxu0 %v9229
        %9823 = vmatprep.subr.bf16.mxu0 0
        %9824 = vmatpush1.bf16.msra.mxu0 %v9230
        %9825 = vmatprep.subr.bf16.mxu0 0
        %9826 = vmatpush1.bf16.msra.mxu0 %v9231
        %9827 = vmatprep.subr.bf16.mxu0 0
        %9828 = vmatpush1.bf16.msra.mxu0 %v9232
        %9829 = vmatprep.subr.bf16.mxu0 0
        %9830 = vmatpush1.bf16.msra.mxu0 %v9233
        %9831 = vmatprep.subr.bf16.mxu0 0
        %9832 = vmatpush1.bf16.msra.mxu0 %v9234
        %9833 = vmatprep.subr.bf16.mxu0 0
        %9834 = vmatpush1.bf16.msra.mxu0 %v9235
        %9835 = vmatprep.subr.bf16.mxu0 0
        %9836 = vmatpush1.bf16.msra.mxu0 %v9236
        %9837 = vmatprep.mubr.bf16.mxu0 %v8117
        %9838 = vmatmul.mubr.bf16.gmra.mrb[0].mxu0 %v8116
        %v9839 = vpop.f32.mrb[0].mxu0
        %v9840 = vadd.f32 %v9800, %v9839
        %v9841 = vpop.f32.mrb[0].mxu0
        %v9842 = vpop.f32.mrb[0].mxu0
        %v9843 = vpop.f32.mrb[0].mxu0
        %9844 = vdwg.mxu0
        %9845 = vmatprep.subr.bf16.mxu0 0
        %9846 = vmatpush1.bf16.msra.mxu0 %v9237
        %9847 = vmatprep.subr.bf16.mxu0 0
        %9848 = vmatpush1.bf16.msra.mxu0 %v9238
        %9849 = vmatprep.subr.bf16.mxu0 0
        %9850 = vmatpush1.bf16.msra.mxu0 %v9239
        %9851 = vmatprep.subr.bf16.mxu0 0
        %9852 = vmatpush1.bf16.msra.mxu0 %v9240
        %9853 = vmatprep.subr.bf16.mxu0 0
        %9854 = vmatpush1.bf16.msra.mxu0 %v9241
        %9855 = vmatprep.subr.bf16.mxu0 0
        %9856 = vmatpush1.bf16.msra.mxu0 %v9242
        %9857 = vmatprep.subr.bf16.mxu0 0
        %9858 = vmatpush1.bf16.msra.mxu0 %v9243
        %9859 = vmatprep.subr.bf16.mxu0 0
        %9860 = vmatpush1.bf16.msra.mxu0 %v9244
        %9861 = vmatprep.subr.bf16.mxu0 0
        %9862 = vmatpush1.bf16.msra.mxu0 %v9245
        %9863 = vmatprep.subr.bf16.mxu0 0
        %9864 = vmatpush1.bf16.msra.mxu0 %v9246
        %9865 = vmatprep.subr.bf16.mxu0 0
        %9866 = vmatpush1.bf16.msra.mxu0 %v9247
        %9867 = vmatprep.subr.bf16.mxu0 0
        %9868 = vmatpush1.bf16.msra.mxu0 %v9248
        %9869 = vmatprep.subr.bf16.mxu0 0
        %9870 = vmatpush1.bf16.msra.mxu0 %v9249
        %9871 = vmatprep.subr.bf16.mxu0 0
        %9872 = vmatpush1.bf16.msra.mxu0 %v9250
        %9873 = vmatprep.subr.bf16.mxu0 0
        %9874 = vmatpush1.bf16.msra.mxu0 %v9251
        %9875 = vmatprep.subr.bf16.mxu0 0
        %9876 = vmatpush1.bf16.msra.mxu0 %v9252
        %9877 = vmatprep.mubr.bf16.mxu0 %v8119
        %9878 = vmatmul.mubr.bf16.gmra.mrb[0].mxu0 %v8118
        %v9879 = vpop.f32.mrb[0].mxu0
        %v9880 = vadd.f32 %v9840, %v9879
        %v9881 = vpop.f32.mrb[0].mxu0
        %v9882 = vpop.f32.mrb[0].mxu0
        %v9883 = vpop.f32.mrb[0].mxu0
        %9884 = vdwg.mxu0
        %9885 = vmatprep.subr.bf16.mxu0 0
        %9886 = vmatpush1.bf16.msra.mxu0 %v9253
        %9887 = vmatprep.subr.bf16.mxu0 0
        %9888 = vmatpush1.bf16.msra.mxu0 %v9254
        %9889 = vmatprep.subr.bf16.mxu0 0
        %9890 = vmatpush1.bf16.msra.mxu0 %v9255
        %9891 = vmatprep.subr.bf16.mxu0 0
        %9892 = vmatpush1.bf16.msra.mxu0 %v9256
        %9893 = vmatprep.subr.bf16.mxu0 0
        %9894 = vmatpush1.bf16.msra.mxu0 %v9257
        %9895 = vmatprep.subr.bf16.mxu0 0
        %9896 = vmatpush1.bf16.msra.mxu0 %v9258
        %9897 = vmatprep.subr.bf16.mxu0 0
        %9898 = vmatpush1.bf16.msra.mxu0 %v9259
        %9899 = vmatprep.subr.bf16.mxu0 0
        %9900 = vmatpush1.bf16.msra.mxu0 %v9260
        %9901 = vmatprep.subr.bf16.mxu0 0
        %9902 = vmatpush1.bf16.msra.mxu0 %v9261
        %9903 = vmatprep.subr.bf16.mxu0 0
        %9904 = vmatpush1.bf16.msra.mxu0 %v9262
        %9905 = vmatprep.subr.bf16.mxu0 0
        %9906 = vmatpush1.bf16.msra.mxu0 %v9263
        %9907 = vmatprep.subr.bf16.mxu0 0
        %9908 = vmatpush1.bf16.msra.mxu0 %v9264
        %9909 = vmatprep.subr.bf16.mxu0 0
        %9910 = vmatpush1.bf16.msra.mxu0 %v9265
        %9911 = vmatprep.subr.bf16.mxu0 0
        %9912 = vmatpush1.bf16.msra.mxu0 %v9266
        %9913 = vmatprep.subr.bf16.mxu0 0
        %9914 = vmatpush1.bf16.msra.mxu0 %v9267
        %9915 = vmatprep.subr.bf16.mxu0 0
        %9916 = vmatpush1.bf16.msra.mxu0 %v9268
        %9917 = vmatprep.mubr.bf16.mxu0 %v8121
        %9918 = vmatmul.mubr.bf16.gmra.mrb[0].mxu0 %v8120
        %v9919 = vpop.f32.mrb[0].mxu0
        %v9920 = vadd.f32 %v9880, %v9919
        %v9921 = vpop.f32.mrb[0].mxu0
        %v9922 = vpop.f32.mrb[0].mxu0
        %v9923 = vpop.f32.mrb[0].mxu0
        %9924 = vdwg.mxu0
        %9925 = vmatprep.subr.bf16.mxu0 0
        %9926 = vmatpush1.bf16.msra.mxu0 %v9269
        %9927 = vmatprep.subr.bf16.mxu0 0
        %9928 = vmatpush1.bf16.msra.mxu0 %v9270
        %9929 = vmatprep.subr.bf16.mxu0 0
        %9930 = vmatpush1.bf16.msra.mxu0 %v9271
        %9931 = vmatprep.subr.bf16.mxu0 0
        %9932 = vmatpush1.bf16.msra.mxu0 %v9272
        %9933 = vmatprep.subr.bf16.mxu0 0
        %9934 = vmatpush1.bf16.msra.mxu0 %v9273
        %9935 = vmatprep.subr.bf16.mxu0 0
        %9936 = vmatpush1.bf16.msra.mxu0 %v9274
        %9937 = vmatprep.subr.bf16.mxu0 0
        %9938 = vmatpush1.bf16.msra.mxu0 %v9275
        %9939 = vmatprep.subr.bf16.mxu0 0
        %9940 = vmatpush1.bf16.msra.mxu0 %v9276
        %9941 = vmatprep.subr.bf16.mxu0 0
        %9942 = vmatpush1.bf16.msra.mxu0 %v9277
        %9943 = vmatprep.subr.bf16.mxu0 0
        %9944 = vmatpush1.bf16.msra.mxu0 %v9278
        %9945 = vmatprep.subr.bf16.mxu0 0
        %9946 = vmatpush1.bf16.msra.mxu0 %v9279
        %9947 = vmatprep.subr.bf16.mxu0 0
        %9948 = vmatpush1.bf16.msra.mxu0 %v9280
        %9949 = vmatprep.subr.bf16.mxu0 0
        %9950 = vmatpush1.bf16.msra.mxu0 %v9281
        %9951 = vmatprep.subr.bf16.mxu0 0
        %9952 = vmatpush1.bf16.msra.mxu0 %v9282
        %9953 = vmatprep.subr.bf16.mxu0 0
        %9954 = vmatpush1.bf16.msra.mxu0 %v9283
        %9955 = vmatprep.subr.bf16.mxu0 0
        %9956 = vmatpush1.bf16.msra.mxu0 %v9284
        %9957 = vmatprep.mubr.bf16.mxu0 %v8123
        %9958 = vmatmul.mubr.bf16.gmra.mrb[0].mxu0 %v8122
        %v9959 = vpop.f32.mrb[0].mxu0
        %v9960 = vadd.f32 %v9920, %v9959
        %v9961 = vpop.f32.mrb[0].mxu0
        %v9962 = vpop.f32.mrb[0].mxu0
        %v9963 = vpop.f32.mrb[0].mxu0
        %9964 = vdwg.mxu0
        %9965 = vmatprep.subr.bf16.mxu0 0
        %9966 = vmatpush1.bf16.msra.mxu0 %v9285
        %9967 = vmatprep.subr.bf16.mxu0 0
        %9968 = vmatpush1.bf16.msra.mxu0 %v9286
        %9969 = vmatprep.subr.bf16.mxu0 0
        %9970 = vmatpush1.bf16.msra.mxu0 %v9287
        %9971 = vmatprep.subr.bf16.mxu0 0
        %9972 = vmatpush1.bf16.msra.mxu0 %v9288
        %9973 = vmatprep.subr.bf16.mxu0 0
        %9974 = vmatpush1.bf16.msra.mxu0 %v9289
        %9975 = vmatprep.subr.bf16.mxu0 0
        %9976 = vmatpush1.bf16.msra.mxu0 %v9290
        %9977 = vmatprep.subr.bf16.mxu0 0
        %9978 = vmatpush1.bf16.msra.mxu0 %v9291
        %9979 = vmatprep.subr.bf16.mxu0 0
        %9980 = vmatpush1.bf16.msra.mxu0 %v9292
        %9981 = vmatprep.subr.bf16.mxu0 0
        %9982 = vmatpush1.bf16.msra.mxu0 %v9293
        %9983 = vmatprep.subr.bf16.mxu0 0
        %9984 = vmatpush1.bf16.msra.mxu0 %v9294
        %9985 = vmatprep.subr.bf16.mxu0 0
        %9986 = vmatpush1.bf16.msra.mxu0 %v9295
        %9987 = vmatprep.subr.bf16.mxu0 0
        %9988 = vmatpush1.bf16.msra.mxu0 %v9296
        %9989 = vmatprep.subr.bf16.mxu0 0
        %9990 = vmatpush1.bf16.msra.mxu0 %v9297
        %9991 = vmatprep.subr.bf16.mxu0 0
        %9992 = vmatpush1.bf16.msra.mxu0 %v9298
        %9993 = vmatprep.subr.bf16.mxu0 0
        %9994 = vmatpush1.bf16.msra.mxu0 %v9299
        %9995 = vmatprep.subr.bf16.mxu0 0
        %9996 = vmatpush1.bf16.msra.mxu0 %v9300
        %9997 = vmatprep.mubr.bf16.mxu0 %v8125
        %9998 = vmatmul.mubr.bf16.gmra.mrb[0].mxu0 %v8124
        %v9999 = vpop.f32.mrb[0].mxu0
        %v10000 = vadd.f32 %v9960, %v9999
        %v10001 = vpop.f32.mrb[0].mxu0
        %v10002 = vpop.f32.mrb[0].mxu0
        %v10003 = vpop.f32.mrb[0].mxu0
        %10004 = vdwg.mxu0
        %10005 = vmatprep.subr.bf16.mxu0 0
        %10006 = vmatpush1.bf16.msra.mxu0 %v9301
        %10007 = vmatprep.subr.bf16.mxu0 0
        %10008 = vmatpush1.bf16.msra.mxu0 %v9302
        %10009 = vmatprep.subr.bf16.mxu0 0
        %10010 = vmatpush1.bf16.msra.mxu0 %v9303
        %10011 = vmatprep.subr.bf16.mxu0 0
        %10012 = vmatpush1.bf16.msra.mxu0 %v9304
        %10013 = vmatprep.subr.bf16.mxu0 0
        %10014 = vmatpush1.bf16.msra.mxu0 %v9305
        %10015 = vmatprep.subr.bf16.mxu0 0
        %10016 = vmatpush1.bf16.msra.mxu0 %v9306
        %10017 = vmatprep.subr.bf16.mxu0 0
        %10018 = vmatpush1.bf16.msra.mxu0 %v9307
        %10019 = vmatprep.subr.bf16.mxu0 0
        %10020 = vmatpush1.bf16.msra.mxu0 %v9308
        %10021 = vmatprep.subr.bf16.mxu0 0
        %10022 = vmatpush1.bf16.msra.mxu0 %v9309
        %10023 = vmatprep.subr.bf16.mxu0 0
        %10024 = vmatpush1.bf16.msra.mxu0 %v9310
        %10025 = vmatprep.subr.bf16.mxu0 0
        %10026 = vmatpush1.bf16.msra.mxu0 %v9311
        %10027 = vmatprep.subr.bf16.mxu0 0
        %10028 = vmatpush1.bf16.msra.mxu0 %v9312
        %10029 = vmatprep.subr.bf16.mxu0 0
        %10030 = vmatpush1.bf16.msra.mxu0 %v9313
        %10031 = vmatprep.subr.bf16.mxu0 0
        %10032 = vmatpush1.bf16.msra.mxu0 %v9314
        %10033 = vmatprep.subr.bf16.mxu0 0
        %10034 = vmatpush1.bf16.msra.mxu0 %v9315
        %10035 = vmatprep.subr.bf16.mxu0 0
        %10036 = vmatpush1.bf16.msra.mxu0 %v9316
        %10037 = vmatprep.mubr.bf16.mxu0 %v8127
        %10038 = vmatmul.mubr.bf16.gmra.mrb[0].mxu0 %v8126
        %v10039 = vpop.f32.mrb[0].mxu0
        %v10040 = vadd.f32 %v10000, %v10039
        %v10041 = vpop.f32.mrb[0].mxu0
        %v10042 = vpop.f32.mrb[0].mxu0
        %v10043 = vpop.f32.mrb[0].mxu0
        %10044 = vdwg.mxu0
        %10045 = vmatprep.subr.bf16.mxu0 0
        %10046 = vmatpush1.bf16.msra.mxu0 %v9317
        %10047 = vmatprep.subr.bf16.mxu0 0
        %10048 = vmatpush1.bf16.msra.mxu0 %v9318
        %10049 = vmatprep.subr.bf16.mxu0 0
        %10050 = vmatpush1.bf16.msra.mxu0 %v9319
        %10051 = vmatprep.subr.bf16.mxu0 0
        %10052 = vmatpush1.bf16.msra.mxu0 %v9320
        %10053 = vmatprep.subr.bf16.mxu0 0
        %10054 = vmatpush1.bf16.msra.mxu0 %v9321
        %10055 = vmatprep.subr.bf16.mxu0 0
        %10056 = vmatpush1.bf16.msra.mxu0 %v9322
        %10057 = vmatprep.subr.bf16.mxu0 0
        %10058 = vmatpush1.bf16.msra.mxu0 %v9323
        %10059 = vmatprep.subr.bf16.mxu0 0
        %10060 = vmatpush1.bf16.msra.mxu0 %v9324
        %10061 = vmatprep.subr.bf16.mxu0 0
        %10062 = vmatpush1.bf16.msra.mxu0 %v9325
        %10063 = vmatprep.subr.bf16.mxu0 0
        %10064 = vmatpush1.bf16.msra.mxu0 %v9326
        %10065 = vmatprep.subr.bf16.mxu0 0
        %10066 = vmatpush1.bf16.msra.mxu0 %v9327
        %10067 = vmatprep.subr.bf16.mxu0 0
        %10068 = vmatpush1.bf16.msra.mxu0 %v9328
        %10069 = vmatprep.subr.bf16.mxu0 0
        %10070 = vmatpush1.bf16.msra.mxu0 %v9329
        %10071 = vmatprep.subr.bf16.mxu0 0
        %10072 = vmatpush1.bf16.msra.mxu0 %v9330
        %10073 = vmatprep.subr.bf16.mxu0 0
        %10074 = vmatpush1.bf16.msra.mxu0 %v9331
        %10075 = vmatprep.subr.bf16.mxu0 0
        %10076 = vmatpush1.bf16.msra.mxu0 %v9332
        %10077 = vmatprep.mubr.bf16.mxu0 %v8129
        %10078 = vmatmul.mubr.bf16.gmra.mrb[0].mxu0 %v8128
        %v10079 = vpop.f32.mrb[0].mxu0
        %v10080 = vadd.f32 %v10040, %v10079
        %v10081 = vpop.f32.mrb[0].mxu0
        %v10082 = vpop.f32.mrb[0].mxu0
        %v10083 = vpop.f32.mrb[0].mxu0
        %10084 = vdwg.mxu0
        %10085 = vmatprep.subr.bf16.mxu0 0
        %10086 = vmatpush1.bf16.msra.mxu0 %v9333
        %10087 = vmatprep.subr.bf16.mxu0 0
        %10088 = vmatpush1.bf16.msra.mxu0 %v9334
        %10089 = vmatprep.subr.bf16.mxu0 0
        %10090 = vmatpush1.bf16.msra.mxu0 %v9335
        %10091 = vmatprep.subr.bf16.mxu0 0
        %10092 = vmatpush1.bf16.msra.mxu0 %v9336
        %10093 = vmatprep.subr.bf16.mxu0 0
        %10094 = vmatpush1.bf16.msra.mxu0 %v9337
        %10095 = vmatprep.subr.bf16.mxu0 0
        %10096 = vmatpush1.bf16.msra.mxu0 %v9338
        %10097 = vmatprep.subr.bf16.mxu0 0
        %10098 = vmatpush1.bf16.msra.mxu0 %v9339
        %10099 = vmatprep.subr.bf16.mxu0 0
        %10100 = vmatpush1.bf16.msra.mxu0 %v9340
        %10101 = vmatprep.subr.bf16.mxu0 0
        %10102 = vmatpush1.bf16.msra.mxu0 %v9341
        %10103 = vmatprep.subr.bf16.mxu0 0
        %10104 = vmatpush1.bf16.msra.mxu0 %v9342
        %10105 = vmatprep.subr.bf16.mxu0 0
        %10106 = vmatpush1.bf16.msra.mxu0 %v9343
        %10107 = vmatprep.subr.bf16.mxu0 0
        %10108 = vmatpush1.bf16.msra.mxu0 %v9344
        %10109 = vmatprep.subr.bf16.mxu0 0
        %10110 = vmatpush1.bf16.msra.mxu0 %v9345
        %10111 = vmatprep.subr.bf16.mxu0 0
        %10112 = vmatpush1.bf16.msra.mxu0 %v9346
        %10113 = vmatprep.subr.bf16.mxu0 0
        %10114 = vmatpush1.bf16.msra.mxu0 %v9347
        %10115 = vmatprep.subr.bf16.mxu0 0
        %10116 = vmatpush1.bf16.msra.mxu0 %v9348
        %10117 = vmatprep.mubr.bf16.mxu0 %v8131
        %10118 = vmatmul.mubr.bf16.gmra.mrb[0].mxu0 %v8130
        %v10119 = vpop.f32.mrb[0].mxu0
        %v10120 = vadd.f32 %v10080, %v10119
        %v10121 = vpop.f32.mrb[0].mxu0
        %v10122 = vpop.f32.mrb[0].mxu0
        %v10123 = vpop.f32.mrb[0].mxu0
        %10124 = vdwg.mxu0
        %10125 = vmatprep.subr.bf16.mxu0 0
        %10126 = vmatpush1.bf16.msra.mxu0 %v9349
        %10127 = vmatprep.subr.bf16.mxu0 0
        %10128 = vmatpush1.bf16.msra.mxu0 %v9350
        %10129 = vmatprep.subr.bf16.mxu0 0
        %10130 = vmatpush1.bf16.msra.mxu0 %v9351
        %10131 = vmatprep.subr.bf16.mxu0 0
        %10132 = vmatpush1.bf16.msra.mxu0 %v9352
        %10133 = vmatprep.subr.bf16.mxu0 0
        %10134 = vmatpush1.bf16.msra.mxu0 %v9353
        %10135 = vmatprep.subr.bf16.mxu0 0
        %10136 = vmatpush1.bf16.msra.mxu0 %v9354
        %10137 = vmatprep.subr.bf16.mxu0 0
        %10138 = vmatpush1.bf16.msra.mxu0 %v9355
        %10139 = vmatprep.subr.bf16.mxu0 0
        %10140 = vmatpush1.bf16.msra.mxu0 %v9356
        %10141 = vmatprep.subr.bf16.mxu0 0
        %10142 = vmatpush1.bf16.msra.mxu0 %v9357
        %10143 = vmatprep.subr.bf16.mxu0 0
        %10144 = vmatpush1.bf16.msra.mxu0 %v9358
        %10145 = vmatprep.subr.bf16.mxu0 0
        %10146 = vmatpush1.bf16.msra.mxu0 %v9359
        %10147 = vmatprep.subr.bf16.mxu0 0
        %10148 = vmatpush1.bf16.msra.mxu0 %v9360
        %10149 = vmatprep.subr.bf16.mxu0 0
        %10150 = vmatpush1.bf16.msra.mxu0 %v9361
        %10151 = vmatprep.subr.bf16.mxu0 0
        %10152 = vmatpush1.bf16.msra.mxu0 %v9362
        %10153 = vmatprep.subr.bf16.mxu0 0
        %10154 = vmatpush1.bf16.msra.mxu0 %v9363
        %10155 = vmatprep.subr.bf16.mxu0 0
        %10156 = vmatpush1.bf16.msra.mxu0 %v9364
        %10157 = vmatprep.mubr.bf16.mxu0 %v8133
        %10158 = vmatmul.mubr.bf16.gmra.mrb[0].mxu0 %v8132
        %v10159 = vpop.f32.mrb[0].mxu0
        %v10160 = vadd.f32 %v10120, %v10159
        %v10161 = vpop.f32.mrb[0].mxu0
        %v10162 = vpop.f32.mrb[0].mxu0
        %v10163 = vpop.f32.mrb[0].mxu0
        %10164 = vdwg.mxu0
        %10165 = vmatprep.subr.bf16.mxu0 0
        %10166 = vmatpush1.bf16.msra.mxu0 %v9365
        %10167 = vmatprep.subr.bf16.mxu0 0
        %10168 = vmatpush1.bf16.msra.mxu0 %v9366
        %10169 = vmatprep.subr.bf16.mxu0 0
        %10170 = vmatpush1.bf16.msra.mxu0 %v9367
        %10171 = vmatprep.subr.bf16.mxu0 0
        %10172 = vmatpush1.bf16.msra.mxu0 %v9368
        %10173 = vmatprep.subr.bf16.mxu0 0
        %10174 = vmatpush1.bf16.msra.mxu0 %v9369
        %10175 = vmatprep.subr.bf16.mxu0 0
        %10176 = vmatpush1.bf16.msra.mxu0 %v9370
        %10177 = vmatprep.subr.bf16.mxu0 0
        %10178 = vmatpush1.bf16.msra.mxu0 %v9371
        %10179 = vmatprep.subr.bf16.mxu0 0
        %10180 = vmatpush1.bf16.msra.mxu0 %v9372
        %10181 = vmatprep.subr.bf16.mxu0 0
        %10182 = vmatpush1.bf16.msra.mxu0 %v9373
        %10183 = vmatprep.subr.bf16.mxu0 0
        %10184 = vmatpush1.bf16.msra.mxu0 %v9374
        %10185 = vmatprep.subr.bf16.mxu0 0
        %10186 = vmatpush1.bf16.msra.mxu0 %v9375
        %10187 = vmatprep.subr.bf16.mxu0 0
        %10188 = vmatpush1.bf16.msra.mxu0 %v9376
        %10189 = vmatprep.subr.bf16.mxu0 0
        %10190 = vmatpush1.bf16.msra.mxu0 %v9377
        %10191 = vmatprep.subr.bf16.mxu0 0
        %10192 = vmatpush1.bf16.msra.mxu0 %v9378
        %10193 = vmatprep.subr.bf16.mxu0 0
        %10194 = vmatpush1.bf16.msra.mxu0 %v9379
        %10195 = vmatprep.subr.bf16.mxu0 0
        %10196 = vmatpush1.bf16.msra.mxu0 %v9380
        %10197 = vmatprep.mubr.bf16.mxu0 %v8135
        %10198 = vmatmul.mubr.bf16.gmra.mrb[0].mxu0 %v8134
        %v10199 = vpop.f32.mrb[0].mxu0
        %v10200 = vadd.f32 %v10160, %v10199
        %v10201 = vpop.f32.mrb[0].mxu0
        %v10202 = vpop.f32.mrb[0].mxu0
        %v10203 = vpop.f32.mrb[0].mxu0
        %10204 = vdwg.mxu0
        %10205 = vmatprep.subr.bf16.mxu0 0
        %10206 = vmatpush1.bf16.msra.mxu0 %v9381
        %10207 = vmatprep.subr.bf16.mxu0 0
        %10208 = vmatpush1.bf16.msra.mxu0 %v9382
        %10209 = vmatprep.subr.bf16.mxu0 0
        %10210 = vmatpush1.bf16.msra.mxu0 %v9383
        %10211 = vmatprep.subr.bf16.mxu0 0
        %10212 = vmatpush1.bf16.msra.mxu0 %v9384
        %10213 = vmatprep.subr.bf16.mxu0 0
        %10214 = vmatpush1.bf16.msra.mxu0 %v9385
        %10215 = vmatprep.subr.bf16.mxu0 0
        %10216 = vmatpush1.bf16.msra.mxu0 %v9386
        %10217 = vmatprep.subr.bf16.mxu0 0
        %10218 = vmatpush1.bf16.msra.mxu0 %v9387
        %10219 = vmatprep.subr.bf16.mxu0 0
        %10220 = vmatpush1.bf16.msra.mxu0 %v9388
        %10221 = vmatprep.subr.bf16.mxu0 0
        %10222 = vmatpush1.bf16.msra.mxu0 %v9389
        %10223 = vmatprep.subr.bf16.mxu0 0
        %10224 = vmatpush1.bf16.msra.mxu0 %v9390
        %10225 = vmatprep.subr.bf16.mxu0 0
        %10226 = vmatpush1.bf16.msra.mxu0 %v9391
        %10227 = vmatprep.subr.bf16.mxu0 0
        %10228 = vmatpush1.bf16.msra.mxu0 %v9392
        %10229 = vmatprep.subr.bf16.mxu0 0
        %10230 = vmatpush1.bf16.msra.mxu0 %v9393
        %10231 = vmatprep.subr.bf16.mxu0 0
        %10232 = vmatpush1.bf16.msra.mxu0 %v9394
        %10233 = vmatprep.subr.bf16.mxu0 0
        %10234 = vmatpush1.bf16.msra.mxu0 %v9395
        %10235 = vmatprep.subr.bf16.mxu0 0
        %10236 = vmatpush1.bf16.msra.mxu0 %v9396
        %10237 = vmatprep.mubr.bf16.mxu0 %v8137
        %10238 = vmatmul.mubr.bf16.gmra.mrb[0].mxu0 %v8136
        %v10239 = vpop.f32.mrb[0].mxu0
        %v10240 = vadd.f32 %v10200, %v10239
        %v10241 = vpop.f32.mrb[0].mxu0
        %v10242 = vpop.f32.mrb[0].mxu0
        %v10243 = vpop.f32.mrb[0].mxu0
        %10244 = vdwg.mxu0
        %10245 = vmatprep.subr.bf16.mxu0 0
        %10246 = vmatpush1.bf16.msra.mxu0 %v9397
        %10247 = vmatprep.subr.bf16.mxu0 0
        %10248 = vmatpush1.bf16.msra.mxu0 %v9398
        %10249 = vmatprep.subr.bf16.mxu0 0
        %10250 = vmatpush1.bf16.msra.mxu0 %v9399
        %10251 = vmatprep.subr.bf16.mxu0 0
        %10252 = vmatpush1.bf16.msra.mxu0 %v9400
        %10253 = vmatprep.subr.bf16.mxu0 0
        %10254 = vmatpush1.bf16.msra.mxu0 %v9401
        %10255 = vmatprep.subr.bf16.mxu0 0
        %10256 = vmatpush1.bf16.msra.mxu0 %v9402
        %10257 = vmatprep.subr.bf16.mxu0 0
        %10258 = vmatpush1.bf16.msra.mxu0 %v9403
        %10259 = vmatprep.subr.bf16.mxu0 0
        %10260 = vmatpush1.bf16.msra.mxu0 %v9404
        %10261 = vmatprep.subr.bf16.mxu0 0
        %10262 = vmatpush1.bf16.msra.mxu0 %v9405
        %10263 = vmatprep.subr.bf16.mxu0 0
        %10264 = vmatpush1.bf16.msra.mxu0 %v9406
        %10265 = vmatprep.subr.bf16.mxu0 0
        %10266 = vmatpush1.bf16.msra.mxu0 %v9407
        %10267 = vmatprep.subr.bf16.mxu0 0
        %10268 = vmatpush1.bf16.msra.mxu0 %v9408
        %10269 = vmatprep.subr.bf16.mxu0 0
        %10270 = vmatpush1.bf16.msra.mxu0 %v9409
        %10271 = vmatprep.subr.bf16.mxu0 0
        %10272 = vmatpush1.bf16.msra.mxu0 %v9410
        %10273 = vmatprep.subr.bf16.mxu0 0
        %10274 = vmatpush1.bf16.msra.mxu0 %v9411
        %10275 = vmatprep.subr.bf16.mxu0 0
        %10276 = vmatpush1.bf16.msra.mxu0 %v9412
        %10277 = vmatprep.mubr.bf16.mxu0 %v8139
        %10278 = vmatmul.mubr.bf16.gmra.mrb[0].mxu0 %v8138
        %v10279 = vpop.f32.mrb[0].mxu0
        %v10280 = vadd.f32 %v10240, %v10279
        %v10281 = vpop.f32.mrb[0].mxu0
        %v10282 = vpop.f32.mrb[0].mxu0
        %v10283 = vpop.f32.mrb[0].mxu0
        %10284 = vdwg.mxu0
        %10285 = vmatprep.subr.bf16.mxu0 0
        %10286 = vmatpush1.bf16.msra.mxu0 %v9413
        %10287 = vmatprep.subr.bf16.mxu0 0
        %10288 = vmatpush1.bf16.msra.mxu0 %v9414
        %10289 = vmatprep.subr.bf16.mxu0 0
        %10290 = vmatpush1.bf16.msra.mxu0 %v9415
        %10291 = vmatprep.subr.bf16.mxu0 0
        %10292 = vmatpush1.bf16.msra.mxu0 %v9416
        %10293 = vmatprep.subr.bf16.mxu0 0
        %10294 = vmatpush1.bf16.msra.mxu0 %v9417
        %10295 = vmatprep.subr.bf16.mxu0 0
        %10296 = vmatpush1.bf16.msra.mxu0 %v9418
        %10297 = vmatprep.subr.bf16.mxu0 0
        %10298 = vmatpush1.bf16.msra.mxu0 %v9419
        %10299 = vmatprep.subr.bf16.mxu0 0
        %10300 = vmatpush1.bf16.msra.mxu0 %v9420
        %10301 = vmatprep.subr.bf16.mxu0 0
        %10302 = vmatpush1.bf16.msra.mxu0 %v9421
        %10303 = vmatprep.subr.bf16.mxu0 0
        %10304 = vmatpush1.bf16.msra.mxu0 %v9422
        %10305 = vmatprep.subr.bf16.mxu0 0
        %10306 = vmatpush1.bf16.msra.mxu0 %v9423
        %10307 = vmatprep.subr.bf16.mxu0 0
        %10308 = vmatpush1.bf16.msra.mxu0 %v9424
        %10309 = vmatprep.subr.bf16.mxu0 0
        %10310 = vmatpush1.bf16.msra.mxu0 %v9425
        %10311 = vmatprep.subr.bf16.mxu0 0
        %10312 = vmatpush1.bf16.msra.mxu0 %v9426
        %10313 = vmatprep.subr.bf16.mxu0 0
        %10314 = vmatpush1.bf16.msra.mxu0 %v9427
        %10315 = vmatprep.subr.bf16.mxu0 0
        %10316 = vmatpush1.bf16.msra.mxu0 %v9428
        %10317 = vmatprep.mubr.bf16.mxu0 %v8141
        %10318 = vmatmul.mubr.bf16.gmra.mrb[0].mxu0 %v8140
        %v10319 = vpop.f32.mrb[0].mxu0
        %v10320 = vadd.f32 %v10280, %v10319
        %v10321 = vpop.f32.mrb[0].mxu0
        %v10322 = vpop.f32.mrb[0].mxu0
        %v10323 = vpop.f32.mrb[0].mxu0
        %10324 = vdwg.mxu0
        %v10325 = vmax.f32 %v10320, 0.0
        %v10326 = vld [vmem:[#allocation16] sm:$0xf]
        %v10327 = vld [vmem:[#allocation16 + $0x4] sm:$0xf]
        %v10328 = vld [vmem:[#allocation16 + $0x8] sm:$0xf]
        %v10329 = vld [vmem:[#allocation16 + $0xc] sm:$0xf]
        %v10330 = vld [vmem:[#allocation16 + $0x10] sm:$0xf]
        %v10331 = vld [vmem:[#allocation16 + $0x14] sm:$0xf]
        %v10332 = vld [vmem:[#allocation16 + $0x18] sm:$0xf]
        %v10333 = vld [vmem:[#allocation16 + $0x1c] sm:$0xf]
        %v10334 = vld [vmem:[#allocation16 + $0x20] sm:$0xf]
        %v10335 = vld [vmem:[#allocation16 + $0x24] sm:$0xf]
        %v10336 = vld [vmem:[#allocation16 + $0x28] sm:$0xf]
        %v10337 = vld [vmem:[#allocation16 + $0x2c] sm:$0xf]
        %v10338 = vld [vmem:[#allocation16 + $0x30] sm:$0xf]
        %v10339 = vld [vmem:[#allocation16 + $0x34] sm:$0xf]
        %v10340 = vld [vmem:[#allocation16 + $0x38] sm:$0xf]
        %v10341 = vld [vmem:[#allocation16 + $0x3c] sm:$0xf]
        %v10342 = vpack.c.bf16 %v10325, %v10325
        %v10343 = vld [vmem:[%s14] sm:$0x1]
        %v10345 = vlaneseq
        %v10346 = vshrl.u32 %v10345, 7
        %v10347 = vsub.s32 0, %v10346
        %v10348 = vrot.slane %v10343, %v10347
        %v10366 = vunpack.c.l.b16 %v10326
        %v10367 = vunpack.c.l.b16 %v10327
        %v10368 = vunpack.c.l.b16 %v10328
        %v10369 = vunpack.c.l.b16 %v10329
        %v10370 = vunpack.c.l.b16 %v10330
        %v10371 = vunpack.c.l.b16 %v10331
        %v10372 = vunpack.c.l.b16 %v10332
        %v10373 = vunpack.c.l.b16 %v10333
        %v10374 = vunpack.c.l.b16 %v10334
        %v10375 = vunpack.c.l.b16 %v10335
        %v10376 = vunpack.c.l.b16 %v10336
        %v10377 = vunpack.c.l.b16 %v10337
        %v10378 = vunpack.c.l.b16 %v10338
        %v10379 = vunpack.c.l.b16 %v10339
        %v10380 = vunpack.c.l.b16 %v10340
        %v10381 = vunpack.c.l.b16 %v10341
        %v10382 = vpack.c.b16 %v10367, %v10366
        %v10383 = vpack.c.b16 %v10369, %v10368
        %v10384 = vpack.c.b16 %v10371, %v10370
        %v10385 = vpack.c.b16 %v10373, %v10372
        %v10386 = vpack.c.b16 %v10375, %v10374
        %v10387 = vpack.c.b16 %v10377, %v10376
        %v10388 = vpack.c.b16 %v10379, %v10378
        %v10389 = vpack.c.b16 %v10381, %v10380
        %10398 = vmatprep.subr.bf16.mxu0 0
        %10399 = vmatpush1.bf16.msra.mxu0 %v10382
        %10400 = vmatprep.subr.bf16.mxu0 0
        %10401 = vmatpush1.bf16.msra.mxu0 %v10383
        %10402 = vmatprep.subr.bf16.mxu0 0
        %10403 = vmatpush1.bf16.msra.mxu0 %v10384
        %10404 = vmatprep.subr.bf16.mxu0 0
        %10405 = vmatpush1.bf16.msra.mxu0 %v10385
        %10406 = vmatprep.subr.bf16.mxu0 0
        %10407 = vmatpush1.bf16.msra.mxu0 %v10386
        %10408 = vmatprep.subr.bf16.mxu0 0
        %10409 = vmatpush1.bf16.msra.mxu0 %v10387
        %10410 = vmatprep.subr.bf16.mxu0 0
        %10411 = vmatpush1.bf16.msra.mxu0 %v10388
        %10412 = vmatprep.subr.bf16.mxu0 0
        %10413 = vmatpush1.bf16.msra.mxu0 %v10389
        %10414 = vmatprep.subr.bf16.mxu0 0
        %10415 = vmatpush1.bf16.msra.mxu0 0
        %10416 = vmatprep.subr.bf16.mxu0 0
        %10417 = vmatpush1.bf16.msra.mxu0 0
        %10418 = vmatprep.subr.bf16.mxu0 0
        %10419 = vmatpush1.bf16.msra.mxu0 0
        %10420 = vmatprep.subr.bf16.mxu0 0
        %10421 = vmatpush1.bf16.msra.mxu0 0
        %10422 = vmatprep.subr.bf16.mxu0 0
        %10423 = vmatpush1.bf16.msra.mxu0 0
        %10424 = vmatprep.subr.bf16.mxu0 0
        %10425 = vmatpush1.bf16.msra.mxu0 0
        %10426 = vmatprep.subr.bf16.mxu0 0
        %10427 = vmatpush1.bf16.msra.mxu0 0
        %10428 = vmatprep.subr.bf16.mxu0 0
        %10429 = vmatpush1.bf16.msra.mxu0 0
        %10430 = vmatprep.mubr.bf16.mxu0 0
        %10431 = vmatmul.mubr.bf16.gmra.mrb[0].mxu0 %v10342
        %v10432 = vpop.f32.mrb[0].mxu0
        %v10433 = vadd.f32 %v10348, %v10432
        %v10434 = vpop.f32.mrb[0].mxu0
        %v10435 = vpop.f32.mrb[0].mxu0
        %v10436 = vpop.f32.mrb[0].mxu0
        %10437 = vdwg.mxu0
        %v10438 = vmax.f32 %v10433, 0.0
        %v10439 = vld [vmem:[#allocation17] sm:$0xf]
        %v10440 = vld [vmem:[#allocation17 + $0x4] sm:$0xf]
        %v10441 = vld [vmem:[#allocation17 + $0x8] sm:$0xf]
        %v10442 = vld [vmem:[#allocation17 + $0xc] sm:$0xf]
        %v10443 = vld [vmem:[#allocation17 + $0x10] sm:$0xf]
        %v10444 = vld [vmem:[#allocation17 + $0x14] sm:$0xf]
        %v10445 = vld [vmem:[#allocation17 + $0x18] sm:$0xf]
        %v10446 = vld [vmem:[#allocation17 + $0x1c] sm:$0xf]
        %v10447 = vld [vmem:[#allocation17 + $0x20] sm:$0xf]
        %v10448 = vld [vmem:[#allocation17 + $0x24] sm:$0xf]
        %v10449 = vld [vmem:[#allocation17 + $0x28] sm:$0xf]
        %v10450 = vld [vmem:[#allocation17 + $0x2c] sm:$0xf]
        %v10451 = vld [vmem:[#allocation17 + $0x30] sm:$0xf]
        %v10452 = vld [vmem:[#allocation17 + $0x34] sm:$0xf]
        %v10453 = vld [vmem:[#allocation17 + $0x38] sm:$0xf]
        %v10454 = vld [vmem:[#allocation17 + $0x3c] sm:$0xf]
        %v10455 = vpack.c.bf16 %v10438, %v10438
        %v10456 = vld [vmem:[%s16] sm:$0x1]
        %v10458 = vlaneseq
        %v10459 = vshrl.u32 %v10458, 7
        %v10460 = vsub.s32 0, %v10459
        %v10461 = vrot.slane %v10456, %v10460
        %v10479 = vunpack.c.l.b16 %v10439
        %v10480 = vunpack.c.l.b16 %v10440
        %v10481 = vunpack.c.l.b16 %v10441
        %v10482 = vunpack.c.l.b16 %v10442
        %v10483 = vunpack.c.l.b16 %v10443
        %v10484 = vunpack.c.l.b16 %v10444
        %v10485 = vunpack.c.l.b16 %v10445
        %v10486 = vunpack.c.l.b16 %v10446
        %v10487 = vunpack.c.l.b16 %v10447
        %v10488 = vunpack.c.l.b16 %v10448
        %v10489 = vunpack.c.l.b16 %v10449
        %v10490 = vunpack.c.l.b16 %v10450
        %v10491 = vunpack.c.l.b16 %v10451
        %v10492 = vunpack.c.l.b16 %v10452
        %v10493 = vunpack.c.l.b16 %v10453
        %v10494 = vunpack.c.l.b16 %v10454
        %v10495 = vpack.c.b16 %v10480, %v10479
        %v10496 = vpack.c.b16 %v10482, %v10481
        %v10497 = vpack.c.b16 %v10484, %v10483
        %v10498 = vpack.c.b16 %v10486, %v10485
        %v10499 = vpack.c.b16 %v10488, %v10487
        %v10500 = vpack.c.b16 %v10490, %v10489
        %v10501 = vpack.c.b16 %v10492, %v10491
        %v10502 = vpack.c.b16 %v10494, %v10493
        %10511 = vmatprep.subr.bf16.mxu0 0
        %10512 = vmatpush1.bf16.msra.mxu0 %v10495
        %10513 = vmatprep.subr.bf16.mxu0 0
        %10514 = vmatpush1.bf16.msra.mxu0 %v10496
        %10515 = vmatprep.subr.bf16.mxu0 0
        %10516 = vmatpush1.bf16.msra.mxu0 %v10497
        %10517 = vmatprep.subr.bf16.mxu0 0
        %10518 = vmatpush1.bf16.msra.mxu0 %v10498
        %10519 = vmatprep.subr.bf16.mxu0 0
        %10520 = vmatpush1.bf16.msra.mxu0 %v10499
        %10521 = vmatprep.subr.bf16.mxu0 0
        %10522 = vmatpush1.bf16.msra.mxu0 %v10500
        %10523 = vmatprep.subr.bf16.mxu0 0
        %10524 = vmatpush1.bf16.msra.mxu0 %v10501
        %10525 = vmatprep.subr.bf16.mxu0 0
        %10526 = vmatpush1.bf16.msra.mxu0 %v10502
        %10527 = vmatprep.subr.bf16.mxu0 0
        %10528 = vmatpush1.bf16.msra.mxu0 0
        %10529 = vmatprep.subr.bf16.mxu0 0
        %10530 = vmatpush1.bf16.msra.mxu0 0
        %10531 = vmatprep.subr.bf16.mxu0 0
        %10532 = vmatpush1.bf16.msra.mxu0 0
        %10533 = vmatprep.subr.bf16.mxu0 0
        %10534 = vmatpush1.bf16.msra.mxu0 0
        %10535 = vmatprep.subr.bf16.mxu0 0
        %10536 = vmatpush1.bf16.msra.mxu0 0
        %10537 = vmatprep.subr.bf16.mxu0 0
        %10538 = vmatpush1.bf16.msra.mxu0 0
        %10539 = vmatprep.subr.bf16.mxu0 0
        %10540 = vmatpush1.bf16.msra.mxu0 0
        %10541 = vmatprep.subr.bf16.mxu0 0
        %10542 = vmatpush1.bf16.msra.mxu0 0
        %10543 = vmatprep.mubr.bf16.mxu0 0
        %10544 = vmatmul.mubr.bf16.gmra.mrb[0].mxu0 %v10455
        %v10545 = vpop.f32.mrb[0].mxu0
        %v10546 = vadd.f32 %v10461, %v10545
        %v10547 = vpop.f32.mrb[0].mxu0
        %v10548 = vpop.f32.mrb[0].mxu0
        %v10549 = vpop.f32.mrb[0].mxu0
        %10550 = vdwg.mxu0
        %10551 = vst [vmem:[%s688] sm:$0x3] %v10546
        %s10552 = sand.u32 %s407, 1
        %s10553 = scalar_lea.sflag [#allocation4], %s10552
        %s10554 = sand.u32 %s407, 1
        %s10555 = smul.addr %s10554, 2
        %s10556 = scalar_lea.vmem [#allocation19], %s10555
        // Predicated region
        $region129: #{tpu_custom_call.1} parent=87 // pred_check
          %p10557 = pneg %p417
        $region130: #{tpu_custom_call.1} parent=87 // pred_check_branch
          %10559 = sbr.rel (%p10557) target = $region132
        $region131: #{tpu_custom_call.1} parent=87 // pred_region
          %s10561 = ssub.s32 32, 32
          %10562 = vsyncadd %s10553, %s10561
          %s10563 = smul.addr %s37, 32
          %s10564 = scalar_lea.hbm %s17, %s10563
          %s10566 = sshll.u32 %s10556, 4
          %s10567 = int_to_ptr.vmem [resolvable:$true] %s10566
          %10569 = dma.vmem_to_hbm [thread:$0]  %s10567, 32, %s10564, %s10553
        $region132: #{tpu_custom_call.1} parent=87 // pred_fallthru
          _
      $region88: #{tpu_custom_call.1} parent=5 // pred_fallthru
        _
      %p10570 = scmp.le.s32.totalorder 2, %s32
      // Predicated region
      $region133: #{tpu_custom_call.1} parent=5 // pred_check
        %p10571 = pneg %p10570
      $region134: #{tpu_custom_call.1} parent=5 // pred_check_branch
        %10573 = sbr.rel (%p10571) target = $region136
      $region135: #{tpu_custom_call.1} parent=5 // pred_region
        %s10574 = ssub.s32 %s32, 2
        // Predicated region
        $region137: #{tpu_custom_call.1} parent=135 // pred_check
          %p10575 = pneg %p423
        $region138: #{tpu_custom_call.1} parent=135 // pred_check_branch
          %10577 = sbr.rel (%p10575) target = $region140
        $region139: #{tpu_custom_call.1} parent=135 // pred_region
          %s10578 = sand.u32 %s408, 1
          %s10579 = scalar_lea.sflag [#allocation4], %s10578
          %s10580 = sand.u32 %s408, 1
          %s10581 = smul.addr %s10580, 2
          %s10582 = scalar_lea.vmem [#allocation19], %s10581
          %10583 = dma.done %s10579, 32
        $region140: #{tpu_custom_call.1} parent=135 // pred_fallthru
          _
      $region136: #{tpu_custom_call.1} parent=5 // pred_fallthru
        _
    $region6: #{tpu_custom_call.1} parent=1 // loop_footer
      %s36 = sadd.s32 1, %s32
    $region7: #{tpu_custom_call.1} parent=1 // loop_footer_branch
      %31 = sbr.rel target = $region3
    $region8: #{tpu_custom_call.1} parent=1 // loop_exit
      _
    %10584 = vsyncpa [#allocation3], 1
    %s10585 = scalar_lea.sflag [#allocation3], 1
    %10586 = vsyncpa %s10585, 1
    %10587 = vsyncpa [#allocation6], 1
    %10588 = vsyncpa [#allocation9], 1
    %10589 = vsyncpa [#allocation12], 1
    %10590 = vsyncpa [#allocation15], 1
    %10591 = vsyncpa [#allocation18], 1
    %10592 = vsyncpa [#allocation4], 1
    %s10593 = scalar_lea.sflag [#allocation4], 1
    %10594 = vsyncpa %s10593, 1

</llo_original>
